<compile_context>
chip_gen: v7x
topology: tpu7x:2x2x1
jax: 0.10.0
libtpu: 0.0.40
codegen_flags: <defaults>
</compile_context>

<pallas_src>
import functools
import math

import jax
import jax.numpy as jnp
from jax.experimental import pallas as pl
from jax.experimental.pallas import tpu as pltpu

LANE = 128      # lane width all packed params are padded to
SUBLANE = 8     # sublane alignment for packed-param row offsets


# ----------------------------------------------------------------------------
# Host-side parameter packing: one lane-dense (R, 128) slab + static layout.
# ----------------------------------------------------------------------------
def pack_params(params):
    leaves, treedef = jax.tree_util.tree_flatten(params)
    slabs, entries, offset = [], [], 0
    for leaf in leaves:
        r, c = leaf.shape
        assert c <= LANE, f"param wider than {LANE} lanes: {leaf.shape}"
        r_pad = -(-r // SUBLANE) * SUBLANE
        slab = jnp.zeros((r_pad, LANE), jnp.float32).at[:r, :c].set(
            leaf.astype(jnp.float32))
        slabs.append(slab)
        entries.append((offset, r, c))
        offset += r_pad
    packed = jnp.concatenate(slabs, axis=0)              # (R_total, 128)
    layout = jax.tree_util.tree_unflatten(treedef, entries)   # static Python tree
    return packed, layout


# ----------------------------------------------------------------------------
# In-kernel helpers (all traced inside the single fused Pallas kernel)
# ----------------------------------------------------------------------------
def _mm(a, b):
    return jnp.dot(a, b, preferred_element_type=jnp.float32)


def _get(p_ref, entry, full_lanes=False):
    off, r, c = entry
    if full_lanes:
        return p_ref[off:off + r, :]
    return p_ref[off:off + r, 0:c]


def _block_id(idx, block, n_blocks):
    """Integer-division-free floor(idx / block), valid for idx < n_blocks*block."""
    bid = jnp.zeros(idx.shape, jnp.int32)
    for m in range(1, n_blocks):
        bid = bid + (idx >= m * block).astype(jnp.int32)
    return bid


def _sel_matrix(target_of_row, rows, cols):
    """(rows, cols) 0/1 matrix with a single 1 per row (row gather via tiny MXU dot)."""
    r = jax.lax.broadcasted_iota(jnp.int32, (rows, cols), 0)
    c = jax.lax.broadcasted_iota(jnp.int32, (rows, cols), 1)
    return (c == target_of_row(r)).astype(jnp.float32)


def _layernorm(x, g, b, eps=1e-5):
    mu = jnp.mean(x, axis=-1, keepdims=True)
    var = jnp.mean((x - mu) ** 2, axis=-1, keepdims=True)
    return (x - mu) * jax.lax.rsqrt(var + eps) * g + b


def _circular_conv3(x, w_taps, bias=None):
    """Conv1d(kernel=3, padding=1, padding_mode='circular'), channel-last.

    w_taps: (Cin, 3*Cout) == [w[:,:,0].T | w[:,:,1].T | w[:,:,2].T]; ONE matmul,
    circular taps realised with XLU sublane rotations (pltpu.roll)."""
    L = x.shape[0]
    d = w_taps.shape[1] // 3
    xw = _mm(x, w_taps)                                        # (L, 3*Cout)
    y = (pltpu.roll(xw[:, 0:d], shift=1, axis=0)               # x[i-1] tap
         + xw[:, d:2 * d]                                      # x[i]   tap
         + pltpu.roll(xw[:, 2 * d:3 * d], shift=L - 1, axis=0))  # x[i+1] tap
    if bias is not None:
        y = y + bias
    return y


def _embed(p_ref, lay, x, x_mark):
    val = _circular_conv3(x, _get(p_ref, lay["tok_w"]))        # TokenEmbedding (no bias)
    temp = _mm(x_mark, _get(p_ref, lay["temp_w"]))             # timeF Linear (no bias)
    return val + temp + _get(p_ref, lay["pe"])                 # dropout p = 0


def _mha(p_ref, lay, q_src, kv_src, n_heads, causal):
    """Multi-head attention (== ProbAttention at these sizes), all heads in one
    score matmul / one softmax / one PV matmul."""
    d = q_src.shape[1]
    dh = d // n_heads
    w_qkv = _get(p_ref, lay["w_qkv"])
    b_qkv = _get(p_ref, lay["b_qkv"])
    w_o = _get(p_ref, lay["w_o"])
    b_o = _get(p_ref, lay["b_o"])

    if q_src is kv_src:                       # self-attn: single fused QKV matmul
        qkv = _mm(q_src, w_qkv) + b_qkv
        q, k, v = qkv[:, 0:d], qkv[:, d:2 * d], qkv[:, 2 * d:3 * d]
    else:                                     # cross-attn: Q + fused KV matmul
        q = _mm(q_src, w_qkv[:, 0:d]) + b_qkv[:, 0:d]
        kv = _mm(kv_src, w_qkv[:, d:3 * d]) + b_qkv[:, d:3 * d]
        k, v = kv[:, 0:d], kv[:, d:2 * d]

    lq, lk = q.shape[0], k.shape[0]
    rows = n_heads * lk
    scale = 1.0 / math.sqrt(dh)

    # "block-diagonal" K/V: row block h carries K/V masked to head-h lanes.
    r_i = jax.lax.broadcasted_iota(jnp.int32, (rows, d), 0)
    c_i = jax.lax.broadcasted_iota(jnp.int32, (rows, d), 1)
    hmask = (_block_id(r_i, lk, n_heads)
             == _block_id(c_i, dh, n_heads)).astype(jnp.float32)
    k_bd = jnp.concatenate([k] * n_heads, axis=0) * hmask      # (rows, d)
    v_bd = jnp.concatenate([v] * n_heads, axis=0) * hmask      # (rows, d)

    # One score matmul for every head: column block h == Q_h @ K_h^T.
    s = jax.lax.dot_general(q, k_bd, (((1,), (1,)), ((), ())),
                            preferred_element_type=jnp.float32) * scale
    if causal:
        row = jax.lax.broadcasted_iota(jnp.int32, (lq, rows), 0)
        col_blk = jnp.concatenate(
            [jax.lax.broadcasted_iota(jnp.int32, (lq, lk), 1)] * n_heads, axis=1)
        s = jnp.where(col_blk > row, -1e30, s)                 # finite mask -> no NaN

    # One softmax: the global row-max is a valid shift for every head block,
    # the per-block denominator comes from one block-diagonal-ones matmul.
    e = jnp.exp(s - jnp.max(s, axis=-1, keepdims=True))
    gr = jax.lax.broadcasted_iota(jnp.int32, (rows, rows), 0)
    gc = jax.lax.broadcasted_iota(jnp.int32, (rows, rows), 1)
    blk_ones = (_block_id(gr, lk, n_heads)
                == _block_id(gc, lk, n_heads)).astype(jnp.float32)
    denom = _mm(e, blk_ones)                                   # per-head block sums
    p_attn = e / denom                                         # exact divide (parity)

    ctx = _mm(p_attn, v_bd)                  # (lq, d): head h lands on its own lanes
    return _mm(ctx, w_o) + b_o


def _ffn(p_ref, lay, x):
    y = jnp.maximum(_mm(x, _get(p_ref, lay["ff1_w"])) + _get(p_ref, lay["ff1_b"]), 0.0)
    return _mm(y, _get(p_ref, lay["ff2_w"])) + _get(p_ref, lay["ff2_b"])


def _encoder_layer(p_ref, lay, x, n_heads):
    x = _layernorm(x + _mha(p_ref, lay["attn"], x, x, n_heads, causal=False),
                   _get(p_ref, lay["ln1_g"]), _get(p_ref, lay["ln1_b"]))
    return _layernorm(x + _ffn(p_ref, lay, x),
                      _get(p_ref, lay["ln2_g"]), _get(p_ref, lay["ln2_b"]))


def _distil_conv_layer(p_ref, lay, x):
    """ConvLayer: circular conv3 + BatchNorm1d(eval) + ELU + MaxPool1d(3, 2, 1)."""
    y = _circular_conv3(x, _get(p_ref, lay["cw"]), _get(p_ref, lay["conv_b"]))
    inv_std = 1.0 / math.sqrt(1.0 + 1e-5)                      # running_var = 1
    y = y * (_get(p_ref, lay["bn_g"]) * inv_std) + _get(p_ref, lay["bn_b"])
    y = jnp.where(y > 0.0, y, jnp.exp(jnp.minimum(y, 0.0)) - 1.0)   # ELU (safe exp)
    l_in = y.shape[0]
    l_out = (l_in - 1) // 2 + 1
    # maxpool(k=3, s=2, p=1): pooled[i] = max(y[2i-1], y[2i], y[2i+1]) (clamped)
    s_a = _sel_matrix(lambda r: jnp.clip(2 * r - 1, 0, l_in - 1), l_out, l_in)
    s_b = _sel_matrix(lambda r: 2 * r, l_out, l_in)
    s_c = _sel_matrix(lambda r: jnp.clip(2 * r + 1, 0, l_in - 1), l_out, l_in)
    return jnp.maximum(jnp.maximum(_mm(s_a, y), _mm(s_b, y)), _mm(s_c, y))


def _decoder_layer(p_ref, lay, x, cross, n_heads):
    x = _layernorm(x + _mha(p_ref, lay["self_attn"], x, x, n_heads, causal=True),
                   _get(p_ref, lay["ln1_g"]), _get(p_ref, lay["ln1_b"]))
    x = _layernorm(x + _mha(p_ref, lay["cross_attn"], x, cross, n_heads, causal=False),
                   _get(p_ref, lay["ln2_g"]), _get(p_ref, lay["ln2_b"]))
    return _layernorm(x + _ffn(p_ref, lay, x),
                      _get(p_ref, lay["ln3_g"]), _get(p_ref, lay["ln3_b"]))


# ----------------------------------------------------------------------------
# The single fused kernel: one grid step, the whole batch, end to end.
# ----------------------------------------------------------------------------
def _informer_kernel(x_enc_ref, x_me_ref, x_dec_ref, x_md_ref, p_ref, out_ref,
                     *, layout, n_heads, pred_len, batch, l_enc, l_dec):
    outs = []
    for b in range(batch):      # unrolled: independent chains interleave on one TC
        x_enc = x_enc_ref[b * l_enc:(b + 1) * l_enc, :]
        x_me = x_me_ref[b * l_enc:(b + 1) * l_enc, :]
        x_dec = x_dec_ref[b * l_dec:(b + 1) * l_dec, :]
        x_md = x_md_ref[b * l_dec:(b + 1) * l_dec, :]

        # ---- embeddings ----
        enc = _embed(p_ref, layout["enc_emb"], x_enc, x_me)
        dec = _embed(p_ref, layout["dec_emb"], x_dec, x_md)

        # ---- encoder (attention layers interleaved with distilling convs) ----
        n_enc = len(layout["enc_layers"])
        for li in range(n_enc - 1):
            enc = _encoder_layer(p_ref, layout["enc_layers"][li], enc, n_heads)
            enc = _distil_conv_layer(p_ref, layout["conv_layers"][li], enc)
        enc = _encoder_layer(p_ref, layout["enc_layers"][-1], enc, n_heads)
        enc = _layernorm(enc, _get(p_ref, layout["enc_norm_g"]),
                         _get(p_ref, layout["enc_norm_b"]))

        # ---- decoder ----
        for lay in layout["dec_layers"]:
            dec = _decoder_layer(p_ref, lay, dec, enc, n_heads)
        dec = _layernorm(dec, _get(p_ref, layout["dec_norm_g"]),
                         _get(p_ref, layout["dec_norm_b"]))

        # ---- projection on the last pred_len steps (static sublane slice) ----
        tail = dec[l_dec - pred_len:, :]                       # (pred_len, d_model)
        out = (_mm(tail, _get(p_ref, layout["proj_w"], full_lanes=True))
               + _get(p_ref, layout["proj_b"], full_lanes=True))   # (pred_len, 128)
        outs.append(out)

    out_ref[...] = jnp.concatenate(outs, axis=0).astype(out_ref.dtype)


# ----------------------------------------------------------------------------
# Wrapper: one pallas_call, one grid step, lane-dense param/output transfers.
# ----------------------------------------------------------------------------
def informer_forward(packed, layout, cfg, x_enc, x_mark_enc, x_dec, x_mark_dec):
    B, l_enc, _ = x_enc.shape
    l_dec = x_dec.shape[1]
    pred_len, c_out, n_heads = cfg["pred_len"], cfg["c_out"], cfg["n_heads"]

    args = (x_enc.reshape(B * l_enc, -1),
            x_mark_enc.reshape(B * l_enc, -1),
            x_dec.reshape(B * l_dec, -1),
            x_mark_dec.reshape(B * l_dec, -1),
            packed)

    kernel = functools.partial(
        _informer_kernel, layout=layout, n_heads=n_heads, pred_len=pred_len,
        batch=B, l_enc=l_enc, l_dec=l_dec)

    flat = pl.pallas_call(
        kernel,
        out_shape=jax.ShapeDtypeStruct((B * pred_len, LANE), jnp.float32),
        grid=(1,),
        in_specs=[pl.BlockSpec(a.shape, lambda i: (0, 0)) for a in args],
        out_specs=pl.BlockSpec((B * pred_len, LANE), lambda i: (0, 0)),
        compiler_params=pltpu.CompilerParams(dimension_semantics=("arbitrary",)),
    )(*args)
    return flat[:, :c_out].reshape(B, pred_len, c_out)


# ----------------------------------------------------------------------------
# Deterministic parameter init (shapes follow the PyTorch module __init__;
# fused layouts: w_qkv = [Wq.T|Wk.T|Wv.T], conv taps = [w0.T|w1.T|w2.T]).
# ----------------------------------------------------------------------------
def positional_embedding(L, d_model):
    pos = jnp.arange(L, dtype=jnp.float32)[:, None]
    div = jnp.exp(jnp.arange(0, d_model, 2, dtype=jnp.float32)
                  * (-math.log(10000.0) / d_model))
    pe = jnp.zeros((L, d_model), jnp.float32)
    pe = pe.at[:, 0::2].set(jnp.sin(pos * div))
    pe = pe.at[:, 1::2].set(jnp.cos(pos * div))
    return pe


def init_params(key, cfg):
    d, dff, mark = cfg["d_model"], cfg["d_ff"], cfg["mark_in"]
    enc_in, dec_in, c_out = cfg["enc_in"], cfg["dec_in"], cfg["c_out"]
    l_enc = cfg["seq_len"]
    l_dec = cfg["label_len"] + cfg["pred_len"]
    keys = iter(jax.random.split(key, 128))

    def nrm(shape, scale=0.1):
        return jax.random.normal(next(keys), shape, jnp.float32) * scale

    ones = lambda s: jnp.ones(s, jnp.float32)
    zeros = lambda s: jnp.zeros(s, jnp.float32)

    def attn_p():
        return dict(w_qkv=nrm((d, 3 * d)), b_qkv=nrm((1, 3 * d)),
                    w_o=nrm((d, d)), b_o=nrm((1, d)))

    def enc_layer_p():
        return dict(attn=attn_p(),
                    ff1_w=nrm((d, dff)), ff1_b=nrm((1, dff)),
                    ff2_w=nrm((dff, d)), ff2_b=nrm((1, d)),
                    ln1_g=ones((1, d)), ln1_b=zeros((1, d)),
                    ln2_g=ones((1, d)), ln2_b=zeros((1, d)))

    def dec_layer_p():
        return dict(self_attn=attn_p(), cross_attn=attn_p(),
                    ff1_w=nrm((d, dff)), ff1_b=nrm((1, dff)),
                    ff2_w=nrm((dff, d)), ff2_b=nrm((1, d)),
                    ln1_g=ones((1, d)), ln1_b=zeros((1, d)),
                    ln2_g=ones((1, d)), ln2_b=zeros((1, d)),
                    ln3_g=ones((1, d)), ln3_b=zeros((1, d)))

    def conv_layer_p():
        return dict(cw=nrm((d, 3 * d)), conv_b=nrm((1, d)),
                    bn_g=ones((1, d)), bn_b=zeros((1, d)))

    def emb_p(c_in, length):
        return dict(tok_w=nrm((c_in, 3 * d)), temp_w=nrm((mark, d)),
                    pe=positional_embedding(length, d))

    return dict(
        enc_emb=emb_p(enc_in, l_enc),
        dec_emb=emb_p(dec_in, l_dec),
        enc_layers=[enc_layer_p() for _ in range(cfg["e_layers"])],
        conv_layers=[conv_layer_p() for _ in range(cfg["e_layers"] - 1)],
        enc_norm_g=ones((1, d)), enc_norm_b=zeros((1, d)),
        dec_layers=[dec_layer_p() for _ in range(cfg["d_layers"])],
        dec_norm_g=ones((1, d)), dec_norm_b=zeros((1, d)),
        proj_w=nrm((d, c_out)), proj_b=nrm((1, c_out)),
    )


# ----------------------------------------------------------------------------
if __name__ == "__main__":
    cfg = dict(
        enc_in=7, dec_in=7, c_out=7, mark_in=4,     # 'timeF', freq='h' -> 4 features
        d_model=32, n_heads=4, d_ff=64,
        e_layers=2, d_layers=1,
        seq_len=8, label_len=4, pred_len=4,
        factor=5,                                    # -> ProbSparse == full attention
    )

    key = jax.random.PRNGKey(0)
    kp, k1, k2, k3, k4 = jax.random.split(key, 5)
    params = init_params(kp, cfg)
    packed, layout = pack_params(params)

    B = 2
    l_dec = cfg["label_len"] + cfg["pred_len"]
    x_enc = jax.random.normal(k1, (B, cfg["seq_len"], cfg["enc_in"]), jnp.float32)
    x_mark_enc = jax.random.normal(k2, (B, cfg["seq_len"], cfg["mark_in"]), jnp.float32)
    x_dec = jax.random.normal(k3, (B, l_dec, cfg["dec_in"]), jnp.float32)
    x_mark_dec = jax.random.normal(k4, (B, l_dec, cfg["mark_in"]), jnp.float32)

    @jax.jit
    def run(pk, a, b, c, d):
        return informer_forward(pk, layout, cfg, a, b, c, d)

    out = jax.block_until_ready(run(packed, x_enc, x_mark_enc, x_dec, x_mark_dec))

    assert out.shape == (B, cfg["pred_len"], cfg["c_out"]), out.shape
    assert bool(jnp.all(jnp.isfinite(out)))
    print("KERNEL_OK")
</pallas_src>

<mosaic_0001>
module attributes {stable_mosaic.version = 11 : i64} {
  func.func @_informer_kernel(%arg0: i32, %arg1: memref<16x7xf32, #tpu.memory_space<vmem>>, %arg2: memref<16x4xf32, #tpu.memory_space<vmem>>, %arg3: memref<16x7xf32, #tpu.memory_space<vmem>>, %arg4: memref<16x4xf32, #tpu.memory_space<vmem>>, %arg5: memref<944x128xf32, #tpu.memory_space<vmem>>, %arg6: memref<8x128xf32, #tpu.memory_space<vmem>>) attributes {dimension_semantics = [#tpu.dimension_semantics<arbitrary>], iteration_bounds = array<i64: 1>, scalar_prefetch = 0 : i64, scratch_operands = 0 : i64, tpu.core_type = #tpu.core_type<tc>, window_params = [{pipeline_mode = #tpu.pipeline_mode<synchronous>, transform_indices = @transform_0, window_bounds = array<i64: 16, 7>}, {pipeline_mode = #tpu.pipeline_mode<synchronous>, transform_indices = @transform_1, window_bounds = array<i64: 16, 4>}, {pipeline_mode = #tpu.pipeline_mode<synchronous>, transform_indices = @transform_2, window_bounds = array<i64: 16, 7>}, {pipeline_mode = #tpu.pipeline_mode<synchronous>, transform_indices = @transform_3, window_bounds = array<i64: 16, 4>}, {pipeline_mode = #tpu.pipeline_mode<synchronous>, transform_indices = @transform_4, window_bounds = array<i64: 944, 128>}, {pipeline_mode = #tpu.pipeline_mode<synchronous>, transform_indices = @transform_5, window_bounds = array<i64: 8, 128>}]} {
    %c0 = arith.constant 0 : index
    %c0_0 = arith.constant 0 : index
    %0 = vector.load %arg1[%c0, %c0_0] : memref<16x7xf32, #tpu.memory_space<vmem>>, vector<8x7xf32>
    %c0_1 = arith.constant 0 : index
    %c0_2 = arith.constant 0 : index
    %1 = vector.load %arg2[%c0_1, %c0_2] : memref<16x4xf32, #tpu.memory_space<vmem>>, vector<8x4xf32>
    %c0_3 = arith.constant 0 : index
    %c0_4 = arith.constant 0 : index
    %2 = vector.load %arg3[%c0_3, %c0_4] : memref<16x7xf32, #tpu.memory_space<vmem>>, vector<8x7xf32>
    %c0_5 = arith.constant 0 : index
    %c0_6 = arith.constant 0 : index
    %3 = vector.load %arg4[%c0_5, %c0_6] : memref<16x4xf32, #tpu.memory_space<vmem>>, vector<8x4xf32>
    %c432 = arith.constant 432 : index
    %c0_7 = arith.constant 0 : index
    %4 = vector.load %arg5[%c432, %c0_7] : memref<944x128xf32, #tpu.memory_space<vmem>>, vector<7x96xf32>
    %cst = arith.constant dense<0.000000e+00> : vector<8x96xf32>
    %5 = tpu.matmul %0, %4, %cst {dimension_numbers = #tpu.dot_dimension_numbers<[1], [0], [0], [1], [0, 0, 1, 1], [], []>} : vector<8x7xf32>, vector<7x96xf32>, vector<8x96xf32> -> vector<8x96xf32>
    %6 = vector.extract_strided_slice %5 {offsets = [0, 0], sizes = [8, 32], strides = [1, 1]} : vector<8x96xf32> to vector<8x32xf32>
    %c1_i32 = arith.constant 1 : i32
    %7 = tpu.dynamic_rotate %6 by %c1_i32 dim 0 : vector<8x32xf32>, i32 -> vector<8x32xf32>
    %8 = vector.extract_strided_slice %5 {offsets = [0, 32], sizes = [8, 32], strides = [1, 1]} : vector<8x96xf32> to vector<8x32xf32>
    %9 = arith.addf %7, %8 : vector<8x32xf32>
    %10 = vector.extract_strided_slice %5 {offsets = [0, 64], sizes = [8, 32], strides = [1, 1]} : vector<8x96xf32> to vector<8x32xf32>
    %c7_i32 = arith.constant 7 : i32
    %11 = tpu.dynamic_rotate %10 by %c7_i32 dim 0 : vector<8x32xf32>, i32 -> vector<8x32xf32>
    %12 = arith.addf %9, %11 : vector<8x32xf32>
    %c424 = arith.constant 424 : index
    %c0_8 = arith.constant 0 : index
    %13 = vector.load %arg5[%c424, %c0_8] : memref<944x128xf32, #tpu.memory_space<vmem>>, vector<4x32xf32>
    %cst_9 = arith.constant dense<0.000000e+00> : vector<8x32xf32>
    %14 = tpu.matmul %1, %13, %cst_9 {dimension_numbers = #tpu.dot_dimension_numbers<[1], [0], [0], [1], [0, 0, 1, 1], [], []>} : vector<8x4xf32>, vector<4x32xf32>, vector<8x32xf32> -> vector<8x32xf32>
    %15 = arith.addf %12, %14 : vector<8x32xf32>
    %c416 = arith.constant 416 : index
    %c0_10 = arith.constant 0 : index
    %16 = vector.load %arg5[%c416, %c0_10] : memref<944x128xf32, #tpu.memory_space<vmem>>, vector<8x32xf32>
    %17 = arith.addf %15, %16 : vector<8x32xf32>
    %c72 = arith.constant 72 : index
    %c0_11 = arith.constant 0 : index
    %18 = vector.load %arg5[%c72, %c0_11] : memref<944x128xf32, #tpu.memory_space<vmem>>, vector<7x96xf32>
    %cst_12 = arith.constant dense<0.000000e+00> : vector<8x96xf32>
    %19 = tpu.matmul %2, %18, %cst_12 {dimension_numbers = #tpu.dot_dimension_numbers<[1], [0], [0], [1], [0, 0, 1, 1], [], []>} : vector<8x7xf32>, vector<7x96xf32>, vector<8x96xf32> -> vector<8x96xf32>
    %20 = vector.extract_strided_slice %19 {offsets = [0, 0], sizes = [8, 32], strides = [1, 1]} : vector<8x96xf32> to vector<8x32xf32>
    %c1_i32_13 = arith.constant 1 : i32
    %21 = tpu.dynamic_rotate %20 by %c1_i32_13 dim 0 : vector<8x32xf32>, i32 -> vector<8x32xf32>
    %22 = vector.extract_strided_slice %19 {offsets = [0, 32], sizes = [8, 32], strides = [1, 1]} : vector<8x96xf32> to vector<8x32xf32>
    %23 = arith.addf %21, %22 : vector<8x32xf32>
    %24 = vector.extract_strided_slice %19 {offsets = [0, 64], sizes = [8, 32], strides = [1, 1]} : vector<8x96xf32> to vector<8x32xf32>
    %c7_i32_14 = arith.constant 7 : i32
    %25 = tpu.dynamic_rotate %24 by %c7_i32_14 dim 0 : vector<8x32xf32>, i32 -> vector<8x32xf32>
    %26 = arith.addf %23, %25 : vector<8x32xf32>
    %c64 = arith.constant 64 : index
    %c0_15 = arith.constant 0 : index
    %27 = vector.load %arg5[%c64, %c0_15] : memref<944x128xf32, #tpu.memory_space<vmem>>, vector<4x32xf32>
    %cst_16 = arith.constant dense<0.000000e+00> : vector<8x32xf32>
    %28 = tpu.matmul %3, %27, %cst_16 {dimension_numbers = #tpu.dot_dimension_numbers<[1], [0], [0], [1], [0, 0, 1, 1], [], []>} : vector<8x4xf32>, vector<4x32xf32>, vector<8x32xf32> -> vector<8x32xf32>
    %29 = arith.addf %26, %28 : vector<8x32xf32>
    %c56 = arith.constant 56 : index
    %c0_17 = arith.constant 0 : index
    %30 = vector.load %arg5[%c56, %c0_17] : memref<944x128xf32, #tpu.memory_space<vmem>>, vector<8x32xf32>
    %31 = arith.addf %29, %30 : vector<8x32xf32>
    %c488 = arith.constant 488 : index
    %c0_18 = arith.constant 0 : index
    %32 = vector.load %arg5[%c488, %c0_18] : memref<944x128xf32, #tpu.memory_space<vmem>>, vector<32x96xf32>
    %c448 = arith.constant 448 : index
    %c0_19 = arith.constant 0 : index
    %33 = vector.load %arg5[%c448, %c0_19] : memref<944x128xf32, #tpu.memory_space<vmem>>, vector<1x96xf32>
    %c456 = arith.constant 456 : index
    %c0_20 = arith.constant 0 : index
    %34 = vector.load %arg5[%c456, %c0_20] : memref<944x128xf32, #tpu.memory_space<vmem>>, vector<32x32xf32>
    %c440 = arith.constant 440 : index
    %c0_21 = arith.constant 0 : index
    %35 = vector.load %arg5[%c440, %c0_21] : memref<944x128xf32, #tpu.memory_space<vmem>>, vector<1x32xf32>
    %cst_22 = arith.constant dense<0.000000e+00> : vector<8x96xf32>
    %36 = tpu.matmul %17, %32, %cst_22 {dimension_numbers = #tpu.dot_dimension_numbers<[1], [0], [0], [1], [0, 0, 1, 1], [], []>} : vector<8x32xf32>, vector<32x96xf32>, vector<8x96xf32> -> vector<8x96xf32>
    %37 = vector.broadcast %33 : vector<1x96xf32> to vector<8x96xf32>
    %38 = arith.addf %36, %37 : vector<8x96xf32>
    %39 = vector.extract_strided_slice %38 {offsets = [0, 0], sizes = [8, 32], strides = [1, 1]} : vector<8x96xf32> to vector<8x32xf32>
    %40 = vector.extract_strided_slice %38 {offsets = [0, 32], sizes = [8, 32], strides = [1, 1]} : vector<8x96xf32> to vector<8x32xf32>
    %41 = vector.extract_strided_slice %38 {offsets = [0, 64], sizes = [8, 32], strides = [1, 1]} : vector<8x96xf32> to vector<8x32xf32>
    %42 = tpu.iota {dimensions = array<i32: 0>} : vector<32x32xi32>
    %43 = tpu.iota {dimensions = array<i32: 1>} : vector<32x32xi32>
    %c0_i32 = arith.constant 0 : i32
    %44 = vector.broadcast %c0_i32 : i32 to vector<32x32xi32>
    %c8_i32 = arith.constant 8 : i32
    %45 = vector.broadcast %c8_i32 : i32 to vector<32x32xi32>
    %46 = arith.cmpi sge, %42, %45 : vector<32x32xi32>
    %47 = arith.extui %46 : vector<32x32xi1> to vector<32x32xi32>
    %48 = arith.addi %44, %47 : vector<32x32xi32>
    %c16_i32 = arith.constant 16 : i32
    %49 = vector.broadcast %c16_i32 : i32 to vector<32x32xi32>
    %50 = arith.cmpi sge, %42, %49 : vector<32x32xi32>
    %51 = arith.extui %50 : vector<32x32xi1> to vector<32x32xi32>
    %52 = arith.addi %48, %51 : vector<32x32xi32>
    %c24_i32 = arith.constant 24 : i32
    %53 = vector.broadcast %c24_i32 : i32 to vector<32x32xi32>
    %54 = arith.cmpi sge, %42, %53 : vector<32x32xi32>
    %55 = arith.extui %54 : vector<32x32xi1> to vector<32x32xi32>
    %56 = arith.addi %52, %55 : vector<32x32xi32>
    %c0_i32_23 = arith.constant 0 : i32
    %57 = vector.broadcast %c0_i32_23 : i32 to vector<32x32xi32>
    %c8_i32_24 = arith.constant 8 : i32
    %58 = vector.broadcast %c8_i32_24 : i32 to vector<32x32xi32>
    %59 = arith.cmpi sge, %43, %58 : vector<32x32xi32>
    %60 = arith.extui %59 : vector<32x32xi1> to vector<32x32xi32>
    %61 = arith.addi %57, %60 : vector<32x32xi32>
    %c16_i32_25 = arith.constant 16 : i32
    %62 = vector.broadcast %c16_i32_25 : i32 to vector<32x32xi32>
    %63 = arith.cmpi sge, %43, %62 : vector<32x32xi32>
    %64 = arith.extui %63 : vector<32x32xi1> to vector<32x32xi32>
    %65 = arith.addi %61, %64 : vector<32x32xi32>
    %c24_i32_26 = arith.constant 24 : i32
    %66 = vector.broadcast %c24_i32_26 : i32 to vector<32x32xi32>
    %67 = arith.cmpi sge, %43, %66 : vector<32x32xi32>
    %68 = arith.extui %67 : vector<32x32xi1> to vector<32x32xi32>
    %69 = arith.addi %65, %68 : vector<32x32xi32>
    %70 = arith.cmpi eq, %56, %69 : vector<32x32xi32>
    %71 = arith.extui %70 : vector<32x32xi1> to vector<32x32xi32>
    %72 = arith.sitofp %71 : vector<32x32xi32> to vector<32x32xf32>
    %73 = tpu.concatenate %40, %40, %40, %40 in 0 : vector<8x32xf32>, vector<8x32xf32>, vector<8x32xf32>, vector<8x32xf32> -> vector<32x32xf32>
    %74 = arith.mulf %73, %72 : vector<32x32xf32>
    %75 = tpu.concatenate %41, %41, %41, %41 in 0 : vector<8x32xf32>, vector<8x32xf32>, vector<8x32xf32>, vector<8x32xf32> -> vector<32x32xf32>
    %76 = arith.mulf %75, %72 : vector<32x32xf32>
    %cst_27 = arith.constant dense<0.000000e+00> : vector<8x32xf32>
    %77 = tpu.matmul %39, %74, %cst_27 {dimension_numbers = #tpu.dot_dimension_numbers<[1], [1], [0], [0], [0, 0, 1, 0], [], []>} : vector<8x32xf32>, vector<32x32xf32>, vector<8x32xf32> -> vector<8x32xf32>
    %cst_28 = arith.constant 0.353553385 : f32
    %78 = vector.broadcast %cst_28 : f32 to vector<8x32xf32>
    %79 = arith.mulf %77, %78 : vector<8x32xf32>
    %cst_29 = arith.constant dense<0xFF800000> : vector<8xf32>
    %80 = vector.multi_reduction <maximumf>, %79, %cst_29 [1] : vector<8x32xf32> to vector<8xf32>
    %81 = vector.shape_cast %80 : vector<8xf32> to vector<8x1xf32>
    %82 = vector.broadcast %81 : vector<8x1xf32> to vector<8x32xf32>
    %83 = arith.subf %79, %82 : vector<8x32xf32>
    %84 = math.exp %83 : vector<8x32xf32>
    %85 = tpu.iota {dimensions = array<i32: 0>} : vector<32x32xi32>
    %86 = tpu.iota {dimensions = array<i32: 1>} : vector<32x32xi32>
    %c0_i32_30 = arith.constant 0 : i32
    %87 = vector.broadcast %c0_i32_30 : i32 to vector<32x32xi32>
    %c8_i32_31 = arith.constant 8 : i32
    %88 = vector.broadcast %c8_i32_31 : i32 to vector<32x32xi32>
    %89 = arith.cmpi sge, %85, %88 : vector<32x32xi32>
    %90 = arith.extui %89 : vector<32x32xi1> to vector<32x32xi32>
    %91 = arith.addi %87, %90 : vector<32x32xi32>
    %c16_i32_32 = arith.constant 16 : i32
    %92 = vector.broadcast %c16_i32_32 : i32 to vector<32x32xi32>
    %93 = arith.cmpi sge, %85, %92 : vector<32x32xi32>
    %94 = arith.extui %93 : vector<32x32xi1> to vector<32x32xi32>
    %95 = arith.addi %91, %94 : vector<32x32xi32>
    %c24_i32_33 = arith.constant 24 : i32
    %96 = vector.broadcast %c24_i32_33 : i32 to vector<32x32xi32>
    %97 = arith.cmpi sge, %85, %96 : vector<32x32xi32>
    %98 = arith.extui %97 : vector<32x32xi1> to vector<32x32xi32>
    %99 = arith.addi %95, %98 : vector<32x32xi32>
    %c0_i32_34 = arith.constant 0 : i32
    %100 = vector.broadcast %c0_i32_34 : i32 to vector<32x32xi32>
    %c8_i32_35 = arith.constant 8 : i32
    %101 = vector.broadcast %c8_i32_35 : i32 to vector<32x32xi32>
    %102 = arith.cmpi sge, %86, %101 : vector<32x32xi32>
    %103 = arith.extui %102 : vector<32x32xi1> to vector<32x32xi32>
    %104 = arith.addi %100, %103 : vector<32x32xi32>
    %c16_i32_36 = arith.constant 16 : i32
    %105 = vector.broadcast %c16_i32_36 : i32 to vector<32x32xi32>
    %106 = arith.cmpi sge, %86, %105 : vector<32x32xi32>
    %107 = arith.extui %106 : vector<32x32xi1> to vector<32x32xi32>
    %108 = arith.addi %104, %107 : vector<32x32xi32>
    %c24_i32_37 = arith.constant 24 : i32
    %109 = vector.broadcast %c24_i32_37 : i32 to vector<32x32xi32>
    %110 = arith.cmpi sge, %86, %109 : vector<32x32xi32>
    %111 = arith.extui %110 : vector<32x32xi1> to vector<32x32xi32>
    %112 = arith.addi %108, %111 : vector<32x32xi32>
    %113 = arith.cmpi eq, %99, %112 : vector<32x32xi32>
    %114 = arith.extui %113 : vector<32x32xi1> to vector<32x32xi32>
    %115 = arith.sitofp %114 : vector<32x32xi32> to vector<32x32xf32>
    %cst_38 = arith.constant dense<0.000000e+00> : vector<8x32xf32>
    %116 = tpu.matmul %84, %115, %cst_38 {dimension_numbers = #tpu.dot_dimension_numbers<[1], [0], [0], [1], [0, 0, 1, 1], [], []>} : vector<8x32xf32>, vector<32x32xf32>, vector<8x32xf32> -> vector<8x32xf32>
    %117 = arith.divf %84, %116 : vector<8x32xf32>
    %cst_39 = arith.constant dense<0.000000e+00> : vector<8x32xf32>
    %118 = tpu.matmul %117, %76, %cst_39 {dimension_numbers = #tpu.dot_dimension_numbers<[1], [0], [0], [1], [0, 0, 1, 1], [], []>} : vector<8x32xf32>, vector<32x32xf32>, vector<8x32xf32> -> vector<8x32xf32>
    %cst_40 = arith.constant dense<0.000000e+00> : vector<8x32xf32>
    %119 = tpu.matmul %118, %34, %cst_40 {dimension_numbers = #tpu.dot_dimension_numbers<[1], [0], [0], [1], [0, 0, 1, 1], [], []>} : vector<8x32xf32>, vector<32x32xf32>, vector<8x32xf32> -> vector<8x32xf32>
    %120 = vector.broadcast %35 : vector<1x32xf32> to vector<8x32xf32>
    %121 = arith.addf %119, %120 : vector<8x32xf32>
    %122 = arith.addf %17, %121 : vector<8x32xf32>
    %c640 = arith.constant 640 : index
    %c0_41 = arith.constant 0 : index
    %123 = vector.load %arg5[%c640, %c0_41] : memref<944x128xf32, #tpu.memory_space<vmem>>, vector<1x32xf32>
    %c632 = arith.constant 632 : index
    %c0_42 = arith.constant 0 : index
    %124 = vector.load %arg5[%c632, %c0_42] : memref<944x128xf32, #tpu.memory_space<vmem>>, vector<1x32xf32>
    %cst_43 = arith.constant dense<0.000000e+00> : vector<8xf32>
    %125 = vector.multi_reduction <add>, %122, %cst_43 [1] : vector<8x32xf32> to vector<8xf32>
    %126 = vector.shape_cast %125 : vector<8xf32> to vector<8x1xf32>
    %cst_44 = arith.constant 3.200000e+01 : f32
    %127 = vector.broadcast %cst_44 : f32 to vector<8x1xf32>
    %128 = arith.divf %126, %127 : vector<8x1xf32>
    %129 = vector.broadcast %128 : vector<8x1xf32> to vector<8x32xf32>
    %130 = arith.subf %122, %129 : vector<8x32xf32>
    %131 = arith.mulf %130, %130 : vector<8x32xf32>
    %cst_45 = arith.constant dense<0.000000e+00> : vector<8xf32>
    %132 = vector.multi_reduction <add>, %131, %cst_45 [1] : vector<8x32xf32> to vector<8xf32>
    %133 = vector.shape_cast %132 : vector<8xf32> to vector<8x1xf32>
    %cst_46 = arith.constant 3.200000e+01 : f32
    %134 = vector.broadcast %cst_46 : f32 to vector<8x1xf32>
    %135 = arith.divf %133, %134 : vector<8x1xf32>
    %136 = vector.broadcast %128 : vector<8x1xf32> to vector<8x32xf32>
    %137 = arith.subf %122, %136 : vector<8x32xf32>
    %cst_47 = arith.constant 9.99999974E-6 : f32
    %138 = vector.broadcast %cst_47 : f32 to vector<8x1xf32>
    %139 = arith.addf %135, %138 : vector<8x1xf32>
    %140 = math.rsqrt %139 : vector<8x1xf32>
    %141 = vector.broadcast %140 : vector<8x1xf32> to vector<8x32xf32>
    %142 = arith.mulf %137, %141 : vector<8x32xf32>
    %143 = vector.broadcast %123 : vector<1x32xf32> to vector<8x32xf32>
    %144 = arith.mulf %142, %143 : vector<8x32xf32>
    %145 = vector.broadcast %124 : vector<1x32xf32> to vector<8x32xf32>
    %146 = arith.addf %144, %145 : vector<8x32xf32>
    %c528 = arith.constant 528 : index
    %c0_48 = arith.constant 0 : index
    %147 = vector.load %arg5[%c528, %c0_48] : memref<944x128xf32, #tpu.memory_space<vmem>>, vector<32x64xf32>
    %cst_49 = arith.constant dense<0.000000e+00> : vector<8x64xf32>
    %148 = tpu.matmul %146, %147, %cst_49 {dimension_numbers = #tpu.dot_dimension_numbers<[1], [0], [0], [1], [0, 0, 1, 1], [], []>} : vector<8x32xf32>, vector<32x64xf32>, vector<8x64xf32> -> vector<8x64xf32>
    %c520 = arith.constant 520 : index
    %c0_50 = arith.constant 0 : index
    %149 = vector.load %arg5[%c520, %c0_50] : memref<944x128xf32, #tpu.memory_space<vmem>>, vector<1x64xf32>
    %150 = vector.broadcast %149 : vector<1x64xf32> to vector<8x64xf32>
    %151 = arith.addf %148, %150 : vector<8x64xf32>
    %cst_51 = arith.constant 0.000000e+00 : f32
    %152 = vector.broadcast %cst_51 : f32 to vector<8x64xf32>
    %153 = arith.maximumf %151, %152 : vector<8x64xf32>
    %c568 = arith.constant 568 : index
    %c0_52 = arith.constant 0 : index
    %154 = vector.load %arg5[%c568, %c0_52] : memref<944x128xf32, #tpu.memory_space<vmem>>, vector<64x32xf32>
    %cst_53 = arith.constant dense<0.000000e+00> : vector<8x32xf32>
    %155 = tpu.matmul %153, %154, %cst_53 {dimension_numbers = #tpu.dot_dimension_numbers<[1], [0], [0], [1], [0, 0, 1, 1], [], []>} : vector<8x64xf32>, vector<64x32xf32>, vector<8x32xf32> -> vector<8x32xf32>
    %c560 = arith.constant 560 : index
    %c0_54 = arith.constant 0 : index
    %156 = vector.load %arg5[%c560, %c0_54] : memref<944x128xf32, #tpu.memory_space<vmem>>, vector<1x32xf32>
    %157 = vector.broadcast %156 : vector<1x32xf32> to vector<8x32xf32>
    %158 = arith.addf %155, %157 : vector<8x32xf32>
    %159 = arith.addf %146, %158 : vector<8x32xf32>
    %c656 = arith.constant 656 : index
    %c0_55 = arith.constant 0 : index
    %160 = vector.load %arg5[%c656, %c0_55] : memref<944x128xf32, #tpu.memory_space<vmem>>, vector<1x32xf32>
    %c648 = arith.constant 648 : index
    %c0_56 = arith.constant 0 : index
    %161 = vector.load %arg5[%c648, %c0_56] : memref<944x128xf32, #tpu.memory_space<vmem>>, vector<1x32xf32>
    %cst_57 = arith.constant dense<0.000000e+00> : vector<8xf32>
    %162 = vector.multi_reduction <add>, %159, %cst_57 [1] : vector<8x32xf32> to vector<8xf32>
    %163 = vector.shape_cast %162 : vector<8xf32> to vector<8x1xf32>
    %cst_58 = arith.constant 3.200000e+01 : f32
    %164 = vector.broadcast %cst_58 : f32 to vector<8x1xf32>
    %165 = arith.divf %163, %164 : vector<8x1xf32>
    %166 = vector.broadcast %165 : vector<8x1xf32> to vector<8x32xf32>
    %167 = arith.subf %159, %166 : vector<8x32xf32>
    %168 = arith.mulf %167, %167 : vector<8x32xf32>
    %cst_59 = arith.constant dense<0.000000e+00> : vector<8xf32>
    %169 = vector.multi_reduction <add>, %168, %cst_59 [1] : vector<8x32xf32> to vector<8xf32>
    %170 = vector.shape_cast %169 : vector<8xf32> to vector<8x1xf32>
    %cst_60 = arith.constant 3.200000e+01 : f32
    %171 = vector.broadcast %cst_60 : f32 to vector<8x1xf32>
    %172 = arith.divf %170, %171 : vector<8x1xf32>
    %173 = vector.broadcast %165 : vector<8x1xf32> to vector<8x32xf32>
    %174 = arith.subf %159, %173 : vector<8x32xf32>
    %cst_61 = arith.constant 9.99999974E-6 : f32
    %175 = vector.broadcast %cst_61 : f32 to vector<8x1xf32>
    %176 = arith.addf %172, %175 : vector<8x1xf32>
    %177 = math.rsqrt %176 : vector<8x1xf32>
    %178 = vector.broadcast %177 : vector<8x1xf32> to vector<8x32xf32>
    %179 = arith.mulf %174, %178 : vector<8x32xf32>
    %180 = vector.broadcast %160 : vector<1x32xf32> to vector<8x32xf32>
    %181 = arith.mulf %179, %180 : vector<8x32xf32>
    %182 = vector.broadcast %161 : vector<1x32xf32> to vector<8x32xf32>
    %183 = arith.addf %181, %182 : vector<8x32xf32>
    %c24 = arith.constant 24 : index
    %c0_62 = arith.constant 0 : index
    %184 = vector.load %arg5[%c24, %c0_62] : memref<944x128xf32, #tpu.memory_space<vmem>>, vector<32x96xf32>
    %c16 = arith.constant 16 : index
    %c0_63 = arith.constant 0 : index
    %185 = vector.load %arg5[%c16, %c0_63] : memref<944x128xf32, #tpu.memory_space<vmem>>, vector<1x32xf32>
    %cst_64 = arith.constant dense<0.000000e+00> : vector<8x96xf32>
    %186 = tpu.matmul %183, %184, %cst_64 {dimension_numbers = #tpu.dot_dimension_numbers<[1], [0], [0], [1], [0, 0, 1, 1], [], []>} : vector<8x32xf32>, vector<32x96xf32>, vector<8x96xf32> -> vector<8x96xf32>
    %187 = vector.extract_strided_slice %186 {offsets = [0, 0], sizes = [8, 32], strides = [1, 1]} : vector<8x96xf32> to vector<8x32xf32>
    %c1_i32_65 = arith.constant 1 : i32
    %188 = tpu.dynamic_rotate %187 by %c1_i32_65 dim 0 : vector<8x32xf32>, i32 -> vector<8x32xf32>
    %189 = vector.extract_strided_slice %186 {offsets = [0, 32], sizes = [8, 32], strides = [1, 1]} : vector<8x96xf32> to vector<8x32xf32>
    %190 = arith.addf %188, %189 : vector<8x32xf32>
    %191 = vector.extract_strided_slice %186 {offsets = [0, 64], sizes = [8, 32], strides = [1, 1]} : vector<8x96xf32> to vector<8x32xf32>
    %c7_i32_66 = arith.constant 7 : i32
    %192 = tpu.dynamic_rotate %191 by %c7_i32_66 dim 0 : vector<8x32xf32>, i32 -> vector<8x32xf32>
    %193 = arith.addf %190, %192 : vector<8x32xf32>
    %194 = vector.broadcast %185 : vector<1x32xf32> to vector<8x32xf32>
    %195 = arith.addf %193, %194 : vector<8x32xf32>
    %c8 = arith.constant 8 : index
    %c0_67 = arith.constant 0 : index
    %196 = vector.load %arg5[%c8, %c0_67] : memref<944x128xf32, #tpu.memory_space<vmem>>, vector<1x32xf32>
    %cst_68 = arith.constant 0.999994993 : f32
    %197 = vector.broadcast %cst_68 : f32 to vector<1x32xf32>
    %198 = arith.mulf %196, %197 : vector<1x32xf32>
    %199 = vector.broadcast %198 : vector<1x32xf32> to vector<8x32xf32>
    %200 = arith.mulf %195, %199 : vector<8x32xf32>
    %c0_69 = arith.constant 0 : index
    %c0_70 = arith.constant 0 : index
    %201 = vector.load %arg5[%c0_69, %c0_70] : memref<944x128xf32, #tpu.memory_space<vmem>>, vector<1x32xf32>
    %202 = vector.broadcast %201 : vector<1x32xf32> to vector<8x32xf32>
    %203 = arith.addf %200, %202 : vector<8x32xf32>
    %cst_71 = arith.constant 0.000000e+00 : f32
    %204 = vector.broadcast %cst_71 : f32 to vector<8x32xf32>
    %205 = arith.cmpf ogt, %203, %204 : vector<8x32xf32>
    %cst_72 = arith.constant 0.000000e+00 : f32
    %206 = vector.broadcast %cst_72 : f32 to vector<8x32xf32>
    %207 = arith.minimumf %203, %206 : vector<8x32xf32>
    %208 = math.exp %207 : vector<8x32xf32>
    %cst_73 = arith.constant 1.000000e+00 : f32
    %209 = vector.broadcast %cst_73 : f32 to vector<8x32xf32>
    %210 = arith.subf %208, %209 : vector<8x32xf32>
    %211 = arith.select %205, %203, %210 : vector<8x32xi1>, vector<8x32xf32>
    %212 = tpu.iota {dimensions = array<i32: 0>} : vector<4x8xi32>
    %213 = tpu.iota {dimensions = array<i32: 1>} : vector<4x8xi32>
    %c2_i32 = arith.constant 2 : i32
    %214 = vector.broadcast %c2_i32 : i32 to vector<4x8xi32>
    %215 = arith.muli %214, %212 : vector<4x8xi32>
    %c1_i32_74 = arith.constant 1 : i32
    %216 = vector.broadcast %c1_i32_74 : i32 to vector<4x8xi32>
    %217 = arith.subi %215, %216 : vector<4x8xi32>
    %c0_i32_75 = arith.constant 0 : i32
    %c7_i32_76 = arith.constant 7 : i32
    %218 = vector.broadcast %c0_i32_75 : i32 to vector<4x8xi32>
    %219 = arith.maxsi %218, %217 : vector<4x8xi32>
    %220 = vector.broadcast %c7_i32_76 : i32 to vector<4x8xi32>
    %221 = arith.minsi %220, %219 : vector<4x8xi32>
    %222 = arith.cmpi eq, %213, %221 : vector<4x8xi32>
    %223 = arith.extui %222 : vector<4x8xi1> to vector<4x8xi32>
    %224 = arith.sitofp %223 : vector<4x8xi32> to vector<4x8xf32>
    %225 = tpu.iota {dimensions = array<i32: 0>} : vector<4x8xi32>
    %226 = tpu.iota {dimensions = array<i32: 1>} : vector<4x8xi32>
    %c2_i32_77 = arith.constant 2 : i32
    %227 = vector.broadcast %c2_i32_77 : i32 to vector<4x8xi32>
    %228 = arith.muli %227, %225 : vector<4x8xi32>
    %229 = arith.cmpi eq, %226, %228 : vector<4x8xi32>
    %230 = arith.extui %229 : vector<4x8xi1> to vector<4x8xi32>
    %231 = arith.sitofp %230 : vector<4x8xi32> to vector<4x8xf32>
    %232 = tpu.iota {dimensions = array<i32: 0>} : vector<4x8xi32>
    %233 = tpu.iota {dimensions = array<i32: 1>} : vector<4x8xi32>
    %c2_i32_78 = arith.constant 2 : i32
    %234 = vector.broadcast %c2_i32_78 : i32 to vector<4x8xi32>
    %235 = arith.muli %234, %232 : vector<4x8xi32>
    %c1_i32_79 = arith.constant 1 : i32
    %236 = vector.broadcast %c1_i32_79 : i32 to vector<4x8xi32>
    %237 = arith.addi %235, %236 : vector<4x8xi32>
    %c0_i32_80 = arith.constant 0 : i32
    %c7_i32_81 = arith.constant 7 : i32
    %238 = vector.broadcast %c0_i32_80 : i32 to vector<4x8xi32>
    %239 = arith.maxsi %238, %237 : vector<4x8xi32>
    %240 = vector.broadcast %c7_i32_81 : i32 to vector<4x8xi32>
    %241 = arith.minsi %240, %239 : vector<4x8xi32>
    %242 = arith.cmpi eq, %233, %241 : vector<4x8xi32>
    %243 = arith.extui %242 : vector<4x8xi1> to vector<4x8xi32>
    %244 = arith.sitofp %243 : vector<4x8xi32> to vector<4x8xf32>
    %cst_82 = arith.constant dense<0.000000e+00> : vector<4x32xf32>
    %245 = tpu.matmul %224, %211, %cst_82 {dimension_numbers = #tpu.dot_dimension_numbers<[1], [0], [0], [1], [0, 0, 1, 1], [], []>} : vector<4x8xf32>, vector<8x32xf32>, vector<4x32xf32> -> vector<4x32xf32>
    %cst_83 = arith.constant dense<0.000000e+00> : vector<4x32xf32>
    %246 = tpu.matmul %231, %211, %cst_83 {dimension_numbers = #tpu.dot_dimension_numbers<[1], [0], [0], [1], [0, 0, 1, 1], [], []>} : vector<4x8xf32>, vector<8x32xf32>, vector<4x32xf32> -> vector<4x32xf32>
    %247 = arith.maximumf %245, %246 : vector<4x32xf32>
    %cst_84 = arith.constant dense<0.000000e+00> : vector<4x32xf32>
    %248 = tpu.matmul %244, %211, %cst_84 {dimension_numbers = #tpu.dot_dimension_numbers<[1], [0], [0], [1], [0, 0, 1, 1], [], []>} : vector<4x8xf32>, vector<8x32xf32>, vector<4x32xf32> -> vector<4x32xf32>
    %249 = arith.maximumf %247, %248 : vector<4x32xf32>
    %c712 = arith.constant 712 : index
    %c0_85 = arith.constant 0 : index
    %250 = vector.load %arg5[%c712, %c0_85] : memref<944x128xf32, #tpu.memory_space<vmem>>, vector<32x96xf32>
    %c672 = arith.constant 672 : index
    %c0_86 = arith.constant 0 : index
    %251 = vector.load %arg5[%c672, %c0_86] : memref<944x128xf32, #tpu.memory_space<vmem>>, vector<1x96xf32>
    %c680 = arith.constant 680 : index
    %c0_87 = arith.constant 0 : index
    %252 = vector.load %arg5[%c680, %c0_87] : memref<944x128xf32, #tpu.memory_space<vmem>>, vector<32x32xf32>
    %c664 = arith.constant 664 : index
    %c0_88 = arith.constant 0 : index
    %253 = vector.load %arg5[%c664, %c0_88] : memref<944x128xf32, #tpu.memory_space<vmem>>, vector<1x32xf32>
    %cst_89 = arith.constant dense<0.000000e+00> : vector<4x96xf32>
    %254 = tpu.matmul %249, %250, %cst_89 {dimension_numbers = #tpu.dot_dimension_numbers<[1], [0], [0], [1], [0, 0, 1, 1], [], []>} : vector<4x32xf32>, vector<32x96xf32>, vector<4x96xf32> -> vector<4x96xf32>
    %255 = vector.broadcast %251 : vector<1x96xf32> to vector<4x96xf32>
    %256 = arith.addf %254, %255 : vector<4x96xf32>
    %257 = vector.extract_strided_slice %256 {offsets = [0, 0], sizes = [4, 32], strides = [1, 1]} : vector<4x96xf32> to vector<4x32xf32>
    %258 = vector.extract_strided_slice %256 {offsets = [0, 32], sizes = [4, 32], strides = [1, 1]} : vector<4x96xf32> to vector<4x32xf32>
    %259 = vector.extract_strided_slice %256 {offsets = [0, 64], sizes = [4, 32], strides = [1, 1]} : vector<4x96xf32> to vector<4x32xf32>
    %260 = tpu.iota {dimensions = array<i32: 0>} : vector<16x32xi32>
    %261 = tpu.iota {dimensions = array<i32: 1>} : vector<16x32xi32>
    %c0_i32_90 = arith.constant 0 : i32
    %262 = vector.broadcast %c0_i32_90 : i32 to vector<16x32xi32>
    %c4_i32 = arith.constant 4 : i32
    %263 = vector.broadcast %c4_i32 : i32 to vector<16x32xi32>
    %264 = arith.cmpi sge, %260, %263 : vector<16x32xi32>
    %265 = arith.extui %264 : vector<16x32xi1> to vector<16x32xi32>
    %266 = arith.addi %262, %265 : vector<16x32xi32>
    %c8_i32_91 = arith.constant 8 : i32
    %267 = vector.broadcast %c8_i32_91 : i32 to vector<16x32xi32>
    %268 = arith.cmpi sge, %260, %267 : vector<16x32xi32>
    %269 = arith.extui %268 : vector<16x32xi1> to vector<16x32xi32>
    %270 = arith.addi %266, %269 : vector<16x32xi32>
    %c12_i32 = arith.constant 12 : i32
    %271 = vector.broadcast %c12_i32 : i32 to vector<16x32xi32>
    %272 = arith.cmpi sge, %260, %271 : vector<16x32xi32>
    %273 = arith.extui %272 : vector<16x32xi1> to vector<16x32xi32>
    %274 = arith.addi %270, %273 : vector<16x32xi32>
    %c0_i32_92 = arith.constant 0 : i32
    %275 = vector.broadcast %c0_i32_92 : i32 to vector<16x32xi32>
    %c8_i32_93 = arith.constant 8 : i32
    %276 = vector.broadcast %c8_i32_93 : i32 to vector<16x32xi32>
    %277 = arith.cmpi sge, %261, %276 : vector<16x32xi32>
    %278 = arith.extui %277 : vector<16x32xi1> to vector<16x32xi32>
    %279 = arith.addi %275, %278 : vector<16x32xi32>
    %c16_i32_94 = arith.constant 16 : i32
    %280 = vector.broadcast %c16_i32_94 : i32 to vector<16x32xi32>
    %281 = arith.cmpi sge, %261, %280 : vector<16x32xi32>
    %282 = arith.extui %281 : vector<16x32xi1> to vector<16x32xi32>
    %283 = arith.addi %279, %282 : vector<16x32xi32>
    %c24_i32_95 = arith.constant 24 : i32
    %284 = vector.broadcast %c24_i32_95 : i32 to vector<16x32xi32>
    %285 = arith.cmpi sge, %261, %284 : vector<16x32xi32>
    %286 = arith.extui %285 : vector<16x32xi1> to vector<16x32xi32>
    %287 = arith.addi %283, %286 : vector<16x32xi32>
    %288 = arith.cmpi eq, %274, %287 : vector<16x32xi32>
    %289 = arith.extui %288 : vector<16x32xi1> to vector<16x32xi32>
    %290 = arith.sitofp %289 : vector<16x32xi32> to vector<16x32xf32>
    %291 = tpu.concatenate %258, %258, %258, %258 in 0 : vector<4x32xf32>, vector<4x32xf32>, vector<4x32xf32>, vector<4x32xf32> -> vector<16x32xf32>
    %292 = arith.mulf %291, %290 : vector<16x32xf32>
    %293 = tpu.concatenate %259, %259, %259, %259 in 0 : vector<4x32xf32>, vector<4x32xf32>, vector<4x32xf32>, vector<4x32xf32> -> vector<16x32xf32>
    %294 = arith.mulf %293, %290 : vector<16x32xf32>
    %cst_96 = arith.constant dense<0.000000e+00> : vector<4x16xf32>
    %295 = tpu.matmul %257, %292, %cst_96 {dimension_numbers = #tpu.dot_dimension_numbers<[1], [1], [0], [0], [0, 0, 1, 0], [], []>} : vector<4x32xf32>, vector<16x32xf32>, vector<4x16xf32> -> vector<4x16xf32>
    %cst_97 = arith.constant 0.353553385 : f32
    %296 = vector.broadcast %cst_97 : f32 to vector<4x16xf32>
    %297 = arith.mulf %295, %296 : vector<4x16xf32>
    %cst_98 = arith.constant dense<0xFF800000> : vector<4xf32>
    %298 = vector.multi_reduction <maximumf>, %297, %cst_98 [1] : vector<4x16xf32> to vector<4xf32>
    %299 = vector.shape_cast %298 : vector<4xf32> to vector<4x1xf32>
    %300 = vector.broadcast %299 : vector<4x1xf32> to vector<4x16xf32>
    %301 = arith.subf %297, %300 : vector<4x16xf32>
    %302 = math.exp %301 : vector<4x16xf32>
    %303 = tpu.iota {dimensions = array<i32: 0>} : vector<16x16xi32>
    %304 = tpu.iota {dimensions = array<i32: 1>} : vector<16x16xi32>
    %c0_i32_99 = arith.constant 0 : i32
    %305 = vector.broadcast %c0_i32_99 : i32 to vector<16x16xi32>
    %c4_i32_100 = arith.constant 4 : i32
    %306 = vector.broadcast %c4_i32_100 : i32 to vector<16x16xi32>
    %307 = arith.cmpi sge, %303, %306 : vector<16x16xi32>
    %308 = arith.extui %307 : vector<16x16xi1> to vector<16x16xi32>
    %309 = arith.addi %305, %308 : vector<16x16xi32>
    %c8_i32_101 = arith.constant 8 : i32
    %310 = vector.broadcast %c8_i32_101 : i32 to vector<16x16xi32>
    %311 = arith.cmpi sge, %303, %310 : vector<16x16xi32>
    %312 = arith.extui %311 : vector<16x16xi1> to vector<16x16xi32>
    %313 = arith.addi %309, %312 : vector<16x16xi32>
    %c12_i32_102 = arith.constant 12 : i32
    %314 = vector.broadcast %c12_i32_102 : i32 to vector<16x16xi32>
    %315 = arith.cmpi sge, %303, %314 : vector<16x16xi32>
    %316 = arith.extui %315 : vector<16x16xi1> to vector<16x16xi32>
    %317 = arith.addi %313, %316 : vector<16x16xi32>
    %c0_i32_103 = arith.constant 0 : i32
    %318 = vector.broadcast %c0_i32_103 : i32 to vector<16x16xi32>
    %c4_i32_104 = arith.constant 4 : i32
    %319 = vector.broadcast %c4_i32_104 : i32 to vector<16x16xi32>
    %320 = arith.cmpi sge, %304, %319 : vector<16x16xi32>
    %321 = arith.extui %320 : vector<16x16xi1> to vector<16x16xi32>
    %322 = arith.addi %318, %321 : vector<16x16xi32>
    %c8_i32_105 = arith.constant 8 : i32
    %323 = vector.broadcast %c8_i32_105 : i32 to vector<16x16xi32>
    %324 = arith.cmpi sge, %304, %323 : vector<16x16xi32>
    %325 = arith.extui %324 : vector<16x16xi1> to vector<16x16xi32>
    %326 = arith.addi %322, %325 : vector<16x16xi32>
    %c12_i32_106 = arith.constant 12 : i32
    %327 = vector.broadcast %c12_i32_106 : i32 to vector<16x16xi32>
    %328 = arith.cmpi sge, %304, %327 : vector<16x16xi32>
    %329 = arith.extui %328 : vector<16x16xi1> to vector<16x16xi32>
    %330 = arith.addi %326, %329 : vector<16x16xi32>
    %331 = arith.cmpi eq, %317, %330 : vector<16x16xi32>
    %332 = arith.extui %331 : vector<16x16xi1> to vector<16x16xi32>
    %333 = arith.sitofp %332 : vector<16x16xi32> to vector<16x16xf32>
    %cst_107 = arith.constant dense<0.000000e+00> : vector<4x16xf32>
    %334 = tpu.matmul %302, %333, %cst_107 {dimension_numbers = #tpu.dot_dimension_numbers<[1], [0], [0], [1], [0, 0, 1, 1], [], []>} : vector<4x16xf32>, vector<16x16xf32>, vector<4x16xf32> -> vector<4x16xf32>
    %335 = arith.divf %302, %334 : vector<4x16xf32>
    %cst_108 = arith.constant dense<0.000000e+00> : vector<4x32xf32>
    %336 = tpu.matmul %335, %294, %cst_108 {dimension_numbers = #tpu.dot_dimension_numbers<[1], [0], [0], [1], [0, 0, 1, 1], [], []>} : vector<4x16xf32>, vector<16x32xf32>, vector<4x32xf32> -> vector<4x32xf32>
    %cst_109 = arith.constant dense<0.000000e+00> : vector<4x32xf32>
    %337 = tpu.matmul %336, %252, %cst_109 {dimension_numbers = #tpu.dot_dimension_numbers<[1], [0], [0], [1], [0, 0, 1, 1], [], []>} : vector<4x32xf32>, vector<32x32xf32>, vector<4x32xf32> -> vector<4x32xf32>
    %338 = vector.broadcast %253 : vector<1x32xf32> to vector<4x32xf32>
    %339 = arith.addf %337, %338 : vector<4x32xf32>
    %340 = arith.addf %249, %339 : vector<4x32xf32>
    %c864 = arith.constant 864 : index
    %c0_110 = arith.constant 0 : index
    %341 = vector.load %arg5[%c864, %c0_110] : memref<944x128xf32, #tpu.memory_space<vmem>>, vector<1x32xf32>
    %c856 = arith.constant 856 : index
    %c0_111 = arith.constant 0 : index
    %342 = vector.load %arg5[%c856, %c0_111] : memref<944x128xf32, #tpu.memory_space<vmem>>, vector<1x32xf32>
    %cst_112 = arith.constant dense<0.000000e+00> : vector<4xf32>
    %343 = vector.multi_reduction <add>, %340, %cst_112 [1] : vector<4x32xf32> to vector<4xf32>
    %344 = vector.shape_cast %343 : vector<4xf32> to vector<4x1xf32>
    %cst_113 = arith.constant 3.200000e+01 : f32
    %345 = vector.broadcast %cst_113 : f32 to vector<4x1xf32>
    %346 = arith.divf %344, %345 : vector<4x1xf32>
    %347 = vector.broadcast %346 : vector<4x1xf32> to vector<4x32xf32>
    %348 = arith.subf %340, %347 : vector<4x32xf32>
    %349 = arith.mulf %348, %348 : vector<4x32xf32>
    %cst_114 = arith.constant dense<0.000000e+00> : vector<4xf32>
    %350 = vector.multi_reduction <add>, %349, %cst_114 [1] : vector<4x32xf32> to vector<4xf32>
    %351 = vector.shape_cast %350 : vector<4xf32> to vector<4x1xf32>
    %cst_115 = arith.constant 3.200000e+01 : f32
    %352 = vector.broadcast %cst_115 : f32 to vector<4x1xf32>
    %353 = arith.divf %351, %352 : vector<4x1xf32>
    %354 = vector.broadcast %346 : vector<4x1xf32> to vector<4x32xf32>
    %355 = arith.subf %340, %354 : vector<4x32xf32>
    %cst_116 = arith.constant 9.99999974E-6 : f32
    %356 = vector.broadcast %cst_116 : f32 to vector<4x1xf32>
    %357 = arith.addf %353, %356 : vector<4x1xf32>
    %358 = math.rsqrt %357 : vector<4x1xf32>
    %359 = vector.broadcast %358 : vector<4x1xf32> to vector<4x32xf32>
    %360 = arith.mulf %355, %359 : vector<4x32xf32>
    %361 = vector.broadcast %341 : vector<1x32xf32> to vector<4x32xf32>
    %362 = arith.mulf %360, %361 : vector<4x32xf32>
    %363 = vector.broadcast %342 : vector<1x32xf32> to vector<4x32xf32>
    %364 = arith.addf %362, %363 : vector<4x32xf32>
    %c752 = arith.constant 752 : index
    %c0_117 = arith.constant 0 : index
    %365 = vector.load %arg5[%c752, %c0_117] : memref<944x128xf32, #tpu.memory_space<vmem>>, vector<32x64xf32>
    %cst_118 = arith.constant dense<0.000000e+00> : vector<4x64xf32>
    %366 = tpu.matmul %364, %365, %cst_118 {dimension_numbers = #tpu.dot_dimension_numbers<[1], [0], [0], [1], [0, 0, 1, 1], [], []>} : vector<4x32xf32>, vector<32x64xf32>, vector<4x64xf32> -> vector<4x64xf32>
    %c744 = arith.constant 744 : index
    %c0_119 = arith.constant 0 : index
    %367 = vector.load %arg5[%c744, %c0_119] : memref<944x128xf32, #tpu.memory_space<vmem>>, vector<1x64xf32>
    %368 = vector.broadcast %367 : vector<1x64xf32> to vector<4x64xf32>
    %369 = arith.addf %366, %368 : vector<4x64xf32>
    %cst_120 = arith.constant 0.000000e+00 : f32
    %370 = vector.broadcast %cst_120 : f32 to vector<4x64xf32>
    %371 = arith.maximumf %369, %370 : vector<4x64xf32>
    %c792 = arith.constant 792 : index
    %c0_121 = arith.constant 0 : index
    %372 = vector.load %arg5[%c792, %c0_121] : memref<944x128xf32, #tpu.memory_space<vmem>>, vector<64x32xf32>
    %cst_122 = arith.constant dense<0.000000e+00> : vector<4x32xf32>
    %373 = tpu.matmul %371, %372, %cst_122 {dimension_numbers = #tpu.dot_dimension_numbers<[1], [0], [0], [1], [0, 0, 1, 1], [], []>} : vector<4x64xf32>, vector<64x32xf32>, vector<4x32xf32> -> vector<4x32xf32>
    %c784 = arith.constant 784 : index
    %c0_123 = arith.constant 0 : index
    %374 = vector.load %arg5[%c784, %c0_123] : memref<944x128xf32, #tpu.memory_space<vmem>>, vector<1x32xf32>
    %375 = vector.broadcast %374 : vector<1x32xf32> to vector<4x32xf32>
    %376 = arith.addf %373, %375 : vector<4x32xf32>
    %377 = arith.addf %364, %376 : vector<4x32xf32>
    %c880 = arith.constant 880 : index
    %c0_124 = arith.constant 0 : index
    %378 = vector.load %arg5[%c880, %c0_124] : memref<944x128xf32, #tpu.memory_space<vmem>>, vector<1x32xf32>
    %c872 = arith.constant 872 : index
    %c0_125 = arith.constant 0 : index
    %379 = vector.load %arg5[%c872, %c0_125] : memref<944x128xf32, #tpu.memory_space<vmem>>, vector<1x32xf32>
    %cst_126 = arith.constant dense<0.000000e+00> : vector<4xf32>
    %380 = vector.multi_reduction <add>, %377, %cst_126 [1] : vector<4x32xf32> to vector<4xf32>
    %381 = vector.shape_cast %380 : vector<4xf32> to vector<4x1xf32>
    %cst_127 = arith.constant 3.200000e+01 : f32
    %382 = vector.broadcast %cst_127 : f32 to vector<4x1xf32>
    %383 = arith.divf %381, %382 : vector<4x1xf32>
    %384 = vector.broadcast %383 : vector<4x1xf32> to vector<4x32xf32>
    %385 = arith.subf %377, %384 : vector<4x32xf32>
    %386 = arith.mulf %385, %385 : vector<4x32xf32>
    %cst_128 = arith.constant dense<0.000000e+00> : vector<4xf32>
    %387 = vector.multi_reduction <add>, %386, %cst_128 [1] : vector<4x32xf32> to vector<4xf32>
    %388 = vector.shape_cast %387 : vector<4xf32> to vector<4x1xf32>
    %cst_129 = arith.constant 3.200000e+01 : f32
    %389 = vector.broadcast %cst_129 : f32 to vector<4x1xf32>
    %390 = arith.divf %388, %389 : vector<4x1xf32>
    %391 = vector.broadcast %383 : vector<4x1xf32> to vector<4x32xf32>
    %392 = arith.subf %377, %391 : vector<4x32xf32>
    %cst_130 = arith.constant 9.99999974E-6 : f32
    %393 = vector.broadcast %cst_130 : f32 to vector<4x1xf32>
    %394 = arith.addf %390, %393 : vector<4x1xf32>
    %395 = math.rsqrt %394 : vector<4x1xf32>
    %396 = vector.broadcast %395 : vector<4x1xf32> to vector<4x32xf32>
    %397 = arith.mulf %392, %396 : vector<4x32xf32>
    %398 = vector.broadcast %378 : vector<1x32xf32> to vector<4x32xf32>
    %399 = arith.mulf %397, %398 : vector<4x32xf32>
    %400 = vector.broadcast %379 : vector<1x32xf32> to vector<4x32xf32>
    %401 = arith.addf %399, %400 : vector<4x32xf32>
    %c896 = arith.constant 896 : index
    %c0_131 = arith.constant 0 : index
    %402 = vector.load %arg5[%c896, %c0_131] : memref<944x128xf32, #tpu.memory_space<vmem>>, vector<1x32xf32>
    %c888 = arith.constant 888 : index
    %c0_132 = arith.constant 0 : index
    %403 = vector.load %arg5[%c888, %c0_132] : memref<944x128xf32, #tpu.memory_space<vmem>>, vector<1x32xf32>
    %cst_133 = arith.constant dense<0.000000e+00> : vector<4xf32>
    %404 = vector.multi_reduction <add>, %401, %cst_133 [1] : vector<4x32xf32> to vector<4xf32>
    %405 = vector.shape_cast %404 : vector<4xf32> to vector<4x1xf32>
    %cst_134 = arith.constant 3.200000e+01 : f32
    %406 = vector.broadcast %cst_134 : f32 to vector<4x1xf32>
    %407 = arith.divf %405, %406 : vector<4x1xf32>
    %408 = vector.broadcast %407 : vector<4x1xf32> to vector<4x32xf32>
    %409 = arith.subf %401, %408 : vector<4x32xf32>
    %410 = arith.mulf %409, %409 : vector<4x32xf32>
    %cst_135 = arith.constant dense<0.000000e+00> : vector<4xf32>
    %411 = vector.multi_reduction <add>, %410, %cst_135 [1] : vector<4x32xf32> to vector<4xf32>
    %412 = vector.shape_cast %411 : vector<4xf32> to vector<4x1xf32>
    %cst_136 = arith.constant 3.200000e+01 : f32
    %413 = vector.broadcast %cst_136 : f32 to vector<4x1xf32>
    %414 = arith.divf %412, %413 : vector<4x1xf32>
    %415 = vector.broadcast %407 : vector<4x1xf32> to vector<4x32xf32>
    %416 = arith.subf %401, %415 : vector<4x32xf32>
    %cst_137 = arith.constant 9.99999974E-6 : f32
    %417 = vector.broadcast %cst_137 : f32 to vector<4x1xf32>
    %418 = arith.addf %414, %417 : vector<4x1xf32>
    %419 = math.rsqrt %418 : vector<4x1xf32>
    %420 = vector.broadcast %419 : vector<4x1xf32> to vector<4x32xf32>
    %421 = arith.mulf %416, %420 : vector<4x32xf32>
    %422 = vector.broadcast %402 : vector<1x32xf32> to vector<4x32xf32>
    %423 = arith.mulf %421, %422 : vector<4x32xf32>
    %424 = vector.broadcast %403 : vector<1x32xf32> to vector<4x32xf32>
    %425 = arith.addf %423, %424 : vector<4x32xf32>
    %c368 = arith.constant 368 : index
    %c0_138 = arith.constant 0 : index
    %426 = vector.load %arg5[%c368, %c0_138] : memref<944x128xf32, #tpu.memory_space<vmem>>, vector<32x96xf32>
    %c328 = arith.constant 328 : index
    %c0_139 = arith.constant 0 : index
    %427 = vector.load %arg5[%c328, %c0_139] : memref<944x128xf32, #tpu.memory_space<vmem>>, vector<1x96xf32>
    %c336 = arith.constant 336 : index
    %c0_140 = arith.constant 0 : index
    %428 = vector.load %arg5[%c336, %c0_140] : memref<944x128xf32, #tpu.memory_space<vmem>>, vector<32x32xf32>
    %c320 = arith.constant 320 : index
    %c0_141 = arith.constant 0 : index
    %429 = vector.load %arg5[%c320, %c0_141] : memref<944x128xf32, #tpu.memory_space<vmem>>, vector<1x32xf32>
    %cst_142 = arith.constant dense<0.000000e+00> : vector<8x96xf32>
    %430 = tpu.matmul %31, %426, %cst_142 {dimension_numbers = #tpu.dot_dimension_numbers<[1], [0], [0], [1], [0, 0, 1, 1], [], []>} : vector<8x32xf32>, vector<32x96xf32>, vector<8x96xf32> -> vector<8x96xf32>
    %431 = vector.broadcast %427 : vector<1x96xf32> to vector<8x96xf32>
    %432 = arith.addf %430, %431 : vector<8x96xf32>
    %433 = vector.extract_strided_slice %432 {offsets = [0, 0], sizes = [8, 32], strides = [1, 1]} : vector<8x96xf32> to vector<8x32xf32>
    %434 = vector.extract_strided_slice %432 {offsets = [0, 32], sizes = [8, 32], strides = [1, 1]} : vector<8x96xf32> to vector<8x32xf32>
    %435 = vector.extract_strided_slice %432 {offsets = [0, 64], sizes = [8, 32], strides = [1, 1]} : vector<8x96xf32> to vector<8x32xf32>
    %436 = tpu.iota {dimensions = array<i32: 0>} : vector<32x32xi32>
    %437 = tpu.iota {dimensions = array<i32: 1>} : vector<32x32xi32>
    %c0_i32_143 = arith.constant 0 : i32
    %438 = vector.broadcast %c0_i32_143 : i32 to vector<32x32xi32>
    %c8_i32_144 = arith.constant 8 : i32
    %439 = vector.broadcast %c8_i32_144 : i32 to vector<32x32xi32>
    %440 = arith.cmpi sge, %436, %439 : vector<32x32xi32>
    %441 = arith.extui %440 : vector<32x32xi1> to vector<32x32xi32>
    %442 = arith.addi %438, %441 : vector<32x32xi32>
    %c16_i32_145 = arith.constant 16 : i32
    %443 = vector.broadcast %c16_i32_145 : i32 to vector<32x32xi32>
    %444 = arith.cmpi sge, %436, %443 : vector<32x32xi32>
    %445 = arith.extui %444 : vector<32x32xi1> to vector<32x32xi32>
    %446 = arith.addi %442, %445 : vector<32x32xi32>
    %c24_i32_146 = arith.constant 24 : i32
    %447 = vector.broadcast %c24_i32_146 : i32 to vector<32x32xi32>
    %448 = arith.cmpi sge, %436, %447 : vector<32x32xi32>
    %449 = arith.extui %448 : vector<32x32xi1> to vector<32x32xi32>
    %450 = arith.addi %446, %449 : vector<32x32xi32>
    %c0_i32_147 = arith.constant 0 : i32
    %451 = vector.broadcast %c0_i32_147 : i32 to vector<32x32xi32>
    %c8_i32_148 = arith.constant 8 : i32
    %452 = vector.broadcast %c8_i32_148 : i32 to vector<32x32xi32>
    %453 = arith.cmpi sge, %437, %452 : vector<32x32xi32>
    %454 = arith.extui %453 : vector<32x32xi1> to vector<32x32xi32>
    %455 = arith.addi %451, %454 : vector<32x32xi32>
    %c16_i32_149 = arith.constant 16 : i32
    %456 = vector.broadcast %c16_i32_149 : i32 to vector<32x32xi32>
    %457 = arith.cmpi sge, %437, %456 : vector<32x32xi32>
    %458 = arith.extui %457 : vector<32x32xi1> to vector<32x32xi32>
    %459 = arith.addi %455, %458 : vector<32x32xi32>
    %c24_i32_150 = arith.constant 24 : i32
    %460 = vector.broadcast %c24_i32_150 : i32 to vector<32x32xi32>
    %461 = arith.cmpi sge, %437, %460 : vector<32x32xi32>
    %462 = arith.extui %461 : vector<32x32xi1> to vector<32x32xi32>
    %463 = arith.addi %459, %462 : vector<32x32xi32>
    %464 = arith.cmpi eq, %450, %463 : vector<32x32xi32>
    %465 = arith.extui %464 : vector<32x32xi1> to vector<32x32xi32>
    %466 = arith.sitofp %465 : vector<32x32xi32> to vector<32x32xf32>
    %467 = tpu.concatenate %434, %434, %434, %434 in 0 : vector<8x32xf32>, vector<8x32xf32>, vector<8x32xf32>, vector<8x32xf32> -> vector<32x32xf32>
    %468 = arith.mulf %467, %466 : vector<32x32xf32>
    %469 = tpu.concatenate %435, %435, %435, %435 in 0 : vector<8x32xf32>, vector<8x32xf32>, vector<8x32xf32>, vector<8x32xf32> -> vector<32x32xf32>
    %470 = arith.mulf %469, %466 : vector<32x32xf32>
    %cst_151 = arith.constant dense<0.000000e+00> : vector<8x32xf32>
    %471 = tpu.matmul %433, %468, %cst_151 {dimension_numbers = #tpu.dot_dimension_numbers<[1], [1], [0], [0], [0, 0, 1, 0], [], []>} : vector<8x32xf32>, vector<32x32xf32>, vector<8x32xf32> -> vector<8x32xf32>
    %cst_152 = arith.constant 0.353553385 : f32
    %472 = vector.broadcast %cst_152 : f32 to vector<8x32xf32>
    %473 = arith.mulf %471, %472 : vector<8x32xf32>
    %474 = tpu.iota {dimensions = array<i32: 0>} : vector<8x32xi32>
    %475 = tpu.iota {dimensions = array<i32: 1>} : vector<8x8xi32>
    %476 = tpu.concatenate %475, %475, %475, %475 in 1 : vector<8x8xi32>, vector<8x8xi32>, vector<8x8xi32>, vector<8x8xi32> -> vector<8x32xi32>
    %477 = arith.cmpi sgt, %476, %474 : vector<8x32xi32>
    %cst_153 = arith.constant -1.000000e+30 : f32
    %478 = vector.broadcast %cst_153 : f32 to vector<8x32xf32>
    %479 = arith.select %477, %478, %473 : vector<8x32xi1>, vector<8x32xf32>
    %cst_154 = arith.constant dense<0xFF800000> : vector<8xf32>
    %480 = vector.multi_reduction <maximumf>, %479, %cst_154 [1] : vector<8x32xf32> to vector<8xf32>
    %481 = vector.shape_cast %480 : vector<8xf32> to vector<8x1xf32>
    %482 = vector.broadcast %481 : vector<8x1xf32> to vector<8x32xf32>
    %483 = arith.subf %479, %482 : vector<8x32xf32>
    %484 = math.exp %483 : vector<8x32xf32>
    %485 = tpu.iota {dimensions = array<i32: 0>} : vector<32x32xi32>
    %486 = tpu.iota {dimensions = array<i32: 1>} : vector<32x32xi32>
    %c0_i32_155 = arith.constant 0 : i32
    %487 = vector.broadcast %c0_i32_155 : i32 to vector<32x32xi32>
    %c8_i32_156 = arith.constant 8 : i32
    %488 = vector.broadcast %c8_i32_156 : i32 to vector<32x32xi32>
    %489 = arith.cmpi sge, %485, %488 : vector<32x32xi32>
    %490 = arith.extui %489 : vector<32x32xi1> to vector<32x32xi32>
    %491 = arith.addi %487, %490 : vector<32x32xi32>
    %c16_i32_157 = arith.constant 16 : i32
    %492 = vector.broadcast %c16_i32_157 : i32 to vector<32x32xi32>
    %493 = arith.cmpi sge, %485, %492 : vector<32x32xi32>
    %494 = arith.extui %493 : vector<32x32xi1> to vector<32x32xi32>
    %495 = arith.addi %491, %494 : vector<32x32xi32>
    %c24_i32_158 = arith.constant 24 : i32
    %496 = vector.broadcast %c24_i32_158 : i32 to vector<32x32xi32>
    %497 = arith.cmpi sge, %485, %496 : vector<32x32xi32>
    %498 = arith.extui %497 : vector<32x32xi1> to vector<32x32xi32>
    %499 = arith.addi %495, %498 : vector<32x32xi32>
    %c0_i32_159 = arith.constant 0 : i32
    %500 = vector.broadcast %c0_i32_159 : i32 to vector<32x32xi32>
    %c8_i32_160 = arith.constant 8 : i32
    %501 = vector.broadcast %c8_i32_160 : i32 to vector<32x32xi32>
    %502 = arith.cmpi sge, %486, %501 : vector<32x32xi32>
    %503 = arith.extui %502 : vector<32x32xi1> to vector<32x32xi32>
    %504 = arith.addi %500, %503 : vector<32x32xi32>
    %c16_i32_161 = arith.constant 16 : i32
    %505 = vector.broadcast %c16_i32_161 : i32 to vector<32x32xi32>
    %506 = arith.cmpi sge, %486, %505 : vector<32x32xi32>
    %507 = arith.extui %506 : vector<32x32xi1> to vector<32x32xi32>
    %508 = arith.addi %504, %507 : vector<32x32xi32>
    %c24_i32_162 = arith.constant 24 : i32
    %509 = vector.broadcast %c24_i32_162 : i32 to vector<32x32xi32>
    %510 = arith.cmpi sge, %486, %509 : vector<32x32xi32>
    %511 = arith.extui %510 : vector<32x32xi1> to vector<32x32xi32>
    %512 = arith.addi %508, %511 : vector<32x32xi32>
    %513 = arith.cmpi eq, %499, %512 : vector<32x32xi32>
    %514 = arith.extui %513 : vector<32x32xi1> to vector<32x32xi32>
    %515 = arith.sitofp %514 : vector<32x32xi32> to vector<32x32xf32>
    %cst_163 = arith.constant dense<0.000000e+00> : vector<8x32xf32>
    %516 = tpu.matmul %484, %515, %cst_163 {dimension_numbers = #tpu.dot_dimension_numbers<[1], [0], [0], [1], [0, 0, 1, 1], [], []>} : vector<8x32xf32>, vector<32x32xf32>, vector<8x32xf32> -> vector<8x32xf32>
    %517 = arith.divf %484, %516 : vector<8x32xf32>
    %cst_164 = arith.constant dense<0.000000e+00> : vector<8x32xf32>
    %518 = tpu.matmul %517, %470, %cst_164 {dimension_numbers = #tpu.dot_dimension_numbers<[1], [0], [0], [1], [0, 0, 1, 1], [], []>} : vector<8x32xf32>, vector<32x32xf32>, vector<8x32xf32> -> vector<8x32xf32>
    %cst_165 = arith.constant dense<0.000000e+00> : vector<8x32xf32>
    %519 = tpu.matmul %518, %428, %cst_165 {dimension_numbers = #tpu.dot_dimension_numbers<[1], [0], [0], [1], [0, 0, 1, 1], [], []>} : vector<8x32xf32>, vector<32x32xf32>, vector<8x32xf32> -> vector<8x32xf32>
    %520 = vector.broadcast %429 : vector<1x32xf32> to vector<8x32xf32>
    %521 = arith.addf %519, %520 : vector<8x32xf32>
    %522 = arith.addf %31, %521 : vector<8x32xf32>
    %c280 = arith.constant 280 : index
    %c0_166 = arith.constant 0 : index
    %523 = vector.load %arg5[%c280, %c0_166] : memref<944x128xf32, #tpu.memory_space<vmem>>, vector<1x32xf32>
    %c272 = arith.constant 272 : index
    %c0_167 = arith.constant 0 : index
    %524 = vector.load %arg5[%c272, %c0_167] : memref<944x128xf32, #tpu.memory_space<vmem>>, vector<1x32xf32>
    %cst_168 = arith.constant dense<0.000000e+00> : vector<8xf32>
    %525 = vector.multi_reduction <add>, %522, %cst_168 [1] : vector<8x32xf32> to vector<8xf32>
    %526 = vector.shape_cast %525 : vector<8xf32> to vector<8x1xf32>
    %cst_169 = arith.constant 3.200000e+01 : f32
    %527 = vector.broadcast %cst_169 : f32 to vector<8x1xf32>
    %528 = arith.divf %526, %527 : vector<8x1xf32>
    %529 = vector.broadcast %528 : vector<8x1xf32> to vector<8x32xf32>
    %530 = arith.subf %522, %529 : vector<8x32xf32>
    %531 = arith.mulf %530, %530 : vector<8x32xf32>
    %cst_170 = arith.constant dense<0.000000e+00> : vector<8xf32>
    %532 = vector.multi_reduction <add>, %531, %cst_170 [1] : vector<8x32xf32> to vector<8xf32>
    %533 = vector.shape_cast %532 : vector<8xf32> to vector<8x1xf32>
    %cst_171 = arith.constant 3.200000e+01 : f32
    %534 = vector.broadcast %cst_171 : f32 to vector<8x1xf32>
    %535 = arith.divf %533, %534 : vector<8x1xf32>
    %536 = vector.broadcast %528 : vector<8x1xf32> to vector<8x32xf32>
    %537 = arith.subf %522, %536 : vector<8x32xf32>
    %cst_172 = arith.constant 9.99999974E-6 : f32
    %538 = vector.broadcast %cst_172 : f32 to vector<8x1xf32>
    %539 = arith.addf %535, %538 : vector<8x1xf32>
    %540 = math.rsqrt %539 : vector<8x1xf32>
    %541 = vector.broadcast %540 : vector<8x1xf32> to vector<8x32xf32>
    %542 = arith.mulf %537, %541 : vector<8x32xf32>
    %543 = vector.broadcast %523 : vector<1x32xf32> to vector<8x32xf32>
    %544 = arith.mulf %542, %543 : vector<8x32xf32>
    %545 = vector.broadcast %524 : vector<1x32xf32> to vector<8x32xf32>
    %546 = arith.addf %544, %545 : vector<8x32xf32>
    %c128 = arith.constant 128 : index
    %c0_173 = arith.constant 0 : index
    %547 = vector.load %arg5[%c128, %c0_173] : memref<944x128xf32, #tpu.memory_space<vmem>>, vector<32x96xf32>
    %c88 = arith.constant 88 : index
    %c0_174 = arith.constant 0 : index
    %548 = vector.load %arg5[%c88, %c0_174] : memref<944x128xf32, #tpu.memory_space<vmem>>, vector<1x96xf32>
    %c96 = arith.constant 96 : index
    %c0_175 = arith.constant 0 : index
    %549 = vector.load %arg5[%c96, %c0_175] : memref<944x128xf32, #tpu.memory_space<vmem>>, vector<32x32xf32>
    %c80 = arith.constant 80 : index
    %c0_176 = arith.constant 0 : index
    %550 = vector.load %arg5[%c80, %c0_176] : memref<944x128xf32, #tpu.memory_space<vmem>>, vector<1x32xf32>
    %551 = vector.extract_strided_slice %547 {offsets = [0, 0], sizes = [32, 32], strides = [1, 1]} : vector<32x96xf32> to vector<32x32xf32>
    %cst_177 = arith.constant dense<0.000000e+00> : vector<8x32xf32>
    %552 = tpu.matmul %546, %551, %cst_177 {dimension_numbers = #tpu.dot_dimension_numbers<[1], [0], [0], [1], [0, 0, 1, 1], [], []>} : vector<8x32xf32>, vector<32x32xf32>, vector<8x32xf32> -> vector<8x32xf32>
    %553 = vector.extract_strided_slice %548 {offsets = [0, 0], sizes = [1, 32], strides = [1, 1]} : vector<1x96xf32> to vector<1x32xf32>
    %554 = vector.broadcast %553 : vector<1x32xf32> to vector<8x32xf32>
    %555 = arith.addf %552, %554 : vector<8x32xf32>
    %556 = vector.extract_strided_slice %547 {offsets = [0, 32], sizes = [32, 64], strides = [1, 1]} : vector<32x96xf32> to vector<32x64xf32>
    %cst_178 = arith.constant dense<0.000000e+00> : vector<4x64xf32>
    %557 = tpu.matmul %425, %556, %cst_178 {dimension_numbers = #tpu.dot_dimension_numbers<[1], [0], [0], [1], [0, 0, 1, 1], [], []>} : vector<4x32xf32>, vector<32x64xf32>, vector<4x64xf32> -> vector<4x64xf32>
    %558 = vector.extract_strided_slice %548 {offsets = [0, 32], sizes = [1, 64], strides = [1, 1]} : vector<1x96xf32> to vector<1x64xf32>
    %559 = vector.broadcast %558 : vector<1x64xf32> to vector<4x64xf32>
    %560 = arith.addf %557, %559 : vector<4x64xf32>
    %561 = vector.extract_strided_slice %560 {offsets = [0, 0], sizes = [4, 32], strides = [1, 1]} : vector<4x64xf32> to vector<4x32xf32>
    %562 = vector.extract_strided_slice %560 {offsets = [0, 32], sizes = [4, 32], strides = [1, 1]} : vector<4x64xf32> to vector<4x32xf32>
    %563 = tpu.iota {dimensions = array<i32: 0>} : vector<16x32xi32>
    %564 = tpu.iota {dimensions = array<i32: 1>} : vector<16x32xi32>
    %c0_i32_179 = arith.constant 0 : i32
    %565 = vector.broadcast %c0_i32_179 : i32 to vector<16x32xi32>
    %c4_i32_180 = arith.constant 4 : i32
    %566 = vector.broadcast %c4_i32_180 : i32 to vector<16x32xi32>
    %567 = arith.cmpi sge, %563, %566 : vector<16x32xi32>
    %568 = arith.extui %567 : vector<16x32xi1> to vector<16x32xi32>
    %569 = arith.addi %565, %568 : vector<16x32xi32>
    %c8_i32_181 = arith.constant 8 : i32
    %570 = vector.broadcast %c8_i32_181 : i32 to vector<16x32xi32>
    %571 = arith.cmpi sge, %563, %570 : vector<16x32xi32>
    %572 = arith.extui %571 : vector<16x32xi1> to vector<16x32xi32>
    %573 = arith.addi %569, %572 : vector<16x32xi32>
    %c12_i32_182 = arith.constant 12 : i32
    %574 = vector.broadcast %c12_i32_182 : i32 to vector<16x32xi32>
    %575 = arith.cmpi sge, %563, %574 : vector<16x32xi32>
    %576 = arith.extui %575 : vector<16x32xi1> to vector<16x32xi32>
    %577 = arith.addi %573, %576 : vector<16x32xi32>
    %c0_i32_183 = arith.constant 0 : i32
    %578 = vector.broadcast %c0_i32_183 : i32 to vector<16x32xi32>
    %c8_i32_184 = arith.constant 8 : i32
    %579 = vector.broadcast %c8_i32_184 : i32 to vector<16x32xi32>
    %580 = arith.cmpi sge, %564, %579 : vector<16x32xi32>
    %581 = arith.extui %580 : vector<16x32xi1> to vector<16x32xi32>
    %582 = arith.addi %578, %581 : vector<16x32xi32>
    %c16_i32_185 = arith.constant 16 : i32
    %583 = vector.broadcast %c16_i32_185 : i32 to vector<16x32xi32>
    %584 = arith.cmpi sge, %564, %583 : vector<16x32xi32>
    %585 = arith.extui %584 : vector<16x32xi1> to vector<16x32xi32>
    %586 = arith.addi %582, %585 : vector<16x32xi32>
    %c24_i32_186 = arith.constant 24 : i32
    %587 = vector.broadcast %c24_i32_186 : i32 to vector<16x32xi32>
    %588 = arith.cmpi sge, %564, %587 : vector<16x32xi32>
    %589 = arith.extui %588 : vector<16x32xi1> to vector<16x32xi32>
    %590 = arith.addi %586, %589 : vector<16x32xi32>
    %591 = arith.cmpi eq, %577, %590 : vector<16x32xi32>
    %592 = arith.extui %591 : vector<16x32xi1> to vector<16x32xi32>
    %593 = arith.sitofp %592 : vector<16x32xi32> to vector<16x32xf32>
    %594 = tpu.concatenate %561, %561, %561, %561 in 0 : vector<4x32xf32>, vector<4x32xf32>, vector<4x32xf32>, vector<4x32xf32> -> vector<16x32xf32>
    %595 = arith.mulf %594, %593 : vector<16x32xf32>
    %596 = tpu.concatenate %562, %562, %562, %562 in 0 : vector<4x32xf32>, vector<4x32xf32>, vector<4x32xf32>, vector<4x32xf32> -> vector<16x32xf32>
    %597 = arith.mulf %596, %593 : vector<16x32xf32>
    %cst_187 = arith.constant dense<0.000000e+00> : vector<8x16xf32>
    %598 = tpu.matmul %555, %595, %cst_187 {dimension_numbers = #tpu.dot_dimension_numbers<[1], [1], [0], [0], [0, 0, 1, 0], [], []>} : vector<8x32xf32>, vector<16x32xf32>, vector<8x16xf32> -> vector<8x16xf32>
    %cst_188 = arith.constant 0.353553385 : f32
    %599 = vector.broadcast %cst_188 : f32 to vector<8x16xf32>
    %600 = arith.mulf %598, %599 : vector<8x16xf32>
    %cst_189 = arith.constant dense<0xFF800000> : vector<8xf32>
    %601 = vector.multi_reduction <maximumf>, %600, %cst_189 [1] : vector<8x16xf32> to vector<8xf32>
    %602 = vector.shape_cast %601 : vector<8xf32> to vector<8x1xf32>
    %603 = vector.broadcast %602 : vector<8x1xf32> to vector<8x16xf32>
    %604 = arith.subf %600, %603 : vector<8x16xf32>
    %605 = math.exp %604 : vector<8x16xf32>
    %606 = tpu.iota {dimensions = array<i32: 0>} : vector<16x16xi32>
    %607 = tpu.iota {dimensions = array<i32: 1>} : vector<16x16xi32>
    %c0_i32_190 = arith.constant 0 : i32
    %608 = vector.broadcast %c0_i32_190 : i32 to vector<16x16xi32>
    %c4_i32_191 = arith.constant 4 : i32
    %609 = vector.broadcast %c4_i32_191 : i32 to vector<16x16xi32>
    %610 = arith.cmpi sge, %606, %609 : vector<16x16xi32>
    %611 = arith.extui %610 : vector<16x16xi1> to vector<16x16xi32>
    %612 = arith.addi %608, %611 : vector<16x16xi32>
    %c8_i32_192 = arith.constant 8 : i32
    %613 = vector.broadcast %c8_i32_192 : i32 to vector<16x16xi32>
    %614 = arith.cmpi sge, %606, %613 : vector<16x16xi32>
    %615 = arith.extui %614 : vector<16x16xi1> to vector<16x16xi32>
    %616 = arith.addi %612, %615 : vector<16x16xi32>
    %c12_i32_193 = arith.constant 12 : i32
    %617 = vector.broadcast %c12_i32_193 : i32 to vector<16x16xi32>
    %618 = arith.cmpi sge, %606, %617 : vector<16x16xi32>
    %619 = arith.extui %618 : vector<16x16xi1> to vector<16x16xi32>
    %620 = arith.addi %616, %619 : vector<16x16xi32>
    %c0_i32_194 = arith.constant 0 : i32
    %621 = vector.broadcast %c0_i32_194 : i32 to vector<16x16xi32>
    %c4_i32_195 = arith.constant 4 : i32
    %622 = vector.broadcast %c4_i32_195 : i32 to vector<16x16xi32>
    %623 = arith.cmpi sge, %607, %622 : vector<16x16xi32>
    %624 = arith.extui %623 : vector<16x16xi1> to vector<16x16xi32>
    %625 = arith.addi %621, %624 : vector<16x16xi32>
    %c8_i32_196 = arith.constant 8 : i32
    %626 = vector.broadcast %c8_i32_196 : i32 to vector<16x16xi32>
    %627 = arith.cmpi sge, %607, %626 : vector<16x16xi32>
    %628 = arith.extui %627 : vector<16x16xi1> to vector<16x16xi32>
    %629 = arith.addi %625, %628 : vector<16x16xi32>
    %c12_i32_197 = arith.constant 12 : i32
    %630 = vector.broadcast %c12_i32_197 : i32 to vector<16x16xi32>
    %631 = arith.cmpi sge, %607, %630 : vector<16x16xi32>
    %632 = arith.extui %631 : vector<16x16xi1> to vector<16x16xi32>
    %633 = arith.addi %629, %632 : vector<16x16xi32>
    %634 = arith.cmpi eq, %620, %633 : vector<16x16xi32>
    %635 = arith.extui %634 : vector<16x16xi1> to vector<16x16xi32>
    %636 = arith.sitofp %635 : vector<16x16xi32> to vector<16x16xf32>
    %cst_198 = arith.constant dense<0.000000e+00> : vector<8x16xf32>
    %637 = tpu.matmul %605, %636, %cst_198 {dimension_numbers = #tpu.dot_dimension_numbers<[1], [0], [0], [1], [0, 0, 1, 1], [], []>} : vector<8x16xf32>, vector<16x16xf32>, vector<8x16xf32> -> vector<8x16xf32>
    %638 = arith.divf %605, %637 : vector<8x16xf32>
    %cst_199 = arith.constant dense<0.000000e+00> : vector<8x32xf32>
    %639 = tpu.matmul %638, %597, %cst_199 {dimension_numbers = #tpu.dot_dimension_numbers<[1], [0], [0], [1], [0, 0, 1, 1], [], []>} : vector<8x16xf32>, vector<16x32xf32>, vector<8x32xf32> -> vector<8x32xf32>
    %cst_200 = arith.constant dense<0.000000e+00> : vector<8x32xf32>
    %640 = tpu.matmul %639, %549, %cst_200 {dimension_numbers = #tpu.dot_dimension_numbers<[1], [0], [0], [1], [0, 0, 1, 1], [], []>} : vector<8x32xf32>, vector<32x32xf32>, vector<8x32xf32> -> vector<8x32xf32>
    %641 = vector.broadcast %550 : vector<1x32xf32> to vector<8x32xf32>
    %642 = arith.addf %640, %641 : vector<8x32xf32>
    %643 = arith.addf %546, %642 : vector<8x32xf32>
    %c296 = arith.constant 296 : index
    %c0_201 = arith.constant 0 : index
    %644 = vector.load %arg5[%c296, %c0_201] : memref<944x128xf32, #tpu.memory_space<vmem>>, vector<1x32xf32>
    %c288 = arith.constant 288 : index
    %c0_202 = arith.constant 0 : index
    %645 = vector.load %arg5[%c288, %c0_202] : memref<944x128xf32, #tpu.memory_space<vmem>>, vector<1x32xf32>
    %cst_203 = arith.constant dense<0.000000e+00> : vector<8xf32>
    %646 = vector.multi_reduction <add>, %643, %cst_203 [1] : vector<8x32xf32> to vector<8xf32>
    %647 = vector.shape_cast %646 : vector<8xf32> to vector<8x1xf32>
    %cst_204 = arith.constant 3.200000e+01 : f32
    %648 = vector.broadcast %cst_204 : f32 to vector<8x1xf32>
    %649 = arith.divf %647, %648 : vector<8x1xf32>
    %650 = vector.broadcast %649 : vector<8x1xf32> to vector<8x32xf32>
    %651 = arith.subf %643, %650 : vector<8x32xf32>
    %652 = arith.mulf %651, %651 : vector<8x32xf32>
    %cst_205 = arith.constant dense<0.000000e+00> : vector<8xf32>
    %653 = vector.multi_reduction <add>, %652, %cst_205 [1] : vector<8x32xf32> to vector<8xf32>
    %654 = vector.shape_cast %653 : vector<8xf32> to vector<8x1xf32>
    %cst_206 = arith.constant 3.200000e+01 : f32
    %655 = vector.broadcast %cst_206 : f32 to vector<8x1xf32>
    %656 = arith.divf %654, %655 : vector<8x1xf32>
    %657 = vector.broadcast %649 : vector<8x1xf32> to vector<8x32xf32>
    %658 = arith.subf %643, %657 : vector<8x32xf32>
    %cst_207 = arith.constant 9.99999974E-6 : f32
    %659 = vector.broadcast %cst_207 : f32 to vector<8x1xf32>
    %660 = arith.addf %656, %659 : vector<8x1xf32>
    %661 = math.rsqrt %660 : vector<8x1xf32>
    %662 = vector.broadcast %661 : vector<8x1xf32> to vector<8x32xf32>
    %663 = arith.mulf %658, %662 : vector<8x32xf32>
    %664 = vector.broadcast %644 : vector<1x32xf32> to vector<8x32xf32>
    %665 = arith.mulf %663, %664 : vector<8x32xf32>
    %666 = vector.broadcast %645 : vector<1x32xf32> to vector<8x32xf32>
    %667 = arith.addf %665, %666 : vector<8x32xf32>
    %c168 = arith.constant 168 : index
    %c0_208 = arith.constant 0 : index
    %668 = vector.load %arg5[%c168, %c0_208] : memref<944x128xf32, #tpu.memory_space<vmem>>, vector<32x64xf32>
    %cst_209 = arith.constant dense<0.000000e+00> : vector<8x64xf32>
    %669 = tpu.matmul %667, %668, %cst_209 {dimension_numbers = #tpu.dot_dimension_numbers<[1], [0], [0], [1], [0, 0, 1, 1], [], []>} : vector<8x32xf32>, vector<32x64xf32>, vector<8x64xf32> -> vector<8x64xf32>
    %c160 = arith.constant 160 : index
    %c0_210 = arith.constant 0 : index
    %670 = vector.load %arg5[%c160, %c0_210] : memref<944x128xf32, #tpu.memory_space<vmem>>, vector<1x64xf32>
    %671 = vector.broadcast %670 : vector<1x64xf32> to vector<8x64xf32>
    %672 = arith.addf %669, %671 : vector<8x64xf32>
    %cst_211 = arith.constant 0.000000e+00 : f32
    %673 = vector.broadcast %cst_211 : f32 to vector<8x64xf32>
    %674 = arith.maximumf %672, %673 : vector<8x64xf32>
    %c208 = arith.constant 208 : index
    %c0_212 = arith.constant 0 : index
    %675 = vector.load %arg5[%c208, %c0_212] : memref<944x128xf32, #tpu.memory_space<vmem>>, vector<64x32xf32>
    %cst_213 = arith.constant dense<0.000000e+00> : vector<8x32xf32>
    %676 = tpu.matmul %674, %675, %cst_213 {dimension_numbers = #tpu.dot_dimension_numbers<[1], [0], [0], [1], [0, 0, 1, 1], [], []>} : vector<8x64xf32>, vector<64x32xf32>, vector<8x32xf32> -> vector<8x32xf32>
    %c200 = arith.constant 200 : index
    %c0_214 = arith.constant 0 : index
    %677 = vector.load %arg5[%c200, %c0_214] : memref<944x128xf32, #tpu.memory_space<vmem>>, vector<1x32xf32>
    %678 = vector.broadcast %677 : vector<1x32xf32> to vector<8x32xf32>
    %679 = arith.addf %676, %678 : vector<8x32xf32>
    %680 = arith.addf %667, %679 : vector<8x32xf32>
    %c312 = arith.constant 312 : index
    %c0_215 = arith.constant 0 : index
    %681 = vector.load %arg5[%c312, %c0_215] : memref<944x128xf32, #tpu.memory_space<vmem>>, vector<1x32xf32>
    %c304 = arith.constant 304 : index
    %c0_216 = arith.constant 0 : index
    %682 = vector.load %arg5[%c304, %c0_216] : memref<944x128xf32, #tpu.memory_space<vmem>>, vector<1x32xf32>
    %cst_217 = arith.constant dense<0.000000e+00> : vector<8xf32>
    %683 = vector.multi_reduction <add>, %680, %cst_217 [1] : vector<8x32xf32> to vector<8xf32>
    %684 = vector.shape_cast %683 : vector<8xf32> to vector<8x1xf32>
    %cst_218 = arith.constant 3.200000e+01 : f32
    %685 = vector.broadcast %cst_218 : f32 to vector<8x1xf32>
    %686 = arith.divf %684, %685 : vector<8x1xf32>
    %687 = vector.broadcast %686 : vector<8x1xf32> to vector<8x32xf32>
    %688 = arith.subf %680, %687 : vector<8x32xf32>
    %689 = arith.mulf %688, %688 : vector<8x32xf32>
    %cst_219 = arith.constant dense<0.000000e+00> : vector<8xf32>
    %690 = vector.multi_reduction <add>, %689, %cst_219 [1] : vector<8x32xf32> to vector<8xf32>
    %691 = vector.shape_cast %690 : vector<8xf32> to vector<8x1xf32>
    %cst_220 = arith.constant 3.200000e+01 : f32
    %692 = vector.broadcast %cst_220 : f32 to vector<8x1xf32>
    %693 = arith.divf %691, %692 : vector<8x1xf32>
    %694 = vector.broadcast %686 : vector<8x1xf32> to vector<8x32xf32>
    %695 = arith.subf %680, %694 : vector<8x32xf32>
    %cst_221 = arith.constant 9.99999974E-6 : f32
    %696 = vector.broadcast %cst_221 : f32 to vector<8x1xf32>
    %697 = arith.addf %693, %696 : vector<8x1xf32>
    %698 = math.rsqrt %697 : vector<8x1xf32>
    %699 = vector.broadcast %698 : vector<8x1xf32> to vector<8x32xf32>
    %700 = arith.mulf %695, %699 : vector<8x32xf32>
    %701 = vector.broadcast %681 : vector<1x32xf32> to vector<8x32xf32>
    %702 = arith.mulf %700, %701 : vector<8x32xf32>
    %703 = vector.broadcast %682 : vector<1x32xf32> to vector<8x32xf32>
    %704 = arith.addf %702, %703 : vector<8x32xf32>
    %c408 = arith.constant 408 : index
    %c0_222 = arith.constant 0 : index
    %705 = vector.load %arg5[%c408, %c0_222] : memref<944x128xf32, #tpu.memory_space<vmem>>, vector<1x32xf32>
    %c400 = arith.constant 400 : index
    %c0_223 = arith.constant 0 : index
    %706 = vector.load %arg5[%c400, %c0_223] : memref<944x128xf32, #tpu.memory_space<vmem>>, vector<1x32xf32>
    %cst_224 = arith.constant dense<0.000000e+00> : vector<8xf32>
    %707 = vector.multi_reduction <add>, %704, %cst_224 [1] : vector<8x32xf32> to vector<8xf32>
    %708 = vector.shape_cast %707 : vector<8xf32> to vector<8x1xf32>
    %cst_225 = arith.constant 3.200000e+01 : f32
    %709 = vector.broadcast %cst_225 : f32 to vector<8x1xf32>
    %710 = arith.divf %708, %709 : vector<8x1xf32>
    %711 = vector.broadcast %710 : vector<8x1xf32> to vector<8x32xf32>
    %712 = arith.subf %704, %711 : vector<8x32xf32>
    %713 = arith.mulf %712, %712 : vector<8x32xf32>
    %cst_226 = arith.constant dense<0.000000e+00> : vector<8xf32>
    %714 = vector.multi_reduction <add>, %713, %cst_226 [1] : vector<8x32xf32> to vector<8xf32>
    %715 = vector.shape_cast %714 : vector<8xf32> to vector<8x1xf32>
    %cst_227 = arith.constant 3.200000e+01 : f32
    %716 = vector.broadcast %cst_227 : f32 to vector<8x1xf32>
    %717 = arith.divf %715, %716 : vector<8x1xf32>
    %718 = vector.broadcast %710 : vector<8x1xf32> to vector<8x32xf32>
    %719 = arith.subf %704, %718 : vector<8x32xf32>
    %cst_228 = arith.constant 9.99999974E-6 : f32
    %720 = vector.broadcast %cst_228 : f32 to vector<8x1xf32>
    %721 = arith.addf %717, %720 : vector<8x1xf32>
    %722 = math.rsqrt %721 : vector<8x1xf32>
    %723 = vector.broadcast %722 : vector<8x1xf32> to vector<8x32xf32>
    %724 = arith.mulf %719, %723 : vector<8x32xf32>
    %725 = vector.broadcast %705 : vector<1x32xf32> to vector<8x32xf32>
    %726 = arith.mulf %724, %725 : vector<8x32xf32>
    %727 = vector.broadcast %706 : vector<1x32xf32> to vector<8x32xf32>
    %728 = arith.addf %726, %727 : vector<8x32xf32>
    %729 = vector.extract_strided_slice %728 {offsets = [4, 0], sizes = [4, 32], strides = [1, 1]} : vector<8x32xf32> to vector<4x32xf32>
    %c912 = arith.constant 912 : index
    %c0_229 = arith.constant 0 : index
    %730 = vector.load %arg5[%c912, %c0_229] : memref<944x128xf32, #tpu.memory_space<vmem>>, vector<32x128xf32>
    %cst_230 = arith.constant dense<0.000000e+00> : vector<4x128xf32>
    %731 = tpu.matmul %729, %730, %cst_230 {dimension_numbers = #tpu.dot_dimension_numbers<[1], [0], [0], [1], [0, 0, 1, 1], [], []>} : vector<4x32xf32>, vector<32x128xf32>, vector<4x128xf32> -> vector<4x128xf32>
    %c904 = arith.constant 904 : index
    %c0_231 = arith.constant 0 : index
    %732 = vector.load %arg5[%c904, %c0_231] : memref<944x128xf32, #tpu.memory_space<vmem>>, vector<1x128xf32>
    %733 = vector.broadcast %732 : vector<1x128xf32> to vector<4x128xf32>
    %734 = arith.addf %731, %733 : vector<4x128xf32>
    %c8_232 = arith.constant 8 : index
    %c0_233 = arith.constant 0 : index
    %735 = vector.load %arg1[%c8_232, %c0_233] : memref<16x7xf32, #tpu.memory_space<vmem>>, vector<8x7xf32>
    %c8_234 = arith.constant 8 : index
    %c0_235 = arith.constant 0 : index
    %736 = vector.load %arg2[%c8_234, %c0_235] : memref<16x4xf32, #tpu.memory_space<vmem>>, vector<8x4xf32>
    %c8_236 = arith.constant 8 : index
    %c0_237 = arith.constant 0 : index
    %737 = vector.load %arg3[%c8_236, %c0_237] : memref<16x7xf32, #tpu.memory_space<vmem>>, vector<8x7xf32>
    %c8_238 = arith.constant 8 : index
    %c0_239 = arith.constant 0 : index
    %738 = vector.load %arg4[%c8_238, %c0_239] : memref<16x4xf32, #tpu.memory_space<vmem>>, vector<8x4xf32>
    %c432_240 = arith.constant 432 : index
    %c0_241 = arith.constant 0 : index
    %739 = vector.load %arg5[%c432_240, %c0_241] : memref<944x128xf32, #tpu.memory_space<vmem>>, vector<7x96xf32>
    %cst_242 = arith.constant dense<0.000000e+00> : vector<8x96xf32>
    %740 = tpu.matmul %735, %739, %cst_242 {dimension_numbers = #tpu.dot_dimension_numbers<[1], [0], [0], [1], [0, 0, 1, 1], [], []>} : vector<8x7xf32>, vector<7x96xf32>, vector<8x96xf32> -> vector<8x96xf32>
    %741 = vector.extract_strided_slice %740 {offsets = [0, 0], sizes = [8, 32], strides = [1, 1]} : vector<8x96xf32> to vector<8x32xf32>
    %c1_i32_243 = arith.constant 1 : i32
    %742 = tpu.dynamic_rotate %741 by %c1_i32_243 dim 0 : vector<8x32xf32>, i32 -> vector<8x32xf32>
    %743 = vector.extract_strided_slice %740 {offsets = [0, 32], sizes = [8, 32], strides = [1, 1]} : vector<8x96xf32> to vector<8x32xf32>
    %744 = arith.addf %742, %743 : vector<8x32xf32>
    %745 = vector.extract_strided_slice %740 {offsets = [0, 64], sizes = [8, 32], strides = [1, 1]} : vector<8x96xf32> to vector<8x32xf32>
    %c7_i32_244 = arith.constant 7 : i32
    %746 = tpu.dynamic_rotate %745 by %c7_i32_244 dim 0 : vector<8x32xf32>, i32 -> vector<8x32xf32>
    %747 = arith.addf %744, %746 : vector<8x32xf32>
    %c424_245 = arith.constant 424 : index
    %c0_246 = arith.constant 0 : index
    %748 = vector.load %arg5[%c424_245, %c0_246] : memref<944x128xf32, #tpu.memory_space<vmem>>, vector<4x32xf32>
    %cst_247 = arith.constant dense<0.000000e+00> : vector<8x32xf32>
    %749 = tpu.matmul %736, %748, %cst_247 {dimension_numbers = #tpu.dot_dimension_numbers<[1], [0], [0], [1], [0, 0, 1, 1], [], []>} : vector<8x4xf32>, vector<4x32xf32>, vector<8x32xf32> -> vector<8x32xf32>
    %750 = arith.addf %747, %749 : vector<8x32xf32>
    %c416_248 = arith.constant 416 : index
    %c0_249 = arith.constant 0 : index
    %751 = vector.load %arg5[%c416_248, %c0_249] : memref<944x128xf32, #tpu.memory_space<vmem>>, vector<8x32xf32>
    %752 = arith.addf %750, %751 : vector<8x32xf32>
    %c72_250 = arith.constant 72 : index
    %c0_251 = arith.constant 0 : index
    %753 = vector.load %arg5[%c72_250, %c0_251] : memref<944x128xf32, #tpu.memory_space<vmem>>, vector<7x96xf32>
    %cst_252 = arith.constant dense<0.000000e+00> : vector<8x96xf32>
    %754 = tpu.matmul %737, %753, %cst_252 {dimension_numbers = #tpu.dot_dimension_numbers<[1], [0], [0], [1], [0, 0, 1, 1], [], []>} : vector<8x7xf32>, vector<7x96xf32>, vector<8x96xf32> -> vector<8x96xf32>
    %755 = vector.extract_strided_slice %754 {offsets = [0, 0], sizes = [8, 32], strides = [1, 1]} : vector<8x96xf32> to vector<8x32xf32>
    %c1_i32_253 = arith.constant 1 : i32
    %756 = tpu.dynamic_rotate %755 by %c1_i32_253 dim 0 : vector<8x32xf32>, i32 -> vector<8x32xf32>
    %757 = vector.extract_strided_slice %754 {offsets = [0, 32], sizes = [8, 32], strides = [1, 1]} : vector<8x96xf32> to vector<8x32xf32>
    %758 = arith.addf %756, %757 : vector<8x32xf32>
    %759 = vector.extract_strided_slice %754 {offsets = [0, 64], sizes = [8, 32], strides = [1, 1]} : vector<8x96xf32> to vector<8x32xf32>
    %c7_i32_254 = arith.constant 7 : i32
    %760 = tpu.dynamic_rotate %759 by %c7_i32_254 dim 0 : vector<8x32xf32>, i32 -> vector<8x32xf32>
    %761 = arith.addf %758, %760 : vector<8x32xf32>
    %c64_255 = arith.constant 64 : index
    %c0_256 = arith.constant 0 : index
    %762 = vector.load %arg5[%c64_255, %c0_256] : memref<944x128xf32, #tpu.memory_space<vmem>>, vector<4x32xf32>
    %cst_257 = arith.constant dense<0.000000e+00> : vector<8x32xf32>
    %763 = tpu.matmul %738, %762, %cst_257 {dimension_numbers = #tpu.dot_dimension_numbers<[1], [0], [0], [1], [0, 0, 1, 1], [], []>} : vector<8x4xf32>, vector<4x32xf32>, vector<8x32xf32> -> vector<8x32xf32>
    %764 = arith.addf %761, %763 : vector<8x32xf32>
    %c56_258 = arith.constant 56 : index
    %c0_259 = arith.constant 0 : index
    %765 = vector.load %arg5[%c56_258, %c0_259] : memref<944x128xf32, #tpu.memory_space<vmem>>, vector<8x32xf32>
    %766 = arith.addf %764, %765 : vector<8x32xf32>
    %c488_260 = arith.constant 488 : index
    %c0_261 = arith.constant 0 : index
    %767 = vector.load %arg5[%c488_260, %c0_261] : memref<944x128xf32, #tpu.memory_space<vmem>>, vector<32x96xf32>
    %c448_262 = arith.constant 448 : index
    %c0_263 = arith.constant 0 : index
    %768 = vector.load %arg5[%c448_262, %c0_263] : memref<944x128xf32, #tpu.memory_space<vmem>>, vector<1x96xf32>
    %c456_264 = arith.constant 456 : index
    %c0_265 = arith.constant 0 : index
    %769 = vector.load %arg5[%c456_264, %c0_265] : memref<944x128xf32, #tpu.memory_space<vmem>>, vector<32x32xf32>
    %c440_266 = arith.constant 440 : index
    %c0_267 = arith.constant 0 : index
    %770 = vector.load %arg5[%c440_266, %c0_267] : memref<944x128xf32, #tpu.memory_space<vmem>>, vector<1x32xf32>
    %cst_268 = arith.constant dense<0.000000e+00> : vector<8x96xf32>
    %771 = tpu.matmul %752, %767, %cst_268 {dimension_numbers = #tpu.dot_dimension_numbers<[1], [0], [0], [1], [0, 0, 1, 1], [], []>} : vector<8x32xf32>, vector<32x96xf32>, vector<8x96xf32> -> vector<8x96xf32>
    %772 = vector.broadcast %768 : vector<1x96xf32> to vector<8x96xf32>
    %773 = arith.addf %771, %772 : vector<8x96xf32>
    %774 = vector.extract_strided_slice %773 {offsets = [0, 0], sizes = [8, 32], strides = [1, 1]} : vector<8x96xf32> to vector<8x32xf32>
    %775 = vector.extract_strided_slice %773 {offsets = [0, 32], sizes = [8, 32], strides = [1, 1]} : vector<8x96xf32> to vector<8x32xf32>
    %776 = vector.extract_strided_slice %773 {offsets = [0, 64], sizes = [8, 32], strides = [1, 1]} : vector<8x96xf32> to vector<8x32xf32>
    %777 = tpu.iota {dimensions = array<i32: 0>} : vector<32x32xi32>
    %778 = tpu.iota {dimensions = array<i32: 1>} : vector<32x32xi32>
    %c0_i32_269 = arith.constant 0 : i32
    %779 = vector.broadcast %c0_i32_269 : i32 to vector<32x32xi32>
    %c8_i32_270 = arith.constant 8 : i32
    %780 = vector.broadcast %c8_i32_270 : i32 to vector<32x32xi32>
    %781 = arith.cmpi sge, %777, %780 : vector<32x32xi32>
    %782 = arith.extui %781 : vector<32x32xi1> to vector<32x32xi32>
    %783 = arith.addi %779, %782 : vector<32x32xi32>
    %c16_i32_271 = arith.constant 16 : i32
    %784 = vector.broadcast %c16_i32_271 : i32 to vector<32x32xi32>
    %785 = arith.cmpi sge, %777, %784 : vector<32x32xi32>
    %786 = arith.extui %785 : vector<32x32xi1> to vector<32x32xi32>
    %787 = arith.addi %783, %786 : vector<32x32xi32>
    %c24_i32_272 = arith.constant 24 : i32
    %788 = vector.broadcast %c24_i32_272 : i32 to vector<32x32xi32>
    %789 = arith.cmpi sge, %777, %788 : vector<32x32xi32>
    %790 = arith.extui %789 : vector<32x32xi1> to vector<32x32xi32>
    %791 = arith.addi %787, %790 : vector<32x32xi32>
    %c0_i32_273 = arith.constant 0 : i32
    %792 = vector.broadcast %c0_i32_273 : i32 to vector<32x32xi32>
    %c8_i32_274 = arith.constant 8 : i32
    %793 = vector.broadcast %c8_i32_274 : i32 to vector<32x32xi32>
    %794 = arith.cmpi sge, %778, %793 : vector<32x32xi32>
    %795 = arith.extui %794 : vector<32x32xi1> to vector<32x32xi32>
    %796 = arith.addi %792, %795 : vector<32x32xi32>
    %c16_i32_275 = arith.constant 16 : i32
    %797 = vector.broadcast %c16_i32_275 : i32 to vector<32x32xi32>
    %798 = arith.cmpi sge, %778, %797 : vector<32x32xi32>
    %799 = arith.extui %798 : vector<32x32xi1> to vector<32x32xi32>
    %800 = arith.addi %796, %799 : vector<32x32xi32>
    %c24_i32_276 = arith.constant 24 : i32
    %801 = vector.broadcast %c24_i32_276 : i32 to vector<32x32xi32>
    %802 = arith.cmpi sge, %778, %801 : vector<32x32xi32>
    %803 = arith.extui %802 : vector<32x32xi1> to vector<32x32xi32>
    %804 = arith.addi %800, %803 : vector<32x32xi32>
    %805 = arith.cmpi eq, %791, %804 : vector<32x32xi32>
    %806 = arith.extui %805 : vector<32x32xi1> to vector<32x32xi32>
    %807 = arith.sitofp %806 : vector<32x32xi32> to vector<32x32xf32>
    %808 = tpu.concatenate %775, %775, %775, %775 in 0 : vector<8x32xf32>, vector<8x32xf32>, vector<8x32xf32>, vector<8x32xf32> -> vector<32x32xf32>
    %809 = arith.mulf %808, %807 : vector<32x32xf32>
    %810 = tpu.concatenate %776, %776, %776, %776 in 0 : vector<8x32xf32>, vector<8x32xf32>, vector<8x32xf32>, vector<8x32xf32> -> vector<32x32xf32>
    %811 = arith.mulf %810, %807 : vector<32x32xf32>
    %cst_277 = arith.constant dense<0.000000e+00> : vector<8x32xf32>
    %812 = tpu.matmul %774, %809, %cst_277 {dimension_numbers = #tpu.dot_dimension_numbers<[1], [1], [0], [0], [0, 0, 1, 0], [], []>} : vector<8x32xf32>, vector<32x32xf32>, vector<8x32xf32> -> vector<8x32xf32>
    %cst_278 = arith.constant 0.353553385 : f32
    %813 = vector.broadcast %cst_278 : f32 to vector<8x32xf32>
    %814 = arith.mulf %812, %813 : vector<8x32xf32>
    %cst_279 = arith.constant dense<0xFF800000> : vector<8xf32>
    %815 = vector.multi_reduction <maximumf>, %814, %cst_279 [1] : vector<8x32xf32> to vector<8xf32>
    %816 = vector.shape_cast %815 : vector<8xf32> to vector<8x1xf32>
    %817 = vector.broadcast %816 : vector<8x1xf32> to vector<8x32xf32>
    %818 = arith.subf %814, %817 : vector<8x32xf32>
    %819 = math.exp %818 : vector<8x32xf32>
    %820 = tpu.iota {dimensions = array<i32: 0>} : vector<32x32xi32>
    %821 = tpu.iota {dimensions = array<i32: 1>} : vector<32x32xi32>
    %c0_i32_280 = arith.constant 0 : i32
    %822 = vector.broadcast %c0_i32_280 : i32 to vector<32x32xi32>
    %c8_i32_281 = arith.constant 8 : i32
    %823 = vector.broadcast %c8_i32_281 : i32 to vector<32x32xi32>
    %824 = arith.cmpi sge, %820, %823 : vector<32x32xi32>
    %825 = arith.extui %824 : vector<32x32xi1> to vector<32x32xi32>
    %826 = arith.addi %822, %825 : vector<32x32xi32>
    %c16_i32_282 = arith.constant 16 : i32
    %827 = vector.broadcast %c16_i32_282 : i32 to vector<32x32xi32>
    %828 = arith.cmpi sge, %820, %827 : vector<32x32xi32>
    %829 = arith.extui %828 : vector<32x32xi1> to vector<32x32xi32>
    %830 = arith.addi %826, %829 : vector<32x32xi32>
    %c24_i32_283 = arith.constant 24 : i32
    %831 = vector.broadcast %c24_i32_283 : i32 to vector<32x32xi32>
    %832 = arith.cmpi sge, %820, %831 : vector<32x32xi32>
    %833 = arith.extui %832 : vector<32x32xi1> to vector<32x32xi32>
    %834 = arith.addi %830, %833 : vector<32x32xi32>
    %c0_i32_284 = arith.constant 0 : i32
    %835 = vector.broadcast %c0_i32_284 : i32 to vector<32x32xi32>
    %c8_i32_285 = arith.constant 8 : i32
    %836 = vector.broadcast %c8_i32_285 : i32 to vector<32x32xi32>
    %837 = arith.cmpi sge, %821, %836 : vector<32x32xi32>
    %838 = arith.extui %837 : vector<32x32xi1> to vector<32x32xi32>
    %839 = arith.addi %835, %838 : vector<32x32xi32>
    %c16_i32_286 = arith.constant 16 : i32
    %840 = vector.broadcast %c16_i32_286 : i32 to vector<32x32xi32>
    %841 = arith.cmpi sge, %821, %840 : vector<32x32xi32>
    %842 = arith.extui %841 : vector<32x32xi1> to vector<32x32xi32>
    %843 = arith.addi %839, %842 : vector<32x32xi32>
    %c24_i32_287 = arith.constant 24 : i32
    %844 = vector.broadcast %c24_i32_287 : i32 to vector<32x32xi32>
    %845 = arith.cmpi sge, %821, %844 : vector<32x32xi32>
    %846 = arith.extui %845 : vector<32x32xi1> to vector<32x32xi32>
    %847 = arith.addi %843, %846 : vector<32x32xi32>
    %848 = arith.cmpi eq, %834, %847 : vector<32x32xi32>
    %849 = arith.extui %848 : vector<32x32xi1> to vector<32x32xi32>
    %850 = arith.sitofp %849 : vector<32x32xi32> to vector<32x32xf32>
    %cst_288 = arith.constant dense<0.000000e+00> : vector<8x32xf32>
    %851 = tpu.matmul %819, %850, %cst_288 {dimension_numbers = #tpu.dot_dimension_numbers<[1], [0], [0], [1], [0, 0, 1, 1], [], []>} : vector<8x32xf32>, vector<32x32xf32>, vector<8x32xf32> -> vector<8x32xf32>
    %852 = arith.divf %819, %851 : vector<8x32xf32>
    %cst_289 = arith.constant dense<0.000000e+00> : vector<8x32xf32>
    %853 = tpu.matmul %852, %811, %cst_289 {dimension_numbers = #tpu.dot_dimension_numbers<[1], [0], [0], [1], [0, 0, 1, 1], [], []>} : vector<8x32xf32>, vector<32x32xf32>, vector<8x32xf32> -> vector<8x32xf32>
    %cst_290 = arith.constant dense<0.000000e+00> : vector<8x32xf32>
    %854 = tpu.matmul %853, %769, %cst_290 {dimension_numbers = #tpu.dot_dimension_numbers<[1], [0], [0], [1], [0, 0, 1, 1], [], []>} : vector<8x32xf32>, vector<32x32xf32>, vector<8x32xf32> -> vector<8x32xf32>
    %855 = vector.broadcast %770 : vector<1x32xf32> to vector<8x32xf32>
    %856 = arith.addf %854, %855 : vector<8x32xf32>
    %857 = arith.addf %752, %856 : vector<8x32xf32>
    %c640_291 = arith.constant 640 : index
    %c0_292 = arith.constant 0 : index
    %858 = vector.load %arg5[%c640_291, %c0_292] : memref<944x128xf32, #tpu.memory_space<vmem>>, vector<1x32xf32>
    %c632_293 = arith.constant 632 : index
    %c0_294 = arith.constant 0 : index
    %859 = vector.load %arg5[%c632_293, %c0_294] : memref<944x128xf32, #tpu.memory_space<vmem>>, vector<1x32xf32>
    %cst_295 = arith.constant dense<0.000000e+00> : vector<8xf32>
    %860 = vector.multi_reduction <add>, %857, %cst_295 [1] : vector<8x32xf32> to vector<8xf32>
    %861 = vector.shape_cast %860 : vector<8xf32> to vector<8x1xf32>
    %cst_296 = arith.constant 3.200000e+01 : f32
    %862 = vector.broadcast %cst_296 : f32 to vector<8x1xf32>
    %863 = arith.divf %861, %862 : vector<8x1xf32>
    %864 = vector.broadcast %863 : vector<8x1xf32> to vector<8x32xf32>
    %865 = arith.subf %857, %864 : vector<8x32xf32>
    %866 = arith.mulf %865, %865 : vector<8x32xf32>
    %cst_297 = arith.constant dense<0.000000e+00> : vector<8xf32>
    %867 = vector.multi_reduction <add>, %866, %cst_297 [1] : vector<8x32xf32> to vector<8xf32>
    %868 = vector.shape_cast %867 : vector<8xf32> to vector<8x1xf32>
    %cst_298 = arith.constant 3.200000e+01 : f32
    %869 = vector.broadcast %cst_298 : f32 to vector<8x1xf32>
    %870 = arith.divf %868, %869 : vector<8x1xf32>
    %871 = vector.broadcast %863 : vector<8x1xf32> to vector<8x32xf32>
    %872 = arith.subf %857, %871 : vector<8x32xf32>
    %cst_299 = arith.constant 9.99999974E-6 : f32
    %873 = vector.broadcast %cst_299 : f32 to vector<8x1xf32>
    %874 = arith.addf %870, %873 : vector<8x1xf32>
    %875 = math.rsqrt %874 : vector<8x1xf32>
    %876 = vector.broadcast %875 : vector<8x1xf32> to vector<8x32xf32>
    %877 = arith.mulf %872, %876 : vector<8x32xf32>
    %878 = vector.broadcast %858 : vector<1x32xf32> to vector<8x32xf32>
    %879 = arith.mulf %877, %878 : vector<8x32xf32>
    %880 = vector.broadcast %859 : vector<1x32xf32> to vector<8x32xf32>
    %881 = arith.addf %879, %880 : vector<8x32xf32>
    %c528_300 = arith.constant 528 : index
    %c0_301 = arith.constant 0 : index
    %882 = vector.load %arg5[%c528_300, %c0_301] : memref<944x128xf32, #tpu.memory_space<vmem>>, vector<32x64xf32>
    %cst_302 = arith.constant dense<0.000000e+00> : vector<8x64xf32>
    %883 = tpu.matmul %881, %882, %cst_302 {dimension_numbers = #tpu.dot_dimension_numbers<[1], [0], [0], [1], [0, 0, 1, 1], [], []>} : vector<8x32xf32>, vector<32x64xf32>, vector<8x64xf32> -> vector<8x64xf32>
    %c520_303 = arith.constant 520 : index
    %c0_304 = arith.constant 0 : index
    %884 = vector.load %arg5[%c520_303, %c0_304] : memref<944x128xf32, #tpu.memory_space<vmem>>, vector<1x64xf32>
    %885 = vector.broadcast %884 : vector<1x64xf32> to vector<8x64xf32>
    %886 = arith.addf %883, %885 : vector<8x64xf32>
    %cst_305 = arith.constant 0.000000e+00 : f32
    %887 = vector.broadcast %cst_305 : f32 to vector<8x64xf32>
    %888 = arith.maximumf %886, %887 : vector<8x64xf32>
    %c568_306 = arith.constant 568 : index
    %c0_307 = arith.constant 0 : index
    %889 = vector.load %arg5[%c568_306, %c0_307] : memref<944x128xf32, #tpu.memory_space<vmem>>, vector<64x32xf32>
    %cst_308 = arith.constant dense<0.000000e+00> : vector<8x32xf32>
    %890 = tpu.matmul %888, %889, %cst_308 {dimension_numbers = #tpu.dot_dimension_numbers<[1], [0], [0], [1], [0, 0, 1, 1], [], []>} : vector<8x64xf32>, vector<64x32xf32>, vector<8x32xf32> -> vector<8x32xf32>
    %c560_309 = arith.constant 560 : index
    %c0_310 = arith.constant 0 : index
    %891 = vector.load %arg5[%c560_309, %c0_310] : memref<944x128xf32, #tpu.memory_space<vmem>>, vector<1x32xf32>
    %892 = vector.broadcast %891 : vector<1x32xf32> to vector<8x32xf32>
    %893 = arith.addf %890, %892 : vector<8x32xf32>
    %894 = arith.addf %881, %893 : vector<8x32xf32>
    %c656_311 = arith.constant 656 : index
    %c0_312 = arith.constant 0 : index
    %895 = vector.load %arg5[%c656_311, %c0_312] : memref<944x128xf32, #tpu.memory_space<vmem>>, vector<1x32xf32>
    %c648_313 = arith.constant 648 : index
    %c0_314 = arith.constant 0 : index
    %896 = vector.load %arg5[%c648_313, %c0_314] : memref<944x128xf32, #tpu.memory_space<vmem>>, vector<1x32xf32>
    %cst_315 = arith.constant dense<0.000000e+00> : vector<8xf32>
    %897 = vector.multi_reduction <add>, %894, %cst_315 [1] : vector<8x32xf32> to vector<8xf32>
    %898 = vector.shape_cast %897 : vector<8xf32> to vector<8x1xf32>
    %cst_316 = arith.constant 3.200000e+01 : f32
    %899 = vector.broadcast %cst_316 : f32 to vector<8x1xf32>
    %900 = arith.divf %898, %899 : vector<8x1xf32>
    %901 = vector.broadcast %900 : vector<8x1xf32> to vector<8x32xf32>
    %902 = arith.subf %894, %901 : vector<8x32xf32>
    %903 = arith.mulf %902, %902 : vector<8x32xf32>
    %cst_317 = arith.constant dense<0.000000e+00> : vector<8xf32>
    %904 = vector.multi_reduction <add>, %903, %cst_317 [1] : vector<8x32xf32> to vector<8xf32>
    %905 = vector.shape_cast %904 : vector<8xf32> to vector<8x1xf32>
    %cst_318 = arith.constant 3.200000e+01 : f32
    %906 = vector.broadcast %cst_318 : f32 to vector<8x1xf32>
    %907 = arith.divf %905, %906 : vector<8x1xf32>
    %908 = vector.broadcast %900 : vector<8x1xf32> to vector<8x32xf32>
    %909 = arith.subf %894, %908 : vector<8x32xf32>
    %cst_319 = arith.constant 9.99999974E-6 : f32
    %910 = vector.broadcast %cst_319 : f32 to vector<8x1xf32>
    %911 = arith.addf %907, %910 : vector<8x1xf32>
    %912 = math.rsqrt %911 : vector<8x1xf32>
    %913 = vector.broadcast %912 : vector<8x1xf32> to vector<8x32xf32>
    %914 = arith.mulf %909, %913 : vector<8x32xf32>
    %915 = vector.broadcast %895 : vector<1x32xf32> to vector<8x32xf32>
    %916 = arith.mulf %914, %915 : vector<8x32xf32>
    %917 = vector.broadcast %896 : vector<1x32xf32> to vector<8x32xf32>
    %918 = arith.addf %916, %917 : vector<8x32xf32>
    %c24_320 = arith.constant 24 : index
    %c0_321 = arith.constant 0 : index
    %919 = vector.load %arg5[%c24_320, %c0_321] : memref<944x128xf32, #tpu.memory_space<vmem>>, vector<32x96xf32>
    %c16_322 = arith.constant 16 : index
    %c0_323 = arith.constant 0 : index
    %920 = vector.load %arg5[%c16_322, %c0_323] : memref<944x128xf32, #tpu.memory_space<vmem>>, vector<1x32xf32>
    %cst_324 = arith.constant dense<0.000000e+00> : vector<8x96xf32>
    %921 = tpu.matmul %918, %919, %cst_324 {dimension_numbers = #tpu.dot_dimension_numbers<[1], [0], [0], [1], [0, 0, 1, 1], [], []>} : vector<8x32xf32>, vector<32x96xf32>, vector<8x96xf32> -> vector<8x96xf32>
    %922 = vector.extract_strided_slice %921 {offsets = [0, 0], sizes = [8, 32], strides = [1, 1]} : vector<8x96xf32> to vector<8x32xf32>
    %c1_i32_325 = arith.constant 1 : i32
    %923 = tpu.dynamic_rotate %922 by %c1_i32_325 dim 0 : vector<8x32xf32>, i32 -> vector<8x32xf32>
    %924 = vector.extract_strided_slice %921 {offsets = [0, 32], sizes = [8, 32], strides = [1, 1]} : vector<8x96xf32> to vector<8x32xf32>
    %925 = arith.addf %923, %924 : vector<8x32xf32>
    %926 = vector.extract_strided_slice %921 {offsets = [0, 64], sizes = [8, 32], strides = [1, 1]} : vector<8x96xf32> to vector<8x32xf32>
    %c7_i32_326 = arith.constant 7 : i32
    %927 = tpu.dynamic_rotate %926 by %c7_i32_326 dim 0 : vector<8x32xf32>, i32 -> vector<8x32xf32>
    %928 = arith.addf %925, %927 : vector<8x32xf32>
    %929 = vector.broadcast %920 : vector<1x32xf32> to vector<8x32xf32>
    %930 = arith.addf %928, %929 : vector<8x32xf32>
    %c8_327 = arith.constant 8 : index
    %c0_328 = arith.constant 0 : index
    %931 = vector.load %arg5[%c8_327, %c0_328] : memref<944x128xf32, #tpu.memory_space<vmem>>, vector<1x32xf32>
    %cst_329 = arith.constant 0.999994993 : f32
    %932 = vector.broadcast %cst_329 : f32 to vector<1x32xf32>
    %933 = arith.mulf %931, %932 : vector<1x32xf32>
    %934 = vector.broadcast %933 : vector<1x32xf32> to vector<8x32xf32>
    %935 = arith.mulf %930, %934 : vector<8x32xf32>
    %c0_330 = arith.constant 0 : index
    %c0_331 = arith.constant 0 : index
    %936 = vector.load %arg5[%c0_330, %c0_331] : memref<944x128xf32, #tpu.memory_space<vmem>>, vector<1x32xf32>
    %937 = vector.broadcast %936 : vector<1x32xf32> to vector<8x32xf32>
    %938 = arith.addf %935, %937 : vector<8x32xf32>
    %cst_332 = arith.constant 0.000000e+00 : f32
    %939 = vector.broadcast %cst_332 : f32 to vector<8x32xf32>
    %940 = arith.cmpf ogt, %938, %939 : vector<8x32xf32>
    %cst_333 = arith.constant 0.000000e+00 : f32
    %941 = vector.broadcast %cst_333 : f32 to vector<8x32xf32>
    %942 = arith.minimumf %938, %941 : vector<8x32xf32>
    %943 = math.exp %942 : vector<8x32xf32>
    %cst_334 = arith.constant 1.000000e+00 : f32
    %944 = vector.broadcast %cst_334 : f32 to vector<8x32xf32>
    %945 = arith.subf %943, %944 : vector<8x32xf32>
    %946 = arith.select %940, %938, %945 : vector<8x32xi1>, vector<8x32xf32>
    %947 = tpu.iota {dimensions = array<i32: 0>} : vector<4x8xi32>
    %948 = tpu.iota {dimensions = array<i32: 1>} : vector<4x8xi32>
    %c2_i32_335 = arith.constant 2 : i32
    %949 = vector.broadcast %c2_i32_335 : i32 to vector<4x8xi32>
    %950 = arith.muli %949, %947 : vector<4x8xi32>
    %c1_i32_336 = arith.constant 1 : i32
    %951 = vector.broadcast %c1_i32_336 : i32 to vector<4x8xi32>
    %952 = arith.subi %950, %951 : vector<4x8xi32>
    %c0_i32_337 = arith.constant 0 : i32
    %c7_i32_338 = arith.constant 7 : i32
    %953 = vector.broadcast %c0_i32_337 : i32 to vector<4x8xi32>
    %954 = arith.maxsi %953, %952 : vector<4x8xi32>
    %955 = vector.broadcast %c7_i32_338 : i32 to vector<4x8xi32>
    %956 = arith.minsi %955, %954 : vector<4x8xi32>
    %957 = arith.cmpi eq, %948, %956 : vector<4x8xi32>
    %958 = arith.extui %957 : vector<4x8xi1> to vector<4x8xi32>
    %959 = arith.sitofp %958 : vector<4x8xi32> to vector<4x8xf32>
    %960 = tpu.iota {dimensions = array<i32: 0>} : vector<4x8xi32>
    %961 = tpu.iota {dimensions = array<i32: 1>} : vector<4x8xi32>
    %c2_i32_339 = arith.constant 2 : i32
    %962 = vector.broadcast %c2_i32_339 : i32 to vector<4x8xi32>
    %963 = arith.muli %962, %960 : vector<4x8xi32>
    %964 = arith.cmpi eq, %961, %963 : vector<4x8xi32>
    %965 = arith.extui %964 : vector<4x8xi1> to vector<4x8xi32>
    %966 = arith.sitofp %965 : vector<4x8xi32> to vector<4x8xf32>
    %967 = tpu.iota {dimensions = array<i32: 0>} : vector<4x8xi32>
    %968 = tpu.iota {dimensions = array<i32: 1>} : vector<4x8xi32>
    %c2_i32_340 = arith.constant 2 : i32
    %969 = vector.broadcast %c2_i32_340 : i32 to vector<4x8xi32>
    %970 = arith.muli %969, %967 : vector<4x8xi32>
    %c1_i32_341 = arith.constant 1 : i32
    %971 = vector.broadcast %c1_i32_341 : i32 to vector<4x8xi32>
    %972 = arith.addi %970, %971 : vector<4x8xi32>
    %c0_i32_342 = arith.constant 0 : i32
    %c7_i32_343 = arith.constant 7 : i32
    %973 = vector.broadcast %c0_i32_342 : i32 to vector<4x8xi32>
    %974 = arith.maxsi %973, %972 : vector<4x8xi32>
    %975 = vector.broadcast %c7_i32_343 : i32 to vector<4x8xi32>
    %976 = arith.minsi %975, %974 : vector<4x8xi32>
    %977 = arith.cmpi eq, %968, %976 : vector<4x8xi32>
    %978 = arith.extui %977 : vector<4x8xi1> to vector<4x8xi32>
    %979 = arith.sitofp %978 : vector<4x8xi32> to vector<4x8xf32>
    %cst_344 = arith.constant dense<0.000000e+00> : vector<4x32xf32>
    %980 = tpu.matmul %959, %946, %cst_344 {dimension_numbers = #tpu.dot_dimension_numbers<[1], [0], [0], [1], [0, 0, 1, 1], [], []>} : vector<4x8xf32>, vector<8x32xf32>, vector<4x32xf32> -> vector<4x32xf32>
    %cst_345 = arith.constant dense<0.000000e+00> : vector<4x32xf32>
    %981 = tpu.matmul %966, %946, %cst_345 {dimension_numbers = #tpu.dot_dimension_numbers<[1], [0], [0], [1], [0, 0, 1, 1], [], []>} : vector<4x8xf32>, vector<8x32xf32>, vector<4x32xf32> -> vector<4x32xf32>
    %982 = arith.maximumf %980, %981 : vector<4x32xf32>
    %cst_346 = arith.constant dense<0.000000e+00> : vector<4x32xf32>
    %983 = tpu.matmul %979, %946, %cst_346 {dimension_numbers = #tpu.dot_dimension_numbers<[1], [0], [0], [1], [0, 0, 1, 1], [], []>} : vector<4x8xf32>, vector<8x32xf32>, vector<4x32xf32> -> vector<4x32xf32>
    %984 = arith.maximumf %982, %983 : vector<4x32xf32>
    %c712_347 = arith.constant 712 : index
    %c0_348 = arith.constant 0 : index
    %985 = vector.load %arg5[%c712_347, %c0_348] : memref<944x128xf32, #tpu.memory_space<vmem>>, vector<32x96xf32>
    %c672_349 = arith.constant 672 : index
    %c0_350 = arith.constant 0 : index
    %986 = vector.load %arg5[%c672_349, %c0_350] : memref<944x128xf32, #tpu.memory_space<vmem>>, vector<1x96xf32>
    %c680_351 = arith.constant 680 : index
    %c0_352 = arith.constant 0 : index
    %987 = vector.load %arg5[%c680_351, %c0_352] : memref<944x128xf32, #tpu.memory_space<vmem>>, vector<32x32xf32>
    %c664_353 = arith.constant 664 : index
    %c0_354 = arith.constant 0 : index
    %988 = vector.load %arg5[%c664_353, %c0_354] : memref<944x128xf32, #tpu.memory_space<vmem>>, vector<1x32xf32>
    %cst_355 = arith.constant dense<0.000000e+00> : vector<4x96xf32>
    %989 = tpu.matmul %984, %985, %cst_355 {dimension_numbers = #tpu.dot_dimension_numbers<[1], [0], [0], [1], [0, 0, 1, 1], [], []>} : vector<4x32xf32>, vector<32x96xf32>, vector<4x96xf32> -> vector<4x96xf32>
    %990 = vector.broadcast %986 : vector<1x96xf32> to vector<4x96xf32>
    %991 = arith.addf %989, %990 : vector<4x96xf32>
    %992 = vector.extract_strided_slice %991 {offsets = [0, 0], sizes = [4, 32], strides = [1, 1]} : vector<4x96xf32> to vector<4x32xf32>
    %993 = vector.extract_strided_slice %991 {offsets = [0, 32], sizes = [4, 32], strides = [1, 1]} : vector<4x96xf32> to vector<4x32xf32>
    %994 = vector.extract_strided_slice %991 {offsets = [0, 64], sizes = [4, 32], strides = [1, 1]} : vector<4x96xf32> to vector<4x32xf32>
    %995 = tpu.iota {dimensions = array<i32: 0>} : vector<16x32xi32>
    %996 = tpu.iota {dimensions = array<i32: 1>} : vector<16x32xi32>
    %c0_i32_356 = arith.constant 0 : i32
    %997 = vector.broadcast %c0_i32_356 : i32 to vector<16x32xi32>
    %c4_i32_357 = arith.constant 4 : i32
    %998 = vector.broadcast %c4_i32_357 : i32 to vector<16x32xi32>
    %999 = arith.cmpi sge, %995, %998 : vector<16x32xi32>
    %1000 = arith.extui %999 : vector<16x32xi1> to vector<16x32xi32>
    %1001 = arith.addi %997, %1000 : vector<16x32xi32>
    %c8_i32_358 = arith.constant 8 : i32
    %1002 = vector.broadcast %c8_i32_358 : i32 to vector<16x32xi32>
    %1003 = arith.cmpi sge, %995, %1002 : vector<16x32xi32>
    %1004 = arith.extui %1003 : vector<16x32xi1> to vector<16x32xi32>
    %1005 = arith.addi %1001, %1004 : vector<16x32xi32>
    %c12_i32_359 = arith.constant 12 : i32
    %1006 = vector.broadcast %c12_i32_359 : i32 to vector<16x32xi32>
    %1007 = arith.cmpi sge, %995, %1006 : vector<16x32xi32>
    %1008 = arith.extui %1007 : vector<16x32xi1> to vector<16x32xi32>
    %1009 = arith.addi %1005, %1008 : vector<16x32xi32>
    %c0_i32_360 = arith.constant 0 : i32
    %1010 = vector.broadcast %c0_i32_360 : i32 to vector<16x32xi32>
    %c8_i32_361 = arith.constant 8 : i32
    %1011 = vector.broadcast %c8_i32_361 : i32 to vector<16x32xi32>
    %1012 = arith.cmpi sge, %996, %1011 : vector<16x32xi32>
    %1013 = arith.extui %1012 : vector<16x32xi1> to vector<16x32xi32>
    %1014 = arith.addi %1010, %1013 : vector<16x32xi32>
    %c16_i32_362 = arith.constant 16 : i32
    %1015 = vector.broadcast %c16_i32_362 : i32 to vector<16x32xi32>
    %1016 = arith.cmpi sge, %996, %1015 : vector<16x32xi32>
    %1017 = arith.extui %1016 : vector<16x32xi1> to vector<16x32xi32>
    %1018 = arith.addi %1014, %1017 : vector<16x32xi32>
    %c24_i32_363 = arith.constant 24 : i32
    %1019 = vector.broadcast %c24_i32_363 : i32 to vector<16x32xi32>
    %1020 = arith.cmpi sge, %996, %1019 : vector<16x32xi32>
    %1021 = arith.extui %1020 : vector<16x32xi1> to vector<16x32xi32>
    %1022 = arith.addi %1018, %1021 : vector<16x32xi32>
    %1023 = arith.cmpi eq, %1009, %1022 : vector<16x32xi32>
    %1024 = arith.extui %1023 : vector<16x32xi1> to vector<16x32xi32>
    %1025 = arith.sitofp %1024 : vector<16x32xi32> to vector<16x32xf32>
    %1026 = tpu.concatenate %993, %993, %993, %993 in 0 : vector<4x32xf32>, vector<4x32xf32>, vector<4x32xf32>, vector<4x32xf32> -> vector<16x32xf32>
    %1027 = arith.mulf %1026, %1025 : vector<16x32xf32>
    %1028 = tpu.concatenate %994, %994, %994, %994 in 0 : vector<4x32xf32>, vector<4x32xf32>, vector<4x32xf32>, vector<4x32xf32> -> vector<16x32xf32>
    %1029 = arith.mulf %1028, %1025 : vector<16x32xf32>
    %cst_364 = arith.constant dense<0.000000e+00> : vector<4x16xf32>
    %1030 = tpu.matmul %992, %1027, %cst_364 {dimension_numbers = #tpu.dot_dimension_numbers<[1], [1], [0], [0], [0, 0, 1, 0], [], []>} : vector<4x32xf32>, vector<16x32xf32>, vector<4x16xf32> -> vector<4x16xf32>
    %cst_365 = arith.constant 0.353553385 : f32
    %1031 = vector.broadcast %cst_365 : f32 to vector<4x16xf32>
    %1032 = arith.mulf %1030, %1031 : vector<4x16xf32>
    %cst_366 = arith.constant dense<0xFF800000> : vector<4xf32>
    %1033 = vector.multi_reduction <maximumf>, %1032, %cst_366 [1] : vector<4x16xf32> to vector<4xf32>
    %1034 = vector.shape_cast %1033 : vector<4xf32> to vector<4x1xf32>
    %1035 = vector.broadcast %1034 : vector<4x1xf32> to vector<4x16xf32>
    %1036 = arith.subf %1032, %1035 : vector<4x16xf32>
    %1037 = math.exp %1036 : vector<4x16xf32>
    %1038 = tpu.iota {dimensions = array<i32: 0>} : vector<16x16xi32>
    %1039 = tpu.iota {dimensions = array<i32: 1>} : vector<16x16xi32>
    %c0_i32_367 = arith.constant 0 : i32
    %1040 = vector.broadcast %c0_i32_367 : i32 to vector<16x16xi32>
    %c4_i32_368 = arith.constant 4 : i32
    %1041 = vector.broadcast %c4_i32_368 : i32 to vector<16x16xi32>
    %1042 = arith.cmpi sge, %1038, %1041 : vector<16x16xi32>
    %1043 = arith.extui %1042 : vector<16x16xi1> to vector<16x16xi32>
    %1044 = arith.addi %1040, %1043 : vector<16x16xi32>
    %c8_i32_369 = arith.constant 8 : i32
    %1045 = vector.broadcast %c8_i32_369 : i32 to vector<16x16xi32>
    %1046 = arith.cmpi sge, %1038, %1045 : vector<16x16xi32>
    %1047 = arith.extui %1046 : vector<16x16xi1> to vector<16x16xi32>
    %1048 = arith.addi %1044, %1047 : vector<16x16xi32>
    %c12_i32_370 = arith.constant 12 : i32
    %1049 = vector.broadcast %c12_i32_370 : i32 to vector<16x16xi32>
    %1050 = arith.cmpi sge, %1038, %1049 : vector<16x16xi32>
    %1051 = arith.extui %1050 : vector<16x16xi1> to vector<16x16xi32>
    %1052 = arith.addi %1048, %1051 : vector<16x16xi32>
    %c0_i32_371 = arith.constant 0 : i32
    %1053 = vector.broadcast %c0_i32_371 : i32 to vector<16x16xi32>
    %c4_i32_372 = arith.constant 4 : i32
    %1054 = vector.broadcast %c4_i32_372 : i32 to vector<16x16xi32>
    %1055 = arith.cmpi sge, %1039, %1054 : vector<16x16xi32>
    %1056 = arith.extui %1055 : vector<16x16xi1> to vector<16x16xi32>
    %1057 = arith.addi %1053, %1056 : vector<16x16xi32>
    %c8_i32_373 = arith.constant 8 : i32
    %1058 = vector.broadcast %c8_i32_373 : i32 to vector<16x16xi32>
    %1059 = arith.cmpi sge, %1039, %1058 : vector<16x16xi32>
    %1060 = arith.extui %1059 : vector<16x16xi1> to vector<16x16xi32>
    %1061 = arith.addi %1057, %1060 : vector<16x16xi32>
    %c12_i32_374 = arith.constant 12 : i32
    %1062 = vector.broadcast %c12_i32_374 : i32 to vector<16x16xi32>
    %1063 = arith.cmpi sge, %1039, %1062 : vector<16x16xi32>
    %1064 = arith.extui %1063 : vector<16x16xi1> to vector<16x16xi32>
    %1065 = arith.addi %1061, %1064 : vector<16x16xi32>
    %1066 = arith.cmpi eq, %1052, %1065 : vector<16x16xi32>
    %1067 = arith.extui %1066 : vector<16x16xi1> to vector<16x16xi32>
    %1068 = arith.sitofp %1067 : vector<16x16xi32> to vector<16x16xf32>
    %cst_375 = arith.constant dense<0.000000e+00> : vector<4x16xf32>
    %1069 = tpu.matmul %1037, %1068, %cst_375 {dimension_numbers = #tpu.dot_dimension_numbers<[1], [0], [0], [1], [0, 0, 1, 1], [], []>} : vector<4x16xf32>, vector<16x16xf32>, vector<4x16xf32> -> vector<4x16xf32>
    %1070 = arith.divf %1037, %1069 : vector<4x16xf32>
    %cst_376 = arith.constant dense<0.000000e+00> : vector<4x32xf32>
    %1071 = tpu.matmul %1070, %1029, %cst_376 {dimension_numbers = #tpu.dot_dimension_numbers<[1], [0], [0], [1], [0, 0, 1, 1], [], []>} : vector<4x16xf32>, vector<16x32xf32>, vector<4x32xf32> -> vector<4x32xf32>
    %cst_377 = arith.constant dense<0.000000e+00> : vector<4x32xf32>
    %1072 = tpu.matmul %1071, %987, %cst_377 {dimension_numbers = #tpu.dot_dimension_numbers<[1], [0], [0], [1], [0, 0, 1, 1], [], []>} : vector<4x32xf32>, vector<32x32xf32>, vector<4x32xf32> -> vector<4x32xf32>
    %1073 = vector.broadcast %988 : vector<1x32xf32> to vector<4x32xf32>
    %1074 = arith.addf %1072, %1073 : vector<4x32xf32>
    %1075 = arith.addf %984, %1074 : vector<4x32xf32>
    %c864_378 = arith.constant 864 : index
    %c0_379 = arith.constant 0 : index
    %1076 = vector.load %arg5[%c864_378, %c0_379] : memref<944x128xf32, #tpu.memory_space<vmem>>, vector<1x32xf32>
    %c856_380 = arith.constant 856 : index
    %c0_381 = arith.constant 0 : index
    %1077 = vector.load %arg5[%c856_380, %c0_381] : memref<944x128xf32, #tpu.memory_space<vmem>>, vector<1x32xf32>
    %cst_382 = arith.constant dense<0.000000e+00> : vector<4xf32>
    %1078 = vector.multi_reduction <add>, %1075, %cst_382 [1] : vector<4x32xf32> to vector<4xf32>
    %1079 = vector.shape_cast %1078 : vector<4xf32> to vector<4x1xf32>
    %cst_383 = arith.constant 3.200000e+01 : f32
    %1080 = vector.broadcast %cst_383 : f32 to vector<4x1xf32>
    %1081 = arith.divf %1079, %1080 : vector<4x1xf32>
    %1082 = vector.broadcast %1081 : vector<4x1xf32> to vector<4x32xf32>
    %1083 = arith.subf %1075, %1082 : vector<4x32xf32>
    %1084 = arith.mulf %1083, %1083 : vector<4x32xf32>
    %cst_384 = arith.constant dense<0.000000e+00> : vector<4xf32>
    %1085 = vector.multi_reduction <add>, %1084, %cst_384 [1] : vector<4x32xf32> to vector<4xf32>
    %1086 = vector.shape_cast %1085 : vector<4xf32> to vector<4x1xf32>
    %cst_385 = arith.constant 3.200000e+01 : f32
    %1087 = vector.broadcast %cst_385 : f32 to vector<4x1xf32>
    %1088 = arith.divf %1086, %1087 : vector<4x1xf32>
    %1089 = vector.broadcast %1081 : vector<4x1xf32> to vector<4x32xf32>
    %1090 = arith.subf %1075, %1089 : vector<4x32xf32>
    %cst_386 = arith.constant 9.99999974E-6 : f32
    %1091 = vector.broadcast %cst_386 : f32 to vector<4x1xf32>
    %1092 = arith.addf %1088, %1091 : vector<4x1xf32>
    %1093 = math.rsqrt %1092 : vector<4x1xf32>
    %1094 = vector.broadcast %1093 : vector<4x1xf32> to vector<4x32xf32>
    %1095 = arith.mulf %1090, %1094 : vector<4x32xf32>
    %1096 = vector.broadcast %1076 : vector<1x32xf32> to vector<4x32xf32>
    %1097 = arith.mulf %1095, %1096 : vector<4x32xf32>
    %1098 = vector.broadcast %1077 : vector<1x32xf32> to vector<4x32xf32>
    %1099 = arith.addf %1097, %1098 : vector<4x32xf32>
    %c752_387 = arith.constant 752 : index
    %c0_388 = arith.constant 0 : index
    %1100 = vector.load %arg5[%c752_387, %c0_388] : memref<944x128xf32, #tpu.memory_space<vmem>>, vector<32x64xf32>
    %cst_389 = arith.constant dense<0.000000e+00> : vector<4x64xf32>
    %1101 = tpu.matmul %1099, %1100, %cst_389 {dimension_numbers = #tpu.dot_dimension_numbers<[1], [0], [0], [1], [0, 0, 1, 1], [], []>} : vector<4x32xf32>, vector<32x64xf32>, vector<4x64xf32> -> vector<4x64xf32>
    %c744_390 = arith.constant 744 : index
    %c0_391 = arith.constant 0 : index
    %1102 = vector.load %arg5[%c744_390, %c0_391] : memref<944x128xf32, #tpu.memory_space<vmem>>, vector<1x64xf32>
    %1103 = vector.broadcast %1102 : vector<1x64xf32> to vector<4x64xf32>
    %1104 = arith.addf %1101, %1103 : vector<4x64xf32>
    %cst_392 = arith.constant 0.000000e+00 : f32
    %1105 = vector.broadcast %cst_392 : f32 to vector<4x64xf32>
    %1106 = arith.maximumf %1104, %1105 : vector<4x64xf32>
    %c792_393 = arith.constant 792 : index
    %c0_394 = arith.constant 0 : index
    %1107 = vector.load %arg5[%c792_393, %c0_394] : memref<944x128xf32, #tpu.memory_space<vmem>>, vector<64x32xf32>
    %cst_395 = arith.constant dense<0.000000e+00> : vector<4x32xf32>
    %1108 = tpu.matmul %1106, %1107, %cst_395 {dimension_numbers = #tpu.dot_dimension_numbers<[1], [0], [0], [1], [0, 0, 1, 1], [], []>} : vector<4x64xf32>, vector<64x32xf32>, vector<4x32xf32> -> vector<4x32xf32>
    %c784_396 = arith.constant 784 : index
    %c0_397 = arith.constant 0 : index
    %1109 = vector.load %arg5[%c784_396, %c0_397] : memref<944x128xf32, #tpu.memory_space<vmem>>, vector<1x32xf32>
    %1110 = vector.broadcast %1109 : vector<1x32xf32> to vector<4x32xf32>
    %1111 = arith.addf %1108, %1110 : vector<4x32xf32>
    %1112 = arith.addf %1099, %1111 : vector<4x32xf32>
    %c880_398 = arith.constant 880 : index
    %c0_399 = arith.constant 0 : index
    %1113 = vector.load %arg5[%c880_398, %c0_399] : memref<944x128xf32, #tpu.memory_space<vmem>>, vector<1x32xf32>
    %c872_400 = arith.constant 872 : index
    %c0_401 = arith.constant 0 : index
    %1114 = vector.load %arg5[%c872_400, %c0_401] : memref<944x128xf32, #tpu.memory_space<vmem>>, vector<1x32xf32>
    %cst_402 = arith.constant dense<0.000000e+00> : vector<4xf32>
    %1115 = vector.multi_reduction <add>, %1112, %cst_402 [1] : vector<4x32xf32> to vector<4xf32>
    %1116 = vector.shape_cast %1115 : vector<4xf32> to vector<4x1xf32>
    %cst_403 = arith.constant 3.200000e+01 : f32
    %1117 = vector.broadcast %cst_403 : f32 to vector<4x1xf32>
    %1118 = arith.divf %1116, %1117 : vector<4x1xf32>
    %1119 = vector.broadcast %1118 : vector<4x1xf32> to vector<4x32xf32>
    %1120 = arith.subf %1112, %1119 : vector<4x32xf32>
    %1121 = arith.mulf %1120, %1120 : vector<4x32xf32>
    %cst_404 = arith.constant dense<0.000000e+00> : vector<4xf32>
    %1122 = vector.multi_reduction <add>, %1121, %cst_404 [1] : vector<4x32xf32> to vector<4xf32>
    %1123 = vector.shape_cast %1122 : vector<4xf32> to vector<4x1xf32>
    %cst_405 = arith.constant 3.200000e+01 : f32
    %1124 = vector.broadcast %cst_405 : f32 to vector<4x1xf32>
    %1125 = arith.divf %1123, %1124 : vector<4x1xf32>
    %1126 = vector.broadcast %1118 : vector<4x1xf32> to vector<4x32xf32>
    %1127 = arith.subf %1112, %1126 : vector<4x32xf32>
    %cst_406 = arith.constant 9.99999974E-6 : f32
    %1128 = vector.broadcast %cst_406 : f32 to vector<4x1xf32>
    %1129 = arith.addf %1125, %1128 : vector<4x1xf32>
    %1130 = math.rsqrt %1129 : vector<4x1xf32>
    %1131 = vector.broadcast %1130 : vector<4x1xf32> to vector<4x32xf32>
    %1132 = arith.mulf %1127, %1131 : vector<4x32xf32>
    %1133 = vector.broadcast %1113 : vector<1x32xf32> to vector<4x32xf32>
    %1134 = arith.mulf %1132, %1133 : vector<4x32xf32>
    %1135 = vector.broadcast %1114 : vector<1x32xf32> to vector<4x32xf32>
    %1136 = arith.addf %1134, %1135 : vector<4x32xf32>
    %c896_407 = arith.constant 896 : index
    %c0_408 = arith.constant 0 : index
    %1137 = vector.load %arg5[%c896_407, %c0_408] : memref<944x128xf32, #tpu.memory_space<vmem>>, vector<1x32xf32>
    %c888_409 = arith.constant 888 : index
    %c0_410 = arith.constant 0 : index
    %1138 = vector.load %arg5[%c888_409, %c0_410] : memref<944x128xf32, #tpu.memory_space<vmem>>, vector<1x32xf32>
    %cst_411 = arith.constant dense<0.000000e+00> : vector<4xf32>
    %1139 = vector.multi_reduction <add>, %1136, %cst_411 [1] : vector<4x32xf32> to vector<4xf32>
    %1140 = vector.shape_cast %1139 : vector<4xf32> to vector<4x1xf32>
    %cst_412 = arith.constant 3.200000e+01 : f32
    %1141 = vector.broadcast %cst_412 : f32 to vector<4x1xf32>
    %1142 = arith.divf %1140, %1141 : vector<4x1xf32>
    %1143 = vector.broadcast %1142 : vector<4x1xf32> to vector<4x32xf32>
    %1144 = arith.subf %1136, %1143 : vector<4x32xf32>
    %1145 = arith.mulf %1144, %1144 : vector<4x32xf32>
    %cst_413 = arith.constant dense<0.000000e+00> : vector<4xf32>
    %1146 = vector.multi_reduction <add>, %1145, %cst_413 [1] : vector<4x32xf32> to vector<4xf32>
    %1147 = vector.shape_cast %1146 : vector<4xf32> to vector<4x1xf32>
    %cst_414 = arith.constant 3.200000e+01 : f32
    %1148 = vector.broadcast %cst_414 : f32 to vector<4x1xf32>
    %1149 = arith.divf %1147, %1148 : vector<4x1xf32>
    %1150 = vector.broadcast %1142 : vector<4x1xf32> to vector<4x32xf32>
    %1151 = arith.subf %1136, %1150 : vector<4x32xf32>
    %cst_415 = arith.constant 9.99999974E-6 : f32
    %1152 = vector.broadcast %cst_415 : f32 to vector<4x1xf32>
    %1153 = arith.addf %1149, %1152 : vector<4x1xf32>
    %1154 = math.rsqrt %1153 : vector<4x1xf32>
    %1155 = vector.broadcast %1154 : vector<4x1xf32> to vector<4x32xf32>
    %1156 = arith.mulf %1151, %1155 : vector<4x32xf32>
    %1157 = vector.broadcast %1137 : vector<1x32xf32> to vector<4x32xf32>
    %1158 = arith.mulf %1156, %1157 : vector<4x32xf32>
    %1159 = vector.broadcast %1138 : vector<1x32xf32> to vector<4x32xf32>
    %1160 = arith.addf %1158, %1159 : vector<4x32xf32>
    %c368_416 = arith.constant 368 : index
    %c0_417 = arith.constant 0 : index
    %1161 = vector.load %arg5[%c368_416, %c0_417] : memref<944x128xf32, #tpu.memory_space<vmem>>, vector<32x96xf32>
    %c328_418 = arith.constant 328 : index
    %c0_419 = arith.constant 0 : index
    %1162 = vector.load %arg5[%c328_418, %c0_419] : memref<944x128xf32, #tpu.memory_space<vmem>>, vector<1x96xf32>
    %c336_420 = arith.constant 336 : index
    %c0_421 = arith.constant 0 : index
    %1163 = vector.load %arg5[%c336_420, %c0_421] : memref<944x128xf32, #tpu.memory_space<vmem>>, vector<32x32xf32>
    %c320_422 = arith.constant 320 : index
    %c0_423 = arith.constant 0 : index
    %1164 = vector.load %arg5[%c320_422, %c0_423] : memref<944x128xf32, #tpu.memory_space<vmem>>, vector<1x32xf32>
    %cst_424 = arith.constant dense<0.000000e+00> : vector<8x96xf32>
    %1165 = tpu.matmul %766, %1161, %cst_424 {dimension_numbers = #tpu.dot_dimension_numbers<[1], [0], [0], [1], [0, 0, 1, 1], [], []>} : vector<8x32xf32>, vector<32x96xf32>, vector<8x96xf32> -> vector<8x96xf32>
    %1166 = vector.broadcast %1162 : vector<1x96xf32> to vector<8x96xf32>
    %1167 = arith.addf %1165, %1166 : vector<8x96xf32>
    %1168 = vector.extract_strided_slice %1167 {offsets = [0, 0], sizes = [8, 32], strides = [1, 1]} : vector<8x96xf32> to vector<8x32xf32>
    %1169 = vector.extract_strided_slice %1167 {offsets = [0, 32], sizes = [8, 32], strides = [1, 1]} : vector<8x96xf32> to vector<8x32xf32>
    %1170 = vector.extract_strided_slice %1167 {offsets = [0, 64], sizes = [8, 32], strides = [1, 1]} : vector<8x96xf32> to vector<8x32xf32>
    %1171 = tpu.iota {dimensions = array<i32: 0>} : vector<32x32xi32>
    %1172 = tpu.iota {dimensions = array<i32: 1>} : vector<32x32xi32>
    %c0_i32_425 = arith.constant 0 : i32
    %1173 = vector.broadcast %c0_i32_425 : i32 to vector<32x32xi32>
    %c8_i32_426 = arith.constant 8 : i32
    %1174 = vector.broadcast %c8_i32_426 : i32 to vector<32x32xi32>
    %1175 = arith.cmpi sge, %1171, %1174 : vector<32x32xi32>
    %1176 = arith.extui %1175 : vector<32x32xi1> to vector<32x32xi32>
    %1177 = arith.addi %1173, %1176 : vector<32x32xi32>
    %c16_i32_427 = arith.constant 16 : i32
    %1178 = vector.broadcast %c16_i32_427 : i32 to vector<32x32xi32>
    %1179 = arith.cmpi sge, %1171, %1178 : vector<32x32xi32>
    %1180 = arith.extui %1179 : vector<32x32xi1> to vector<32x32xi32>
    %1181 = arith.addi %1177, %1180 : vector<32x32xi32>
    %c24_i32_428 = arith.constant 24 : i32
    %1182 = vector.broadcast %c24_i32_428 : i32 to vector<32x32xi32>
    %1183 = arith.cmpi sge, %1171, %1182 : vector<32x32xi32>
    %1184 = arith.extui %1183 : vector<32x32xi1> to vector<32x32xi32>
    %1185 = arith.addi %1181, %1184 : vector<32x32xi32>
    %c0_i32_429 = arith.constant 0 : i32
    %1186 = vector.broadcast %c0_i32_429 : i32 to vector<32x32xi32>
    %c8_i32_430 = arith.constant 8 : i32
    %1187 = vector.broadcast %c8_i32_430 : i32 to vector<32x32xi32>
    %1188 = arith.cmpi sge, %1172, %1187 : vector<32x32xi32>
    %1189 = arith.extui %1188 : vector<32x32xi1> to vector<32x32xi32>
    %1190 = arith.addi %1186, %1189 : vector<32x32xi32>
    %c16_i32_431 = arith.constant 16 : i32
    %1191 = vector.broadcast %c16_i32_431 : i32 to vector<32x32xi32>
    %1192 = arith.cmpi sge, %1172, %1191 : vector<32x32xi32>
    %1193 = arith.extui %1192 : vector<32x32xi1> to vector<32x32xi32>
    %1194 = arith.addi %1190, %1193 : vector<32x32xi32>
    %c24_i32_432 = arith.constant 24 : i32
    %1195 = vector.broadcast %c24_i32_432 : i32 to vector<32x32xi32>
    %1196 = arith.cmpi sge, %1172, %1195 : vector<32x32xi32>
    %1197 = arith.extui %1196 : vector<32x32xi1> to vector<32x32xi32>
    %1198 = arith.addi %1194, %1197 : vector<32x32xi32>
    %1199 = arith.cmpi eq, %1185, %1198 : vector<32x32xi32>
    %1200 = arith.extui %1199 : vector<32x32xi1> to vector<32x32xi32>
    %1201 = arith.sitofp %1200 : vector<32x32xi32> to vector<32x32xf32>
    %1202 = tpu.concatenate %1169, %1169, %1169, %1169 in 0 : vector<8x32xf32>, vector<8x32xf32>, vector<8x32xf32>, vector<8x32xf32> -> vector<32x32xf32>
    %1203 = arith.mulf %1202, %1201 : vector<32x32xf32>
    %1204 = tpu.concatenate %1170, %1170, %1170, %1170 in 0 : vector<8x32xf32>, vector<8x32xf32>, vector<8x32xf32>, vector<8x32xf32> -> vector<32x32xf32>
    %1205 = arith.mulf %1204, %1201 : vector<32x32xf32>
    %cst_433 = arith.constant dense<0.000000e+00> : vector<8x32xf32>
    %1206 = tpu.matmul %1168, %1203, %cst_433 {dimension_numbers = #tpu.dot_dimension_numbers<[1], [1], [0], [0], [0, 0, 1, 0], [], []>} : vector<8x32xf32>, vector<32x32xf32>, vector<8x32xf32> -> vector<8x32xf32>
    %cst_434 = arith.constant 0.353553385 : f32
    %1207 = vector.broadcast %cst_434 : f32 to vector<8x32xf32>
    %1208 = arith.mulf %1206, %1207 : vector<8x32xf32>
    %1209 = tpu.iota {dimensions = array<i32: 0>} : vector<8x32xi32>
    %1210 = tpu.iota {dimensions = array<i32: 1>} : vector<8x8xi32>
    %1211 = tpu.concatenate %1210, %1210, %1210, %1210 in 1 : vector<8x8xi32>, vector<8x8xi32>, vector<8x8xi32>, vector<8x8xi32> -> vector<8x32xi32>
    %1212 = arith.cmpi sgt, %1211, %1209 : vector<8x32xi32>
    %cst_435 = arith.constant -1.000000e+30 : f32
    %1213 = vector.broadcast %cst_435 : f32 to vector<8x32xf32>
    %1214 = arith.select %1212, %1213, %1208 : vector<8x32xi1>, vector<8x32xf32>
    %cst_436 = arith.constant dense<0xFF800000> : vector<8xf32>
    %1215 = vector.multi_reduction <maximumf>, %1214, %cst_436 [1] : vector<8x32xf32> to vector<8xf32>
    %1216 = vector.shape_cast %1215 : vector<8xf32> to vector<8x1xf32>
    %1217 = vector.broadcast %1216 : vector<8x1xf32> to vector<8x32xf32>
    %1218 = arith.subf %1214, %1217 : vector<8x32xf32>
    %1219 = math.exp %1218 : vector<8x32xf32>
    %1220 = tpu.iota {dimensions = array<i32: 0>} : vector<32x32xi32>
    %1221 = tpu.iota {dimensions = array<i32: 1>} : vector<32x32xi32>
    %c0_i32_437 = arith.constant 0 : i32
    %1222 = vector.broadcast %c0_i32_437 : i32 to vector<32x32xi32>
    %c8_i32_438 = arith.constant 8 : i32
    %1223 = vector.broadcast %c8_i32_438 : i32 to vector<32x32xi32>
    %1224 = arith.cmpi sge, %1220, %1223 : vector<32x32xi32>
    %1225 = arith.extui %1224 : vector<32x32xi1> to vector<32x32xi32>
    %1226 = arith.addi %1222, %1225 : vector<32x32xi32>
    %c16_i32_439 = arith.constant 16 : i32
    %1227 = vector.broadcast %c16_i32_439 : i32 to vector<32x32xi32>
    %1228 = arith.cmpi sge, %1220, %1227 : vector<32x32xi32>
    %1229 = arith.extui %1228 : vector<32x32xi1> to vector<32x32xi32>
    %1230 = arith.addi %1226, %1229 : vector<32x32xi32>
    %c24_i32_440 = arith.constant 24 : i32
    %1231 = vector.broadcast %c24_i32_440 : i32 to vector<32x32xi32>
    %1232 = arith.cmpi sge, %1220, %1231 : vector<32x32xi32>
    %1233 = arith.extui %1232 : vector<32x32xi1> to vector<32x32xi32>
    %1234 = arith.addi %1230, %1233 : vector<32x32xi32>
    %c0_i32_441 = arith.constant 0 : i32
    %1235 = vector.broadcast %c0_i32_441 : i32 to vector<32x32xi32>
    %c8_i32_442 = arith.constant 8 : i32
    %1236 = vector.broadcast %c8_i32_442 : i32 to vector<32x32xi32>
    %1237 = arith.cmpi sge, %1221, %1236 : vector<32x32xi32>
    %1238 = arith.extui %1237 : vector<32x32xi1> to vector<32x32xi32>
    %1239 = arith.addi %1235, %1238 : vector<32x32xi32>
    %c16_i32_443 = arith.constant 16 : i32
    %1240 = vector.broadcast %c16_i32_443 : i32 to vector<32x32xi32>
    %1241 = arith.cmpi sge, %1221, %1240 : vector<32x32xi32>
    %1242 = arith.extui %1241 : vector<32x32xi1> to vector<32x32xi32>
    %1243 = arith.addi %1239, %1242 : vector<32x32xi32>
    %c24_i32_444 = arith.constant 24 : i32
    %1244 = vector.broadcast %c24_i32_444 : i32 to vector<32x32xi32>
    %1245 = arith.cmpi sge, %1221, %1244 : vector<32x32xi32>
    %1246 = arith.extui %1245 : vector<32x32xi1> to vector<32x32xi32>
    %1247 = arith.addi %1243, %1246 : vector<32x32xi32>
    %1248 = arith.cmpi eq, %1234, %1247 : vector<32x32xi32>
    %1249 = arith.extui %1248 : vector<32x32xi1> to vector<32x32xi32>
    %1250 = arith.sitofp %1249 : vector<32x32xi32> to vector<32x32xf32>
    %cst_445 = arith.constant dense<0.000000e+00> : vector<8x32xf32>
    %1251 = tpu.matmul %1219, %1250, %cst_445 {dimension_numbers = #tpu.dot_dimension_numbers<[1], [0], [0], [1], [0, 0, 1, 1], [], []>} : vector<8x32xf32>, vector<32x32xf32>, vector<8x32xf32> -> vector<8x32xf32>
    %1252 = arith.divf %1219, %1251 : vector<8x32xf32>
    %cst_446 = arith.constant dense<0.000000e+00> : vector<8x32xf32>
    %1253 = tpu.matmul %1252, %1205, %cst_446 {dimension_numbers = #tpu.dot_dimension_numbers<[1], [0], [0], [1], [0, 0, 1, 1], [], []>} : vector<8x32xf32>, vector<32x32xf32>, vector<8x32xf32> -> vector<8x32xf32>
    %cst_447 = arith.constant dense<0.000000e+00> : vector<8x32xf32>
    %1254 = tpu.matmul %1253, %1163, %cst_447 {dimension_numbers = #tpu.dot_dimension_numbers<[1], [0], [0], [1], [0, 0, 1, 1], [], []>} : vector<8x32xf32>, vector<32x32xf32>, vector<8x32xf32> -> vector<8x32xf32>
    %1255 = vector.broadcast %1164 : vector<1x32xf32> to vector<8x32xf32>
    %1256 = arith.addf %1254, %1255 : vector<8x32xf32>
    %1257 = arith.addf %766, %1256 : vector<8x32xf32>
    %c280_448 = arith.constant 280 : index
    %c0_449 = arith.constant 0 : index
    %1258 = vector.load %arg5[%c280_448, %c0_449] : memref<944x128xf32, #tpu.memory_space<vmem>>, vector<1x32xf32>
    %c272_450 = arith.constant 272 : index
    %c0_451 = arith.constant 0 : index
    %1259 = vector.load %arg5[%c272_450, %c0_451] : memref<944x128xf32, #tpu.memory_space<vmem>>, vector<1x32xf32>
    %cst_452 = arith.constant dense<0.000000e+00> : vector<8xf32>
    %1260 = vector.multi_reduction <add>, %1257, %cst_452 [1] : vector<8x32xf32> to vector<8xf32>
    %1261 = vector.shape_cast %1260 : vector<8xf32> to vector<8x1xf32>
    %cst_453 = arith.constant 3.200000e+01 : f32
    %1262 = vector.broadcast %cst_453 : f32 to vector<8x1xf32>
    %1263 = arith.divf %1261, %1262 : vector<8x1xf32>
    %1264 = vector.broadcast %1263 : vector<8x1xf32> to vector<8x32xf32>
    %1265 = arith.subf %1257, %1264 : vector<8x32xf32>
    %1266 = arith.mulf %1265, %1265 : vector<8x32xf32>
    %cst_454 = arith.constant dense<0.000000e+00> : vector<8xf32>
    %1267 = vector.multi_reduction <add>, %1266, %cst_454 [1] : vector<8x32xf32> to vector<8xf32>
    %1268 = vector.shape_cast %1267 : vector<8xf32> to vector<8x1xf32>
    %cst_455 = arith.constant 3.200000e+01 : f32
    %1269 = vector.broadcast %cst_455 : f32 to vector<8x1xf32>
    %1270 = arith.divf %1268, %1269 : vector<8x1xf32>
    %1271 = vector.broadcast %1263 : vector<8x1xf32> to vector<8x32xf32>
    %1272 = arith.subf %1257, %1271 : vector<8x32xf32>
    %cst_456 = arith.constant 9.99999974E-6 : f32
    %1273 = vector.broadcast %cst_456 : f32 to vector<8x1xf32>
    %1274 = arith.addf %1270, %1273 : vector<8x1xf32>
    %1275 = math.rsqrt %1274 : vector<8x1xf32>
    %1276 = vector.broadcast %1275 : vector<8x1xf32> to vector<8x32xf32>
    %1277 = arith.mulf %1272, %1276 : vector<8x32xf32>
    %1278 = vector.broadcast %1258 : vector<1x32xf32> to vector<8x32xf32>
    %1279 = arith.mulf %1277, %1278 : vector<8x32xf32>
    %1280 = vector.broadcast %1259 : vector<1x32xf32> to vector<8x32xf32>
    %1281 = arith.addf %1279, %1280 : vector<8x32xf32>
    %c128_457 = arith.constant 128 : index
    %c0_458 = arith.constant 0 : index
    %1282 = vector.load %arg5[%c128_457, %c0_458] : memref<944x128xf32, #tpu.memory_space<vmem>>, vector<32x96xf32>
    %c88_459 = arith.constant 88 : index
    %c0_460 = arith.constant 0 : index
    %1283 = vector.load %arg5[%c88_459, %c0_460] : memref<944x128xf32, #tpu.memory_space<vmem>>, vector<1x96xf32>
    %c96_461 = arith.constant 96 : index
    %c0_462 = arith.constant 0 : index
    %1284 = vector.load %arg5[%c96_461, %c0_462] : memref<944x128xf32, #tpu.memory_space<vmem>>, vector<32x32xf32>
    %c80_463 = arith.constant 80 : index
    %c0_464 = arith.constant 0 : index
    %1285 = vector.load %arg5[%c80_463, %c0_464] : memref<944x128xf32, #tpu.memory_space<vmem>>, vector<1x32xf32>
    %1286 = vector.extract_strided_slice %1282 {offsets = [0, 0], sizes = [32, 32], strides = [1, 1]} : vector<32x96xf32> to vector<32x32xf32>
    %cst_465 = arith.constant dense<0.000000e+00> : vector<8x32xf32>
    %1287 = tpu.matmul %1281, %1286, %cst_465 {dimension_numbers = #tpu.dot_dimension_numbers<[1], [0], [0], [1], [0, 0, 1, 1], [], []>} : vector<8x32xf32>, vector<32x32xf32>, vector<8x32xf32> -> vector<8x32xf32>
    %1288 = vector.extract_strided_slice %1283 {offsets = [0, 0], sizes = [1, 32], strides = [1, 1]} : vector<1x96xf32> to vector<1x32xf32>
    %1289 = vector.broadcast %1288 : vector<1x32xf32> to vector<8x32xf32>
    %1290 = arith.addf %1287, %1289 : vector<8x32xf32>
    %1291 = vector.extract_strided_slice %1282 {offsets = [0, 32], sizes = [32, 64], strides = [1, 1]} : vector<32x96xf32> to vector<32x64xf32>
    %cst_466 = arith.constant dense<0.000000e+00> : vector<4x64xf32>
    %1292 = tpu.matmul %1160, %1291, %cst_466 {dimension_numbers = #tpu.dot_dimension_numbers<[1], [0], [0], [1], [0, 0, 1, 1], [], []>} : vector<4x32xf32>, vector<32x64xf32>, vector<4x64xf32> -> vector<4x64xf32>
    %1293 = vector.extract_strided_slice %1283 {offsets = [0, 32], sizes = [1, 64], strides = [1, 1]} : vector<1x96xf32> to vector<1x64xf32>
    %1294 = vector.broadcast %1293 : vector<1x64xf32> to vector<4x64xf32>
    %1295 = arith.addf %1292, %1294 : vector<4x64xf32>
    %1296 = vector.extract_strided_slice %1295 {offsets = [0, 0], sizes = [4, 32], strides = [1, 1]} : vector<4x64xf32> to vector<4x32xf32>
    %1297 = vector.extract_strided_slice %1295 {offsets = [0, 32], sizes = [4, 32], strides = [1, 1]} : vector<4x64xf32> to vector<4x32xf32>
    %1298 = tpu.iota {dimensions = array<i32: 0>} : vector<16x32xi32>
    %1299 = tpu.iota {dimensions = array<i32: 1>} : vector<16x32xi32>
    %c0_i32_467 = arith.constant 0 : i32
    %1300 = vector.broadcast %c0_i32_467 : i32 to vector<16x32xi32>
    %c4_i32_468 = arith.constant 4 : i32
    %1301 = vector.broadcast %c4_i32_468 : i32 to vector<16x32xi32>
    %1302 = arith.cmpi sge, %1298, %1301 : vector<16x32xi32>
    %1303 = arith.extui %1302 : vector<16x32xi1> to vector<16x32xi32>
    %1304 = arith.addi %1300, %1303 : vector<16x32xi32>
    %c8_i32_469 = arith.constant 8 : i32
    %1305 = vector.broadcast %c8_i32_469 : i32 to vector<16x32xi32>
    %1306 = arith.cmpi sge, %1298, %1305 : vector<16x32xi32>
    %1307 = arith.extui %1306 : vector<16x32xi1> to vector<16x32xi32>
    %1308 = arith.addi %1304, %1307 : vector<16x32xi32>
    %c12_i32_470 = arith.constant 12 : i32
    %1309 = vector.broadcast %c12_i32_470 : i32 to vector<16x32xi32>
    %1310 = arith.cmpi sge, %1298, %1309 : vector<16x32xi32>
    %1311 = arith.extui %1310 : vector<16x32xi1> to vector<16x32xi32>
    %1312 = arith.addi %1308, %1311 : vector<16x32xi32>
    %c0_i32_471 = arith.constant 0 : i32
    %1313 = vector.broadcast %c0_i32_471 : i32 to vector<16x32xi32>
    %c8_i32_472 = arith.constant 8 : i32
    %1314 = vector.broadcast %c8_i32_472 : i32 to vector<16x32xi32>
    %1315 = arith.cmpi sge, %1299, %1314 : vector<16x32xi32>
    %1316 = arith.extui %1315 : vector<16x32xi1> to vector<16x32xi32>
    %1317 = arith.addi %1313, %1316 : vector<16x32xi32>
    %c16_i32_473 = arith.constant 16 : i32
    %1318 = vector.broadcast %c16_i32_473 : i32 to vector<16x32xi32>
    %1319 = arith.cmpi sge, %1299, %1318 : vector<16x32xi32>
    %1320 = arith.extui %1319 : vector<16x32xi1> to vector<16x32xi32>
    %1321 = arith.addi %1317, %1320 : vector<16x32xi32>
    %c24_i32_474 = arith.constant 24 : i32
    %1322 = vector.broadcast %c24_i32_474 : i32 to vector<16x32xi32>
    %1323 = arith.cmpi sge, %1299, %1322 : vector<16x32xi32>
    %1324 = arith.extui %1323 : vector<16x32xi1> to vector<16x32xi32>
    %1325 = arith.addi %1321, %1324 : vector<16x32xi32>
    %1326 = arith.cmpi eq, %1312, %1325 : vector<16x32xi32>
    %1327 = arith.extui %1326 : vector<16x32xi1> to vector<16x32xi32>
    %1328 = arith.sitofp %1327 : vector<16x32xi32> to vector<16x32xf32>
    %1329 = tpu.concatenate %1296, %1296, %1296, %1296 in 0 : vector<4x32xf32>, vector<4x32xf32>, vector<4x32xf32>, vector<4x32xf32> -> vector<16x32xf32>
    %1330 = arith.mulf %1329, %1328 : vector<16x32xf32>
    %1331 = tpu.concatenate %1297, %1297, %1297, %1297 in 0 : vector<4x32xf32>, vector<4x32xf32>, vector<4x32xf32>, vector<4x32xf32> -> vector<16x32xf32>
    %1332 = arith.mulf %1331, %1328 : vector<16x32xf32>
    %cst_475 = arith.constant dense<0.000000e+00> : vector<8x16xf32>
    %1333 = tpu.matmul %1290, %1330, %cst_475 {dimension_numbers = #tpu.dot_dimension_numbers<[1], [1], [0], [0], [0, 0, 1, 0], [], []>} : vector<8x32xf32>, vector<16x32xf32>, vector<8x16xf32> -> vector<8x16xf32>
    %cst_476 = arith.constant 0.353553385 : f32
    %1334 = vector.broadcast %cst_476 : f32 to vector<8x16xf32>
    %1335 = arith.mulf %1333, %1334 : vector<8x16xf32>
    %cst_477 = arith.constant dense<0xFF800000> : vector<8xf32>
    %1336 = vector.multi_reduction <maximumf>, %1335, %cst_477 [1] : vector<8x16xf32> to vector<8xf32>
    %1337 = vector.shape_cast %1336 : vector<8xf32> to vector<8x1xf32>
    %1338 = vector.broadcast %1337 : vector<8x1xf32> to vector<8x16xf32>
    %1339 = arith.subf %1335, %1338 : vector<8x16xf32>
    %1340 = math.exp %1339 : vector<8x16xf32>
    %1341 = tpu.iota {dimensions = array<i32: 0>} : vector<16x16xi32>
    %1342 = tpu.iota {dimensions = array<i32: 1>} : vector<16x16xi32>
    %c0_i32_478 = arith.constant 0 : i32
    %1343 = vector.broadcast %c0_i32_478 : i32 to vector<16x16xi32>
    %c4_i32_479 = arith.constant 4 : i32
    %1344 = vector.broadcast %c4_i32_479 : i32 to vector<16x16xi32>
    %1345 = arith.cmpi sge, %1341, %1344 : vector<16x16xi32>
    %1346 = arith.extui %1345 : vector<16x16xi1> to vector<16x16xi32>
    %1347 = arith.addi %1343, %1346 : vector<16x16xi32>
    %c8_i32_480 = arith.constant 8 : i32
    %1348 = vector.broadcast %c8_i32_480 : i32 to vector<16x16xi32>
    %1349 = arith.cmpi sge, %1341, %1348 : vector<16x16xi32>
    %1350 = arith.extui %1349 : vector<16x16xi1> to vector<16x16xi32>
    %1351 = arith.addi %1347, %1350 : vector<16x16xi32>
    %c12_i32_481 = arith.constant 12 : i32
    %1352 = vector.broadcast %c12_i32_481 : i32 to vector<16x16xi32>
    %1353 = arith.cmpi sge, %1341, %1352 : vector<16x16xi32>
    %1354 = arith.extui %1353 : vector<16x16xi1> to vector<16x16xi32>
    %1355 = arith.addi %1351, %1354 : vector<16x16xi32>
    %c0_i32_482 = arith.constant 0 : i32
    %1356 = vector.broadcast %c0_i32_482 : i32 to vector<16x16xi32>
    %c4_i32_483 = arith.constant 4 : i32
    %1357 = vector.broadcast %c4_i32_483 : i32 to vector<16x16xi32>
    %1358 = arith.cmpi sge, %1342, %1357 : vector<16x16xi32>
    %1359 = arith.extui %1358 : vector<16x16xi1> to vector<16x16xi32>
    %1360 = arith.addi %1356, %1359 : vector<16x16xi32>
    %c8_i32_484 = arith.constant 8 : i32
    %1361 = vector.broadcast %c8_i32_484 : i32 to vector<16x16xi32>
    %1362 = arith.cmpi sge, %1342, %1361 : vector<16x16xi32>
    %1363 = arith.extui %1362 : vector<16x16xi1> to vector<16x16xi32>
    %1364 = arith.addi %1360, %1363 : vector<16x16xi32>
    %c12_i32_485 = arith.constant 12 : i32
    %1365 = vector.broadcast %c12_i32_485 : i32 to vector<16x16xi32>
    %1366 = arith.cmpi sge, %1342, %1365 : vector<16x16xi32>
    %1367 = arith.extui %1366 : vector<16x16xi1> to vector<16x16xi32>
    %1368 = arith.addi %1364, %1367 : vector<16x16xi32>
    %1369 = arith.cmpi eq, %1355, %1368 : vector<16x16xi32>
    %1370 = arith.extui %1369 : vector<16x16xi1> to vector<16x16xi32>
    %1371 = arith.sitofp %1370 : vector<16x16xi32> to vector<16x16xf32>
    %cst_486 = arith.constant dense<0.000000e+00> : vector<8x16xf32>
    %1372 = tpu.matmul %1340, %1371, %cst_486 {dimension_numbers = #tpu.dot_dimension_numbers<[1], [0], [0], [1], [0, 0, 1, 1], [], []>} : vector<8x16xf32>, vector<16x16xf32>, vector<8x16xf32> -> vector<8x16xf32>
    %1373 = arith.divf %1340, %1372 : vector<8x16xf32>
    %cst_487 = arith.constant dense<0.000000e+00> : vector<8x32xf32>
    %1374 = tpu.matmul %1373, %1332, %cst_487 {dimension_numbers = #tpu.dot_dimension_numbers<[1], [0], [0], [1], [0, 0, 1, 1], [], []>} : vector<8x16xf32>, vector<16x32xf32>, vector<8x32xf32> -> vector<8x32xf32>
    %cst_488 = arith.constant dense<0.000000e+00> : vector<8x32xf32>
    %1375 = tpu.matmul %1374, %1284, %cst_488 {dimension_numbers = #tpu.dot_dimension_numbers<[1], [0], [0], [1], [0, 0, 1, 1], [], []>} : vector<8x32xf32>, vector<32x32xf32>, vector<8x32xf32> -> vector<8x32xf32>
    %1376 = vector.broadcast %1285 : vector<1x32xf32> to vector<8x32xf32>
    %1377 = arith.addf %1375, %1376 : vector<8x32xf32>
    %1378 = arith.addf %1281, %1377 : vector<8x32xf32>
    %c296_489 = arith.constant 296 : index
    %c0_490 = arith.constant 0 : index
    %1379 = vector.load %arg5[%c296_489, %c0_490] : memref<944x128xf32, #tpu.memory_space<vmem>>, vector<1x32xf32>
    %c288_491 = arith.constant 288 : index
    %c0_492 = arith.constant 0 : index
    %1380 = vector.load %arg5[%c288_491, %c0_492] : memref<944x128xf32, #tpu.memory_space<vmem>>, vector<1x32xf32>
    %cst_493 = arith.constant dense<0.000000e+00> : vector<8xf32>
    %1381 = vector.multi_reduction <add>, %1378, %cst_493 [1] : vector<8x32xf32> to vector<8xf32>
    %1382 = vector.shape_cast %1381 : vector<8xf32> to vector<8x1xf32>
    %cst_494 = arith.constant 3.200000e+01 : f32
    %1383 = vector.broadcast %cst_494 : f32 to vector<8x1xf32>
    %1384 = arith.divf %1382, %1383 : vector<8x1xf32>
    %1385 = vector.broadcast %1384 : vector<8x1xf32> to vector<8x32xf32>
    %1386 = arith.subf %1378, %1385 : vector<8x32xf32>
    %1387 = arith.mulf %1386, %1386 : vector<8x32xf32>
    %cst_495 = arith.constant dense<0.000000e+00> : vector<8xf32>
    %1388 = vector.multi_reduction <add>, %1387, %cst_495 [1] : vector<8x32xf32> to vector<8xf32>
    %1389 = vector.shape_cast %1388 : vector<8xf32> to vector<8x1xf32>
    %cst_496 = arith.constant 3.200000e+01 : f32
    %1390 = vector.broadcast %cst_496 : f32 to vector<8x1xf32>
    %1391 = arith.divf %1389, %1390 : vector<8x1xf32>
    %1392 = vector.broadcast %1384 : vector<8x1xf32> to vector<8x32xf32>
    %1393 = arith.subf %1378, %1392 : vector<8x32xf32>
    %cst_497 = arith.constant 9.99999974E-6 : f32
    %1394 = vector.broadcast %cst_497 : f32 to vector<8x1xf32>
    %1395 = arith.addf %1391, %1394 : vector<8x1xf32>
    %1396 = math.rsqrt %1395 : vector<8x1xf32>
    %1397 = vector.broadcast %1396 : vector<8x1xf32> to vector<8x32xf32>
    %1398 = arith.mulf %1393, %1397 : vector<8x32xf32>
    %1399 = vector.broadcast %1379 : vector<1x32xf32> to vector<8x32xf32>
    %1400 = arith.mulf %1398, %1399 : vector<8x32xf32>
    %1401 = vector.broadcast %1380 : vector<1x32xf32> to vector<8x32xf32>
    %1402 = arith.addf %1400, %1401 : vector<8x32xf32>
    %c168_498 = arith.constant 168 : index
    %c0_499 = arith.constant 0 : index
    %1403 = vector.load %arg5[%c168_498, %c0_499] : memref<944x128xf32, #tpu.memory_space<vmem>>, vector<32x64xf32>
    %cst_500 = arith.constant dense<0.000000e+00> : vector<8x64xf32>
    %1404 = tpu.matmul %1402, %1403, %cst_500 {dimension_numbers = #tpu.dot_dimension_numbers<[1], [0], [0], [1], [0, 0, 1, 1], [], []>} : vector<8x32xf32>, vector<32x64xf32>, vector<8x64xf32> -> vector<8x64xf32>
    %c160_501 = arith.constant 160 : index
    %c0_502 = arith.constant 0 : index
    %1405 = vector.load %arg5[%c160_501, %c0_502] : memref<944x128xf32, #tpu.memory_space<vmem>>, vector<1x64xf32>
    %1406 = vector.broadcast %1405 : vector<1x64xf32> to vector<8x64xf32>
    %1407 = arith.addf %1404, %1406 : vector<8x64xf32>
    %cst_503 = arith.constant 0.000000e+00 : f32
    %1408 = vector.broadcast %cst_503 : f32 to vector<8x64xf32>
    %1409 = arith.maximumf %1407, %1408 : vector<8x64xf32>
    %c208_504 = arith.constant 208 : index
    %c0_505 = arith.constant 0 : index
    %1410 = vector.load %arg5[%c208_504, %c0_505] : memref<944x128xf32, #tpu.memory_space<vmem>>, vector<64x32xf32>
    %cst_506 = arith.constant dense<0.000000e+00> : vector<8x32xf32>
    %1411 = tpu.matmul %1409, %1410, %cst_506 {dimension_numbers = #tpu.dot_dimension_numbers<[1], [0], [0], [1], [0, 0, 1, 1], [], []>} : vector<8x64xf32>, vector<64x32xf32>, vector<8x32xf32> -> vector<8x32xf32>
    %c200_507 = arith.constant 200 : index
    %c0_508 = arith.constant 0 : index
    %1412 = vector.load %arg5[%c200_507, %c0_508] : memref<944x128xf32, #tpu.memory_space<vmem>>, vector<1x32xf32>
    %1413 = vector.broadcast %1412 : vector<1x32xf32> to vector<8x32xf32>
    %1414 = arith.addf %1411, %1413 : vector<8x32xf32>
    %1415 = arith.addf %1402, %1414 : vector<8x32xf32>
    %c312_509 = arith.constant 312 : index
    %c0_510 = arith.constant 0 : index
    %1416 = vector.load %arg5[%c312_509, %c0_510] : memref<944x128xf32, #tpu.memory_space<vmem>>, vector<1x32xf32>
    %c304_511 = arith.constant 304 : index
    %c0_512 = arith.constant 0 : index
    %1417 = vector.load %arg5[%c304_511, %c0_512] : memref<944x128xf32, #tpu.memory_space<vmem>>, vector<1x32xf32>
    %cst_513 = arith.constant dense<0.000000e+00> : vector<8xf32>
    %1418 = vector.multi_reduction <add>, %1415, %cst_513 [1] : vector<8x32xf32> to vector<8xf32>
    %1419 = vector.shape_cast %1418 : vector<8xf32> to vector<8x1xf32>
    %cst_514 = arith.constant 3.200000e+01 : f32
    %1420 = vector.broadcast %cst_514 : f32 to vector<8x1xf32>
    %1421 = arith.divf %1419, %1420 : vector<8x1xf32>
    %1422 = vector.broadcast %1421 : vector<8x1xf32> to vector<8x32xf32>
    %1423 = arith.subf %1415, %1422 : vector<8x32xf32>
    %1424 = arith.mulf %1423, %1423 : vector<8x32xf32>
    %cst_515 = arith.constant dense<0.000000e+00> : vector<8xf32>
    %1425 = vector.multi_reduction <add>, %1424, %cst_515 [1] : vector<8x32xf32> to vector<8xf32>
    %1426 = vector.shape_cast %1425 : vector<8xf32> to vector<8x1xf32>
    %cst_516 = arith.constant 3.200000e+01 : f32
    %1427 = vector.broadcast %cst_516 : f32 to vector<8x1xf32>
    %1428 = arith.divf %1426, %1427 : vector<8x1xf32>
    %1429 = vector.broadcast %1421 : vector<8x1xf32> to vector<8x32xf32>
    %1430 = arith.subf %1415, %1429 : vector<8x32xf32>
    %cst_517 = arith.constant 9.99999974E-6 : f32
    %1431 = vector.broadcast %cst_517 : f32 to vector<8x1xf32>
    %1432 = arith.addf %1428, %1431 : vector<8x1xf32>
    %1433 = math.rsqrt %1432 : vector<8x1xf32>
    %1434 = vector.broadcast %1433 : vector<8x1xf32> to vector<8x32xf32>
    %1435 = arith.mulf %1430, %1434 : vector<8x32xf32>
    %1436 = vector.broadcast %1416 : vector<1x32xf32> to vector<8x32xf32>
    %1437 = arith.mulf %1435, %1436 : vector<8x32xf32>
    %1438 = vector.broadcast %1417 : vector<1x32xf32> to vector<8x32xf32>
    %1439 = arith.addf %1437, %1438 : vector<8x32xf32>
    %c408_518 = arith.constant 408 : index
    %c0_519 = arith.constant 0 : index
    %1440 = vector.load %arg5[%c408_518, %c0_519] : memref<944x128xf32, #tpu.memory_space<vmem>>, vector<1x32xf32>
    %c400_520 = arith.constant 400 : index
    %c0_521 = arith.constant 0 : index
    %1441 = vector.load %arg5[%c400_520, %c0_521] : memref<944x128xf32, #tpu.memory_space<vmem>>, vector<1x32xf32>
    %cst_522 = arith.constant dense<0.000000e+00> : vector<8xf32>
    %1442 = vector.multi_reduction <add>, %1439, %cst_522 [1] : vector<8x32xf32> to vector<8xf32>
    %1443 = vector.shape_cast %1442 : vector<8xf32> to vector<8x1xf32>
    %cst_523 = arith.constant 3.200000e+01 : f32
    %1444 = vector.broadcast %cst_523 : f32 to vector<8x1xf32>
    %1445 = arith.divf %1443, %1444 : vector<8x1xf32>
    %1446 = vector.broadcast %1445 : vector<8x1xf32> to vector<8x32xf32>
    %1447 = arith.subf %1439, %1446 : vector<8x32xf32>
    %1448 = arith.mulf %1447, %1447 : vector<8x32xf32>
    %cst_524 = arith.constant dense<0.000000e+00> : vector<8xf32>
    %1449 = vector.multi_reduction <add>, %1448, %cst_524 [1] : vector<8x32xf32> to vector<8xf32>
    %1450 = vector.shape_cast %1449 : vector<8xf32> to vector<8x1xf32>
    %cst_525 = arith.constant 3.200000e+01 : f32
    %1451 = vector.broadcast %cst_525 : f32 to vector<8x1xf32>
    %1452 = arith.divf %1450, %1451 : vector<8x1xf32>
    %1453 = vector.broadcast %1445 : vector<8x1xf32> to vector<8x32xf32>
    %1454 = arith.subf %1439, %1453 : vector<8x32xf32>
    %cst_526 = arith.constant 9.99999974E-6 : f32
    %1455 = vector.broadcast %cst_526 : f32 to vector<8x1xf32>
    %1456 = arith.addf %1452, %1455 : vector<8x1xf32>
    %1457 = math.rsqrt %1456 : vector<8x1xf32>
    %1458 = vector.broadcast %1457 : vector<8x1xf32> to vector<8x32xf32>
    %1459 = arith.mulf %1454, %1458 : vector<8x32xf32>
    %1460 = vector.broadcast %1440 : vector<1x32xf32> to vector<8x32xf32>
    %1461 = arith.mulf %1459, %1460 : vector<8x32xf32>
    %1462 = vector.broadcast %1441 : vector<1x32xf32> to vector<8x32xf32>
    %1463 = arith.addf %1461, %1462 : vector<8x32xf32>
    %1464 = vector.extract_strided_slice %1463 {offsets = [4, 0], sizes = [4, 32], strides = [1, 1]} : vector<8x32xf32> to vector<4x32xf32>
    %c912_527 = arith.constant 912 : index
    %c0_528 = arith.constant 0 : index
    %1465 = vector.load %arg5[%c912_527, %c0_528] : memref<944x128xf32, #tpu.memory_space<vmem>>, vector<32x128xf32>
    %cst_529 = arith.constant dense<0.000000e+00> : vector<4x128xf32>
    %1466 = tpu.matmul %1464, %1465, %cst_529 {dimension_numbers = #tpu.dot_dimension_numbers<[1], [0], [0], [1], [0, 0, 1, 1], [], []>} : vector<4x32xf32>, vector<32x128xf32>, vector<4x128xf32> -> vector<4x128xf32>
    %c904_530 = arith.constant 904 : index
    %c0_531 = arith.constant 0 : index
    %1467 = vector.load %arg5[%c904_530, %c0_531] : memref<944x128xf32, #tpu.memory_space<vmem>>, vector<1x128xf32>
    %1468 = vector.broadcast %1467 : vector<1x128xf32> to vector<4x128xf32>
    %1469 = arith.addf %1466, %1468 : vector<4x128xf32>
    %1470 = tpu.concatenate %734, %1469 in 0 : vector<4x128xf32>, vector<4x128xf32> -> vector<8x128xf32>
    %c0_532 = arith.constant 0 : index
    %c0_533 = arith.constant 0 : index
    %1471 = vector.load %arg6[%c0_532, %c0_533] : memref<8x128xf32, #tpu.memory_space<vmem>>, vector<8x128xf32>
    tpu.vector_store %arg6[%c0_532, %c0_533], %1470 {strides = array<i32>} : memref<8x128xf32, #tpu.memory_space<vmem>>, vector<8x128xf32>,
    return
  }
  func.func @transform_0(%arg0: i32) -> (i32, i32) {
    %c0_i32 = arith.constant 0 : i32
    %c0_i32_0 = arith.constant 0 : i32
    %c0_i32_1 = arith.constant 0 : i32
    return %c0_i32, %c0_i32_0 : i32, i32
  }
  func.func @transform_1(%arg0: i32) -> (i32, i32) {
    %c0_i32 = arith.constant 0 : i32
    %c0_i32_0 = arith.constant 0 : i32
    %c0_i32_1 = arith.constant 0 : i32
    return %c0_i32, %c0_i32_0 : i32, i32
  }
  func.func @transform_2(%arg0: i32) -> (i32, i32) {
    %c0_i32 = arith.constant 0 : i32
    %c0_i32_0 = arith.constant 0 : i32
    %c0_i32_1 = arith.constant 0 : i32
    return %c0_i32, %c0_i32_0 : i32, i32
  }
  func.func @transform_3(%arg0: i32) -> (i32, i32) {
    %c0_i32 = arith.constant 0 : i32
    %c0_i32_0 = arith.constant 0 : i32
    %c0_i32_1 = arith.constant 0 : i32
    return %c0_i32, %c0_i32_0 : i32, i32
  }
  func.func @transform_4(%arg0: i32) -> (i32, i32) {
    %c0_i32 = arith.constant 0 : i32
    %c0_i32_0 = arith.constant 0 : i32
    %c0_i32_1 = arith.constant 0 : i32
    return %c0_i32, %c0_i32_0 : i32, i32
  }
  func.func @transform_5(%arg0: i32) -> (i32, i32) {
    %c0_i32 = arith.constant 0 : i32
    %c0_i32_0 = arith.constant 0 : i32
    %c0_i32_1 = arith.constant 0 : i32
    return %c0_i32, %c0_i32_0 : i32, i32
  }
}

</mosaic_0001>

<llo_original>
// kernel: run.1
$region0: #{run.1}
  #allocation0 [shape = 'u32[]', space=smem, size = 0x4, offset = 0x4, fixed_abs, tag = 'smem constant byte address 0x4 - core index']
  #allocation1 [shape = 'u32[144,128]{1,0:T(1,128)}', space=vmem, size = 0x12000, scoped, tag = 'internal scratch']
  %s0 = inlined_call_operand.vmem [shape: f32[16,7], index: 0, kind: input, shape index: {}]
  %s1 = inlined_call_operand.vmem [shape: f32[16,4], index: 1, kind: input, shape index: {}]
  %s2 = inlined_call_operand.vmem [shape: f32[16,7], index: 2, kind: input, shape index: {}]
  %s3 = inlined_call_operand.vmem [shape: f32[16,4], index: 3, kind: input, shape index: {}]
  %s4 = inlined_call_operand.hbm [shape: f32[944,128], index: 4, kind: input, shape index: {}]
  %s5 = inlined_call_operand.hbm [shape: f32[8,128], index: 5, kind: output, shape index: {}]
  %s6 = sld [smem:[#allocation0]]
  $region34: #{run.1} parent=0
    _
  %s8 = ssub.s32 1, %s6
  %s9 = scalar_select 0, %s8, %s6
  $region1: #{run.1} parent=0
    #allocation2 [shape = 'u8[483328]{0}', space=vmem, size = 0x76000, scoped, tag = 'input window, operand 4, single buffered']
    #allocation3 [shape = 's32[1]{0}', space=sflag, size = 0x4, scoped, tag = 'scoped memory for run.1']
    #allocation4 [shape = 's32[1]{0}', space=sflag, size = 0x4, scoped, tag = 'scoped memory for run.1']
    #allocation5 [shape = 'u8[4096]{0}', space=vmem, size = 0x1000, scoped, tag = 'output window, operand 0, single buffered']
    %10 = vsyncpa [#allocation3], 0
    %11 = vsyncpa [#allocation4], 0
    // Predicated region
    $region2: #{run.1} parent=1 // pred_check
      _
    $region3: #{run.1} parent=1 // pred_check_branch
      %13 = sbr.rel (0) target = $region5
    $region4: #{run.1} parent=1 // pred_region
      _
    $region5: #{run.1} parent=1 // pred_fallthru
      _
    // Predicated region
    $region6: #{run.1} parent=1 // pred_check
      _
    $region7: #{run.1} parent=1 // pred_check_branch
      %15 = sbr.rel (0) target = $region9
    $region8: #{run.1} parent=1 // pred_region
      _
    $region9: #{run.1} parent=1 // pred_fallthru
      _
    // Predicated region
    $region10: #{run.1} parent=1 // pred_check
      _
    $region11: #{run.1} parent=1 // pred_check_branch
      %17 = sbr.rel (0) target = $region13
    $region12: #{run.1} parent=1 // pred_region
      _
    $region13: #{run.1} parent=1 // pred_fallthru
      _
    // Predicated region
    $region14: #{run.1} parent=1 // pred_check
      _
    $region15: #{run.1} parent=1 // pred_check_branch
      %19 = sbr.rel (0) target = $region17
    $region16: #{run.1} parent=1 // pred_region
      _
    $region17: #{run.1} parent=1 // pred_fallthru
      _
    // Predicated region
    $region18: #{run.1} parent=1 // pred_check
      _
    $region19: #{run.1} parent=1 // pred_check_branch
      %21 = sbr.rel (0) target = $region21
    $region20: #{run.1} parent=1 // pred_region
      %s23 = ssub.s32 15104, 15104
      %24 = vsyncadd [#allocation3], %s23
      %s25 = sshll.u32 [#allocation2], 4
      %s26 = int_to_ptr.vmem [resolvable:$true] %s25
      %31 = dma.hbm_to_vmem [thread:$0]  %s4, 15104, %s26, [#allocation3], 128, 128, 8
    $region21: #{run.1} parent=1 // pred_fallthru
      _
    // Predicated region
    $region22: #{run.1} parent=1 // pred_check
      _
    $region23: #{run.1} parent=1 // pred_check_branch
      %33 = sbr.rel (0) target = $region25
    $region24: #{run.1} parent=1 // pred_region
      %34 = dma.done [#allocation3], 15104
    $region25: #{run.1} parent=1 // pred_fallthru
      _
    %v35 = vld [vmem:[%s0] sm:$0xff]
    %v36 = vld [vmem:[%s1] sm:$0xff]
    %v37 = vld [vmem:[%s2] sm:$0xff]
    %v38 = vld [vmem:[%s3] sm:$0xff]
    %v39 = vld [vmem:[#allocation2 + $0x1b0] sm:$0x7f]
    %vm40 = vcmask 56320
    %v42 = vsel %vm40, %v35, 0
    %vm44 = vcmask 1046528
    %v46 = vsel %vm44, %v39, 0
    %48 = vmatprep.subr.mxu0 0.0
    %49 = vmatpush1.msra.mxu0 %v46
    %50 = vmatprep.subr.mxu0 0.0
    %51 = vmatpush1.msra.mxu0 0.0
    %52 = vmatprep.subr.mxu0 0.0
    %53 = vmatpush1.msra.mxu0 0.0
    %54 = vmatprep.subr.mxu0 0.0
    %55 = vmatpush1.msra.mxu0 0.0
    %56 = vmatprep.subr.mxu0 0.0
    %57 = vmatpush1.msra.mxu0 0.0
    %58 = vmatprep.subr.mxu0 0.0
    %59 = vmatpush1.msra.mxu0 0.0
    %60 = vmatprep.subr.mxu0 0.0
    %61 = vmatpush1.msra.mxu0 0.0
    %62 = vmatprep.subr.mxu0 0.0
    %63 = vmatpush1.msra.mxu0 0.0
    %64 = vmatprep.subr.mxu0 0.0
    %65 = vmatpush1.msra.mxu0 0.0
    %66 = vmatprep.subr.mxu0 0.0
    %67 = vmatpush1.msra.mxu0 0.0
    %68 = vmatprep.subr.mxu0 0.0
    %69 = vmatpush1.msra.mxu0 0.0
    %70 = vmatprep.subr.mxu0 0.0
    %71 = vmatpush1.msra.mxu0 0.0
    %72 = vmatprep.subr.mxu0 0.0
    %73 = vmatpush1.msra.mxu0 0.0
    %74 = vmatprep.subr.mxu0 0.0
    %75 = vmatpush1.msra.mxu0 0.0
    %76 = vmatprep.subr.mxu0 0.0
    %77 = vmatpush1.msra.mxu0 0.0
    %78 = vmatprep.subr.mxu0 0.0
    %79 = vmatpush1.msra.mxu0 0.0
    %80 = vmatprep.subr.mxu0 0.0
    %81 = vmatpush1.msra.mxu0 0.0
    %82 = vmatprep.subr.mxu0 0.0
    %83 = vmatpush1.msra.mxu0 0.0
    %84 = vmatprep.subr.mxu0 0.0
    %85 = vmatpush1.msra.mxu0 0.0
    %86 = vmatprep.subr.mxu0 0.0
    %87 = vmatpush1.msra.mxu0 0.0
    %88 = vmatprep.subr.mxu0 0.0
    %89 = vmatpush1.msra.mxu0 0.0
    %90 = vmatprep.subr.mxu0 0.0
    %91 = vmatpush1.msra.mxu0 0.0
    %92 = vmatprep.subr.mxu0 0.0
    %93 = vmatpush1.msra.mxu0 0.0
    %94 = vmatprep.subr.mxu0 0.0
    %95 = vmatpush1.msra.mxu0 0.0
    %96 = vmatprep.subr.mxu0 0.0
    %97 = vmatpush1.msra.mxu0 0.0
    %98 = vmatprep.subr.mxu0 0.0
    %99 = vmatpush1.msra.mxu0 0.0
    %100 = vmatprep.subr.mxu0 0.0
    %101 = vmatpush1.msra.mxu0 0.0
    %102 = vmatprep.subr.mxu0 0.0
    %103 = vmatpush1.msra.mxu0 0.0
    %104 = vmatprep.subr.mxu0 0.0
    %105 = vmatpush1.msra.mxu0 0.0
    %106 = vmatprep.subr.mxu0 0.0
    %107 = vmatpush1.msra.mxu0 0.0
    %108 = vmatprep.subr.mxu0 0.0
    %109 = vmatpush1.msra.mxu0 0.0
    %110 = vmatprep.subr.mxu0 0.0
    %111 = vmatpush1.msra.mxu0 0.0
    %112 = vmatprep.mubr.f32.mxu0 0.0
    %113 = vmatmul.mubr.f32.gmra.mrb[0].mxu0 %v42
    %v114 = vpop.f32.mrb[0].mxu0
    %v115 = vadd.f32 0.0, %v114
    %v116 = vpop.f32.mrb[0].mxu0
    %117 = vdwg.mxu0
    %v118 = vrot.slane %v115, 7
    %120 = vrot.lane.b32.xlu0 %v115, 96
    %v121 = vpop.permute.xlu0 %120
    %v123 = vadd.f32 %v118, %v121
    %124 = vrot.lane.b32.xlu0 %v115, 64
    %v125 = vpop.permute.xlu0 %124
    %v127 = vrot.slane %v125, 1
    %v128 = vadd.f32 %v123, %v127
    %v129 = vld [vmem:[#allocation2 + $0x1a8] sm:$0xf]
    %vm130 = vcmask 31744
    %v132 = vsel %vm130, %v36, 0
    %vm134 = vcmask 1043456
    %v136 = vsel %vm134, %v129, 0
    %138 = vmatprep.subr.mxu0 0.0
    %139 = vmatpush1.msra.mxu0 %v136
    %140 = vmatprep.subr.mxu0 0.0
    %141 = vmatpush1.msra.mxu0 0.0
    %142 = vmatprep.subr.mxu0 0.0
    %143 = vmatpush1.msra.mxu0 0.0
    %144 = vmatprep.subr.mxu0 0.0
    %145 = vmatpush1.msra.mxu0 0.0
    %146 = vmatprep.subr.mxu0 0.0
    %147 = vmatpush1.msra.mxu0 0.0
    %148 = vmatprep.subr.mxu0 0.0
    %149 = vmatpush1.msra.mxu0 0.0
    %150 = vmatprep.subr.mxu0 0.0
    %151 = vmatpush1.msra.mxu0 0.0
    %152 = vmatprep.subr.mxu0 0.0
    %153 = vmatpush1.msra.mxu0 0.0
    %154 = vmatprep.subr.mxu0 0.0
    %155 = vmatpush1.msra.mxu0 0.0
    %156 = vmatprep.subr.mxu0 0.0
    %157 = vmatpush1.msra.mxu0 0.0
    %158 = vmatprep.subr.mxu0 0.0
    %159 = vmatpush1.msra.mxu0 0.0
    %160 = vmatprep.subr.mxu0 0.0
    %161 = vmatpush1.msra.mxu0 0.0
    %162 = vmatprep.subr.mxu0 0.0
    %163 = vmatpush1.msra.mxu0 0.0
    %164 = vmatprep.subr.mxu0 0.0
    %165 = vmatpush1.msra.mxu0 0.0
    %166 = vmatprep.subr.mxu0 0.0
    %167 = vmatpush1.msra.mxu0 0.0
    %168 = vmatprep.subr.mxu0 0.0
    %169 = vmatpush1.msra.mxu0 0.0
    %170 = vmatprep.subr.mxu0 0.0
    %171 = vmatpush1.msra.mxu0 0.0
    %172 = vmatprep.subr.mxu0 0.0
    %173 = vmatpush1.msra.mxu0 0.0
    %174 = vmatprep.subr.mxu0 0.0
    %175 = vmatpush1.msra.mxu0 0.0
    %176 = vmatprep.subr.mxu0 0.0
    %177 = vmatpush1.msra.mxu0 0.0
    %178 = vmatprep.subr.mxu0 0.0
    %179 = vmatpush1.msra.mxu0 0.0
    %180 = vmatprep.subr.mxu0 0.0
    %181 = vmatpush1.msra.mxu0 0.0
    %182 = vmatprep.subr.mxu0 0.0
    %183 = vmatpush1.msra.mxu0 0.0
    %184 = vmatprep.subr.mxu0 0.0
    %185 = vmatpush1.msra.mxu0 0.0
    %186 = vmatprep.subr.mxu0 0.0
    %187 = vmatpush1.msra.mxu0 0.0
    %188 = vmatprep.subr.mxu0 0.0
    %189 = vmatpush1.msra.mxu0 0.0
    %190 = vmatprep.subr.mxu0 0.0
    %191 = vmatpush1.msra.mxu0 0.0
    %192 = vmatprep.subr.mxu0 0.0
    %193 = vmatpush1.msra.mxu0 0.0
    %194 = vmatprep.subr.mxu0 0.0
    %195 = vmatpush1.msra.mxu0 0.0
    %196 = vmatprep.subr.mxu0 0.0
    %197 = vmatpush1.msra.mxu0 0.0
    %198 = vmatprep.subr.mxu0 0.0
    %199 = vmatpush1.msra.mxu0 0.0
    %200 = vmatprep.subr.mxu0 0.0
    %201 = vmatpush1.msra.mxu0 0.0
    %202 = vmatprep.mubr.f32.mxu0 0.0
    %203 = vmatmul.mubr.f32.gmra.mrb[0].mxu0 %v132
    %v204 = vpop.f32.mrb[0].mxu0
    %v205 = vadd.f32 0.0, %v204
    %v206 = vpop.f32.mrb[0].mxu0
    %207 = vdwg.mxu0
    %v208 = vadd.f32 %v128, %v205
    %v209 = vld [vmem:[#allocation2 + $0x1a0] sm:$0xff]
    %v210 = vadd.f32 %v208, %v209
    %v211 = vld [vmem:[#allocation2 + $0x48] sm:$0x7f]
    %v213 = vsel %vm40, %v37, 0
    %v216 = vsel %vm44, %v211, 0
    %218 = vmatprep.subr.mxu0 0.0
    %219 = vmatpush1.msra.mxu0 %v216
    %220 = vmatprep.subr.mxu0 0.0
    %221 = vmatpush1.msra.mxu0 0.0
    %222 = vmatprep.subr.mxu0 0.0
    %223 = vmatpush1.msra.mxu0 0.0
    %224 = vmatprep.subr.mxu0 0.0
    %225 = vmatpush1.msra.mxu0 0.0
    %226 = vmatprep.subr.mxu0 0.0
    %227 = vmatpush1.msra.mxu0 0.0
    %228 = vmatprep.subr.mxu0 0.0
    %229 = vmatpush1.msra.mxu0 0.0
    %230 = vmatprep.subr.mxu0 0.0
    %231 = vmatpush1.msra.mxu0 0.0
    %232 = vmatprep.subr.mxu0 0.0
    %233 = vmatpush1.msra.mxu0 0.0
    %234 = vmatprep.subr.mxu0 0.0
    %235 = vmatpush1.msra.mxu0 0.0
    %236 = vmatprep.subr.mxu0 0.0
    %237 = vmatpush1.msra.mxu0 0.0
    %238 = vmatprep.subr.mxu0 0.0
    %239 = vmatpush1.msra.mxu0 0.0
    %240 = vmatprep.subr.mxu0 0.0
    %241 = vmatpush1.msra.mxu0 0.0
    %242 = vmatprep.subr.mxu0 0.0
    %243 = vmatpush1.msra.mxu0 0.0
    %244 = vmatprep.subr.mxu0 0.0
    %245 = vmatpush1.msra.mxu0 0.0
    %246 = vmatprep.subr.mxu0 0.0
    %247 = vmatpush1.msra.mxu0 0.0
    %248 = vmatprep.subr.mxu0 0.0
    %249 = vmatpush1.msra.mxu0 0.0
    %250 = vmatprep.subr.mxu0 0.0
    %251 = vmatpush1.msra.mxu0 0.0
    %252 = vmatprep.subr.mxu0 0.0
    %253 = vmatpush1.msra.mxu0 0.0
    %254 = vmatprep.subr.mxu0 0.0
    %255 = vmatpush1.msra.mxu0 0.0
    %256 = vmatprep.subr.mxu0 0.0
    %257 = vmatpush1.msra.mxu0 0.0
    %258 = vmatprep.subr.mxu0 0.0
    %259 = vmatpush1.msra.mxu0 0.0
    %260 = vmatprep.subr.mxu0 0.0
    %261 = vmatpush1.msra.mxu0 0.0
    %262 = vmatprep.subr.mxu0 0.0
    %263 = vmatpush1.msra.mxu0 0.0
    %264 = vmatprep.subr.mxu0 0.0
    %265 = vmatpush1.msra.mxu0 0.0
    %266 = vmatprep.subr.mxu0 0.0
    %267 = vmatpush1.msra.mxu0 0.0
    %268 = vmatprep.subr.mxu0 0.0
    %269 = vmatpush1.msra.mxu0 0.0
    %270 = vmatprep.subr.mxu0 0.0
    %271 = vmatpush1.msra.mxu0 0.0
    %272 = vmatprep.subr.mxu0 0.0
    %273 = vmatpush1.msra.mxu0 0.0
    %274 = vmatprep.subr.mxu0 0.0
    %275 = vmatpush1.msra.mxu0 0.0
    %276 = vmatprep.subr.mxu0 0.0
    %277 = vmatpush1.msra.mxu0 0.0
    %278 = vmatprep.subr.mxu0 0.0
    %279 = vmatpush1.msra.mxu0 0.0
    %280 = vmatprep.subr.mxu0 0.0
    %281 = vmatpush1.msra.mxu0 0.0
    %282 = vmatprep.mubr.f32.mxu0 0.0
    %283 = vmatmul.mubr.f32.gmra.mrb[0].mxu0 %v213
    %v284 = vpop.f32.mrb[0].mxu0
    %v285 = vadd.f32 0.0, %v284
    %v286 = vpop.f32.mrb[0].mxu0
    %287 = vdwg.mxu0
    %v288 = vrot.slane %v285, 7
    %290 = vrot.lane.b32.xlu0 %v285, 96
    %v291 = vpop.permute.xlu0 %290
    %v293 = vadd.f32 %v288, %v291
    %294 = vrot.lane.b32.xlu0 %v285, 64
    %v295 = vpop.permute.xlu0 %294
    %v297 = vrot.slane %v295, 1
    %v298 = vadd.f32 %v293, %v297
    %v299 = vld [vmem:[#allocation2 + $0x40] sm:$0xf]
    %v301 = vsel %vm130, %v38, 0
    %v304 = vsel %vm134, %v299, 0
    %306 = vmatprep.subr.mxu0 0.0
    %307 = vmatpush1.msra.mxu0 %v304
    %308 = vmatprep.subr.mxu0 0.0
    %309 = vmatpush1.msra.mxu0 0.0
    %310 = vmatprep.subr.mxu0 0.0
    %311 = vmatpush1.msra.mxu0 0.0
    %312 = vmatprep.subr.mxu0 0.0
    %313 = vmatpush1.msra.mxu0 0.0
    %314 = vmatprep.subr.mxu0 0.0
    %315 = vmatpush1.msra.mxu0 0.0
    %316 = vmatprep.subr.mxu0 0.0
    %317 = vmatpush1.msra.mxu0 0.0
    %318 = vmatprep.subr.mxu0 0.0
    %319 = vmatpush1.msra.mxu0 0.0
    %320 = vmatprep.subr.mxu0 0.0
    %321 = vmatpush1.msra.mxu0 0.0
    %322 = vmatprep.subr.mxu0 0.0
    %323 = vmatpush1.msra.mxu0 0.0
    %324 = vmatprep.subr.mxu0 0.0
    %325 = vmatpush1.msra.mxu0 0.0
    %326 = vmatprep.subr.mxu0 0.0
    %327 = vmatpush1.msra.mxu0 0.0
    %328 = vmatprep.subr.mxu0 0.0
    %329 = vmatpush1.msra.mxu0 0.0
    %330 = vmatprep.subr.mxu0 0.0
    %331 = vmatpush1.msra.mxu0 0.0
    %332 = vmatprep.subr.mxu0 0.0
    %333 = vmatpush1.msra.mxu0 0.0
    %334 = vmatprep.subr.mxu0 0.0
    %335 = vmatpush1.msra.mxu0 0.0
    %336 = vmatprep.subr.mxu0 0.0
    %337 = vmatpush1.msra.mxu0 0.0
    %338 = vmatprep.subr.mxu0 0.0
    %339 = vmatpush1.msra.mxu0 0.0
    %340 = vmatprep.subr.mxu0 0.0
    %341 = vmatpush1.msra.mxu0 0.0
    %342 = vmatprep.subr.mxu0 0.0
    %343 = vmatpush1.msra.mxu0 0.0
    %344 = vmatprep.subr.mxu0 0.0
    %345 = vmatpush1.msra.mxu0 0.0
    %346 = vmatprep.subr.mxu0 0.0
    %347 = vmatpush1.msra.mxu0 0.0
    %348 = vmatprep.subr.mxu0 0.0
    %349 = vmatpush1.msra.mxu0 0.0
    %350 = vmatprep.subr.mxu0 0.0
    %351 = vmatpush1.msra.mxu0 0.0
    %352 = vmatprep.subr.mxu0 0.0
    %353 = vmatpush1.msra.mxu0 0.0
    %354 = vmatprep.subr.mxu0 0.0
    %355 = vmatpush1.msra.mxu0 0.0
    %356 = vmatprep.subr.mxu0 0.0
    %357 = vmatpush1.msra.mxu0 0.0
    %358 = vmatprep.subr.mxu0 0.0
    %359 = vmatpush1.msra.mxu0 0.0
    %360 = vmatprep.subr.mxu0 0.0
    %361 = vmatpush1.msra.mxu0 0.0
    %362 = vmatprep.subr.mxu0 0.0
    %363 = vmatpush1.msra.mxu0 0.0
    %364 = vmatprep.subr.mxu0 0.0
    %365 = vmatpush1.msra.mxu0 0.0
    %366 = vmatprep.subr.mxu0 0.0
    %367 = vmatpush1.msra.mxu0 0.0
    %368 = vmatprep.subr.mxu0 0.0
    %369 = vmatpush1.msra.mxu0 0.0
    %370 = vmatprep.mubr.f32.mxu0 0.0
    %371 = vmatmul.mubr.f32.gmra.mrb[0].mxu0 %v301
    %v372 = vpop.f32.mrb[0].mxu0
    %v373 = vadd.f32 0.0, %v372
    %v374 = vpop.f32.mrb[0].mxu0
    %375 = vdwg.mxu0
    %v376 = vadd.f32 %v298, %v373
    %v377 = vld [vmem:[#allocation2 + $0x38] sm:$0xff]
    %v378 = vadd.f32 %v376, %v377
    %v379 = vld [vmem:[#allocation2 + $0x1e8] sm:$0xff]
    %v380 = vld [vmem:[#allocation2 + $0x1f0] sm:$0xff]
    %v381 = vld [vmem:[#allocation2 + $0x1f8] sm:$0xff]
    %v382 = vld [vmem:[#allocation2 + $0x200] sm:$0xff]
    %v383 = vld [vmem:[#allocation2 + $0x1c0] sm:$0x1]
    %v384 = vld [vmem:[#allocation2 + $0x1c8] sm:$0xff]
    %v385 = vld [vmem:[#allocation2 + $0x1d0] sm:$0xff]
    %v386 = vld [vmem:[#allocation2 + $0x1d8] sm:$0xff]
    %v387 = vld [vmem:[#allocation2 + $0x1e0] sm:$0xff]
    %v388 = vld [vmem:[#allocation2 + $0x1b8] sm:$0x1]
    %v389 = vlaneseq
    %v390 = vshrl.u32 %v389, 7
    %v391 = vsub.s32 0, %v390
    %v392 = vrot.slane %v383, %v391
    %vm393 = vcmask 261120
    %v395 = vsel %vm393, %v210, 0
    %397 = vmatprep.subr.mxu0 0.0
    %398 = vmatpush1.msra.mxu0 %v379
    %399 = vmatprep.subr.mxu0 0.0
    %400 = vmatpush1.msra.mxu0 %v380
    %401 = vmatprep.subr.mxu0 0.0
    %402 = vmatpush1.msra.mxu0 %v381
    %403 = vmatprep.subr.mxu0 0.0
    %404 = vmatpush1.msra.mxu0 %v382
    %405 = vmatprep.subr.mxu0 0.0
    %406 = vmatpush1.msra.mxu0 0.0
    %407 = vmatprep.subr.mxu0 0.0
    %408 = vmatpush1.msra.mxu0 0.0
    %409 = vmatprep.subr.mxu0 0.0
    %410 = vmatpush1.msra.mxu0 0.0
    %411 = vmatprep.subr.mxu0 0.0
    %412 = vmatpush1.msra.mxu0 0.0
    %413 = vmatprep.subr.mxu0 0.0
    %414 = vmatpush1.msra.mxu0 0.0
    %415 = vmatprep.subr.mxu0 0.0
    %416 = vmatpush1.msra.mxu0 0.0
    %417 = vmatprep.subr.mxu0 0.0
    %418 = vmatpush1.msra.mxu0 0.0
    %419 = vmatprep.subr.mxu0 0.0
    %420 = vmatpush1.msra.mxu0 0.0
    %421 = vmatprep.subr.mxu0 0.0
    %422 = vmatpush1.msra.mxu0 0.0
    %423 = vmatprep.subr.mxu0 0.0
    %424 = vmatpush1.msra.mxu0 0.0
    %425 = vmatprep.subr.mxu0 0.0
    %426 = vmatpush1.msra.mxu0 0.0
    %427 = vmatprep.subr.mxu0 0.0
    %428 = vmatpush1.msra.mxu0 0.0
    %429 = vmatprep.subr.mxu0 0.0
    %430 = vmatpush1.msra.mxu0 0.0
    %431 = vmatprep.subr.mxu0 0.0
    %432 = vmatpush1.msra.mxu0 0.0
    %433 = vmatprep.subr.mxu0 0.0
    %434 = vmatpush1.msra.mxu0 0.0
    %435 = vmatprep.subr.mxu0 0.0
    %436 = vmatpush1.msra.mxu0 0.0
    %437 = vmatprep.subr.mxu0 0.0
    %438 = vmatpush1.msra.mxu0 0.0
    %439 = vmatprep.subr.mxu0 0.0
    %440 = vmatpush1.msra.mxu0 0.0
    %441 = vmatprep.subr.mxu0 0.0
    %442 = vmatpush1.msra.mxu0 0.0
    %443 = vmatprep.subr.mxu0 0.0
    %444 = vmatpush1.msra.mxu0 0.0
    %445 = vmatprep.subr.mxu0 0.0
    %446 = vmatpush1.msra.mxu0 0.0
    %447 = vmatprep.subr.mxu0 0.0
    %448 = vmatpush1.msra.mxu0 0.0
    %449 = vmatprep.subr.mxu0 0.0
    %450 = vmatpush1.msra.mxu0 0.0
    %451 = vmatprep.subr.mxu0 0.0
    %452 = vmatpush1.msra.mxu0 0.0
    %453 = vmatprep.subr.mxu0 0.0
    %454 = vmatpush1.msra.mxu0 0.0
    %455 = vmatprep.subr.mxu0 0.0
    %456 = vmatpush1.msra.mxu0 0.0
    %457 = vmatprep.subr.mxu0 0.0
    %458 = vmatpush1.msra.mxu0 0.0
    %459 = vmatprep.subr.mxu0 0.0
    %460 = vmatpush1.msra.mxu0 0.0
    %461 = vmatprep.mubr.f32.mxu0 0.0
    %462 = vmatmul.mubr.f32.gmra.mrb[0].mxu0 %v395
    %v463 = vpop.f32.mrb[0].mxu0
    %v464 = vadd.f32 %v392, %v463
    %v465 = vpop.f32.mrb[0].mxu0
    %466 = vdwg.mxu0
    %v467 = vlaneseq
    %v468 = vshrl.u32 %v467, 7
    %v469 = vadd.s32 %v468, 8
    %v470 = vadd.s32 %v468, 16
    %v471 = vadd.s32 %v468, 24
    %v472 = vlaneseq
    %v473 = vand.u32 %v472, 127
    %vm474 = vcmp.ge.s32.totalorder %v468, 8
    %vm475 = vcmp.ge.s32.totalorder %v469, 8
    %vm476 = vcmp.ge.s32.totalorder %v470, 8
    %vm477 = vcmp.ge.s32.totalorder %v471, 8
    %v478 = vsel %vm474, 1, 0
    %v479 = vsel %vm475, 1, 0
    %v480 = vsel %vm476, 1, 0
    %v481 = vsel %vm477, 1, 0
    %vm482 = vcmp.ge.s32.totalorder %v468, 16
    %vm483 = vcmp.ge.s32.totalorder %v469, 16
    %vm484 = vcmp.ge.s32.totalorder %v470, 16
    %vm485 = vcmp.ge.s32.totalorder %v471, 16
    %v486 = vsel %vm482, 1, 0
    %v487 = vsel %vm483, 1, 0
    %v488 = vsel %vm484, 1, 0
    %v489 = vsel %vm485, 1, 0
    %v490 = vadd.s32 %v478, %v486
    %v491 = vadd.s32 %v479, %v487
    %v492 = vadd.s32 %v480, %v488
    %v493 = vadd.s32 %v481, %v489
    %vm494 = vcmp.ge.s32.totalorder %v468, 24
    %vm495 = vcmp.ge.s32.totalorder %v469, 24
    %vm496 = vcmp.ge.s32.totalorder %v470, 24
    %vm497 = vcmp.ge.s32.totalorder %v471, 24
    %v498 = vsel %vm494, 1, 0
    %v499 = vsel %vm495, 1, 0
    %v500 = vsel %vm496, 1, 0
    %v501 = vsel %vm497, 1, 0
    %v502 = vadd.s32 %v490, %v498
    %v503 = vadd.s32 %v491, %v499
    %v504 = vadd.s32 %v492, %v500
    %v505 = vadd.s32 %v493, %v501
    %vm506 = vcmp.ge.s32.totalorder %v473, 8
    %v507 = vsel %vm506, 1, 0
    %vm508 = vcmp.ge.s32.totalorder %v473, 16
    %v509 = vsel %vm508, 1, 0
    %v510 = vadd.s32 %v507, %v509
    %vm511 = vcmp.ge.s32.totalorder %v473, 24
    %v512 = vsel %vm511, 1, 0
    %v513 = vadd.s32 %v510, %v512
    %vm514 = vcmp.eq.s32.totalorder %v502, %v513
    %vm515 = vcmp.eq.s32.totalorder %v503, %v513
    %vm516 = vcmp.eq.s32.totalorder %v504, %v513
    %vm517 = vcmp.eq.s32.totalorder %v505, %v513
    %v518 = vsel %vm514, 1, 0
    %v519 = vsel %vm515, 1, 0
    %v520 = vsel %vm516, 1, 0
    %v521 = vsel %vm517, 1, 0
    %v522 = vcvt.s32.f32 %v518
    %v523 = vcvt.s32.f32 %v519
    %v524 = vcvt.s32.f32 %v520
    %v525 = vcvt.s32.f32 %v521
    %530 = vrot.lane.b32.xlu0 %v522, 32
    %v531 = vpop.permute.xlu0 %530
    %532 = vrot.lane.b32.xlu0 %v523, 32
    %v533 = vpop.permute.xlu0 %532
    %534 = vrot.lane.b32.xlu0 %v524, 32
    %v535 = vpop.permute.xlu0 %534
    %536 = vrot.lane.b32.xlu0 %v525, 32
    %v537 = vpop.permute.xlu0 %536
    %v542 = vmul.f32 %v464, %v531
    %v543 = vmul.f32 %v464, %v533
    %v544 = vmul.f32 %v464, %v535
    %v545 = vmul.f32 %v464, %v537
    %546 = vrot.lane.b32.xlu0 %v522, 64
    %v547 = vpop.permute.xlu0 %546
    %548 = vrot.lane.b32.xlu0 %v523, 64
    %v549 = vpop.permute.xlu0 %548
    %550 = vrot.lane.b32.xlu0 %v524, 64
    %v551 = vpop.permute.xlu0 %550
    %552 = vrot.lane.b32.xlu0 %v525, 64
    %v553 = vpop.permute.xlu0 %552
    %v558 = vmul.f32 %v464, %v547
    %v559 = vmul.f32 %v464, %v549
    %v560 = vmul.f32 %v464, %v551
    %v561 = vmul.f32 %v464, %v553
    %566 = vrot.lane.b32.xlu0 %v542, 96
    %v567 = vpop.permute.xlu0 %566
    %568 = vrot.lane.b32.xlu0 %v543, 96
    %v569 = vpop.permute.xlu0 %568
    %570 = vrot.lane.b32.xlu0 %v544, 96
    %v571 = vpop.permute.xlu0 %570
    %572 = vrot.lane.b32.xlu0 %v545, 96
    %v573 = vpop.permute.xlu0 %572
    %v575 = vsel %vm393, %v464, 0
    %v577 = vsel %vm393, %v567, 0
    %v579 = vsel %vm393, %v569, 0
    %v581 = vsel %vm393, %v571, 0
    %v583 = vsel %vm393, %v573, 0
    %585 = vmatprep.subr.mxu0 0.0
    %586 = vmatpush1.xpose.msra.mxu0 %v577
    %587 = vmatprep.subr.mxu0 0.0
    %588 = vmatpush1.xpose.msra.mxu0 %v579
    %589 = vmatprep.subr.mxu0 0.0
    %590 = vmatpush1.xpose.msra.mxu0 %v581
    %591 = vmatprep.subr.mxu0 0.0
    %592 = vmatpush1.xpose.msra.mxu0 %v583
    %593 = vmatprep.subr.mxu0 0.0
    %594 = vmatpush1.xpose.msra.mxu0 0.0
    %595 = vmatprep.subr.mxu0 0.0
    %596 = vmatpush1.xpose.msra.mxu0 0.0
    %597 = vmatprep.subr.mxu0 0.0
    %598 = vmatpush1.xpose.msra.mxu0 0.0
    %599 = vmatprep.subr.mxu0 0.0
    %600 = vmatpush1.xpose.msra.mxu0 0.0
    %601 = vmatprep.subr.mxu0 0.0
    %602 = vmatpush1.xpose.msra.mxu0 0.0
    %603 = vmatprep.subr.mxu0 0.0
    %604 = vmatpush1.xpose.msra.mxu0 0.0
    %605 = vmatprep.subr.mxu0 0.0
    %606 = vmatpush1.xpose.msra.mxu0 0.0
    %607 = vmatprep.subr.mxu0 0.0
    %608 = vmatpush1.xpose.msra.mxu0 0.0
    %609 = vmatprep.subr.mxu0 0.0
    %610 = vmatpush1.xpose.msra.mxu0 0.0
    %611 = vmatprep.subr.mxu0 0.0
    %612 = vmatpush1.xpose.msra.mxu0 0.0
    %613 = vmatprep.subr.mxu0 0.0
    %614 = vmatpush1.xpose.msra.mxu0 0.0
    %615 = vmatprep.subr.mxu0 0.0
    %616 = vmatpush1.xpose.msra.mxu0 0.0
    %617 = vmatprep.subr.mxu0 0.0
    %618 = vmatpush1.xpose.msra.mxu0 0.0
    %619 = vmatprep.subr.mxu0 0.0
    %620 = vmatpush1.xpose.msra.mxu0 0.0
    %621 = vmatprep.subr.mxu0 0.0
    %622 = vmatpush1.xpose.msra.mxu0 0.0
    %623 = vmatprep.subr.mxu0 0.0
    %624 = vmatpush1.xpose.msra.mxu0 0.0
    %625 = vmatprep.subr.mxu0 0.0
    %626 = vmatpush1.xpose.msra.mxu0 0.0
    %627 = vmatprep.subr.mxu0 0.0
    %628 = vmatpush1.xpose.msra.mxu0 0.0
    %629 = vmatprep.subr.mxu0 0.0
    %630 = vmatpush1.xpose.msra.mxu0 0.0
    %631 = vmatprep.subr.mxu0 0.0
    %632 = vmatpush1.xpose.msra.mxu0 0.0
    %633 = vmatprep.subr.mxu0 0.0
    %634 = vmatpush1.xpose.msra.mxu0 0.0
    %635 = vmatprep.subr.mxu0 0.0
    %636 = vmatpush1.xpose.msra.mxu0 0.0
    %637 = vmatprep.subr.mxu0 0.0
    %638 = vmatpush1.xpose.msra.mxu0 0.0
    %639 = vmatprep.subr.mxu0 0.0
    %640 = vmatpush1.xpose.msra.mxu0 0.0
    %641 = vmatprep.subr.mxu0 0.0
    %642 = vmatpush1.xpose.msra.mxu0 0.0
    %643 = vmatprep.subr.mxu0 0.0
    %644 = vmatpush1.xpose.msra.mxu0 0.0
    %645 = vmatprep.subr.mxu0 0.0
    %646 = vmatpush1.xpose.msra.mxu0 0.0
    %647 = vmatprep.subr.mxu0 0.0
    %648 = vmatpush1.xpose.msra.mxu0 0.0
    %649 = vmatprep.mubr.f32.mxu0 0.0
    %650 = vmatmul.mubr.f32.gmra.mrb[0].mxu0 %v575
    %v651 = vpop.f32.mrb[0].mxu0
    %v652 = vadd.f32 0.0, %v651
    %v653 = vpop.f32.mrb[0].mxu0
    %654 = vdwg.mxu0
    %v655 = vmul.f32 %v652, 0.35355338
    %v656 = vsel %vm393, %v655, -inf
    %657 = vmax.xlane.f32.xlu0 %v656
    %v658 = vpop.xlane.xlu0 %657
    %v659 = vsub.f32 %v655, %v658
    %v660 = vmul.f32 %v659, 1.442695
    %v661 = vpow.pop %v660
    %v663 = vsel %vm393, %v661, 0
    %665 = vmatprep.subr.mxu0 0.0
    %666 = vmatpush1.msra.mxu0 %v522
    %667 = vmatprep.subr.mxu0 0.0
    %668 = vmatpush1.msra.mxu0 %v523
    %669 = vmatprep.subr.mxu0 0.0
    %670 = vmatpush1.msra.mxu0 %v524
    %671 = vmatprep.subr.mxu0 0.0
    %672 = vmatpush1.msra.mxu0 %v525
    %673 = vmatprep.subr.mxu0 0.0
    %674 = vmatpush1.msra.mxu0 0.0
    %675 = vmatprep.subr.mxu0 0.0
    %676 = vmatpush1.msra.mxu0 0.0
    %677 = vmatprep.subr.mxu0 0.0
    %678 = vmatpush1.msra.mxu0 0.0
    %679 = vmatprep.subr.mxu0 0.0
    %680 = vmatpush1.msra.mxu0 0.0
    %681 = vmatprep.subr.mxu0 0.0
    %682 = vmatpush1.msra.mxu0 0.0
    %683 = vmatprep.subr.mxu0 0.0
    %684 = vmatpush1.msra.mxu0 0.0
    %685 = vmatprep.subr.mxu0 0.0
    %686 = vmatpush1.msra.mxu0 0.0
    %687 = vmatprep.subr.mxu0 0.0
    %688 = vmatpush1.msra.mxu0 0.0
    %689 = vmatprep.subr.mxu0 0.0
    %690 = vmatpush1.msra.mxu0 0.0
    %691 = vmatprep.subr.mxu0 0.0
    %692 = vmatpush1.msra.mxu0 0.0
    %693 = vmatprep.subr.mxu0 0.0
    %694 = vmatpush1.msra.mxu0 0.0
    %695 = vmatprep.subr.mxu0 0.0
    %696 = vmatpush1.msra.mxu0 0.0
    %697 = vmatprep.subr.mxu0 0.0
    %698 = vmatpush1.msra.mxu0 0.0
    %699 = vmatprep.subr.mxu0 0.0
    %700 = vmatpush1.msra.mxu0 0.0
    %701 = vmatprep.subr.mxu0 0.0
    %702 = vmatpush1.msra.mxu0 0.0
    %703 = vmatprep.subr.mxu0 0.0
    %704 = vmatpush1.msra.mxu0 0.0
    %705 = vmatprep.subr.mxu0 0.0
    %706 = vmatpush1.msra.mxu0 0.0
    %707 = vmatprep.subr.mxu0 0.0
    %708 = vmatpush1.msra.mxu0 0.0
    %709 = vmatprep.subr.mxu0 0.0
    %710 = vmatpush1.msra.mxu0 0.0
    %711 = vmatprep.subr.mxu0 0.0
    %712 = vmatpush1.msra.mxu0 0.0
    %713 = vmatprep.subr.mxu0 0.0
    %714 = vmatpush1.msra.mxu0 0.0
    %715 = vmatprep.subr.mxu0 0.0
    %716 = vmatpush1.msra.mxu0 0.0
    %717 = vmatprep.subr.mxu0 0.0
    %718 = vmatpush1.msra.mxu0 0.0
    %719 = vmatprep.subr.mxu0 0.0
    %720 = vmatpush1.msra.mxu0 0.0
    %721 = vmatprep.subr.mxu0 0.0
    %722 = vmatpush1.msra.mxu0 0.0
    %723 = vmatprep.subr.mxu0 0.0
    %724 = vmatpush1.msra.mxu0 0.0
    %725 = vmatprep.subr.mxu0 0.0
    %726 = vmatpush1.msra.mxu0 0.0
    %727 = vmatprep.subr.mxu0 0.0
    %728 = vmatpush1.msra.mxu0 0.0
    %729 = vmatprep.mubr.f32.mxu0 0.0
    %730 = vmatmul.mubr.f32.gmra.mrb[0].mxu0 %v663
    %v731 = vpop.f32.mrb[0].mxu0
    %v732 = vadd.f32 0.0, %v731
    %v733 = vpop.f32.mrb[0].mxu0
    %734 = vdwg.mxu0
    %v735 = vrcp.pop %v732
    %v736 = vmul.f32 %v661, %v735
    %741 = vrot.lane.b32.xlu0 %v558, 64
    %v742 = vpop.permute.xlu0 %741
    %743 = vrot.lane.b32.xlu0 %v559, 64
    %v744 = vpop.permute.xlu0 %743
    %745 = vrot.lane.b32.xlu0 %v560, 64
    %v746 = vpop.permute.xlu0 %745
    %747 = vrot.lane.b32.xlu0 %v561, 64
    %v748 = vpop.permute.xlu0 %747
    %v754 = vsel %vm393, %v736, 0
    %756 = vmatprep.subr.mxu0 0.0
    %757 = vmatpush1.msra.mxu0 %v742
    %758 = vmatprep.subr.mxu0 0.0
    %759 = vmatpush1.msra.mxu0 %v744
    %760 = vmatprep.subr.mxu0 0.0
    %761 = vmatpush1.msra.mxu0 %v746
    %762 = vmatprep.subr.mxu0 0.0
    %763 = vmatpush1.msra.mxu0 %v748
    %764 = vmatprep.subr.mxu0 0.0
    %765 = vmatpush1.msra.mxu0 0.0
    %766 = vmatprep.subr.mxu0 0.0
    %767 = vmatpush1.msra.mxu0 0.0
    %768 = vmatprep.subr.mxu0 0.0
    %769 = vmatpush1.msra.mxu0 0.0
    %770 = vmatprep.subr.mxu0 0.0
    %771 = vmatpush1.msra.mxu0 0.0
    %772 = vmatprep.subr.mxu0 0.0
    %773 = vmatpush1.msra.mxu0 0.0
    %774 = vmatprep.subr.mxu0 0.0
    %775 = vmatpush1.msra.mxu0 0.0
    %776 = vmatprep.subr.mxu0 0.0
    %777 = vmatpush1.msra.mxu0 0.0
    %778 = vmatprep.subr.mxu0 0.0
    %779 = vmatpush1.msra.mxu0 0.0
    %780 = vmatprep.subr.mxu0 0.0
    %781 = vmatpush1.msra.mxu0 0.0
    %782 = vmatprep.subr.mxu0 0.0
    %783 = vmatpush1.msra.mxu0 0.0
    %784 = vmatprep.subr.mxu0 0.0
    %785 = vmatpush1.msra.mxu0 0.0
    %786 = vmatprep.subr.mxu0 0.0
    %787 = vmatpush1.msra.mxu0 0.0
    %788 = vmatprep.subr.mxu0 0.0
    %789 = vmatpush1.msra.mxu0 0.0
    %790 = vmatprep.subr.mxu0 0.0
    %791 = vmatpush1.msra.mxu0 0.0
    %792 = vmatprep.subr.mxu0 0.0
    %793 = vmatpush1.msra.mxu0 0.0
    %794 = vmatprep.subr.mxu0 0.0
    %795 = vmatpush1.msra.mxu0 0.0
    %796 = vmatprep.subr.mxu0 0.0
    %797 = vmatpush1.msra.mxu0 0.0
    %798 = vmatprep.subr.mxu0 0.0
    %799 = vmatpush1.msra.mxu0 0.0
    %800 = vmatprep.subr.mxu0 0.0
    %801 = vmatpush1.msra.mxu0 0.0
    %802 = vmatprep.subr.mxu0 0.0
    %803 = vmatpush1.msra.mxu0 0.0
    %804 = vmatprep.subr.mxu0 0.0
    %805 = vmatpush1.msra.mxu0 0.0
    %806 = vmatprep.subr.mxu0 0.0
    %807 = vmatpush1.msra.mxu0 0.0
    %808 = vmatprep.subr.mxu0 0.0
    %809 = vmatpush1.msra.mxu0 0.0
    %810 = vmatprep.subr.mxu0 0.0
    %811 = vmatpush1.msra.mxu0 0.0
    %812 = vmatprep.subr.mxu0 0.0
    %813 = vmatpush1.msra.mxu0 0.0
    %814 = vmatprep.subr.mxu0 0.0
    %815 = vmatpush1.msra.mxu0 0.0
    %816 = vmatprep.subr.mxu0 0.0
    %817 = vmatpush1.msra.mxu0 0.0
    %818 = vmatprep.subr.mxu0 0.0
    %819 = vmatpush1.msra.mxu0 0.0
    %820 = vmatprep.mubr.f32.mxu0 0.0
    %821 = vmatmul.mubr.f32.gmra.mrb[0].mxu0 %v754
    %v822 = vpop.f32.mrb[0].mxu0
    %v823 = vadd.f32 0.0, %v822
    %v824 = vpop.f32.mrb[0].mxu0
    %825 = vdwg.mxu0
    %v826 = vlaneseq
    %v827 = vshrl.u32 %v826, 7
    %v828 = vsub.s32 0, %v827
    %v829 = vrot.slane %v388, %v828
    %v831 = vsel %vm393, %v823, 0
    %833 = vmatprep.subr.mxu0 0.0
    %834 = vmatpush1.msra.mxu0 %v384
    %835 = vmatprep.subr.mxu0 0.0
    %836 = vmatpush1.msra.mxu0 %v385
    %837 = vmatprep.subr.mxu0 0.0
    %838 = vmatpush1.msra.mxu0 %v386
    %839 = vmatprep.subr.mxu0 0.0
    %840 = vmatpush1.msra.mxu0 %v387
    %841 = vmatprep.subr.mxu0 0.0
    %842 = vmatpush1.msra.mxu0 0.0
    %843 = vmatprep.subr.mxu0 0.0
    %844 = vmatpush1.msra.mxu0 0.0
    %845 = vmatprep.subr.mxu0 0.0
    %846 = vmatpush1.msra.mxu0 0.0
    %847 = vmatprep.subr.mxu0 0.0
    %848 = vmatpush1.msra.mxu0 0.0
    %849 = vmatprep.subr.mxu0 0.0
    %850 = vmatpush1.msra.mxu0 0.0
    %851 = vmatprep.subr.mxu0 0.0
    %852 = vmatpush1.msra.mxu0 0.0
    %853 = vmatprep.subr.mxu0 0.0
    %854 = vmatpush1.msra.mxu0 0.0
    %855 = vmatprep.subr.mxu0 0.0
    %856 = vmatpush1.msra.mxu0 0.0
    %857 = vmatprep.subr.mxu0 0.0
    %858 = vmatpush1.msra.mxu0 0.0
    %859 = vmatprep.subr.mxu0 0.0
    %860 = vmatpush1.msra.mxu0 0.0
    %861 = vmatprep.subr.mxu0 0.0
    %862 = vmatpush1.msra.mxu0 0.0
    %863 = vmatprep.subr.mxu0 0.0
    %864 = vmatpush1.msra.mxu0 0.0
    %865 = vmatprep.subr.mxu0 0.0
    %866 = vmatpush1.msra.mxu0 0.0
    %867 = vmatprep.subr.mxu0 0.0
    %868 = vmatpush1.msra.mxu0 0.0
    %869 = vmatprep.subr.mxu0 0.0
    %870 = vmatpush1.msra.mxu0 0.0
    %871 = vmatprep.subr.mxu0 0.0
    %872 = vmatpush1.msra.mxu0 0.0
    %873 = vmatprep.subr.mxu0 0.0
    %874 = vmatpush1.msra.mxu0 0.0
    %875 = vmatprep.subr.mxu0 0.0
    %876 = vmatpush1.msra.mxu0 0.0
    %877 = vmatprep.subr.mxu0 0.0
    %878 = vmatpush1.msra.mxu0 0.0
    %879 = vmatprep.subr.mxu0 0.0
    %880 = vmatpush1.msra.mxu0 0.0
    %881 = vmatprep.subr.mxu0 0.0
    %882 = vmatpush1.msra.mxu0 0.0
    %883 = vmatprep.subr.mxu0 0.0
    %884 = vmatpush1.msra.mxu0 0.0
    %885 = vmatprep.subr.mxu0 0.0
    %886 = vmatpush1.msra.mxu0 0.0
    %887 = vmatprep.subr.mxu0 0.0
    %888 = vmatpush1.msra.mxu0 0.0
    %889 = vmatprep.subr.mxu0 0.0
    %890 = vmatpush1.msra.mxu0 0.0
    %891 = vmatprep.subr.mxu0 0.0
    %892 = vmatpush1.msra.mxu0 0.0
    %893 = vmatprep.subr.mxu0 0.0
    %894 = vmatpush1.msra.mxu0 0.0
    %895 = vmatprep.subr.mxu0 0.0
    %896 = vmatpush1.msra.mxu0 0.0
    %897 = vmatprep.mubr.f32.mxu0 0.0
    %898 = vmatmul.mubr.f32.gmra.mrb[0].mxu0 %v831
    %v899 = vpop.f32.mrb[0].mxu0
    %v900 = vadd.f32 %v829, %v899
    %v901 = vpop.f32.mrb[0].mxu0
    %902 = vdwg.mxu0
    %v903 = vadd.f32 %v210, %v900
    %v904 = vld [vmem:[#allocation2 + $0x280] sm:$0x1]
    %v905 = vld [vmem:[#allocation2 + $0x278] sm:$0x1]
    %v906 = vsel %vm393, %v903, 0.0
    %907 = vadd.xlane.f32.xlu0 %v906
    %v908 = vpop.xlane.xlu0 %907
    %v909 = vrcp.pop 32.0
    %v910 = vmul.f32 %v908, %v909
    %v911 = vsub.f32 %v903, %v910
    %v912 = vmul.f32 %v911, %v911
    %v913 = vsel %vm393, %v912, 0.0
    %914 = vadd.xlane.f32.xlu0 %v913
    %v915 = vpop.xlane.xlu0 %914
    %v916 = vmul.f32 %v915, %v909
    %v917 = vadd.f32 %v916, 1e-05
    %v918 = vrsqrt.pop %v917
    %v919 = vmul.f32 %v911, %v918
    %v920 = vlaneseq
    %v921 = vshrl.u32 %v920, 7
    %v922 = vsub.s32 0, %v921
    %v923 = vrot.slane %v904, %v922
    %v924 = vmul.f32 %v919, %v923
    %v925 = vlaneseq
    %v926 = vshrl.u32 %v925, 7
    %v927 = vsub.s32 0, %v926
    %v928 = vrot.slane %v905, %v927
    %v929 = vadd.f32 %v924, %v928
    %v930 = vld [vmem:[#allocation2 + $0x210] sm:$0xff]
    %v931 = vld [vmem:[#allocation2 + $0x218] sm:$0xff]
    %v932 = vld [vmem:[#allocation2 + $0x220] sm:$0xff]
    %v933 = vld [vmem:[#allocation2 + $0x228] sm:$0xff]
    %v934 = vld [vmem:[#allocation2 + $0x208] sm:$0x1]
    %v935 = vlaneseq
    %v936 = vshrl.u32 %v935, 7
    %v937 = vsub.s32 0, %v936
    %v938 = vrot.slane %v934, %v937
    %v940 = vsel %vm393, %v929, 0
    %942 = vmatprep.subr.mxu0 0.0
    %943 = vmatpush1.msra.mxu0 %v930
    %944 = vmatprep.subr.mxu0 0.0
    %945 = vmatpush1.msra.mxu0 %v931
    %946 = vmatprep.subr.mxu0 0.0
    %947 = vmatpush1.msra.mxu0 %v932
    %948 = vmatprep.subr.mxu0 0.0
    %949 = vmatpush1.msra.mxu0 %v933
    %950 = vmatprep.subr.mxu0 0.0
    %951 = vmatpush1.msra.mxu0 0.0
    %952 = vmatprep.subr.mxu0 0.0
    %953 = vmatpush1.msra.mxu0 0.0
    %954 = vmatprep.subr.mxu0 0.0
    %955 = vmatpush1.msra.mxu0 0.0
    %956 = vmatprep.subr.mxu0 0.0
    %957 = vmatpush1.msra.mxu0 0.0
    %958 = vmatprep.subr.mxu0 0.0
    %959 = vmatpush1.msra.mxu0 0.0
    %960 = vmatprep.subr.mxu0 0.0
    %961 = vmatpush1.msra.mxu0 0.0
    %962 = vmatprep.subr.mxu0 0.0
    %963 = vmatpush1.msra.mxu0 0.0
    %964 = vmatprep.subr.mxu0 0.0
    %965 = vmatpush1.msra.mxu0 0.0
    %966 = vmatprep.subr.mxu0 0.0
    %967 = vmatpush1.msra.mxu0 0.0
    %968 = vmatprep.subr.mxu0 0.0
    %969 = vmatpush1.msra.mxu0 0.0
    %970 = vmatprep.subr.mxu0 0.0
    %971 = vmatpush1.msra.mxu0 0.0
    %972 = vmatprep.subr.mxu0 0.0
    %973 = vmatpush1.msra.mxu0 0.0
    %974 = vmatprep.subr.mxu0 0.0
    %975 = vmatpush1.msra.mxu0 0.0
    %976 = vmatprep.subr.mxu0 0.0
    %977 = vmatpush1.msra.mxu0 0.0
    %978 = vmatprep.subr.mxu0 0.0
    %979 = vmatpush1.msra.mxu0 0.0
    %980 = vmatprep.subr.mxu0 0.0
    %981 = vmatpush1.msra.mxu0 0.0
    %982 = vmatprep.subr.mxu0 0.0
    %983 = vmatpush1.msra.mxu0 0.0
    %984 = vmatprep.subr.mxu0 0.0
    %985 = vmatpush1.msra.mxu0 0.0
    %986 = vmatprep.subr.mxu0 0.0
    %987 = vmatpush1.msra.mxu0 0.0
    %988 = vmatprep.subr.mxu0 0.0
    %989 = vmatpush1.msra.mxu0 0.0
    %990 = vmatprep.subr.mxu0 0.0
    %991 = vmatpush1.msra.mxu0 0.0
    %992 = vmatprep.subr.mxu0 0.0
    %993 = vmatpush1.msra.mxu0 0.0
    %994 = vmatprep.subr.mxu0 0.0
    %995 = vmatpush1.msra.mxu0 0.0
    %996 = vmatprep.subr.mxu0 0.0
    %997 = vmatpush1.msra.mxu0 0.0
    %998 = vmatprep.subr.mxu0 0.0
    %999 = vmatpush1.msra.mxu0 0.0
    %1000 = vmatprep.subr.mxu0 0.0
    %1001 = vmatpush1.msra.mxu0 0.0
    %1002 = vmatprep.subr.mxu0 0.0
    %1003 = vmatpush1.msra.mxu0 0.0
    %1004 = vmatprep.subr.mxu0 0.0
    %1005 = vmatpush1.msra.mxu0 0.0
    %1006 = vmatprep.mubr.f32.mxu0 0.0
    %1007 = vmatmul.mubr.f32.gmra.mrb[0].mxu0 %v940
    %v1008 = vpop.f32.mrb[0].mxu0
    %v1009 = vadd.f32 %v938, %v1008
    %v1010 = vpop.f32.mrb[0].mxu0
    %1011 = vdwg.mxu0
    %v1012 = vmax.f32 %v1009, 0.0
    %v1013 = vld [vmem:[#allocation2 + $0x238] sm:$0xff]
    %v1014 = vld [vmem:[#allocation2 + $0x240] sm:$0xff]
    %v1015 = vld [vmem:[#allocation2 + $0x248] sm:$0xff]
    %v1016 = vld [vmem:[#allocation2 + $0x250] sm:$0xff]
    %v1017 = vld [vmem:[#allocation2 + $0x258] sm:$0xff]
    %v1018 = vld [vmem:[#allocation2 + $0x260] sm:$0xff]
    %v1019 = vld [vmem:[#allocation2 + $0x268] sm:$0xff]
    %v1020 = vld [vmem:[#allocation2 + $0x270] sm:$0xff]
    %v1021 = vld [vmem:[#allocation2 + $0x230] sm:$0x1]
    %v1022 = vlaneseq
    %v1023 = vshrl.u32 %v1022, 7
    %v1024 = vsub.s32 0, %v1023
    %v1025 = vrot.slane %v1021, %v1024
    %vm1026 = vcmask 523264
    %v1028 = vsel %vm1026, %v1012, 0
    %1030 = vmatprep.subr.mxu0 0.0
    %1031 = vmatpush1.msra.mxu0 %v1013
    %1032 = vmatprep.subr.mxu0 0.0
    %1033 = vmatpush1.msra.mxu0 %v1014
    %1034 = vmatprep.subr.mxu0 0.0
    %1035 = vmatpush1.msra.mxu0 %v1015
    %1036 = vmatprep.subr.mxu0 0.0
    %1037 = vmatpush1.msra.mxu0 %v1016
    %1038 = vmatprep.subr.mxu0 0.0
    %1039 = vmatpush1.msra.mxu0 %v1017
    %1040 = vmatprep.subr.mxu0 0.0
    %1041 = vmatpush1.msra.mxu0 %v1018
    %1042 = vmatprep.subr.mxu0 0.0
    %1043 = vmatpush1.msra.mxu0 %v1019
    %1044 = vmatprep.subr.mxu0 0.0
    %1045 = vmatpush1.msra.mxu0 %v1020
    %1046 = vmatprep.subr.mxu0 0.0
    %1047 = vmatpush1.msra.mxu0 0.0
    %1048 = vmatprep.subr.mxu0 0.0
    %1049 = vmatpush1.msra.mxu0 0.0
    %1050 = vmatprep.subr.mxu0 0.0
    %1051 = vmatpush1.msra.mxu0 0.0
    %1052 = vmatprep.subr.mxu0 0.0
    %1053 = vmatpush1.msra.mxu0 0.0
    %1054 = vmatprep.subr.mxu0 0.0
    %1055 = vmatpush1.msra.mxu0 0.0
    %1056 = vmatprep.subr.mxu0 0.0
    %1057 = vmatpush1.msra.mxu0 0.0
    %1058 = vmatprep.subr.mxu0 0.0
    %1059 = vmatpush1.msra.mxu0 0.0
    %1060 = vmatprep.subr.mxu0 0.0
    %1061 = vmatpush1.msra.mxu0 0.0
    %1062 = vmatprep.subr.mxu0 0.0
    %1063 = vmatpush1.msra.mxu0 0.0
    %1064 = vmatprep.subr.mxu0 0.0
    %1065 = vmatpush1.msra.mxu0 0.0
    %1066 = vmatprep.subr.mxu0 0.0
    %1067 = vmatpush1.msra.mxu0 0.0
    %1068 = vmatprep.subr.mxu0 0.0
    %1069 = vmatpush1.msra.mxu0 0.0
    %1070 = vmatprep.subr.mxu0 0.0
    %1071 = vmatpush1.msra.mxu0 0.0
    %1072 = vmatprep.subr.mxu0 0.0
    %1073 = vmatpush1.msra.mxu0 0.0
    %1074 = vmatprep.subr.mxu0 0.0
    %1075 = vmatpush1.msra.mxu0 0.0
    %1076 = vmatprep.subr.mxu0 0.0
    %1077 = vmatpush1.msra.mxu0 0.0
    %1078 = vmatprep.subr.mxu0 0.0
    %1079 = vmatpush1.msra.mxu0 0.0
    %1080 = vmatprep.subr.mxu0 0.0
    %1081 = vmatpush1.msra.mxu0 0.0
    %1082 = vmatprep.subr.mxu0 0.0
    %1083 = vmatpush1.msra.mxu0 0.0
    %1084 = vmatprep.subr.mxu0 0.0
    %1085 = vmatpush1.msra.mxu0 0.0
    %1086 = vmatprep.subr.mxu0 0.0
    %1087 = vmatpush1.msra.mxu0 0.0
    %1088 = vmatprep.subr.mxu0 0.0
    %1089 = vmatpush1.msra.mxu0 0.0
    %1090 = vmatprep.subr.mxu0 0.0
    %1091 = vmatpush1.msra.mxu0 0.0
    %1092 = vmatprep.subr.mxu0 0.0
    %1093 = vmatpush1.msra.mxu0 0.0
    %1094 = vmatprep.mubr.f32.mxu0 0.0
    %1095 = vmatmul.mubr.f32.gmra.mrb[0].mxu0 %v1028
    %v1096 = vpop.f32.mrb[0].mxu0
    %v1097 = vadd.f32 %v1025, %v1096
    %v1098 = vpop.f32.mrb[0].mxu0
    %1099 = vdwg.mxu0
    %v1100 = vadd.f32 %v929, %v1097
    %v1101 = vld [vmem:[#allocation2 + $0x290] sm:$0x1]
    %v1102 = vld [vmem:[#allocation2 + $0x288] sm:$0x1]
    %v1103 = vsel %vm393, %v1100, 0.0
    %1104 = vadd.xlane.f32.xlu0 %v1103
    %v1105 = vpop.xlane.xlu0 %1104
    %v1106 = vmul.f32 %v1105, %v909
    %v1107 = vsub.f32 %v1100, %v1106
    %v1108 = vmul.f32 %v1107, %v1107
    %v1109 = vsel %vm393, %v1108, 0.0
    %1110 = vadd.xlane.f32.xlu0 %v1109
    %v1111 = vpop.xlane.xlu0 %1110
    %v1112 = vmul.f32 %v1111, %v909
    %v1113 = vadd.f32 %v1112, 1e-05
    %v1114 = vrsqrt.pop %v1113
    %v1115 = vmul.f32 %v1107, %v1114
    %v1116 = vlaneseq
    %v1117 = vshrl.u32 %v1116, 7
    %v1118 = vsub.s32 0, %v1117
    %v1119 = vrot.slane %v1101, %v1118
    %v1120 = vmul.f32 %v1115, %v1119
    %v1121 = vlaneseq
    %v1122 = vshrl.u32 %v1121, 7
    %v1123 = vsub.s32 0, %v1122
    %v1124 = vrot.slane %v1102, %v1123
    %v1125 = vadd.f32 %v1120, %v1124
    %v1126 = vld [vmem:[#allocation2 + $0x18] sm:$0xff]
    %v1127 = vld [vmem:[#allocation2 + $0x20] sm:$0xff]
    %v1128 = vld [vmem:[#allocation2 + $0x28] sm:$0xff]
    %v1129 = vld [vmem:[#allocation2 + $0x30] sm:$0xff]
    %v1130 = vld [vmem:[#allocation2 + $0x10] sm:$0x1]
    %v1132 = vsel %vm393, %v1125, 0
    %1134 = vmatprep.subr.mxu0 0.0
    %1135 = vmatpush1.msra.mxu0 %v1126
    %1136 = vmatprep.subr.mxu0 0.0
    %1137 = vmatpush1.msra.mxu0 %v1127
    %1138 = vmatprep.subr.mxu0 0.0
    %1139 = vmatpush1.msra.mxu0 %v1128
    %1140 = vmatprep.subr.mxu0 0.0
    %1141 = vmatpush1.msra.mxu0 %v1129
    %1142 = vmatprep.subr.mxu0 0.0
    %1143 = vmatpush1.msra.mxu0 0.0
    %1144 = vmatprep.subr.mxu0 0.0
    %1145 = vmatpush1.msra.mxu0 0.0
    %1146 = vmatprep.subr.mxu0 0.0
    %1147 = vmatpush1.msra.mxu0 0.0
    %1148 = vmatprep.subr.mxu0 0.0
    %1149 = vmatpush1.msra.mxu0 0.0
    %1150 = vmatprep.subr.mxu0 0.0
    %1151 = vmatpush1.msra.mxu0 0.0
    %1152 = vmatprep.subr.mxu0 0.0
    %1153 = vmatpush1.msra.mxu0 0.0
    %1154 = vmatprep.subr.mxu0 0.0
    %1155 = vmatpush1.msra.mxu0 0.0
    %1156 = vmatprep.subr.mxu0 0.0
    %1157 = vmatpush1.msra.mxu0 0.0
    %1158 = vmatprep.subr.mxu0 0.0
    %1159 = vmatpush1.msra.mxu0 0.0
    %1160 = vmatprep.subr.mxu0 0.0
    %1161 = vmatpush1.msra.mxu0 0.0
    %1162 = vmatprep.subr.mxu0 0.0
    %1163 = vmatpush1.msra.mxu0 0.0
    %1164 = vmatprep.subr.mxu0 0.0
    %1165 = vmatpush1.msra.mxu0 0.0
    %1166 = vmatprep.subr.mxu0 0.0
    %1167 = vmatpush1.msra.mxu0 0.0
    %1168 = vmatprep.subr.mxu0 0.0
    %1169 = vmatpush1.msra.mxu0 0.0
    %1170 = vmatprep.subr.mxu0 0.0
    %1171 = vmatpush1.msra.mxu0 0.0
    %1172 = vmatprep.subr.mxu0 0.0
    %1173 = vmatpush1.msra.mxu0 0.0
    %1174 = vmatprep.subr.mxu0 0.0
    %1175 = vmatpush1.msra.mxu0 0.0
    %1176 = vmatprep.subr.mxu0 0.0
    %1177 = vmatpush1.msra.mxu0 0.0
    %1178 = vmatprep.subr.mxu0 0.0
    %1179 = vmatpush1.msra.mxu0 0.0
    %1180 = vmatprep.subr.mxu0 0.0
    %1181 = vmatpush1.msra.mxu0 0.0
    %1182 = vmatprep.subr.mxu0 0.0
    %1183 = vmatpush1.msra.mxu0 0.0
    %1184 = vmatprep.subr.mxu0 0.0
    %1185 = vmatpush1.msra.mxu0 0.0
    %1186 = vmatprep.subr.mxu0 0.0
    %1187 = vmatpush1.msra.mxu0 0.0
    %1188 = vmatprep.subr.mxu0 0.0
    %1189 = vmatpush1.msra.mxu0 0.0
    %1190 = vmatprep.subr.mxu0 0.0
    %1191 = vmatpush1.msra.mxu0 0.0
    %1192 = vmatprep.subr.mxu0 0.0
    %1193 = vmatpush1.msra.mxu0 0.0
    %1194 = vmatprep.subr.mxu0 0.0
    %1195 = vmatpush1.msra.mxu0 0.0
    %1196 = vmatprep.subr.mxu0 0.0
    %1197 = vmatpush1.msra.mxu0 0.0
    %1198 = vmatprep.mubr.f32.mxu0 0.0
    %1199 = vmatmul.mubr.f32.gmra.mrb[0].mxu0 %v1132
    %v1200 = vpop.f32.mrb[0].mxu0
    %v1201 = vadd.f32 0.0, %v1200
    %v1202 = vpop.f32.mrb[0].mxu0
    %1203 = vdwg.mxu0
    %v1204 = vrot.slane %v1201, 7
    %1206 = vrot.lane.b32.xlu0 %v1201, 96
    %v1207 = vpop.permute.xlu0 %1206
    %v1209 = vadd.f32 %v1204, %v1207
    %1210 = vrot.lane.b32.xlu0 %v1201, 64
    %v1211 = vpop.permute.xlu0 %1210
    %v1213 = vrot.slane %v1211, 1
    %v1214 = vadd.f32 %v1209, %v1213
    %v1215 = vlaneseq
    %v1216 = vshrl.u32 %v1215, 7
    %v1217 = vsub.s32 0, %v1216
    %v1218 = vrot.slane %v1130, %v1217
    %v1219 = vadd.f32 %v1214, %v1218
    %v1220 = vld [vmem:[#allocation2 + $0x8] sm:$0x1]
    %v1221 = vmul.f32 %v1220, 0.999995
    %v1222 = vlaneseq
    %v1223 = vshrl.u32 %v1222, 7
    %v1224 = vsub.s32 0, %v1223
    %v1225 = vrot.slane %v1221, %v1224
    %v1226 = vmul.f32 %v1219, %v1225
    %v1227 = vld [vmem:[#allocation2] sm:$0x1]
    %v1228 = vlaneseq
    %v1229 = vshrl.u32 %v1228, 7
    %v1230 = vsub.s32 0, %v1229
    %v1231 = vrot.slane %v1227, %v1230
    %v1232 = vadd.f32 %v1226, %v1231
    %vm1233 = vcmp.gt.f32.partialorder %v1232, 0.0
    %v1234 = vmin.f32 %v1232, 0.0
    %v1235 = vmul.f32 %v1234, 1.442695
    %v1236 = vpow.pop %v1235
    %v1237 = vsub.f32 %v1236, 1.0
    %v1238 = vsel %vm1233, %v1232, %v1237
    %v1239 = vmul.u32 %v468, 2
    %v1240 = vsub.s32 %v1239, 1
    %vm1241 = vcmp.gt.s32.totalorder %v1240, 0
    %v1242 = vsel %vm1241, %v1240, 0
    %vm1243 = vcmp.lt.s32.totalorder %v1242, 7
    %v1244 = vsel %vm1243, %v1242, 7
    %vm1245 = vcmp.eq.s32.totalorder %v473, %v1244
    %v1246 = vsel %vm1245, 1, 0
    %v1247 = vcvt.s32.f32 %v1246
    %vm1248 = vcmp.eq.s32.totalorder %v473, %v1239
    %v1249 = vsel %vm1248, 1, 0
    %v1250 = vcvt.s32.f32 %v1249
    %v1251 = vadd.s32 %v1239, 1
    %vm1252 = vcmp.gt.s32.totalorder %v1251, 0
    %v1253 = vsel %vm1252, %v1251, 0
    %vm1254 = vcmp.lt.s32.totalorder %v1253, 7
    %v1255 = vsel %vm1254, %v1253, 7
    %vm1256 = vcmp.eq.s32.totalorder %v473, %v1255
    %v1257 = vsel %vm1256, 1, 0
    %v1258 = vcvt.s32.f32 %v1257
    %vm1259 = vcmask 64512
    %v1261 = vsel %vm1259, %v1247, 0
    %1263 = vmatprep.subr.mxu0 0.0
    %1264 = vmatpush1.msra.mxu0 %v1238
    %1265 = vmatprep.subr.mxu0 0.0
    %1266 = vmatpush1.msra.mxu0 0.0
    %1267 = vmatprep.subr.mxu0 0.0
    %1268 = vmatpush1.msra.mxu0 0.0
    %1269 = vmatprep.subr.mxu0 0.0
    %1270 = vmatpush1.msra.mxu0 0.0
    %1271 = vmatprep.subr.mxu0 0.0
    %1272 = vmatpush1.msra.mxu0 0.0
    %1273 = vmatprep.subr.mxu0 0.0
    %1274 = vmatpush1.msra.mxu0 0.0
    %1275 = vmatprep.subr.mxu0 0.0
    %1276 = vmatpush1.msra.mxu0 0.0
    %1277 = vmatprep.subr.mxu0 0.0
    %1278 = vmatpush1.msra.mxu0 0.0
    %1279 = vmatprep.subr.mxu0 0.0
    %1280 = vmatpush1.msra.mxu0 0.0
    %1281 = vmatprep.subr.mxu0 0.0
    %1282 = vmatpush1.msra.mxu0 0.0
    %1283 = vmatprep.subr.mxu0 0.0
    %1284 = vmatpush1.msra.mxu0 0.0
    %1285 = vmatprep.subr.mxu0 0.0
    %1286 = vmatpush1.msra.mxu0 0.0
    %1287 = vmatprep.subr.mxu0 0.0
    %1288 = vmatpush1.msra.mxu0 0.0
    %1289 = vmatprep.subr.mxu0 0.0
    %1290 = vmatpush1.msra.mxu0 0.0
    %1291 = vmatprep.subr.mxu0 0.0
    %1292 = vmatpush1.msra.mxu0 0.0
    %1293 = vmatprep.subr.mxu0 0.0
    %1294 = vmatpush1.msra.mxu0 0.0
    %1295 = vmatprep.subr.mxu0 0.0
    %1296 = vmatpush1.msra.mxu0 0.0
    %1297 = vmatprep.subr.mxu0 0.0
    %1298 = vmatpush1.msra.mxu0 0.0
    %1299 = vmatprep.subr.mxu0 0.0
    %1300 = vmatpush1.msra.mxu0 0.0
    %1301 = vmatprep.subr.mxu0 0.0
    %1302 = vmatpush1.msra.mxu0 0.0
    %1303 = vmatprep.subr.mxu0 0.0
    %1304 = vmatpush1.msra.mxu0 0.0
    %1305 = vmatprep.subr.mxu0 0.0
    %1306 = vmatpush1.msra.mxu0 0.0
    %1307 = vmatprep.subr.mxu0 0.0
    %1308 = vmatpush1.msra.mxu0 0.0
    %1309 = vmatprep.subr.mxu0 0.0
    %1310 = vmatpush1.msra.mxu0 0.0
    %1311 = vmatprep.subr.mxu0 0.0
    %1312 = vmatpush1.msra.mxu0 0.0
    %1313 = vmatprep.subr.mxu0 0.0
    %1314 = vmatpush1.msra.mxu0 0.0
    %1315 = vmatprep.subr.mxu0 0.0
    %1316 = vmatpush1.msra.mxu0 0.0
    %1317 = vmatprep.subr.mxu0 0.0
    %1318 = vmatpush1.msra.mxu0 0.0
    %1319 = vmatprep.subr.mxu0 0.0
    %1320 = vmatpush1.msra.mxu0 0.0
    %1321 = vmatprep.subr.mxu0 0.0
    %1322 = vmatpush1.msra.mxu0 0.0
    %1323 = vmatprep.subr.mxu0 0.0
    %1324 = vmatpush1.msra.mxu0 0.0
    %1325 = vmatprep.subr.mxu0 0.0
    %1326 = vmatpush1.msra.mxu0 0.0
    %1327 = vmatprep.mubr.f32.mxu0 0.0
    %1328 = vmatmul.mubr.f32.gmra.mrb[0].mxu0 %v1261
    %v1329 = vpop.f32.mrb[0].mxu0
    %v1330 = vadd.f32 0.0, %v1329
    %v1331 = vpop.f32.mrb[0].mxu0
    %1332 = vdwg.mxu0
    %v1334 = vsel %vm1259, %v1250, 0
    %1336 = vmatprep.subr.mxu0 0.0
    %1337 = vmatpush1.msra.mxu0 %v1238
    %1338 = vmatprep.subr.mxu0 0.0
    %1339 = vmatpush1.msra.mxu0 0.0
    %1340 = vmatprep.subr.mxu0 0.0
    %1341 = vmatpush1.msra.mxu0 0.0
    %1342 = vmatprep.subr.mxu0 0.0
    %1343 = vmatpush1.msra.mxu0 0.0
    %1344 = vmatprep.subr.mxu0 0.0
    %1345 = vmatpush1.msra.mxu0 0.0
    %1346 = vmatprep.subr.mxu0 0.0
    %1347 = vmatpush1.msra.mxu0 0.0
    %1348 = vmatprep.subr.mxu0 0.0
    %1349 = vmatpush1.msra.mxu0 0.0
    %1350 = vmatprep.subr.mxu0 0.0
    %1351 = vmatpush1.msra.mxu0 0.0
    %1352 = vmatprep.subr.mxu0 0.0
    %1353 = vmatpush1.msra.mxu0 0.0
    %1354 = vmatprep.subr.mxu0 0.0
    %1355 = vmatpush1.msra.mxu0 0.0
    %1356 = vmatprep.subr.mxu0 0.0
    %1357 = vmatpush1.msra.mxu0 0.0
    %1358 = vmatprep.subr.mxu0 0.0
    %1359 = vmatpush1.msra.mxu0 0.0
    %1360 = vmatprep.subr.mxu0 0.0
    %1361 = vmatpush1.msra.mxu0 0.0
    %1362 = vmatprep.subr.mxu0 0.0
    %1363 = vmatpush1.msra.mxu0 0.0
    %1364 = vmatprep.subr.mxu0 0.0
    %1365 = vmatpush1.msra.mxu0 0.0
    %1366 = vmatprep.subr.mxu0 0.0
    %1367 = vmatpush1.msra.mxu0 0.0
    %1368 = vmatprep.subr.mxu0 0.0
    %1369 = vmatpush1.msra.mxu0 0.0
    %1370 = vmatprep.subr.mxu0 0.0
    %1371 = vmatpush1.msra.mxu0 0.0
    %1372 = vmatprep.subr.mxu0 0.0
    %1373 = vmatpush1.msra.mxu0 0.0
    %1374 = vmatprep.subr.mxu0 0.0
    %1375 = vmatpush1.msra.mxu0 0.0
    %1376 = vmatprep.subr.mxu0 0.0
    %1377 = vmatpush1.msra.mxu0 0.0
    %1378 = vmatprep.subr.mxu0 0.0
    %1379 = vmatpush1.msra.mxu0 0.0
    %1380 = vmatprep.subr.mxu0 0.0
    %1381 = vmatpush1.msra.mxu0 0.0
    %1382 = vmatprep.subr.mxu0 0.0
    %1383 = vmatpush1.msra.mxu0 0.0
    %1384 = vmatprep.subr.mxu0 0.0
    %1385 = vmatpush1.msra.mxu0 0.0
    %1386 = vmatprep.subr.mxu0 0.0
    %1387 = vmatpush1.msra.mxu0 0.0
    %1388 = vmatprep.subr.mxu0 0.0
    %1389 = vmatpush1.msra.mxu0 0.0
    %1390 = vmatprep.subr.mxu0 0.0
    %1391 = vmatpush1.msra.mxu0 0.0
    %1392 = vmatprep.subr.mxu0 0.0
    %1393 = vmatpush1.msra.mxu0 0.0
    %1394 = vmatprep.subr.mxu0 0.0
    %1395 = vmatpush1.msra.mxu0 0.0
    %1396 = vmatprep.subr.mxu0 0.0
    %1397 = vmatpush1.msra.mxu0 0.0
    %1398 = vmatprep.subr.mxu0 0.0
    %1399 = vmatpush1.msra.mxu0 0.0
    %1400 = vmatprep.mubr.f32.mxu0 0.0
    %1401 = vmatmul.mubr.f32.gmra.mrb[0].mxu0 %v1334
    %v1402 = vpop.f32.mrb[0].mxu0
    %v1403 = vadd.f32 0.0, %v1402
    %v1404 = vpop.f32.mrb[0].mxu0
    %1405 = vdwg.mxu0
    %v1406 = vmax.f32 %v1330, %v1403
    %v1408 = vsel %vm1259, %v1258, 0
    %1410 = vmatprep.subr.mxu0 0.0
    %1411 = vmatpush1.msra.mxu0 %v1238
    %1412 = vmatprep.subr.mxu0 0.0
    %1413 = vmatpush1.msra.mxu0 0.0
    %1414 = vmatprep.subr.mxu0 0.0
    %1415 = vmatpush1.msra.mxu0 0.0
    %1416 = vmatprep.subr.mxu0 0.0
    %1417 = vmatpush1.msra.mxu0 0.0
    %1418 = vmatprep.subr.mxu0 0.0
    %1419 = vmatpush1.msra.mxu0 0.0
    %1420 = vmatprep.subr.mxu0 0.0
    %1421 = vmatpush1.msra.mxu0 0.0
    %1422 = vmatprep.subr.mxu0 0.0
    %1423 = vmatpush1.msra.mxu0 0.0
    %1424 = vmatprep.subr.mxu0 0.0
    %1425 = vmatpush1.msra.mxu0 0.0
    %1426 = vmatprep.subr.mxu0 0.0
    %1427 = vmatpush1.msra.mxu0 0.0
    %1428 = vmatprep.subr.mxu0 0.0
    %1429 = vmatpush1.msra.mxu0 0.0
    %1430 = vmatprep.subr.mxu0 0.0
    %1431 = vmatpush1.msra.mxu0 0.0
    %1432 = vmatprep.subr.mxu0 0.0
    %1433 = vmatpush1.msra.mxu0 0.0
    %1434 = vmatprep.subr.mxu0 0.0
    %1435 = vmatpush1.msra.mxu0 0.0
    %1436 = vmatprep.subr.mxu0 0.0
    %1437 = vmatpush1.msra.mxu0 0.0
    %1438 = vmatprep.subr.mxu0 0.0
    %1439 = vmatpush1.msra.mxu0 0.0
    %1440 = vmatprep.subr.mxu0 0.0
    %1441 = vmatpush1.msra.mxu0 0.0
    %1442 = vmatprep.subr.mxu0 0.0
    %1443 = vmatpush1.msra.mxu0 0.0
    %1444 = vmatprep.subr.mxu0 0.0
    %1445 = vmatpush1.msra.mxu0 0.0
    %1446 = vmatprep.subr.mxu0 0.0
    %1447 = vmatpush1.msra.mxu0 0.0
    %1448 = vmatprep.subr.mxu0 0.0
    %1449 = vmatpush1.msra.mxu0 0.0
    %1450 = vmatprep.subr.mxu0 0.0
    %1451 = vmatpush1.msra.mxu0 0.0
    %1452 = vmatprep.subr.mxu0 0.0
    %1453 = vmatpush1.msra.mxu0 0.0
    %1454 = vmatprep.subr.mxu0 0.0
    %1455 = vmatpush1.msra.mxu0 0.0
    %1456 = vmatprep.subr.mxu0 0.0
    %1457 = vmatpush1.msra.mxu0 0.0
    %1458 = vmatprep.subr.mxu0 0.0
    %1459 = vmatpush1.msra.mxu0 0.0
    %1460 = vmatprep.subr.mxu0 0.0
    %1461 = vmatpush1.msra.mxu0 0.0
    %1462 = vmatprep.subr.mxu0 0.0
    %1463 = vmatpush1.msra.mxu0 0.0
    %1464 = vmatprep.subr.mxu0 0.0
    %1465 = vmatpush1.msra.mxu0 0.0
    %1466 = vmatprep.subr.mxu0 0.0
    %1467 = vmatpush1.msra.mxu0 0.0
    %1468 = vmatprep.subr.mxu0 0.0
    %1469 = vmatpush1.msra.mxu0 0.0
    %1470 = vmatprep.subr.mxu0 0.0
    %1471 = vmatpush1.msra.mxu0 0.0
    %1472 = vmatprep.subr.mxu0 0.0
    %1473 = vmatpush1.msra.mxu0 0.0
    %1474 = vmatprep.mubr.f32.mxu0 0.0
    %1475 = vmatmul.mubr.f32.gmra.mrb[0].mxu0 %v1408
    %v1476 = vpop.f32.mrb[0].mxu0
    %v1477 = vadd.f32 0.0, %v1476
    %v1478 = vpop.f32.mrb[0].mxu0
    %1479 = vdwg.mxu0
    %v1480 = vmax.f32 %v1406, %v1477
    %v1481 = vld [vmem:[#allocation2 + $0x2c8] sm:$0xff]
    %v1482 = vld [vmem:[#allocation2 + $0x2d0] sm:$0xff]
    %v1483 = vld [vmem:[#allocation2 + $0x2d8] sm:$0xff]
    %v1484 = vld [vmem:[#allocation2 + $0x2e0] sm:$0xff]
    %v1485 = vld [vmem:[#allocation2 + $0x2a0] sm:$0x1]
    %v1486 = vld [vmem:[#allocation2 + $0x2a8] sm:$0xff]
    %v1487 = vld [vmem:[#allocation2 + $0x2b0] sm:$0xff]
    %v1488 = vld [vmem:[#allocation2 + $0x2b8] sm:$0xff]
    %v1489 = vld [vmem:[#allocation2 + $0x2c0] sm:$0xff]
    %v1490 = vld [vmem:[#allocation2 + $0x298] sm:$0x1]
    %v1491 = vlaneseq
    %v1492 = vshrl.u32 %v1491, 7
    %v1493 = vsub.s32 0, %v1492
    %v1494 = vrot.slane %v1485, %v1493
    %v1496 = vsel %vm393, %v1480, 0
    %1498 = vmatprep.subr.mxu0 0.0
    %1499 = vmatpush1.msra.mxu0 %v1481
    %1500 = vmatprep.subr.mxu0 0.0
    %1501 = vmatpush1.msra.mxu0 %v1482
    %1502 = vmatprep.subr.mxu0 0.0
    %1503 = vmatpush1.msra.mxu0 %v1483
    %1504 = vmatprep.subr.mxu0 0.0
    %1505 = vmatpush1.msra.mxu0 %v1484
    %1506 = vmatprep.subr.mxu0 0.0
    %1507 = vmatpush1.msra.mxu0 0.0
    %1508 = vmatprep.subr.mxu0 0.0
    %1509 = vmatpush1.msra.mxu0 0.0
    %1510 = vmatprep.subr.mxu0 0.0
    %1511 = vmatpush1.msra.mxu0 0.0
    %1512 = vmatprep.subr.mxu0 0.0
    %1513 = vmatpush1.msra.mxu0 0.0
    %1514 = vmatprep.subr.mxu0 0.0
    %1515 = vmatpush1.msra.mxu0 0.0
    %1516 = vmatprep.subr.mxu0 0.0
    %1517 = vmatpush1.msra.mxu0 0.0
    %1518 = vmatprep.subr.mxu0 0.0
    %1519 = vmatpush1.msra.mxu0 0.0
    %1520 = vmatprep.subr.mxu0 0.0
    %1521 = vmatpush1.msra.mxu0 0.0
    %1522 = vmatprep.subr.mxu0 0.0
    %1523 = vmatpush1.msra.mxu0 0.0
    %1524 = vmatprep.subr.mxu0 0.0
    %1525 = vmatpush1.msra.mxu0 0.0
    %1526 = vmatprep.subr.mxu0 0.0
    %1527 = vmatpush1.msra.mxu0 0.0
    %1528 = vmatprep.subr.mxu0 0.0
    %1529 = vmatpush1.msra.mxu0 0.0
    %1530 = vmatprep.subr.mxu0 0.0
    %1531 = vmatpush1.msra.mxu0 0.0
    %1532 = vmatprep.subr.mxu0 0.0
    %1533 = vmatpush1.msra.mxu0 0.0
    %1534 = vmatprep.subr.mxu0 0.0
    %1535 = vmatpush1.msra.mxu0 0.0
    %1536 = vmatprep.subr.mxu0 0.0
    %1537 = vmatpush1.msra.mxu0 0.0
    %1538 = vmatprep.subr.mxu0 0.0
    %1539 = vmatpush1.msra.mxu0 0.0
    %1540 = vmatprep.subr.mxu0 0.0
    %1541 = vmatpush1.msra.mxu0 0.0
    %1542 = vmatprep.subr.mxu0 0.0
    %1543 = vmatpush1.msra.mxu0 0.0
    %1544 = vmatprep.subr.mxu0 0.0
    %1545 = vmatpush1.msra.mxu0 0.0
    %1546 = vmatprep.subr.mxu0 0.0
    %1547 = vmatpush1.msra.mxu0 0.0
    %1548 = vmatprep.subr.mxu0 0.0
    %1549 = vmatpush1.msra.mxu0 0.0
    %1550 = vmatprep.subr.mxu0 0.0
    %1551 = vmatpush1.msra.mxu0 0.0
    %1552 = vmatprep.subr.mxu0 0.0
    %1553 = vmatpush1.msra.mxu0 0.0
    %1554 = vmatprep.subr.mxu0 0.0
    %1555 = vmatpush1.msra.mxu0 0.0
    %1556 = vmatprep.subr.mxu0 0.0
    %1557 = vmatpush1.msra.mxu0 0.0
    %1558 = vmatprep.subr.mxu0 0.0
    %1559 = vmatpush1.msra.mxu0 0.0
    %1560 = vmatprep.subr.mxu0 0.0
    %1561 = vmatpush1.msra.mxu0 0.0
    %1562 = vmatprep.mubr.f32.mxu0 0.0
    %1563 = vmatmul.mubr.f32.gmra.mrb[0].mxu0 %v1496
    %v1564 = vpop.f32.mrb[0].mxu0
    %v1565 = vadd.f32 %v1494, %v1564
    %v1566 = vpop.f32.mrb[0].mxu0
    %1567 = vdwg.mxu0
    %vm1568 = vcmp.ge.s32.totalorder %v468, 4
    %vm1569 = vcmp.ge.s32.totalorder %v469, 4
    %v1570 = vsel %vm1568, 1, 0
    %v1571 = vsel %vm1569, 1, 0
    %v1572 = vadd.s32 %v1570, %v478
    %v1573 = vadd.s32 %v1571, %v479
    %vm1574 = vcmp.ge.s32.totalorder %v468, 12
    %vm1575 = vcmp.ge.s32.totalorder %v469, 12
    %v1576 = vsel %vm1574, 1, 0
    %v1577 = vsel %vm1575, 1, 0
    %v1578 = vadd.s32 %v1572, %v1576
    %v1579 = vadd.s32 %v1573, %v1577
    %vm1580 = vcmp.eq.s32.totalorder %v1578, %v513
    %vm1581 = vcmp.eq.s32.totalorder %v1579, %v513
    %v1582 = vsel %vm1580, 1, 0
    %v1583 = vsel %vm1581, 1, 0
    %v1584 = vcvt.s32.f32 %v1582
    %v1585 = vcvt.s32.f32 %v1583
    %v1587 = vrot.slane %v1565, 4
    %v1589 = vsel %vm134, %v1565, %v1587
    %1592 = vrot.lane.b32.xlu0 %v1584, 32
    %v1593 = vpop.permute.xlu0 %1592
    %1594 = vrot.lane.b32.xlu0 %v1585, 32
    %v1595 = vpop.permute.xlu0 %1594
    %v1598 = vmul.f32 %v1589, %v1593
    %v1599 = vmul.f32 %v1589, %v1595
    %1600 = vrot.lane.b32.xlu0 %v1584, 64
    %v1601 = vpop.permute.xlu0 %1600
    %1602 = vrot.lane.b32.xlu0 %v1585, 64
    %v1603 = vpop.permute.xlu0 %1602
    %v1606 = vmul.f32 %v1589, %v1601
    %v1607 = vmul.f32 %v1589, %v1603
    %1610 = vrot.lane.b32.xlu0 %v1598, 96
    %v1611 = vpop.permute.xlu0 %1610
    %1612 = vrot.lane.b32.xlu0 %v1599, 96
    %v1613 = vpop.permute.xlu0 %1612
    %v1614 = vsel %vm393, %v1565, 0
    %v1616 = vsel %vm393, %v1611, 0
    %v1618 = vsel %vm393, %v1613, 0
    %1620 = vmatprep.subr.mxu0 0.0
    %1621 = vmatpush1.xpose.msra.mxu0 %v1616
    %1622 = vmatprep.subr.mxu0 0.0
    %1623 = vmatpush1.xpose.msra.mxu0 %v1618
    %1624 = vmatprep.subr.mxu0 0.0
    %1625 = vmatpush1.xpose.msra.mxu0 0.0
    %1626 = vmatprep.subr.mxu0 0.0
    %1627 = vmatpush1.xpose.msra.mxu0 0.0
    %1628 = vmatprep.subr.mxu0 0.0
    %1629 = vmatpush1.xpose.msra.mxu0 0.0
    %1630 = vmatprep.subr.mxu0 0.0
    %1631 = vmatpush1.xpose.msra.mxu0 0.0
    %1632 = vmatprep.subr.mxu0 0.0
    %1633 = vmatpush1.xpose.msra.mxu0 0.0
    %1634 = vmatprep.subr.mxu0 0.0
    %1635 = vmatpush1.xpose.msra.mxu0 0.0
    %1636 = vmatprep.subr.mxu0 0.0
    %1637 = vmatpush1.xpose.msra.mxu0 0.0
    %1638 = vmatprep.subr.mxu0 0.0
    %1639 = vmatpush1.xpose.msra.mxu0 0.0
    %1640 = vmatprep.subr.mxu0 0.0
    %1641 = vmatpush1.xpose.msra.mxu0 0.0
    %1642 = vmatprep.subr.mxu0 0.0
    %1643 = vmatpush1.xpose.msra.mxu0 0.0
    %1644 = vmatprep.subr.mxu0 0.0
    %1645 = vmatpush1.xpose.msra.mxu0 0.0
    %1646 = vmatprep.subr.mxu0 0.0
    %1647 = vmatpush1.xpose.msra.mxu0 0.0
    %1648 = vmatprep.subr.mxu0 0.0
    %1649 = vmatpush1.xpose.msra.mxu0 0.0
    %1650 = vmatprep.subr.mxu0 0.0
    %1651 = vmatpush1.xpose.msra.mxu0 0.0
    %1652 = vmatprep.subr.mxu0 0.0
    %1653 = vmatpush1.xpose.msra.mxu0 0.0
    %1654 = vmatprep.subr.mxu0 0.0
    %1655 = vmatpush1.xpose.msra.mxu0 0.0
    %1656 = vmatprep.subr.mxu0 0.0
    %1657 = vmatpush1.xpose.msra.mxu0 0.0
    %1658 = vmatprep.subr.mxu0 0.0
    %1659 = vmatpush1.xpose.msra.mxu0 0.0
    %1660 = vmatprep.subr.mxu0 0.0
    %1661 = vmatpush1.xpose.msra.mxu0 0.0
    %1662 = vmatprep.subr.mxu0 0.0
    %1663 = vmatpush1.xpose.msra.mxu0 0.0
    %1664 = vmatprep.subr.mxu0 0.0
    %1665 = vmatpush1.xpose.msra.mxu0 0.0
    %1666 = vmatprep.subr.mxu0 0.0
    %1667 = vmatpush1.xpose.msra.mxu0 0.0
    %1668 = vmatprep.subr.mxu0 0.0
    %1669 = vmatpush1.xpose.msra.mxu0 0.0
    %1670 = vmatprep.subr.mxu0 0.0
    %1671 = vmatpush1.xpose.msra.mxu0 0.0
    %1672 = vmatprep.subr.mxu0 0.0
    %1673 = vmatpush1.xpose.msra.mxu0 0.0
    %1674 = vmatprep.subr.mxu0 0.0
    %1675 = vmatpush1.xpose.msra.mxu0 0.0
    %1676 = vmatprep.subr.mxu0 0.0
    %1677 = vmatpush1.xpose.msra.mxu0 0.0
    %1678 = vmatprep.subr.mxu0 0.0
    %1679 = vmatpush1.xpose.msra.mxu0 0.0
    %1680 = vmatprep.subr.mxu0 0.0
    %1681 = vmatpush1.xpose.msra.mxu0 0.0
    %1682 = vmatprep.subr.mxu0 0.0
    %1683 = vmatpush1.xpose.msra.mxu0 0.0
    %1684 = vmatprep.mubr.f32.mxu0 0.0
    %1685 = vmatmul.mubr.f32.gmra.mrb[0].mxu0 %v1614
    %v1686 = vpop.f32.mrb[0].mxu0
    %v1687 = vadd.f32 0.0, %v1686
    %v1688 = vpop.f32.mrb[0].mxu0
    %1689 = vdwg.mxu0
    %v1690 = vmul.f32 %v1687, 0.35355338
    %vm1691 = vcmask 125952
    %v1692 = vsel %vm1691, %v1690, -inf
    %1693 = vmax.xlane.f32.xlu0 %v1692
    %v1694 = vpop.xlane.xlu0 %1693
    %v1695 = vsub.f32 %v1690, %v1694
    %v1696 = vmul.f32 %v1695, 1.442695
    %v1697 = vpow.pop %v1696
    %vm1698 = vcmp.ge.s32.totalorder %v473, 4
    %v1699 = vsel %vm1698, 1, 0
    %v1700 = vadd.s32 %v1699, %v507
    %vm1701 = vcmp.ge.s32.totalorder %v473, 12
    %v1702 = vsel %vm1701, 1, 0
    %v1703 = vadd.s32 %v1700, %v1702
    %vm1704 = vcmp.eq.s32.totalorder %v1578, %v1703
    %vm1705 = vcmp.eq.s32.totalorder %v1579, %v1703
    %v1706 = vsel %vm1704, 1, 0
    %v1707 = vsel %vm1705, 1, 0
    %v1708 = vcvt.s32.f32 %v1706
    %v1709 = vcvt.s32.f32 %v1707
    %vm1710 = vcmask 130048
    %v1712 = vsel %vm1710, %v1697, 0
    %1714 = vmatprep.subr.mxu0 0.0
    %1715 = vmatpush1.msra.mxu0 %v1708
    %1716 = vmatprep.subr.mxu0 0.0
    %1717 = vmatpush1.msra.mxu0 %v1709
    %1718 = vmatprep.subr.mxu0 0.0
    %1719 = vmatpush1.msra.mxu0 0.0
    %1720 = vmatprep.subr.mxu0 0.0
    %1721 = vmatpush1.msra.mxu0 0.0
    %1722 = vmatprep.subr.mxu0 0.0
    %1723 = vmatpush1.msra.mxu0 0.0
    %1724 = vmatprep.subr.mxu0 0.0
    %1725 = vmatpush1.msra.mxu0 0.0
    %1726 = vmatprep.subr.mxu0 0.0
    %1727 = vmatpush1.msra.mxu0 0.0
    %1728 = vmatprep.subr.mxu0 0.0
    %1729 = vmatpush1.msra.mxu0 0.0
    %1730 = vmatprep.subr.mxu0 0.0
    %1731 = vmatpush1.msra.mxu0 0.0
    %1732 = vmatprep.subr.mxu0 0.0
    %1733 = vmatpush1.msra.mxu0 0.0
    %1734 = vmatprep.subr.mxu0 0.0
    %1735 = vmatpush1.msra.mxu0 0.0
    %1736 = vmatprep.subr.mxu0 0.0
    %1737 = vmatpush1.msra.mxu0 0.0
    %1738 = vmatprep.subr.mxu0 0.0
    %1739 = vmatpush1.msra.mxu0 0.0
    %1740 = vmatprep.subr.mxu0 0.0
    %1741 = vmatpush1.msra.mxu0 0.0
    %1742 = vmatprep.subr.mxu0 0.0
    %1743 = vmatpush1.msra.mxu0 0.0
    %1744 = vmatprep.subr.mxu0 0.0
    %1745 = vmatpush1.msra.mxu0 0.0
    %1746 = vmatprep.subr.mxu0 0.0
    %1747 = vmatpush1.msra.mxu0 0.0
    %1748 = vmatprep.subr.mxu0 0.0
    %1749 = vmatpush1.msra.mxu0 0.0
    %1750 = vmatprep.subr.mxu0 0.0
    %1751 = vmatpush1.msra.mxu0 0.0
    %1752 = vmatprep.subr.mxu0 0.0
    %1753 = vmatpush1.msra.mxu0 0.0
    %1754 = vmatprep.subr.mxu0 0.0
    %1755 = vmatpush1.msra.mxu0 0.0
    %1756 = vmatprep.subr.mxu0 0.0
    %1757 = vmatpush1.msra.mxu0 0.0
    %1758 = vmatprep.subr.mxu0 0.0
    %1759 = vmatpush1.msra.mxu0 0.0
    %1760 = vmatprep.subr.mxu0 0.0
    %1761 = vmatpush1.msra.mxu0 0.0
    %1762 = vmatprep.subr.mxu0 0.0
    %1763 = vmatpush1.msra.mxu0 0.0
    %1764 = vmatprep.subr.mxu0 0.0
    %1765 = vmatpush1.msra.mxu0 0.0
    %1766 = vmatprep.subr.mxu0 0.0
    %1767 = vmatpush1.msra.mxu0 0.0
    %1768 = vmatprep.subr.mxu0 0.0
    %1769 = vmatpush1.msra.mxu0 0.0
    %1770 = vmatprep.subr.mxu0 0.0
    %1771 = vmatpush1.msra.mxu0 0.0
    %1772 = vmatprep.subr.mxu0 0.0
    %1773 = vmatpush1.msra.mxu0 0.0
    %1774 = vmatprep.subr.mxu0 0.0
    %1775 = vmatpush1.msra.mxu0 0.0
    %1776 = vmatprep.subr.mxu0 0.0
    %1777 = vmatpush1.msra.mxu0 0.0
    %1778 = vmatprep.mubr.f32.mxu0 0.0
    %1779 = vmatmul.mubr.f32.gmra.mrb[0].mxu0 %v1712
    %v1780 = vpop.f32.mrb[0].mxu0
    %v1781 = vadd.f32 0.0, %v1780
    %v1782 = vpop.f32.mrb[0].mxu0
    %1783 = vdwg.mxu0
    %v1784 = vrcp.pop %v1781
    %v1785 = vmul.f32 %v1697, %v1784
    %1788 = vrot.lane.b32.xlu0 %v1606, 64
    %v1789 = vpop.permute.xlu0 %1788
    %1790 = vrot.lane.b32.xlu0 %v1607, 64
    %v1791 = vpop.permute.xlu0 %1790
    %v1795 = vsel %vm1710, %v1785, 0
    %1797 = vmatprep.subr.mxu0 0.0
    %1798 = vmatpush1.msra.mxu0 %v1789
    %1799 = vmatprep.subr.mxu0 0.0
    %1800 = vmatpush1.msra.mxu0 %v1791
    %1801 = vmatprep.subr.mxu0 0.0
    %1802 = vmatpush1.msra.mxu0 0.0
    %1803 = vmatprep.subr.mxu0 0.0
    %1804 = vmatpush1.msra.mxu0 0.0
    %1805 = vmatprep.subr.mxu0 0.0
    %1806 = vmatpush1.msra.mxu0 0.0
    %1807 = vmatprep.subr.mxu0 0.0
    %1808 = vmatpush1.msra.mxu0 0.0
    %1809 = vmatprep.subr.mxu0 0.0
    %1810 = vmatpush1.msra.mxu0 0.0
    %1811 = vmatprep.subr.mxu0 0.0
    %1812 = vmatpush1.msra.mxu0 0.0
    %1813 = vmatprep.subr.mxu0 0.0
    %1814 = vmatpush1.msra.mxu0 0.0
    %1815 = vmatprep.subr.mxu0 0.0
    %1816 = vmatpush1.msra.mxu0 0.0
    %1817 = vmatprep.subr.mxu0 0.0
    %1818 = vmatpush1.msra.mxu0 0.0
    %1819 = vmatprep.subr.mxu0 0.0
    %1820 = vmatpush1.msra.mxu0 0.0
    %1821 = vmatprep.subr.mxu0 0.0
    %1822 = vmatpush1.msra.mxu0 0.0
    %1823 = vmatprep.subr.mxu0 0.0
    %1824 = vmatpush1.msra.mxu0 0.0
    %1825 = vmatprep.subr.mxu0 0.0
    %1826 = vmatpush1.msra.mxu0 0.0
    %1827 = vmatprep.subr.mxu0 0.0
    %1828 = vmatpush1.msra.mxu0 0.0
    %1829 = vmatprep.subr.mxu0 0.0
    %1830 = vmatpush1.msra.mxu0 0.0
    %1831 = vmatprep.subr.mxu0 0.0
    %1832 = vmatpush1.msra.mxu0 0.0
    %1833 = vmatprep.subr.mxu0 0.0
    %1834 = vmatpush1.msra.mxu0 0.0
    %1835 = vmatprep.subr.mxu0 0.0
    %1836 = vmatpush1.msra.mxu0 0.0
    %1837 = vmatprep.subr.mxu0 0.0
    %1838 = vmatpush1.msra.mxu0 0.0
    %1839 = vmatprep.subr.mxu0 0.0
    %1840 = vmatpush1.msra.mxu0 0.0
    %1841 = vmatprep.subr.mxu0 0.0
    %1842 = vmatpush1.msra.mxu0 0.0
    %1843 = vmatprep.subr.mxu0 0.0
    %1844 = vmatpush1.msra.mxu0 0.0
    %1845 = vmatprep.subr.mxu0 0.0
    %1846 = vmatpush1.msra.mxu0 0.0
    %1847 = vmatprep.subr.mxu0 0.0
    %1848 = vmatpush1.msra.mxu0 0.0
    %1849 = vmatprep.subr.mxu0 0.0
    %1850 = vmatpush1.msra.mxu0 0.0
    %1851 = vmatprep.subr.mxu0 0.0
    %1852 = vmatpush1.msra.mxu0 0.0
    %1853 = vmatprep.subr.mxu0 0.0
    %1854 = vmatpush1.msra.mxu0 0.0
    %1855 = vmatprep.subr.mxu0 0.0
    %1856 = vmatpush1.msra.mxu0 0.0
    %1857 = vmatprep.subr.mxu0 0.0
    %1858 = vmatpush1.msra.mxu0 0.0
    %1859 = vmatprep.subr.mxu0 0.0
    %1860 = vmatpush1.msra.mxu0 0.0
    %1861 = vmatprep.mubr.f32.mxu0 0.0
    %1862 = vmatmul.mubr.f32.gmra.mrb[0].mxu0 %v1795
    %v1863 = vpop.f32.mrb[0].mxu0
    %v1864 = vadd.f32 0.0, %v1863
    %v1865 = vpop.f32.mrb[0].mxu0
    %1866 = vdwg.mxu0
    %v1867 = vlaneseq
    %v1868 = vshrl.u32 %v1867, 7
    %v1869 = vsub.s32 0, %v1868
    %v1870 = vrot.slane %v1490, %v1869
    %v1872 = vsel %vm393, %v1864, 0
    %1874 = vmatprep.subr.mxu0 0.0
    %1875 = vmatpush1.msra.mxu0 %v1486
    %1876 = vmatprep.subr.mxu0 0.0
    %1877 = vmatpush1.msra.mxu0 %v1487
    %1878 = vmatprep.subr.mxu0 0.0
    %1879 = vmatpush1.msra.mxu0 %v1488
    %1880 = vmatprep.subr.mxu0 0.0
    %1881 = vmatpush1.msra.mxu0 %v1489
    %1882 = vmatprep.subr.mxu0 0.0
    %1883 = vmatpush1.msra.mxu0 0.0
    %1884 = vmatprep.subr.mxu0 0.0
    %1885 = vmatpush1.msra.mxu0 0.0
    %1886 = vmatprep.subr.mxu0 0.0
    %1887 = vmatpush1.msra.mxu0 0.0
    %1888 = vmatprep.subr.mxu0 0.0
    %1889 = vmatpush1.msra.mxu0 0.0
    %1890 = vmatprep.subr.mxu0 0.0
    %1891 = vmatpush1.msra.mxu0 0.0
    %1892 = vmatprep.subr.mxu0 0.0
    %1893 = vmatpush1.msra.mxu0 0.0
    %1894 = vmatprep.subr.mxu0 0.0
    %1895 = vmatpush1.msra.mxu0 0.0
    %1896 = vmatprep.subr.mxu0 0.0
    %1897 = vmatpush1.msra.mxu0 0.0
    %1898 = vmatprep.subr.mxu0 0.0
    %1899 = vmatpush1.msra.mxu0 0.0
    %1900 = vmatprep.subr.mxu0 0.0
    %1901 = vmatpush1.msra.mxu0 0.0
    %1902 = vmatprep.subr.mxu0 0.0
    %1903 = vmatpush1.msra.mxu0 0.0
    %1904 = vmatprep.subr.mxu0 0.0
    %1905 = vmatpush1.msra.mxu0 0.0
    %1906 = vmatprep.subr.mxu0 0.0
    %1907 = vmatpush1.msra.mxu0 0.0
    %1908 = vmatprep.subr.mxu0 0.0
    %1909 = vmatpush1.msra.mxu0 0.0
    %1910 = vmatprep.subr.mxu0 0.0
    %1911 = vmatpush1.msra.mxu0 0.0
    %1912 = vmatprep.subr.mxu0 0.0
    %1913 = vmatpush1.msra.mxu0 0.0
    %1914 = vmatprep.subr.mxu0 0.0
    %1915 = vmatpush1.msra.mxu0 0.0
    %1916 = vmatprep.subr.mxu0 0.0
    %1917 = vmatpush1.msra.mxu0 0.0
    %1918 = vmatprep.subr.mxu0 0.0
    %1919 = vmatpush1.msra.mxu0 0.0
    %1920 = vmatprep.subr.mxu0 0.0
    %1921 = vmatpush1.msra.mxu0 0.0
    %1922 = vmatprep.subr.mxu0 0.0
    %1923 = vmatpush1.msra.mxu0 0.0
    %1924 = vmatprep.subr.mxu0 0.0
    %1925 = vmatpush1.msra.mxu0 0.0
    %1926 = vmatprep.subr.mxu0 0.0
    %1927 = vmatpush1.msra.mxu0 0.0
    %1928 = vmatprep.subr.mxu0 0.0
    %1929 = vmatpush1.msra.mxu0 0.0
    %1930 = vmatprep.subr.mxu0 0.0
    %1931 = vmatpush1.msra.mxu0 0.0
    %1932 = vmatprep.subr.mxu0 0.0
    %1933 = vmatpush1.msra.mxu0 0.0
    %1934 = vmatprep.subr.mxu0 0.0
    %1935 = vmatpush1.msra.mxu0 0.0
    %1936 = vmatprep.subr.mxu0 0.0
    %1937 = vmatpush1.msra.mxu0 0.0
    %1938 = vmatprep.mubr.f32.mxu0 0.0
    %1939 = vmatmul.mubr.f32.gmra.mrb[0].mxu0 %v1872
    %v1940 = vpop.f32.mrb[0].mxu0
    %v1941 = vadd.f32 %v1870, %v1940
    %v1942 = vpop.f32.mrb[0].mxu0
    %1943 = vdwg.mxu0
    %v1944 = vadd.f32 %v1480, %v1941
    %v1945 = vld [vmem:[#allocation2 + $0x360] sm:$0x1]
    %v1946 = vld [vmem:[#allocation2 + $0x358] sm:$0x1]
    %vm1947 = vcmask 257024
    %v1948 = vsel %vm1947, %v1944, 0.0
    %1949 = vadd.xlane.f32.xlu0 %v1948
    %v1950 = vpop.xlane.xlu0 %1949
    %v1951 = vmul.f32 %v1950, %v909
    %v1952 = vsub.f32 %v1944, %v1951
    %v1953 = vmul.f32 %v1952, %v1952
    %v1954 = vsel %vm1947, %v1953, 0.0
    %1955 = vadd.xlane.f32.xlu0 %v1954
    %v1956 = vpop.xlane.xlu0 %1955
    %v1957 = vmul.f32 %v1956, %v909
    %v1958 = vadd.f32 %v1957, 1e-05
    %v1959 = vrsqrt.pop %v1958
    %v1960 = vmul.f32 %v1952, %v1959
    %v1961 = vlaneseq
    %v1962 = vshrl.u32 %v1961, 7
    %v1963 = vsub.s32 0, %v1962
    %v1964 = vrot.slane %v1945, %v1963
    %v1965 = vmul.f32 %v1960, %v1964
    %v1966 = vlaneseq
    %v1967 = vshrl.u32 %v1966, 7
    %v1968 = vsub.s32 0, %v1967
    %v1969 = vrot.slane %v1946, %v1968
    %v1970 = vadd.f32 %v1965, %v1969
    %v1971 = vld [vmem:[#allocation2 + $0x2f0] sm:$0xff]
    %v1972 = vld [vmem:[#allocation2 + $0x2f8] sm:$0xff]
    %v1973 = vld [vmem:[#allocation2 + $0x300] sm:$0xff]
    %v1974 = vld [vmem:[#allocation2 + $0x308] sm:$0xff]
    %v1975 = vld [vmem:[#allocation2 + $0x2e8] sm:$0x1]
    %v1976 = vlaneseq
    %v1977 = vshrl.u32 %v1976, 7
    %v1978 = vsub.s32 0, %v1977
    %v1979 = vrot.slane %v1975, %v1978
    %v1981 = vsel %vm393, %v1970, 0
    %1983 = vmatprep.subr.mxu0 0.0
    %1984 = vmatpush1.msra.mxu0 %v1971
    %1985 = vmatprep.subr.mxu0 0.0
    %1986 = vmatpush1.msra.mxu0 %v1972
    %1987 = vmatprep.subr.mxu0 0.0
    %1988 = vmatpush1.msra.mxu0 %v1973
    %1989 = vmatprep.subr.mxu0 0.0
    %1990 = vmatpush1.msra.mxu0 %v1974
    %1991 = vmatprep.subr.mxu0 0.0
    %1992 = vmatpush1.msra.mxu0 0.0
    %1993 = vmatprep.subr.mxu0 0.0
    %1994 = vmatpush1.msra.mxu0 0.0
    %1995 = vmatprep.subr.mxu0 0.0
    %1996 = vmatpush1.msra.mxu0 0.0
    %1997 = vmatprep.subr.mxu0 0.0
    %1998 = vmatpush1.msra.mxu0 0.0
    %1999 = vmatprep.subr.mxu0 0.0
    %2000 = vmatpush1.msra.mxu0 0.0
    %2001 = vmatprep.subr.mxu0 0.0
    %2002 = vmatpush1.msra.mxu0 0.0
    %2003 = vmatprep.subr.mxu0 0.0
    %2004 = vmatpush1.msra.mxu0 0.0
    %2005 = vmatprep.subr.mxu0 0.0
    %2006 = vmatpush1.msra.mxu0 0.0
    %2007 = vmatprep.subr.mxu0 0.0
    %2008 = vmatpush1.msra.mxu0 0.0
    %2009 = vmatprep.subr.mxu0 0.0
    %2010 = vmatpush1.msra.mxu0 0.0
    %2011 = vmatprep.subr.mxu0 0.0
    %2012 = vmatpush1.msra.mxu0 0.0
    %2013 = vmatprep.subr.mxu0 0.0
    %2014 = vmatpush1.msra.mxu0 0.0
    %2015 = vmatprep.subr.mxu0 0.0
    %2016 = vmatpush1.msra.mxu0 0.0
    %2017 = vmatprep.subr.mxu0 0.0
    %2018 = vmatpush1.msra.mxu0 0.0
    %2019 = vmatprep.subr.mxu0 0.0
    %2020 = vmatpush1.msra.mxu0 0.0
    %2021 = vmatprep.subr.mxu0 0.0
    %2022 = vmatpush1.msra.mxu0 0.0
    %2023 = vmatprep.subr.mxu0 0.0
    %2024 = vmatpush1.msra.mxu0 0.0
    %2025 = vmatprep.subr.mxu0 0.0
    %2026 = vmatpush1.msra.mxu0 0.0
    %2027 = vmatprep.subr.mxu0 0.0
    %2028 = vmatpush1.msra.mxu0 0.0
    %2029 = vmatprep.subr.mxu0 0.0
    %2030 = vmatpush1.msra.mxu0 0.0
    %2031 = vmatprep.subr.mxu0 0.0
    %2032 = vmatpush1.msra.mxu0 0.0
    %2033 = vmatprep.subr.mxu0 0.0
    %2034 = vmatpush1.msra.mxu0 0.0
    %2035 = vmatprep.subr.mxu0 0.0
    %2036 = vmatpush1.msra.mxu0 0.0
    %2037 = vmatprep.subr.mxu0 0.0
    %2038 = vmatpush1.msra.mxu0 0.0
    %2039 = vmatprep.subr.mxu0 0.0
    %2040 = vmatpush1.msra.mxu0 0.0
    %2041 = vmatprep.subr.mxu0 0.0
    %2042 = vmatpush1.msra.mxu0 0.0
    %2043 = vmatprep.subr.mxu0 0.0
    %2044 = vmatpush1.msra.mxu0 0.0
    %2045 = vmatprep.subr.mxu0 0.0
    %2046 = vmatpush1.msra.mxu0 0.0
    %2047 = vmatprep.mubr.f32.mxu0 0.0
    %2048 = vmatmul.mubr.f32.gmra.mrb[0].mxu0 %v1981
    %v2049 = vpop.f32.mrb[0].mxu0
    %v2050 = vadd.f32 %v1979, %v2049
    %v2051 = vpop.f32.mrb[0].mxu0
    %2052 = vdwg.mxu0
    %v2053 = vmax.f32 %v2050, 0.0
    %v2054 = vld [vmem:[#allocation2 + $0x318] sm:$0xff]
    %v2055 = vld [vmem:[#allocation2 + $0x320] sm:$0xff]
    %v2056 = vld [vmem:[#allocation2 + $0x328] sm:$0xff]
    %v2057 = vld [vmem:[#allocation2 + $0x330] sm:$0xff]
    %v2058 = vld [vmem:[#allocation2 + $0x338] sm:$0xff]
    %v2059 = vld [vmem:[#allocation2 + $0x340] sm:$0xff]
    %v2060 = vld [vmem:[#allocation2 + $0x348] sm:$0xff]
    %v2061 = vld [vmem:[#allocation2 + $0x350] sm:$0xff]
    %v2062 = vld [vmem:[#allocation2 + $0x310] sm:$0x1]
    %v2063 = vlaneseq
    %v2064 = vshrl.u32 %v2063, 7
    %v2065 = vsub.s32 0, %v2064
    %v2066 = vrot.slane %v2062, %v2065
    %v2068 = vsel %vm1026, %v2053, 0
    %2070 = vmatprep.subr.mxu0 0.0
    %2071 = vmatpush1.msra.mxu0 %v2054
    %2072 = vmatprep.subr.mxu0 0.0
    %2073 = vmatpush1.msra.mxu0 %v2055
    %2074 = vmatprep.subr.mxu0 0.0
    %2075 = vmatpush1.msra.mxu0 %v2056
    %2076 = vmatprep.subr.mxu0 0.0
    %2077 = vmatpush1.msra.mxu0 %v2057
    %2078 = vmatprep.subr.mxu0 0.0
    %2079 = vmatpush1.msra.mxu0 %v2058
    %2080 = vmatprep.subr.mxu0 0.0
    %2081 = vmatpush1.msra.mxu0 %v2059
    %2082 = vmatprep.subr.mxu0 0.0
    %2083 = vmatpush1.msra.mxu0 %v2060
    %2084 = vmatprep.subr.mxu0 0.0
    %2085 = vmatpush1.msra.mxu0 %v2061
    %2086 = vmatprep.subr.mxu0 0.0
    %2087 = vmatpush1.msra.mxu0 0.0
    %2088 = vmatprep.subr.mxu0 0.0
    %2089 = vmatpush1.msra.mxu0 0.0
    %2090 = vmatprep.subr.mxu0 0.0
    %2091 = vmatpush1.msra.mxu0 0.0
    %2092 = vmatprep.subr.mxu0 0.0
    %2093 = vmatpush1.msra.mxu0 0.0
    %2094 = vmatprep.subr.mxu0 0.0
    %2095 = vmatpush1.msra.mxu0 0.0
    %2096 = vmatprep.subr.mxu0 0.0
    %2097 = vmatpush1.msra.mxu0 0.0
    %2098 = vmatprep.subr.mxu0 0.0
    %2099 = vmatpush1.msra.mxu0 0.0
    %2100 = vmatprep.subr.mxu0 0.0
    %2101 = vmatpush1.msra.mxu0 0.0
    %2102 = vmatprep.subr.mxu0 0.0
    %2103 = vmatpush1.msra.mxu0 0.0
    %2104 = vmatprep.subr.mxu0 0.0
    %2105 = vmatpush1.msra.mxu0 0.0
    %2106 = vmatprep.subr.mxu0 0.0
    %2107 = vmatpush1.msra.mxu0 0.0
    %2108 = vmatprep.subr.mxu0 0.0
    %2109 = vmatpush1.msra.mxu0 0.0
    %2110 = vmatprep.subr.mxu0 0.0
    %2111 = vmatpush1.msra.mxu0 0.0
    %2112 = vmatprep.subr.mxu0 0.0
    %2113 = vmatpush1.msra.mxu0 0.0
    %2114 = vmatprep.subr.mxu0 0.0
    %2115 = vmatpush1.msra.mxu0 0.0
    %2116 = vmatprep.subr.mxu0 0.0
    %2117 = vmatpush1.msra.mxu0 0.0
    %2118 = vmatprep.subr.mxu0 0.0
    %2119 = vmatpush1.msra.mxu0 0.0
    %2120 = vmatprep.subr.mxu0 0.0
    %2121 = vmatpush1.msra.mxu0 0.0
    %2122 = vmatprep.subr.mxu0 0.0
    %2123 = vmatpush1.msra.mxu0 0.0
    %2124 = vmatprep.subr.mxu0 0.0
    %2125 = vmatpush1.msra.mxu0 0.0
    %2126 = vmatprep.subr.mxu0 0.0
    %2127 = vmatpush1.msra.mxu0 0.0
    %2128 = vmatprep.subr.mxu0 0.0
    %2129 = vmatpush1.msra.mxu0 0.0
    %2130 = vmatprep.subr.mxu0 0.0
    %2131 = vmatpush1.msra.mxu0 0.0
    %2132 = vmatprep.subr.mxu0 0.0
    %2133 = vmatpush1.msra.mxu0 0.0
    %2134 = vmatprep.mubr.f32.mxu0 0.0
    %2135 = vmatmul.mubr.f32.gmra.mrb[0].mxu0 %v2068
    %v2136 = vpop.f32.mrb[0].mxu0
    %v2137 = vadd.f32 %v2066, %v2136
    %v2138 = vpop.f32.mrb[0].mxu0
    %2139 = vdwg.mxu0
    %v2140 = vadd.f32 %v1970, %v2137
    %v2141 = vld [vmem:[#allocation2 + $0x370] sm:$0x1]
    %v2142 = vld [vmem:[#allocation2 + $0x368] sm:$0x1]
    %v2143 = vsel %vm1947, %v2140, 0.0
    %2144 = vadd.xlane.f32.xlu0 %v2143
    %v2145 = vpop.xlane.xlu0 %2144
    %v2146 = vmul.f32 %v2145, %v909
    %v2147 = vsub.f32 %v2140, %v2146
    %v2148 = vmul.f32 %v2147, %v2147
    %v2149 = vsel %vm1947, %v2148, 0.0
    %2150 = vadd.xlane.f32.xlu0 %v2149
    %v2151 = vpop.xlane.xlu0 %2150
    %v2152 = vmul.f32 %v2151, %v909
    %v2153 = vadd.f32 %v2152, 1e-05
    %v2154 = vrsqrt.pop %v2153
    %v2155 = vmul.f32 %v2147, %v2154
    %v2156 = vlaneseq
    %v2157 = vshrl.u32 %v2156, 7
    %v2158 = vsub.s32 0, %v2157
    %v2159 = vrot.slane %v2141, %v2158
    %v2160 = vmul.f32 %v2155, %v2159
    %v2161 = vlaneseq
    %v2162 = vshrl.u32 %v2161, 7
    %v2163 = vsub.s32 0, %v2162
    %v2164 = vrot.slane %v2142, %v2163
    %v2165 = vadd.f32 %v2160, %v2164
    %v2166 = vld [vmem:[#allocation2 + $0x380] sm:$0x1]
    %v2167 = vld [vmem:[#allocation2 + $0x378] sm:$0x1]
    %v2168 = vsel %vm1947, %v2165, 0.0
    %2169 = vadd.xlane.f32.xlu0 %v2168
    %v2170 = vpop.xlane.xlu0 %2169
    %v2171 = vmul.f32 %v2170, %v909
    %v2172 = vsub.f32 %v2165, %v2171
    %v2173 = vmul.f32 %v2172, %v2172
    %v2174 = vsel %vm1947, %v2173, 0.0
    %2175 = vadd.xlane.f32.xlu0 %v2174
    %v2176 = vpop.xlane.xlu0 %2175
    %v2177 = vmul.f32 %v2176, %v909
    %v2178 = vadd.f32 %v2177, 1e-05
    %v2179 = vrsqrt.pop %v2178
    %v2180 = vmul.f32 %v2172, %v2179
    %v2181 = vlaneseq
    %v2182 = vshrl.u32 %v2181, 7
    %v2183 = vsub.s32 0, %v2182
    %v2184 = vrot.slane %v2166, %v2183
    %v2185 = vmul.f32 %v2180, %v2184
    %v2186 = vlaneseq
    %v2187 = vshrl.u32 %v2186, 7
    %v2188 = vsub.s32 0, %v2187
    %v2189 = vrot.slane %v2167, %v2188
    %v2190 = vadd.f32 %v2185, %v2189
    %v2191 = vld [vmem:[#allocation2 + $0x170] sm:$0xff]
    %v2192 = vld [vmem:[#allocation2 + $0x178] sm:$0xff]
    %v2193 = vld [vmem:[#allocation2 + $0x180] sm:$0xff]
    %v2194 = vld [vmem:[#allocation2 + $0x188] sm:$0xff]
    %v2195 = vld [vmem:[#allocation2 + $0x148] sm:$0x1]
    %v2196 = vld [vmem:[#allocation2 + $0x150] sm:$0xff]
    %v2197 = vld [vmem:[#allocation2 + $0x158] sm:$0xff]
    %v2198 = vld [vmem:[#allocation2 + $0x160] sm:$0xff]
    %v2199 = vld [vmem:[#allocation2 + $0x168] sm:$0xff]
    %v2200 = vld [vmem:[#allocation2 + $0x140] sm:$0x1]
    %v2201 = vlaneseq
    %v2202 = vshrl.u32 %v2201, 7
    %v2203 = vsub.s32 0, %v2202
    %v2204 = vrot.slane %v2195, %v2203
    %v2206 = vsel %vm393, %v378, 0
    %2208 = vmatprep.subr.mxu0 0.0
    %2209 = vmatpush1.msra.mxu0 %v2191
    %2210 = vmatprep.subr.mxu0 0.0
    %2211 = vmatpush1.msra.mxu0 %v2192
    %2212 = vmatprep.subr.mxu0 0.0
    %2213 = vmatpush1.msra.mxu0 %v2193
    %2214 = vmatprep.subr.mxu0 0.0
    %2215 = vmatpush1.msra.mxu0 %v2194
    %2216 = vmatprep.subr.mxu0 0.0
    %2217 = vmatpush1.msra.mxu0 0.0
    %2218 = vmatprep.subr.mxu0 0.0
    %2219 = vmatpush1.msra.mxu0 0.0
    %2220 = vmatprep.subr.mxu0 0.0
    %2221 = vmatpush1.msra.mxu0 0.0
    %2222 = vmatprep.subr.mxu0 0.0
    %2223 = vmatpush1.msra.mxu0 0.0
    %2224 = vmatprep.subr.mxu0 0.0
    %2225 = vmatpush1.msra.mxu0 0.0
    %2226 = vmatprep.subr.mxu0 0.0
    %2227 = vmatpush1.msra.mxu0 0.0
    %2228 = vmatprep.subr.mxu0 0.0
    %2229 = vmatpush1.msra.mxu0 0.0
    %2230 = vmatprep.subr.mxu0 0.0
    %2231 = vmatpush1.msra.mxu0 0.0
    %2232 = vmatprep.subr.mxu0 0.0
    %2233 = vmatpush1.msra.mxu0 0.0
    %2234 = vmatprep.subr.mxu0 0.0
    %2235 = vmatpush1.msra.mxu0 0.0
    %2236 = vmatprep.subr.mxu0 0.0
    %2237 = vmatpush1.msra.mxu0 0.0
    %2238 = vmatprep.subr.mxu0 0.0
    %2239 = vmatpush1.msra.mxu0 0.0
    %2240 = vmatprep.subr.mxu0 0.0
    %2241 = vmatpush1.msra.mxu0 0.0
    %2242 = vmatprep.subr.mxu0 0.0
    %2243 = vmatpush1.msra.mxu0 0.0
    %2244 = vmatprep.subr.mxu0 0.0
    %2245 = vmatpush1.msra.mxu0 0.0
    %2246 = vmatprep.subr.mxu0 0.0
    %2247 = vmatpush1.msra.mxu0 0.0
    %2248 = vmatprep.subr.mxu0 0.0
    %2249 = vmatpush1.msra.mxu0 0.0
    %2250 = vmatprep.subr.mxu0 0.0
    %2251 = vmatpush1.msra.mxu0 0.0
    %2252 = vmatprep.subr.mxu0 0.0
    %2253 = vmatpush1.msra.mxu0 0.0
    %2254 = vmatprep.subr.mxu0 0.0
    %2255 = vmatpush1.msra.mxu0 0.0
    %2256 = vmatprep.subr.mxu0 0.0
    %2257 = vmatpush1.msra.mxu0 0.0
    %2258 = vmatprep.subr.mxu0 0.0
    %2259 = vmatpush1.msra.mxu0 0.0
    %2260 = vmatprep.subr.mxu0 0.0
    %2261 = vmatpush1.msra.mxu0 0.0
    %2262 = vmatprep.subr.mxu0 0.0
    %2263 = vmatpush1.msra.mxu0 0.0
    %2264 = vmatprep.subr.mxu0 0.0
    %2265 = vmatpush1.msra.mxu0 0.0
    %2266 = vmatprep.subr.mxu0 0.0
    %2267 = vmatpush1.msra.mxu0 0.0
    %2268 = vmatprep.subr.mxu0 0.0
    %2269 = vmatpush1.msra.mxu0 0.0
    %2270 = vmatprep.subr.mxu0 0.0
    %2271 = vmatpush1.msra.mxu0 0.0
    %2272 = vmatprep.mubr.f32.mxu0 0.0
    %2273 = vmatmul.mubr.f32.gmra.mrb[0].mxu0 %v2206
    %v2274 = vpop.f32.mrb[0].mxu0
    %v2275 = vadd.f32 %v2204, %v2274
    %v2276 = vpop.f32.mrb[0].mxu0
    %2277 = vdwg.mxu0
    %v2278 = vmul.f32 %v2275, %v531
    %v2279 = vmul.f32 %v2275, %v533
    %v2280 = vmul.f32 %v2275, %v535
    %v2281 = vmul.f32 %v2275, %v537
    %v2282 = vmul.f32 %v2275, %v547
    %v2283 = vmul.f32 %v2275, %v549
    %v2284 = vmul.f32 %v2275, %v551
    %v2285 = vmul.f32 %v2275, %v553
    %2290 = vrot.lane.b32.xlu0 %v2278, 96
    %v2291 = vpop.permute.xlu0 %2290
    %2292 = vrot.lane.b32.xlu0 %v2279, 96
    %v2293 = vpop.permute.xlu0 %2292
    %2294 = vrot.lane.b32.xlu0 %v2280, 96
    %v2295 = vpop.permute.xlu0 %2294
    %2296 = vrot.lane.b32.xlu0 %v2281, 96
    %v2297 = vpop.permute.xlu0 %2296
    %v2299 = vsel %vm393, %v2275, 0
    %v2301 = vsel %vm393, %v2291, 0
    %v2303 = vsel %vm393, %v2293, 0
    %v2305 = vsel %vm393, %v2295, 0
    %v2307 = vsel %vm393, %v2297, 0
    %2309 = vmatprep.subr.mxu0 0.0
    %2310 = vmatpush1.xpose.msra.mxu0 %v2301
    %2311 = vmatprep.subr.mxu0 0.0
    %2312 = vmatpush1.xpose.msra.mxu0 %v2303
    %2313 = vmatprep.subr.mxu0 0.0
    %2314 = vmatpush1.xpose.msra.mxu0 %v2305
    %2315 = vmatprep.subr.mxu0 0.0
    %2316 = vmatpush1.xpose.msra.mxu0 %v2307
    %2317 = vmatprep.subr.mxu0 0.0
    %2318 = vmatpush1.xpose.msra.mxu0 0.0
    %2319 = vmatprep.subr.mxu0 0.0
    %2320 = vmatpush1.xpose.msra.mxu0 0.0
    %2321 = vmatprep.subr.mxu0 0.0
    %2322 = vmatpush1.xpose.msra.mxu0 0.0
    %2323 = vmatprep.subr.mxu0 0.0
    %2324 = vmatpush1.xpose.msra.mxu0 0.0
    %2325 = vmatprep.subr.mxu0 0.0
    %2326 = vmatpush1.xpose.msra.mxu0 0.0
    %2327 = vmatprep.subr.mxu0 0.0
    %2328 = vmatpush1.xpose.msra.mxu0 0.0
    %2329 = vmatprep.subr.mxu0 0.0
    %2330 = vmatpush1.xpose.msra.mxu0 0.0
    %2331 = vmatprep.subr.mxu0 0.0
    %2332 = vmatpush1.xpose.msra.mxu0 0.0
    %2333 = vmatprep.subr.mxu0 0.0
    %2334 = vmatpush1.xpose.msra.mxu0 0.0
    %2335 = vmatprep.subr.mxu0 0.0
    %2336 = vmatpush1.xpose.msra.mxu0 0.0
    %2337 = vmatprep.subr.mxu0 0.0
    %2338 = vmatpush1.xpose.msra.mxu0 0.0
    %2339 = vmatprep.subr.mxu0 0.0
    %2340 = vmatpush1.xpose.msra.mxu0 0.0
    %2341 = vmatprep.subr.mxu0 0.0
    %2342 = vmatpush1.xpose.msra.mxu0 0.0
    %2343 = vmatprep.subr.mxu0 0.0
    %2344 = vmatpush1.xpose.msra.mxu0 0.0
    %2345 = vmatprep.subr.mxu0 0.0
    %2346 = vmatpush1.xpose.msra.mxu0 0.0
    %2347 = vmatprep.subr.mxu0 0.0
    %2348 = vmatpush1.xpose.msra.mxu0 0.0
    %2349 = vmatprep.subr.mxu0 0.0
    %2350 = vmatpush1.xpose.msra.mxu0 0.0
    %2351 = vmatprep.subr.mxu0 0.0
    %2352 = vmatpush1.xpose.msra.mxu0 0.0
    %2353 = vmatprep.subr.mxu0 0.0
    %2354 = vmatpush1.xpose.msra.mxu0 0.0
    %2355 = vmatprep.subr.mxu0 0.0
    %2356 = vmatpush1.xpose.msra.mxu0 0.0
    %2357 = vmatprep.subr.mxu0 0.0
    %2358 = vmatpush1.xpose.msra.mxu0 0.0
    %2359 = vmatprep.subr.mxu0 0.0
    %2360 = vmatpush1.xpose.msra.mxu0 0.0
    %2361 = vmatprep.subr.mxu0 0.0
    %2362 = vmatpush1.xpose.msra.mxu0 0.0
    %2363 = vmatprep.subr.mxu0 0.0
    %2364 = vmatpush1.xpose.msra.mxu0 0.0
    %2365 = vmatprep.subr.mxu0 0.0
    %2366 = vmatpush1.xpose.msra.mxu0 0.0
    %2367 = vmatprep.subr.mxu0 0.0
    %2368 = vmatpush1.xpose.msra.mxu0 0.0
    %2369 = vmatprep.subr.mxu0 0.0
    %2370 = vmatpush1.xpose.msra.mxu0 0.0
    %2371 = vmatprep.subr.mxu0 0.0
    %2372 = vmatpush1.xpose.msra.mxu0 0.0
    %2373 = vmatprep.mubr.f32.mxu0 0.0
    %2374 = vmatmul.mubr.f32.gmra.mrb[0].mxu0 %v2299
    %v2375 = vpop.f32.mrb[0].mxu0
    %v2376 = vadd.f32 0.0, %v2375
    %v2377 = vpop.f32.mrb[0].mxu0
    %2378 = vdwg.mxu0
    %v2379 = vmul.f32 %v2376, 0.35355338
    %2380 = vrot.lane.b32.xlu0 %v473, 8
    %v2381 = vpop.permute.xlu0 %2380
    %2382 = vrot.lane.b32.xlu0 %v473, 16
    %v2383 = vpop.permute.xlu0 %2382
    %2384 = vrot.lane.b32.xlu0 %v473, 24
    %v2385 = vpop.permute.xlu0 %2384
    %v2386 = vsel %vm1259, %v473, %v2381
    %v2387 = vsel %vm1710, %v2386, %v2383
    %vm2388 = vcmask 195584
    %v2389 = vsel %vm2388, %v2387, %v2385
    %vm2390 = vcmp.gt.s32.totalorder %v2389, %v468
    %v2391 = vsel %vm2390, -1e+30, %v2379
    %v2392 = vsel %vm393, %v2391, -inf
    %2393 = vmax.xlane.f32.xlu0 %v2392
    %v2394 = vpop.xlane.xlu0 %2393
    %v2395 = vsub.f32 %v2391, %v2394
    %v2396 = vmul.f32 %v2395, 1.442695
    %v2397 = vpow.pop %v2396
    %v2399 = vsel %vm393, %v2397, 0
    %2401 = vmatprep.subr.mxu0 0.0
    %2402 = vmatpush1.msra.mxu0 %v522
    %2403 = vmatprep.subr.mxu0 0.0
    %2404 = vmatpush1.msra.mxu0 %v523
    %2405 = vmatprep.subr.mxu0 0.0
    %2406 = vmatpush1.msra.mxu0 %v524
    %2407 = vmatprep.subr.mxu0 0.0
    %2408 = vmatpush1.msra.mxu0 %v525
    %2409 = vmatprep.subr.mxu0 0.0
    %2410 = vmatpush1.msra.mxu0 0.0
    %2411 = vmatprep.subr.mxu0 0.0
    %2412 = vmatpush1.msra.mxu0 0.0
    %2413 = vmatprep.subr.mxu0 0.0
    %2414 = vmatpush1.msra.mxu0 0.0
    %2415 = vmatprep.subr.mxu0 0.0
    %2416 = vmatpush1.msra.mxu0 0.0
    %2417 = vmatprep.subr.mxu0 0.0
    %2418 = vmatpush1.msra.mxu0 0.0
    %2419 = vmatprep.subr.mxu0 0.0
    %2420 = vmatpush1.msra.mxu0 0.0
    %2421 = vmatprep.subr.mxu0 0.0
    %2422 = vmatpush1.msra.mxu0 0.0
    %2423 = vmatprep.subr.mxu0 0.0
    %2424 = vmatpush1.msra.mxu0 0.0
    %2425 = vmatprep.subr.mxu0 0.0
    %2426 = vmatpush1.msra.mxu0 0.0
    %2427 = vmatprep.subr.mxu0 0.0
    %2428 = vmatpush1.msra.mxu0 0.0
    %2429 = vmatprep.subr.mxu0 0.0
    %2430 = vmatpush1.msra.mxu0 0.0
    %2431 = vmatprep.subr.mxu0 0.0
    %2432 = vmatpush1.msra.mxu0 0.0
    %2433 = vmatprep.subr.mxu0 0.0
    %2434 = vmatpush1.msra.mxu0 0.0
    %2435 = vmatprep.subr.mxu0 0.0
    %2436 = vmatpush1.msra.mxu0 0.0
    %2437 = vmatprep.subr.mxu0 0.0
    %2438 = vmatpush1.msra.mxu0 0.0
    %2439 = vmatprep.subr.mxu0 0.0
    %2440 = vmatpush1.msra.mxu0 0.0
    %2441 = vmatprep.subr.mxu0 0.0
    %2442 = vmatpush1.msra.mxu0 0.0
    %2443 = vmatprep.subr.mxu0 0.0
    %2444 = vmatpush1.msra.mxu0 0.0
    %2445 = vmatprep.subr.mxu0 0.0
    %2446 = vmatpush1.msra.mxu0 0.0
    %2447 = vmatprep.subr.mxu0 0.0
    %2448 = vmatpush1.msra.mxu0 0.0
    %2449 = vmatprep.subr.mxu0 0.0
    %2450 = vmatpush1.msra.mxu0 0.0
    %2451 = vmatprep.subr.mxu0 0.0
    %2452 = vmatpush1.msra.mxu0 0.0
    %2453 = vmatprep.subr.mxu0 0.0
    %2454 = vmatpush1.msra.mxu0 0.0
    %2455 = vmatprep.subr.mxu0 0.0
    %2456 = vmatpush1.msra.mxu0 0.0
    %2457 = vmatprep.subr.mxu0 0.0
    %2458 = vmatpush1.msra.mxu0 0.0
    %2459 = vmatprep.subr.mxu0 0.0
    %2460 = vmatpush1.msra.mxu0 0.0
    %2461 = vmatprep.subr.mxu0 0.0
    %2462 = vmatpush1.msra.mxu0 0.0
    %2463 = vmatprep.subr.mxu0 0.0
    %2464 = vmatpush1.msra.mxu0 0.0
    %2465 = vmatprep.mubr.f32.mxu0 0.0
    %2466 = vmatmul.mubr.f32.gmra.mrb[0].mxu0 %v2399
    %v2467 = vpop.f32.mrb[0].mxu0
    %v2468 = vadd.f32 0.0, %v2467
    %v2469 = vpop.f32.mrb[0].mxu0
    %2470 = vdwg.mxu0
    %v2471 = vrcp.pop %v2468
    %v2472 = vmul.f32 %v2397, %v2471
    %2477 = vrot.lane.b32.xlu0 %v2282, 64
    %v2478 = vpop.permute.xlu0 %2477
    %2479 = vrot.lane.b32.xlu0 %v2283, 64
    %v2480 = vpop.permute.xlu0 %2479
    %2481 = vrot.lane.b32.xlu0 %v2284, 64
    %v2482 = vpop.permute.xlu0 %2481
    %2483 = vrot.lane.b32.xlu0 %v2285, 64
    %v2484 = vpop.permute.xlu0 %2483
    %v2490 = vsel %vm393, %v2472, 0
    %2492 = vmatprep.subr.mxu0 0.0
    %2493 = vmatpush1.msra.mxu0 %v2478
    %2494 = vmatprep.subr.mxu0 0.0
    %2495 = vmatpush1.msra.mxu0 %v2480
    %2496 = vmatprep.subr.mxu0 0.0
    %2497 = vmatpush1.msra.mxu0 %v2482
    %2498 = vmatprep.subr.mxu0 0.0
    %2499 = vmatpush1.msra.mxu0 %v2484
    %2500 = vmatprep.subr.mxu0 0.0
    %2501 = vmatpush1.msra.mxu0 0.0
    %2502 = vmatprep.subr.mxu0 0.0
    %2503 = vmatpush1.msra.mxu0 0.0
    %2504 = vmatprep.subr.mxu0 0.0
    %2505 = vmatpush1.msra.mxu0 0.0
    %2506 = vmatprep.subr.mxu0 0.0
    %2507 = vmatpush1.msra.mxu0 0.0
    %2508 = vmatprep.subr.mxu0 0.0
    %2509 = vmatpush1.msra.mxu0 0.0
    %2510 = vmatprep.subr.mxu0 0.0
    %2511 = vmatpush1.msra.mxu0 0.0
    %2512 = vmatprep.subr.mxu0 0.0
    %2513 = vmatpush1.msra.mxu0 0.0
    %2514 = vmatprep.subr.mxu0 0.0
    %2515 = vmatpush1.msra.mxu0 0.0
    %2516 = vmatprep.subr.mxu0 0.0
    %2517 = vmatpush1.msra.mxu0 0.0
    %2518 = vmatprep.subr.mxu0 0.0
    %2519 = vmatpush1.msra.mxu0 0.0
    %2520 = vmatprep.subr.mxu0 0.0
    %2521 = vmatpush1.msra.mxu0 0.0
    %2522 = vmatprep.subr.mxu0 0.0
    %2523 = vmatpush1.msra.mxu0 0.0
    %2524 = vmatprep.subr.mxu0 0.0
    %2525 = vmatpush1.msra.mxu0 0.0
    %2526 = vmatprep.subr.mxu0 0.0
    %2527 = vmatpush1.msra.mxu0 0.0
    %2528 = vmatprep.subr.mxu0 0.0
    %2529 = vmatpush1.msra.mxu0 0.0
    %2530 = vmatprep.subr.mxu0 0.0
    %2531 = vmatpush1.msra.mxu0 0.0
    %2532 = vmatprep.subr.mxu0 0.0
    %2533 = vmatpush1.msra.mxu0 0.0
    %2534 = vmatprep.subr.mxu0 0.0
    %2535 = vmatpush1.msra.mxu0 0.0
    %2536 = vmatprep.subr.mxu0 0.0
    %2537 = vmatpush1.msra.mxu0 0.0
    %2538 = vmatprep.subr.mxu0 0.0
    %2539 = vmatpush1.msra.mxu0 0.0
    %2540 = vmatprep.subr.mxu0 0.0
    %2541 = vmatpush1.msra.mxu0 0.0
    %2542 = vmatprep.subr.mxu0 0.0
    %2543 = vmatpush1.msra.mxu0 0.0
    %2544 = vmatprep.subr.mxu0 0.0
    %2545 = vmatpush1.msra.mxu0 0.0
    %2546 = vmatprep.subr.mxu0 0.0
    %2547 = vmatpush1.msra.mxu0 0.0
    %2548 = vmatprep.subr.mxu0 0.0
    %2549 = vmatpush1.msra.mxu0 0.0
    %2550 = vmatprep.subr.mxu0 0.0
    %2551 = vmatpush1.msra.mxu0 0.0
    %2552 = vmatprep.subr.mxu0 0.0
    %2553 = vmatpush1.msra.mxu0 0.0
    %2554 = vmatprep.subr.mxu0 0.0
    %2555 = vmatpush1.msra.mxu0 0.0
    %2556 = vmatprep.mubr.f32.mxu0 0.0
    %2557 = vmatmul.mubr.f32.gmra.mrb[0].mxu0 %v2490
    %v2558 = vpop.f32.mrb[0].mxu0
    %v2559 = vadd.f32 0.0, %v2558
    %v2560 = vpop.f32.mrb[0].mxu0
    %2561 = vdwg.mxu0
    %v2562 = vlaneseq
    %v2563 = vshrl.u32 %v2562, 7
    %v2564 = vsub.s32 0, %v2563
    %v2565 = vrot.slane %v2200, %v2564
    %v2567 = vsel %vm393, %v2559, 0
    %2569 = vmatprep.subr.mxu0 0.0
    %2570 = vmatpush1.msra.mxu0 %v2196
    %2571 = vmatprep.subr.mxu0 0.0
    %2572 = vmatpush1.msra.mxu0 %v2197
    %2573 = vmatprep.subr.mxu0 0.0
    %2574 = vmatpush1.msra.mxu0 %v2198
    %2575 = vmatprep.subr.mxu0 0.0
    %2576 = vmatpush1.msra.mxu0 %v2199
    %2577 = vmatprep.subr.mxu0 0.0
    %2578 = vmatpush1.msra.mxu0 0.0
    %2579 = vmatprep.subr.mxu0 0.0
    %2580 = vmatpush1.msra.mxu0 0.0
    %2581 = vmatprep.subr.mxu0 0.0
    %2582 = vmatpush1.msra.mxu0 0.0
    %2583 = vmatprep.subr.mxu0 0.0
    %2584 = vmatpush1.msra.mxu0 0.0
    %2585 = vmatprep.subr.mxu0 0.0
    %2586 = vmatpush1.msra.mxu0 0.0
    %2587 = vmatprep.subr.mxu0 0.0
    %2588 = vmatpush1.msra.mxu0 0.0
    %2589 = vmatprep.subr.mxu0 0.0
    %2590 = vmatpush1.msra.mxu0 0.0
    %2591 = vmatprep.subr.mxu0 0.0
    %2592 = vmatpush1.msra.mxu0 0.0
    %2593 = vmatprep.subr.mxu0 0.0
    %2594 = vmatpush1.msra.mxu0 0.0
    %2595 = vmatprep.subr.mxu0 0.0
    %2596 = vmatpush1.msra.mxu0 0.0
    %2597 = vmatprep.subr.mxu0 0.0
    %2598 = vmatpush1.msra.mxu0 0.0
    %2599 = vmatprep.subr.mxu0 0.0
    %2600 = vmatpush1.msra.mxu0 0.0
    %2601 = vmatprep.subr.mxu0 0.0
    %2602 = vmatpush1.msra.mxu0 0.0
    %2603 = vmatprep.subr.mxu0 0.0
    %2604 = vmatpush1.msra.mxu0 0.0
    %2605 = vmatprep.subr.mxu0 0.0
    %2606 = vmatpush1.msra.mxu0 0.0
    %2607 = vmatprep.subr.mxu0 0.0
    %2608 = vmatpush1.msra.mxu0 0.0
    %2609 = vmatprep.subr.mxu0 0.0
    %2610 = vmatpush1.msra.mxu0 0.0
    %2611 = vmatprep.subr.mxu0 0.0
    %2612 = vmatpush1.msra.mxu0 0.0
    %2613 = vmatprep.subr.mxu0 0.0
    %2614 = vmatpush1.msra.mxu0 0.0
    %2615 = vmatprep.subr.mxu0 0.0
    %2616 = vmatpush1.msra.mxu0 0.0
    %2617 = vmatprep.subr.mxu0 0.0
    %2618 = vmatpush1.msra.mxu0 0.0
    %2619 = vmatprep.subr.mxu0 0.0
    %2620 = vmatpush1.msra.mxu0 0.0
    %2621 = vmatprep.subr.mxu0 0.0
    %2622 = vmatpush1.msra.mxu0 0.0
    %2623 = vmatprep.subr.mxu0 0.0
    %2624 = vmatpush1.msra.mxu0 0.0
    %2625 = vmatprep.subr.mxu0 0.0
    %2626 = vmatpush1.msra.mxu0 0.0
    %2627 = vmatprep.subr.mxu0 0.0
    %2628 = vmatpush1.msra.mxu0 0.0
    %2629 = vmatprep.subr.mxu0 0.0
    %2630 = vmatpush1.msra.mxu0 0.0
    %2631 = vmatprep.subr.mxu0 0.0
    %2632 = vmatpush1.msra.mxu0 0.0
    %2633 = vmatprep.mubr.f32.mxu0 0.0
    %2634 = vmatmul.mubr.f32.gmra.mrb[0].mxu0 %v2567
    %v2635 = vpop.f32.mrb[0].mxu0
    %v2636 = vadd.f32 %v2565, %v2635
    %v2637 = vpop.f32.mrb[0].mxu0
    %2638 = vdwg.mxu0
    %v2639 = vadd.f32 %v378, %v2636
    %v2640 = vld [vmem:[#allocation2 + $0x118] sm:$0x1]
    %v2641 = vld [vmem:[#allocation2 + $0x110] sm:$0x1]
    %v2642 = vsel %vm393, %v2639, 0.0
    %2643 = vadd.xlane.f32.xlu0 %v2642
    %v2644 = vpop.xlane.xlu0 %2643
    %v2645 = vmul.f32 %v2644, %v909
    %v2646 = vsub.f32 %v2639, %v2645
    %v2647 = vmul.f32 %v2646, %v2646
    %v2648 = vsel %vm393, %v2647, 0.0
    %2649 = vadd.xlane.f32.xlu0 %v2648
    %v2650 = vpop.xlane.xlu0 %2649
    %v2651 = vmul.f32 %v2650, %v909
    %v2652 = vadd.f32 %v2651, 1e-05
    %v2653 = vrsqrt.pop %v2652
    %v2654 = vmul.f32 %v2646, %v2653
    %v2655 = vlaneseq
    %v2656 = vshrl.u32 %v2655, 7
    %v2657 = vsub.s32 0, %v2656
    %v2658 = vrot.slane %v2640, %v2657
    %v2659 = vmul.f32 %v2654, %v2658
    %v2660 = vlaneseq
    %v2661 = vshrl.u32 %v2660, 7
    %v2662 = vsub.s32 0, %v2661
    %v2663 = vrot.slane %v2641, %v2662
    %v2664 = vadd.f32 %v2659, %v2663
    %v2665 = vld [vmem:[#allocation2 + $0x80] sm:$0xff]
    %v2666 = vld [vmem:[#allocation2 + $0x88] sm:$0xff]
    %v2667 = vld [vmem:[#allocation2 + $0x90] sm:$0xff]
    %v2668 = vld [vmem:[#allocation2 + $0x98] sm:$0xff]
    %v2669 = vld [vmem:[#allocation2 + $0x58] sm:$0x1]
    %v2670 = vld [vmem:[#allocation2 + $0x60] sm:$0xff]
    %v2671 = vld [vmem:[#allocation2 + $0x68] sm:$0xff]
    %v2672 = vld [vmem:[#allocation2 + $0x70] sm:$0xff]
    %v2673 = vld [vmem:[#allocation2 + $0x78] sm:$0xff]
    %v2674 = vld [vmem:[#allocation2 + $0x50] sm:$0x1]
    %v2675 = vlaneseq
    %v2676 = vshrl.u32 %v2675, 7
    %v2677 = vsub.s32 0, %v2676
    %v2678 = vrot.slane %v2669, %v2677
    %v2680 = vsel %vm393, %v2664, 0
    %2682 = vmatprep.subr.mxu0 0.0
    %2683 = vmatpush1.msra.mxu0 %v2665
    %2684 = vmatprep.subr.mxu0 0.0
    %2685 = vmatpush1.msra.mxu0 %v2666
    %2686 = vmatprep.subr.mxu0 0.0
    %2687 = vmatpush1.msra.mxu0 %v2667
    %2688 = vmatprep.subr.mxu0 0.0
    %2689 = vmatpush1.msra.mxu0 %v2668
    %2690 = vmatprep.subr.mxu0 0.0
    %2691 = vmatpush1.msra.mxu0 0.0
    %2692 = vmatprep.subr.mxu0 0.0
    %2693 = vmatpush1.msra.mxu0 0.0
    %2694 = vmatprep.subr.mxu0 0.0
    %2695 = vmatpush1.msra.mxu0 0.0
    %2696 = vmatprep.subr.mxu0 0.0
    %2697 = vmatpush1.msra.mxu0 0.0
    %2698 = vmatprep.subr.mxu0 0.0
    %2699 = vmatpush1.msra.mxu0 0.0
    %2700 = vmatprep.subr.mxu0 0.0
    %2701 = vmatpush1.msra.mxu0 0.0
    %2702 = vmatprep.subr.mxu0 0.0
    %2703 = vmatpush1.msra.mxu0 0.0
    %2704 = vmatprep.subr.mxu0 0.0
    %2705 = vmatpush1.msra.mxu0 0.0
    %2706 = vmatprep.subr.mxu0 0.0
    %2707 = vmatpush1.msra.mxu0 0.0
    %2708 = vmatprep.subr.mxu0 0.0
    %2709 = vmatpush1.msra.mxu0 0.0
    %2710 = vmatprep.subr.mxu0 0.0
    %2711 = vmatpush1.msra.mxu0 0.0
    %2712 = vmatprep.subr.mxu0 0.0
    %2713 = vmatpush1.msra.mxu0 0.0
    %2714 = vmatprep.subr.mxu0 0.0
    %2715 = vmatpush1.msra.mxu0 0.0
    %2716 = vmatprep.subr.mxu0 0.0
    %2717 = vmatpush1.msra.mxu0 0.0
    %2718 = vmatprep.subr.mxu0 0.0
    %2719 = vmatpush1.msra.mxu0 0.0
    %2720 = vmatprep.subr.mxu0 0.0
    %2721 = vmatpush1.msra.mxu0 0.0
    %2722 = vmatprep.subr.mxu0 0.0
    %2723 = vmatpush1.msra.mxu0 0.0
    %2724 = vmatprep.subr.mxu0 0.0
    %2725 = vmatpush1.msra.mxu0 0.0
    %2726 = vmatprep.subr.mxu0 0.0
    %2727 = vmatpush1.msra.mxu0 0.0
    %2728 = vmatprep.subr.mxu0 0.0
    %2729 = vmatpush1.msra.mxu0 0.0
    %2730 = vmatprep.subr.mxu0 0.0
    %2731 = vmatpush1.msra.mxu0 0.0
    %2732 = vmatprep.subr.mxu0 0.0
    %2733 = vmatpush1.msra.mxu0 0.0
    %2734 = vmatprep.subr.mxu0 0.0
    %2735 = vmatpush1.msra.mxu0 0.0
    %2736 = vmatprep.subr.mxu0 0.0
    %2737 = vmatpush1.msra.mxu0 0.0
    %2738 = vmatprep.subr.mxu0 0.0
    %2739 = vmatpush1.msra.mxu0 0.0
    %2740 = vmatprep.subr.mxu0 0.0
    %2741 = vmatpush1.msra.mxu0 0.0
    %2742 = vmatprep.subr.mxu0 0.0
    %2743 = vmatpush1.msra.mxu0 0.0
    %2744 = vmatprep.subr.mxu0 0.0
    %2745 = vmatpush1.msra.mxu0 0.0
    %2746 = vmatprep.mubr.f32.mxu0 0.0
    %2747 = vmatmul.mubr.f32.gmra.mrb[0].mxu0 %v2680
    %v2748 = vpop.f32.mrb[0].mxu0
    %v2749 = vadd.f32 %v2678, %v2748
    %v2750 = vpop.f32.mrb[0].mxu0
    %2751 = vdwg.mxu0
    %2756 = vrot.lane.b32.xlu0 %v2665, 96
    %v2757 = vpop.permute.xlu0 %2756
    %2758 = vrot.lane.b32.xlu0 %v2666, 96
    %v2759 = vpop.permute.xlu0 %2758
    %2760 = vrot.lane.b32.xlu0 %v2667, 96
    %v2761 = vpop.permute.xlu0 %2760
    %2762 = vrot.lane.b32.xlu0 %v2668, 96
    %v2763 = vpop.permute.xlu0 %2762
    %2769 = vrot.lane.b32.xlu0 %v2678, 96
    %v2770 = vpop.permute.xlu0 %2769
    %v2773 = vsel %vm393, %v2190, 0
    %2775 = vmatprep.subr.mxu0 0.0
    %2776 = vmatpush1.msra.mxu0 %v2757
    %2777 = vmatprep.subr.mxu0 0.0
    %2778 = vmatpush1.msra.mxu0 %v2759
    %2779 = vmatprep.subr.mxu0 0.0
    %2780 = vmatpush1.msra.mxu0 %v2761
    %2781 = vmatprep.subr.mxu0 0.0
    %2782 = vmatpush1.msra.mxu0 %v2763
    %2783 = vmatprep.subr.mxu0 0.0
    %2784 = vmatpush1.msra.mxu0 0.0
    %2785 = vmatprep.subr.mxu0 0.0
    %2786 = vmatpush1.msra.mxu0 0.0
    %2787 = vmatprep.subr.mxu0 0.0
    %2788 = vmatpush1.msra.mxu0 0.0
    %2789 = vmatprep.subr.mxu0 0.0
    %2790 = vmatpush1.msra.mxu0 0.0
    %2791 = vmatprep.subr.mxu0 0.0
    %2792 = vmatpush1.msra.mxu0 0.0
    %2793 = vmatprep.subr.mxu0 0.0
    %2794 = vmatpush1.msra.mxu0 0.0
    %2795 = vmatprep.subr.mxu0 0.0
    %2796 = vmatpush1.msra.mxu0 0.0
    %2797 = vmatprep.subr.mxu0 0.0
    %2798 = vmatpush1.msra.mxu0 0.0
    %2799 = vmatprep.subr.mxu0 0.0
    %2800 = vmatpush1.msra.mxu0 0.0
    %2801 = vmatprep.subr.mxu0 0.0
    %2802 = vmatpush1.msra.mxu0 0.0
    %2803 = vmatprep.subr.mxu0 0.0
    %2804 = vmatpush1.msra.mxu0 0.0
    %2805 = vmatprep.subr.mxu0 0.0
    %2806 = vmatpush1.msra.mxu0 0.0
    %2807 = vmatprep.subr.mxu0 0.0
    %2808 = vmatpush1.msra.mxu0 0.0
    %2809 = vmatprep.subr.mxu0 0.0
    %2810 = vmatpush1.msra.mxu0 0.0
    %2811 = vmatprep.subr.mxu0 0.0
    %2812 = vmatpush1.msra.mxu0 0.0
    %2813 = vmatprep.subr.mxu0 0.0
    %2814 = vmatpush1.msra.mxu0 0.0
    %2815 = vmatprep.subr.mxu0 0.0
    %2816 = vmatpush1.msra.mxu0 0.0
    %2817 = vmatprep.subr.mxu0 0.0
    %2818 = vmatpush1.msra.mxu0 0.0
    %2819 = vmatprep.subr.mxu0 0.0
    %2820 = vmatpush1.msra.mxu0 0.0
    %2821 = vmatprep.subr.mxu0 0.0
    %2822 = vmatpush1.msra.mxu0 0.0
    %2823 = vmatprep.subr.mxu0 0.0
    %2824 = vmatpush1.msra.mxu0 0.0
    %2825 = vmatprep.subr.mxu0 0.0
    %2826 = vmatpush1.msra.mxu0 0.0
    %2827 = vmatprep.subr.mxu0 0.0
    %2828 = vmatpush1.msra.mxu0 0.0
    %2829 = vmatprep.subr.mxu0 0.0
    %2830 = vmatpush1.msra.mxu0 0.0
    %2831 = vmatprep.subr.mxu0 0.0
    %2832 = vmatpush1.msra.mxu0 0.0
    %2833 = vmatprep.subr.mxu0 0.0
    %2834 = vmatpush1.msra.mxu0 0.0
    %2835 = vmatprep.subr.mxu0 0.0
    %2836 = vmatpush1.msra.mxu0 0.0
    %2837 = vmatprep.subr.mxu0 0.0
    %2838 = vmatpush1.msra.mxu0 0.0
    %2839 = vmatprep.mubr.f32.mxu0 0.0
    %2840 = vmatmul.mubr.f32.gmra.mrb[0].mxu0 %v2773
    %v2841 = vpop.f32.mrb[0].mxu0
    %v2842 = vadd.f32 %v2770, %v2841
    %v2843 = vpop.f32.mrb[0].mxu0
    %2844 = vdwg.mxu0
    %v2846 = vrot.slane %v2842, 4
    %v2848 = vsel %vm134, %v2842, %v2846
    %v2849 = vmul.f32 %v2848, %v1584
    %v2850 = vmul.f32 %v2848, %v1585
    %v2851 = vmul.f32 %v2848, %v1593
    %v2852 = vmul.f32 %v2848, %v1595
    %v2854 = vsel %vm393, %v2749, 0
    %v2857 = vsel %vm393, %v2849, 0
    %v2860 = vsel %vm393, %v2850, 0
    %2862 = vmatprep.subr.mxu0 0.0
    %2863 = vmatpush1.xpose.msra.mxu0 %v2857
    %2864 = vmatprep.subr.mxu0 0.0
    %2865 = vmatpush1.xpose.msra.mxu0 %v2860
    %2866 = vmatprep.subr.mxu0 0.0
    %2867 = vmatpush1.xpose.msra.mxu0 0.0
    %2868 = vmatprep.subr.mxu0 0.0
    %2869 = vmatpush1.xpose.msra.mxu0 0.0
    %2870 = vmatprep.subr.mxu0 0.0
    %2871 = vmatpush1.xpose.msra.mxu0 0.0
    %2872 = vmatprep.subr.mxu0 0.0
    %2873 = vmatpush1.xpose.msra.mxu0 0.0
    %2874 = vmatprep.subr.mxu0 0.0
    %2875 = vmatpush1.xpose.msra.mxu0 0.0
    %2876 = vmatprep.subr.mxu0 0.0
    %2877 = vmatpush1.xpose.msra.mxu0 0.0
    %2878 = vmatprep.subr.mxu0 0.0
    %2879 = vmatpush1.xpose.msra.mxu0 0.0
    %2880 = vmatprep.subr.mxu0 0.0
    %2881 = vmatpush1.xpose.msra.mxu0 0.0
    %2882 = vmatprep.subr.mxu0 0.0
    %2883 = vmatpush1.xpose.msra.mxu0 0.0
    %2884 = vmatprep.subr.mxu0 0.0
    %2885 = vmatpush1.xpose.msra.mxu0 0.0
    %2886 = vmatprep.subr.mxu0 0.0
    %2887 = vmatpush1.xpose.msra.mxu0 0.0
    %2888 = vmatprep.subr.mxu0 0.0
    %2889 = vmatpush1.xpose.msra.mxu0 0.0
    %2890 = vmatprep.subr.mxu0 0.0
    %2891 = vmatpush1.xpose.msra.mxu0 0.0
    %2892 = vmatprep.subr.mxu0 0.0
    %2893 = vmatpush1.xpose.msra.mxu0 0.0
    %2894 = vmatprep.subr.mxu0 0.0
    %2895 = vmatpush1.xpose.msra.mxu0 0.0
    %2896 = vmatprep.subr.mxu0 0.0
    %2897 = vmatpush1.xpose.msra.mxu0 0.0
    %2898 = vmatprep.subr.mxu0 0.0
    %2899 = vmatpush1.xpose.msra.mxu0 0.0
    %2900 = vmatprep.subr.mxu0 0.0
    %2901 = vmatpush1.xpose.msra.mxu0 0.0
    %2902 = vmatprep.subr.mxu0 0.0
    %2903 = vmatpush1.xpose.msra.mxu0 0.0
    %2904 = vmatprep.subr.mxu0 0.0
    %2905 = vmatpush1.xpose.msra.mxu0 0.0
    %2906 = vmatprep.subr.mxu0 0.0
    %2907 = vmatpush1.xpose.msra.mxu0 0.0
    %2908 = vmatprep.subr.mxu0 0.0
    %2909 = vmatpush1.xpose.msra.mxu0 0.0
    %2910 = vmatprep.subr.mxu0 0.0
    %2911 = vmatpush1.xpose.msra.mxu0 0.0
    %2912 = vmatprep.subr.mxu0 0.0
    %2913 = vmatpush1.xpose.msra.mxu0 0.0
    %2914 = vmatprep.subr.mxu0 0.0
    %2915 = vmatpush1.xpose.msra.mxu0 0.0
    %2916 = vmatprep.subr.mxu0 0.0
    %2917 = vmatpush1.xpose.msra.mxu0 0.0
    %2918 = vmatprep.subr.mxu0 0.0
    %2919 = vmatpush1.xpose.msra.mxu0 0.0
    %2920 = vmatprep.subr.mxu0 0.0
    %2921 = vmatpush1.xpose.msra.mxu0 0.0
    %2922 = vmatprep.subr.mxu0 0.0
    %2923 = vmatpush1.xpose.msra.mxu0 0.0
    %2924 = vmatprep.subr.mxu0 0.0
    %2925 = vmatpush1.xpose.msra.mxu0 0.0
    %2926 = vmatprep.mubr.f32.mxu0 0.0
    %2927 = vmatmul.mubr.f32.gmra.mrb[0].mxu0 %v2854
    %v2928 = vpop.f32.mrb[0].mxu0
    %v2929 = vadd.f32 0.0, %v2928
    %v2930 = vpop.f32.mrb[0].mxu0
    %2931 = vdwg.mxu0
    %v2932 = vmul.f32 %v2929, 0.35355338
    %v2933 = vsel %vm1710, %v2932, -inf
    %2934 = vmax.xlane.f32.xlu0 %v2933
    %v2935 = vpop.xlane.xlu0 %2934
    %v2936 = vsub.f32 %v2932, %v2935
    %v2937 = vmul.f32 %v2936, 1.442695
    %v2938 = vpow.pop %v2937
    %v2940 = vsel %vm1710, %v2938, 0
    %2942 = vmatprep.subr.mxu0 0.0
    %2943 = vmatpush1.msra.mxu0 %v1708
    %2944 = vmatprep.subr.mxu0 0.0
    %2945 = vmatpush1.msra.mxu0 %v1709
    %2946 = vmatprep.subr.mxu0 0.0
    %2947 = vmatpush1.msra.mxu0 0.0
    %2948 = vmatprep.subr.mxu0 0.0
    %2949 = vmatpush1.msra.mxu0 0.0
    %2950 = vmatprep.subr.mxu0 0.0
    %2951 = vmatpush1.msra.mxu0 0.0
    %2952 = vmatprep.subr.mxu0 0.0
    %2953 = vmatpush1.msra.mxu0 0.0
    %2954 = vmatprep.subr.mxu0 0.0
    %2955 = vmatpush1.msra.mxu0 0.0
    %2956 = vmatprep.subr.mxu0 0.0
    %2957 = vmatpush1.msra.mxu0 0.0
    %2958 = vmatprep.subr.mxu0 0.0
    %2959 = vmatpush1.msra.mxu0 0.0
    %2960 = vmatprep.subr.mxu0 0.0
    %2961 = vmatpush1.msra.mxu0 0.0
    %2962 = vmatprep.subr.mxu0 0.0
    %2963 = vmatpush1.msra.mxu0 0.0
    %2964 = vmatprep.subr.mxu0 0.0
    %2965 = vmatpush1.msra.mxu0 0.0
    %2966 = vmatprep.subr.mxu0 0.0
    %2967 = vmatpush1.msra.mxu0 0.0
    %2968 = vmatprep.subr.mxu0 0.0
    %2969 = vmatpush1.msra.mxu0 0.0
    %2970 = vmatprep.subr.mxu0 0.0
    %2971 = vmatpush1.msra.mxu0 0.0
    %2972 = vmatprep.subr.mxu0 0.0
    %2973 = vmatpush1.msra.mxu0 0.0
    %2974 = vmatprep.subr.mxu0 0.0
    %2975 = vmatpush1.msra.mxu0 0.0
    %2976 = vmatprep.subr.mxu0 0.0
    %2977 = vmatpush1.msra.mxu0 0.0
    %2978 = vmatprep.subr.mxu0 0.0
    %2979 = vmatpush1.msra.mxu0 0.0
    %2980 = vmatprep.subr.mxu0 0.0
    %2981 = vmatpush1.msra.mxu0 0.0
    %2982 = vmatprep.subr.mxu0 0.0
    %2983 = vmatpush1.msra.mxu0 0.0
    %2984 = vmatprep.subr.mxu0 0.0
    %2985 = vmatpush1.msra.mxu0 0.0
    %2986 = vmatprep.subr.mxu0 0.0
    %2987 = vmatpush1.msra.mxu0 0.0
    %2988 = vmatprep.subr.mxu0 0.0
    %2989 = vmatpush1.msra.mxu0 0.0
    %2990 = vmatprep.subr.mxu0 0.0
    %2991 = vmatpush1.msra.mxu0 0.0
    %2992 = vmatprep.subr.mxu0 0.0
    %2993 = vmatpush1.msra.mxu0 0.0
    %2994 = vmatprep.subr.mxu0 0.0
    %2995 = vmatpush1.msra.mxu0 0.0
    %2996 = vmatprep.subr.mxu0 0.0
    %2997 = vmatpush1.msra.mxu0 0.0
    %2998 = vmatprep.subr.mxu0 0.0
    %2999 = vmatpush1.msra.mxu0 0.0
    %3000 = vmatprep.subr.mxu0 0.0
    %3001 = vmatpush1.msra.mxu0 0.0
    %3002 = vmatprep.subr.mxu0 0.0
    %3003 = vmatpush1.msra.mxu0 0.0
    %3004 = vmatprep.subr.mxu0 0.0
    %3005 = vmatpush1.msra.mxu0 0.0
    %3006 = vmatprep.mubr.f32.mxu0 0.0
    %3007 = vmatmul.mubr.f32.gmra.mrb[0].mxu0 %v2940
    %v3008 = vpop.f32.mrb[0].mxu0
    %v3009 = vadd.f32 0.0, %v3008
    %v3010 = vpop.f32.mrb[0].mxu0
    %3011 = vdwg.mxu0
    %v3012 = vrcp.pop %v3009
    %v3013 = vmul.f32 %v2938, %v3012
    %3016 = vrot.lane.b32.xlu0 %v2851, 96
    %v3017 = vpop.permute.xlu0 %3016
    %3018 = vrot.lane.b32.xlu0 %v2852, 96
    %v3019 = vpop.permute.xlu0 %3018
    %v3023 = vsel %vm1710, %v3013, 0
    %3025 = vmatprep.subr.mxu0 0.0
    %3026 = vmatpush1.msra.mxu0 %v3017
    %3027 = vmatprep.subr.mxu0 0.0
    %3028 = vmatpush1.msra.mxu0 %v3019
    %3029 = vmatprep.subr.mxu0 0.0
    %3030 = vmatpush1.msra.mxu0 0.0
    %3031 = vmatprep.subr.mxu0 0.0
    %3032 = vmatpush1.msra.mxu0 0.0
    %3033 = vmatprep.subr.mxu0 0.0
    %3034 = vmatpush1.msra.mxu0 0.0
    %3035 = vmatprep.subr.mxu0 0.0
    %3036 = vmatpush1.msra.mxu0 0.0
    %3037 = vmatprep.subr.mxu0 0.0
    %3038 = vmatpush1.msra.mxu0 0.0
    %3039 = vmatprep.subr.mxu0 0.0
    %3040 = vmatpush1.msra.mxu0 0.0
    %3041 = vmatprep.subr.mxu0 0.0
    %3042 = vmatpush1.msra.mxu0 0.0
    %3043 = vmatprep.subr.mxu0 0.0
    %3044 = vmatpush1.msra.mxu0 0.0
    %3045 = vmatprep.subr.mxu0 0.0
    %3046 = vmatpush1.msra.mxu0 0.0
    %3047 = vmatprep.subr.mxu0 0.0
    %3048 = vmatpush1.msra.mxu0 0.0
    %3049 = vmatprep.subr.mxu0 0.0
    %3050 = vmatpush1.msra.mxu0 0.0
    %3051 = vmatprep.subr.mxu0 0.0
    %3052 = vmatpush1.msra.mxu0 0.0
    %3053 = vmatprep.subr.mxu0 0.0
    %3054 = vmatpush1.msra.mxu0 0.0
    %3055 = vmatprep.subr.mxu0 0.0
    %3056 = vmatpush1.msra.mxu0 0.0
    %3057 = vmatprep.subr.mxu0 0.0
    %3058 = vmatpush1.msra.mxu0 0.0
    %3059 = vmatprep.subr.mxu0 0.0
    %3060 = vmatpush1.msra.mxu0 0.0
    %3061 = vmatprep.subr.mxu0 0.0
    %3062 = vmatpush1.msra.mxu0 0.0
    %3063 = vmatprep.subr.mxu0 0.0
    %3064 = vmatpush1.msra.mxu0 0.0
    %3065 = vmatprep.subr.mxu0 0.0
    %3066 = vmatpush1.msra.mxu0 0.0
    %3067 = vmatprep.subr.mxu0 0.0
    %3068 = vmatpush1.msra.mxu0 0.0
    %3069 = vmatprep.subr.mxu0 0.0
    %3070 = vmatpush1.msra.mxu0 0.0
    %3071 = vmatprep.subr.mxu0 0.0
    %3072 = vmatpush1.msra.mxu0 0.0
    %3073 = vmatprep.subr.mxu0 0.0
    %3074 = vmatpush1.msra.mxu0 0.0
    %3075 = vmatprep.subr.mxu0 0.0
    %3076 = vmatpush1.msra.mxu0 0.0
    %3077 = vmatprep.subr.mxu0 0.0
    %3078 = vmatpush1.msra.mxu0 0.0
    %3079 = vmatprep.subr.mxu0 0.0
    %3080 = vmatpush1.msra.mxu0 0.0
    %3081 = vmatprep.subr.mxu0 0.0
    %3082 = vmatpush1.msra.mxu0 0.0
    %3083 = vmatprep.subr.mxu0 0.0
    %3084 = vmatpush1.msra.mxu0 0.0
    %3085 = vmatprep.subr.mxu0 0.0
    %3086 = vmatpush1.msra.mxu0 0.0
    %3087 = vmatprep.subr.mxu0 0.0
    %3088 = vmatpush1.msra.mxu0 0.0
    %3089 = vmatprep.mubr.f32.mxu0 0.0
    %3090 = vmatmul.mubr.f32.gmra.mrb[0].mxu0 %v3023
    %v3091 = vpop.f32.mrb[0].mxu0
    %v3092 = vadd.f32 0.0, %v3091
    %v3093 = vpop.f32.mrb[0].mxu0
    %3094 = vdwg.mxu0
    %v3095 = vlaneseq
    %v3096 = vshrl.u32 %v3095, 7
    %v3097 = vsub.s32 0, %v3096
    %v3098 = vrot.slane %v2674, %v3097
    %v3100 = vsel %vm393, %v3092, 0
    %3102 = vmatprep.subr.mxu0 0.0
    %3103 = vmatpush1.msra.mxu0 %v2670
    %3104 = vmatprep.subr.mxu0 0.0
    %3105 = vmatpush1.msra.mxu0 %v2671
    %3106 = vmatprep.subr.mxu0 0.0
    %3107 = vmatpush1.msra.mxu0 %v2672
    %3108 = vmatprep.subr.mxu0 0.0
    %3109 = vmatpush1.msra.mxu0 %v2673
    %3110 = vmatprep.subr.mxu0 0.0
    %3111 = vmatpush1.msra.mxu0 0.0
    %3112 = vmatprep.subr.mxu0 0.0
    %3113 = vmatpush1.msra.mxu0 0.0
    %3114 = vmatprep.subr.mxu0 0.0
    %3115 = vmatpush1.msra.mxu0 0.0
    %3116 = vmatprep.subr.mxu0 0.0
    %3117 = vmatpush1.msra.mxu0 0.0
    %3118 = vmatprep.subr.mxu0 0.0
    %3119 = vmatpush1.msra.mxu0 0.0
    %3120 = vmatprep.subr.mxu0 0.0
    %3121 = vmatpush1.msra.mxu0 0.0
    %3122 = vmatprep.subr.mxu0 0.0
    %3123 = vmatpush1.msra.mxu0 0.0
    %3124 = vmatprep.subr.mxu0 0.0
    %3125 = vmatpush1.msra.mxu0 0.0
    %3126 = vmatprep.subr.mxu0 0.0
    %3127 = vmatpush1.msra.mxu0 0.0
    %3128 = vmatprep.subr.mxu0 0.0
    %3129 = vmatpush1.msra.mxu0 0.0
    %3130 = vmatprep.subr.mxu0 0.0
    %3131 = vmatpush1.msra.mxu0 0.0
    %3132 = vmatprep.subr.mxu0 0.0
    %3133 = vmatpush1.msra.mxu0 0.0
    %3134 = vmatprep.subr.mxu0 0.0
    %3135 = vmatpush1.msra.mxu0 0.0
    %3136 = vmatprep.subr.mxu0 0.0
    %3137 = vmatpush1.msra.mxu0 0.0
    %3138 = vmatprep.subr.mxu0 0.0
    %3139 = vmatpush1.msra.mxu0 0.0
    %3140 = vmatprep.subr.mxu0 0.0
    %3141 = vmatpush1.msra.mxu0 0.0
    %3142 = vmatprep.subr.mxu0 0.0
    %3143 = vmatpush1.msra.mxu0 0.0
    %3144 = vmatprep.subr.mxu0 0.0
    %3145 = vmatpush1.msra.mxu0 0.0
    %3146 = vmatprep.subr.mxu0 0.0
    %3147 = vmatpush1.msra.mxu0 0.0
    %3148 = vmatprep.subr.mxu0 0.0
    %3149 = vmatpush1.msra.mxu0 0.0
    %3150 = vmatprep.subr.mxu0 0.0
    %3151 = vmatpush1.msra.mxu0 0.0
    %3152 = vmatprep.subr.mxu0 0.0
    %3153 = vmatpush1.msra.mxu0 0.0
    %3154 = vmatprep.subr.mxu0 0.0
    %3155 = vmatpush1.msra.mxu0 0.0
    %3156 = vmatprep.subr.mxu0 0.0
    %3157 = vmatpush1.msra.mxu0 0.0
    %3158 = vmatprep.subr.mxu0 0.0
    %3159 = vmatpush1.msra.mxu0 0.0
    %3160 = vmatprep.subr.mxu0 0.0
    %3161 = vmatpush1.msra.mxu0 0.0
    %3162 = vmatprep.subr.mxu0 0.0
    %3163 = vmatpush1.msra.mxu0 0.0
    %3164 = vmatprep.subr.mxu0 0.0
    %3165 = vmatpush1.msra.mxu0 0.0
    %3166 = vmatprep.mubr.f32.mxu0 0.0
    %3167 = vmatmul.mubr.f32.gmra.mrb[0].mxu0 %v3100
    %v3168 = vpop.f32.mrb[0].mxu0
    %v3169 = vadd.f32 %v3098, %v3168
    %v3170 = vpop.f32.mrb[0].mxu0
    %3171 = vdwg.mxu0
    %v3172 = vadd.f32 %v2664, %v3169
    %v3173 = vld [vmem:[#allocation2 + $0x128] sm:$0x1]
    %v3174 = vld [vmem:[#allocation2 + $0x120] sm:$0x1]
    %v3175 = vsel %vm393, %v3172, 0.0
    %3176 = vadd.xlane.f32.xlu0 %v3175
    %v3177 = vpop.xlane.xlu0 %3176
    %v3178 = vmul.f32 %v3177, %v909
    %v3179 = vsub.f32 %v3172, %v3178
    %v3180 = vmul.f32 %v3179, %v3179
    %v3181 = vsel %vm393, %v3180, 0.0
    %3182 = vadd.xlane.f32.xlu0 %v3181
    %v3183 = vpop.xlane.xlu0 %3182
    %v3184 = vmul.f32 %v3183, %v909
    %v3185 = vadd.f32 %v3184, 1e-05
    %v3186 = vrsqrt.pop %v3185
    %v3187 = vmul.f32 %v3179, %v3186
    %v3188 = vlaneseq
    %v3189 = vshrl.u32 %v3188, 7
    %v3190 = vsub.s32 0, %v3189
    %v3191 = vrot.slane %v3173, %v3190
    %v3192 = vmul.f32 %v3187, %v3191
    %v3193 = vlaneseq
    %v3194 = vshrl.u32 %v3193, 7
    %v3195 = vsub.s32 0, %v3194
    %v3196 = vrot.slane %v3174, %v3195
    %v3197 = vadd.f32 %v3192, %v3196
    %v3198 = vld [vmem:[#allocation2 + $0xa8] sm:$0xff]
    %v3199 = vld [vmem:[#allocation2 + $0xb0] sm:$0xff]
    %v3200 = vld [vmem:[#allocation2 + $0xb8] sm:$0xff]
    %v3201 = vld [vmem:[#allocation2 + $0xc0] sm:$0xff]
    %v3202 = vld [vmem:[#allocation2 + $0xa0] sm:$0x1]
    %v3203 = vlaneseq
    %v3204 = vshrl.u32 %v3203, 7
    %v3205 = vsub.s32 0, %v3204
    %v3206 = vrot.slane %v3202, %v3205
    %v3208 = vsel %vm393, %v3197, 0
    %3210 = vmatprep.subr.mxu0 0.0
    %3211 = vmatpush1.msra.mxu0 %v3198
    %3212 = vmatprep.subr.mxu0 0.0
    %3213 = vmatpush1.msra.mxu0 %v3199
    %3214 = vmatprep.subr.mxu0 0.0
    %3215 = vmatpush1.msra.mxu0 %v3200
    %3216 = vmatprep.subr.mxu0 0.0
    %3217 = vmatpush1.msra.mxu0 %v3201
    %3218 = vmatprep.subr.mxu0 0.0
    %3219 = vmatpush1.msra.mxu0 0.0
    %3220 = vmatprep.subr.mxu0 0.0
    %3221 = vmatpush1.msra.mxu0 0.0
    %3222 = vmatprep.subr.mxu0 0.0
    %3223 = vmatpush1.msra.mxu0 0.0
    %3224 = vmatprep.subr.mxu0 0.0
    %3225 = vmatpush1.msra.mxu0 0.0
    %3226 = vmatprep.subr.mxu0 0.0
    %3227 = vmatpush1.msra.mxu0 0.0
    %3228 = vmatprep.subr.mxu0 0.0
    %3229 = vmatpush1.msra.mxu0 0.0
    %3230 = vmatprep.subr.mxu0 0.0
    %3231 = vmatpush1.msra.mxu0 0.0
    %3232 = vmatprep.subr.mxu0 0.0
    %3233 = vmatpush1.msra.mxu0 0.0
    %3234 = vmatprep.subr.mxu0 0.0
    %3235 = vmatpush1.msra.mxu0 0.0
    %3236 = vmatprep.subr.mxu0 0.0
    %3237 = vmatpush1.msra.mxu0 0.0
    %3238 = vmatprep.subr.mxu0 0.0
    %3239 = vmatpush1.msra.mxu0 0.0
    %3240 = vmatprep.subr.mxu0 0.0
    %3241 = vmatpush1.msra.mxu0 0.0
    %3242 = vmatprep.subr.mxu0 0.0
    %3243 = vmatpush1.msra.mxu0 0.0
    %3244 = vmatprep.subr.mxu0 0.0
    %3245 = vmatpush1.msra.mxu0 0.0
    %3246 = vmatprep.subr.mxu0 0.0
    %3247 = vmatpush1.msra.mxu0 0.0
    %3248 = vmatprep.subr.mxu0 0.0
    %3249 = vmatpush1.msra.mxu0 0.0
    %3250 = vmatprep.subr.mxu0 0.0
    %3251 = vmatpush1.msra.mxu0 0.0
    %3252 = vmatprep.subr.mxu0 0.0
    %3253 = vmatpush1.msra.mxu0 0.0
    %3254 = vmatprep.subr.mxu0 0.0
    %3255 = vmatpush1.msra.mxu0 0.0
    %3256 = vmatprep.subr.mxu0 0.0
    %3257 = vmatpush1.msra.mxu0 0.0
    %3258 = vmatprep.subr.mxu0 0.0
    %3259 = vmatpush1.msra.mxu0 0.0
    %3260 = vmatprep.subr.mxu0 0.0
    %3261 = vmatpush1.msra.mxu0 0.0
    %3262 = vmatprep.subr.mxu0 0.0
    %3263 = vmatpush1.msra.mxu0 0.0
    %3264 = vmatprep.subr.mxu0 0.0
    %3265 = vmatpush1.msra.mxu0 0.0
    %3266 = vmatprep.subr.mxu0 0.0
    %3267 = vmatpush1.msra.mxu0 0.0
    %3268 = vmatprep.subr.mxu0 0.0
    %3269 = vmatpush1.msra.mxu0 0.0
    %3270 = vmatprep.subr.mxu0 0.0
    %3271 = vmatpush1.msra.mxu0 0.0
    %3272 = vmatprep.subr.mxu0 0.0
    %3273 = vmatpush1.msra.mxu0 0.0
    %3274 = vmatprep.mubr.f32.mxu0 0.0
    %3275 = vmatmul.mubr.f32.gmra.mrb[0].mxu0 %v3208
    %v3276 = vpop.f32.mrb[0].mxu0
    %v3277 = vadd.f32 %v3206, %v3276
    %v3278 = vpop.f32.mrb[0].mxu0
    %3279 = vdwg.mxu0
    %v3280 = vmax.f32 %v3277, 0.0
    %v3281 = vld [vmem:[#allocation2 + $0xd0] sm:$0xff]
    %v3282 = vld [vmem:[#allocation2 + $0xd8] sm:$0xff]
    %v3283 = vld [vmem:[#allocation2 + $0xe0] sm:$0xff]
    %v3284 = vld [vmem:[#allocation2 + $0xe8] sm:$0xff]
    %v3285 = vld [vmem:[#allocation2 + $0xf0] sm:$0xff]
    %v3286 = vld [vmem:[#allocation2 + $0xf8] sm:$0xff]
    %v3287 = vld [vmem:[#allocation2 + $0x100] sm:$0xff]
    %v3288 = vld [vmem:[#allocation2 + $0x108] sm:$0xff]
    %v3289 = vld [vmem:[#allocation2 + $0xc8] sm:$0x1]
    %v3290 = vlaneseq
    %v3291 = vshrl.u32 %v3290, 7
    %v3292 = vsub.s32 0, %v3291
    %v3293 = vrot.slane %v3289, %v3292
    %v3295 = vsel %vm1026, %v3280, 0
    %3297 = vmatprep.subr.mxu0 0.0
    %3298 = vmatpush1.msra.mxu0 %v3281
    %3299 = vmatprep.subr.mxu0 0.0
    %3300 = vmatpush1.msra.mxu0 %v3282
    %3301 = vmatprep.subr.mxu0 0.0
    %3302 = vmatpush1.msra.mxu0 %v3283
    %3303 = vmatprep.subr.mxu0 0.0
    %3304 = vmatpush1.msra.mxu0 %v3284
    %3305 = vmatprep.subr.mxu0 0.0
    %3306 = vmatpush1.msra.mxu0 %v3285
    %3307 = vmatprep.subr.mxu0 0.0
    %3308 = vmatpush1.msra.mxu0 %v3286
    %3309 = vmatprep.subr.mxu0 0.0
    %3310 = vmatpush1.msra.mxu0 %v3287
    %3311 = vmatprep.subr.mxu0 0.0
    %3312 = vmatpush1.msra.mxu0 %v3288
    %3313 = vmatprep.subr.mxu0 0.0
    %3314 = vmatpush1.msra.mxu0 0.0
    %3315 = vmatprep.subr.mxu0 0.0
    %3316 = vmatpush1.msra.mxu0 0.0
    %3317 = vmatprep.subr.mxu0 0.0
    %3318 = vmatpush1.msra.mxu0 0.0
    %3319 = vmatprep.subr.mxu0 0.0
    %3320 = vmatpush1.msra.mxu0 0.0
    %3321 = vmatprep.subr.mxu0 0.0
    %3322 = vmatpush1.msra.mxu0 0.0
    %3323 = vmatprep.subr.mxu0 0.0
    %3324 = vmatpush1.msra.mxu0 0.0
    %3325 = vmatprep.subr.mxu0 0.0
    %3326 = vmatpush1.msra.mxu0 0.0
    %3327 = vmatprep.subr.mxu0 0.0
    %3328 = vmatpush1.msra.mxu0 0.0
    %3329 = vmatprep.subr.mxu0 0.0
    %3330 = vmatpush1.msra.mxu0 0.0
    %3331 = vmatprep.subr.mxu0 0.0
    %3332 = vmatpush1.msra.mxu0 0.0
    %3333 = vmatprep.subr.mxu0 0.0
    %3334 = vmatpush1.msra.mxu0 0.0
    %3335 = vmatprep.subr.mxu0 0.0
    %3336 = vmatpush1.msra.mxu0 0.0
    %3337 = vmatprep.subr.mxu0 0.0
    %3338 = vmatpush1.msra.mxu0 0.0
    %3339 = vmatprep.subr.mxu0 0.0
    %3340 = vmatpush1.msra.mxu0 0.0
    %3341 = vmatprep.subr.mxu0 0.0
    %3342 = vmatpush1.msra.mxu0 0.0
    %3343 = vmatprep.subr.mxu0 0.0
    %3344 = vmatpush1.msra.mxu0 0.0
    %3345 = vmatprep.subr.mxu0 0.0
    %3346 = vmatpush1.msra.mxu0 0.0
    %3347 = vmatprep.subr.mxu0 0.0
    %3348 = vmatpush1.msra.mxu0 0.0
    %3349 = vmatprep.subr.mxu0 0.0
    %3350 = vmatpush1.msra.mxu0 0.0
    %3351 = vmatprep.subr.mxu0 0.0
    %3352 = vmatpush1.msra.mxu0 0.0
    %3353 = vmatprep.subr.mxu0 0.0
    %3354 = vmatpush1.msra.mxu0 0.0
    %3355 = vmatprep.subr.mxu0 0.0
    %3356 = vmatpush1.msra.mxu0 0.0
    %3357 = vmatprep.subr.mxu0 0.0
    %3358 = vmatpush1.msra.mxu0 0.0
    %3359 = vmatprep.subr.mxu0 0.0
    %3360 = vmatpush1.msra.mxu0 0.0
    %3361 = vmatprep.mubr.f32.mxu0 0.0
    %3362 = vmatmul.mubr.f32.gmra.mrb[0].mxu0 %v3295
    %v3363 = vpop.f32.mrb[0].mxu0
    %v3364 = vadd.f32 %v3293, %v3363
    %v3365 = vpop.f32.mrb[0].mxu0
    %3366 = vdwg.mxu0
    %v3367 = vadd.f32 %v3197, %v3364
    %v3368 = vld [vmem:[#allocation2 + $0x138] sm:$0x1]
    %v3369 = vld [vmem:[#allocation2 + $0x130] sm:$0x1]
    %v3370 = vsel %vm393, %v3367, 0.0
    %3371 = vadd.xlane.f32.xlu0 %v3370
    %v3372 = vpop.xlane.xlu0 %3371
    %v3373 = vmul.f32 %v3372, %v909
    %v3374 = vsub.f32 %v3367, %v3373
    %v3375 = vmul.f32 %v3374, %v3374
    %v3376 = vsel %vm393, %v3375, 0.0
    %3377 = vadd.xlane.f32.xlu0 %v3376
    %v3378 = vpop.xlane.xlu0 %3377
    %v3379 = vmul.f32 %v3378, %v909
    %v3380 = vadd.f32 %v3379, 1e-05
    %v3381 = vrsqrt.pop %v3380
    %v3382 = vmul.f32 %v3374, %v3381
    %v3383 = vlaneseq
    %v3384 = vshrl.u32 %v3383, 7
    %v3385 = vsub.s32 0, %v3384
    %v3386 = vrot.slane %v3368, %v3385
    %v3387 = vmul.f32 %v3382, %v3386
    %v3388 = vlaneseq
    %v3389 = vshrl.u32 %v3388, 7
    %v3390 = vsub.s32 0, %v3389
    %v3391 = vrot.slane %v3369, %v3390
    %v3392 = vadd.f32 %v3387, %v3391
    %v3393 = vld [vmem:[#allocation2 + $0x198] sm:$0x1]
    %v3394 = vld [vmem:[#allocation2 + $0x190] sm:$0x1]
    %v3395 = vsel %vm393, %v3392, 0.0
    %3396 = vadd.xlane.f32.xlu0 %v3395
    %v3397 = vpop.xlane.xlu0 %3396
    %v3398 = vmul.f32 %v3397, %v909
    %v3399 = vsub.f32 %v3392, %v3398
    %v3400 = vmul.f32 %v3399, %v3399
    %v3401 = vsel %vm393, %v3400, 0.0
    %3402 = vadd.xlane.f32.xlu0 %v3401
    %v3403 = vpop.xlane.xlu0 %3402
    %v3404 = vmul.f32 %v3403, %v909
    %v3405 = vadd.f32 %v3404, 1e-05
    %v3406 = vrsqrt.pop %v3405
    %v3407 = vmul.f32 %v3399, %v3406
    %v3408 = vlaneseq
    %v3409 = vshrl.u32 %v3408, 7
    %v3410 = vsub.s32 0, %v3409
    %v3411 = vrot.slane %v3393, %v3410
    %v3412 = vmul.f32 %v3407, %v3411
    %v3413 = vlaneseq
    %v3414 = vshrl.u32 %v3413, 7
    %v3415 = vsub.s32 0, %v3414
    %v3416 = vrot.slane %v3394, %v3415
    %v3417 = vadd.f32 %v3412, %v3416
    %v3418 = vld [vmem:[#allocation2 + $0x390] sm:$0xff]
    %v3419 = vld [vmem:[#allocation2 + $0x398] sm:$0xff]
    %v3420 = vld [vmem:[#allocation2 + $0x3a0] sm:$0xff]
    %v3421 = vld [vmem:[#allocation2 + $0x3a8] sm:$0xff]
    %v3422 = vld [vmem:[#allocation2 + $0x388] sm:$0x1]
    %v3423 = vlaneseq
    %v3424 = vshrl.u32 %v3423, 7
    %v3425 = vsub.s32 0, %v3424
    %v3426 = vrot.slane %v3422, %v3425
    %v3428 = vrot.slane %v3417, 4
    %v3429 = vsel %vm393, %v3428, 0
    %3431 = vmatprep.subr.mxu0 0.0
    %3432 = vmatpush1.msra.mxu0 %v3418
    %3433 = vmatprep.subr.mxu0 0.0
    %3434 = vmatpush1.msra.mxu0 %v3419
    %3435 = vmatprep.subr.mxu0 0.0
    %3436 = vmatpush1.msra.mxu0 %v3420
    %3437 = vmatprep.subr.mxu0 0.0
    %3438 = vmatpush1.msra.mxu0 %v3421
    %3439 = vmatprep.subr.mxu0 0.0
    %3440 = vmatpush1.msra.mxu0 0.0
    %3441 = vmatprep.subr.mxu0 0.0
    %3442 = vmatpush1.msra.mxu0 0.0
    %3443 = vmatprep.subr.mxu0 0.0
    %3444 = vmatpush1.msra.mxu0 0.0
    %3445 = vmatprep.subr.mxu0 0.0
    %3446 = vmatpush1.msra.mxu0 0.0
    %3447 = vmatprep.subr.mxu0 0.0
    %3448 = vmatpush1.msra.mxu0 0.0
    %3449 = vmatprep.subr.mxu0 0.0
    %3450 = vmatpush1.msra.mxu0 0.0
    %3451 = vmatprep.subr.mxu0 0.0
    %3452 = vmatpush1.msra.mxu0 0.0
    %3453 = vmatprep.subr.mxu0 0.0
    %3454 = vmatpush1.msra.mxu0 0.0
    %3455 = vmatprep.subr.mxu0 0.0
    %3456 = vmatpush1.msra.mxu0 0.0
    %3457 = vmatprep.subr.mxu0 0.0
    %3458 = vmatpush1.msra.mxu0 0.0
    %3459 = vmatprep.subr.mxu0 0.0
    %3460 = vmatpush1.msra.mxu0 0.0
    %3461 = vmatprep.subr.mxu0 0.0
    %3462 = vmatpush1.msra.mxu0 0.0
    %3463 = vmatprep.subr.mxu0 0.0
    %3464 = vmatpush1.msra.mxu0 0.0
    %3465 = vmatprep.subr.mxu0 0.0
    %3466 = vmatpush1.msra.mxu0 0.0
    %3467 = vmatprep.subr.mxu0 0.0
    %3468 = vmatpush1.msra.mxu0 0.0
    %3469 = vmatprep.subr.mxu0 0.0
    %3470 = vmatpush1.msra.mxu0 0.0
    %3471 = vmatprep.subr.mxu0 0.0
    %3472 = vmatpush1.msra.mxu0 0.0
    %3473 = vmatprep.subr.mxu0 0.0
    %3474 = vmatpush1.msra.mxu0 0.0
    %3475 = vmatprep.subr.mxu0 0.0
    %3476 = vmatpush1.msra.mxu0 0.0
    %3477 = vmatprep.subr.mxu0 0.0
    %3478 = vmatpush1.msra.mxu0 0.0
    %3479 = vmatprep.subr.mxu0 0.0
    %3480 = vmatpush1.msra.mxu0 0.0
    %3481 = vmatprep.subr.mxu0 0.0
    %3482 = vmatpush1.msra.mxu0 0.0
    %3483 = vmatprep.subr.mxu0 0.0
    %3484 = vmatpush1.msra.mxu0 0.0
    %3485 = vmatprep.subr.mxu0 0.0
    %3486 = vmatpush1.msra.mxu0 0.0
    %3487 = vmatprep.subr.mxu0 0.0
    %3488 = vmatpush1.msra.mxu0 0.0
    %3489 = vmatprep.subr.mxu0 0.0
    %3490 = vmatpush1.msra.mxu0 0.0
    %3491 = vmatprep.subr.mxu0 0.0
    %3492 = vmatpush1.msra.mxu0 0.0
    %3493 = vmatprep.subr.mxu0 0.0
    %3494 = vmatpush1.msra.mxu0 0.0
    %3495 = vmatprep.mubr.f32.mxu0 0.0
    %3496 = vmatmul.mubr.f32.gmra.mrb[0].mxu0 %v3429
    %v3497 = vpop.f32.mrb[0].mxu0
    %v3498 = vadd.f32 %v3426, %v3497
    %v3499 = vpop.f32.mrb[0].mxu0
    %3500 = vdwg.mxu0
    %v3501 = vld [vmem:[%s0 + $0x8] sm:$0xff]
    %v3502 = vld [vmem:[%s1 + $0x8] sm:$0xff]
    %v3503 = vld [vmem:[%s2 + $0x8] sm:$0xff]
    %v3504 = vld [vmem:[%s3 + $0x8] sm:$0xff]
    %v3506 = vsel %vm40, %v3501, 0
    %3508 = vmatprep.subr.mxu0 0.0
    %3509 = vmatpush1.msra.mxu0 %v46
    %3510 = vmatprep.subr.mxu0 0.0
    %3511 = vmatpush1.msra.mxu0 0.0
    %3512 = vmatprep.subr.mxu0 0.0
    %3513 = vmatpush1.msra.mxu0 0.0
    %3514 = vmatprep.subr.mxu0 0.0
    %3515 = vmatpush1.msra.mxu0 0.0
    %3516 = vmatprep.subr.mxu0 0.0
    %3517 = vmatpush1.msra.mxu0 0.0
    %3518 = vmatprep.subr.mxu0 0.0
    %3519 = vmatpush1.msra.mxu0 0.0
    %3520 = vmatprep.subr.mxu0 0.0
    %3521 = vmatpush1.msra.mxu0 0.0
    %3522 = vmatprep.subr.mxu0 0.0
    %3523 = vmatpush1.msra.mxu0 0.0
    %3524 = vmatprep.subr.mxu0 0.0
    %3525 = vmatpush1.msra.mxu0 0.0
    %3526 = vmatprep.subr.mxu0 0.0
    %3527 = vmatpush1.msra.mxu0 0.0
    %3528 = vmatprep.subr.mxu0 0.0
    %3529 = vmatpush1.msra.mxu0 0.0
    %3530 = vmatprep.subr.mxu0 0.0
    %3531 = vmatpush1.msra.mxu0 0.0
    %3532 = vmatprep.subr.mxu0 0.0
    %3533 = vmatpush1.msra.mxu0 0.0
    %3534 = vmatprep.subr.mxu0 0.0
    %3535 = vmatpush1.msra.mxu0 0.0
    %3536 = vmatprep.subr.mxu0 0.0
    %3537 = vmatpush1.msra.mxu0 0.0
    %3538 = vmatprep.subr.mxu0 0.0
    %3539 = vmatpush1.msra.mxu0 0.0
    %3540 = vmatprep.subr.mxu0 0.0
    %3541 = vmatpush1.msra.mxu0 0.0
    %3542 = vmatprep.subr.mxu0 0.0
    %3543 = vmatpush1.msra.mxu0 0.0
    %3544 = vmatprep.subr.mxu0 0.0
    %3545 = vmatpush1.msra.mxu0 0.0
    %3546 = vmatprep.subr.mxu0 0.0
    %3547 = vmatpush1.msra.mxu0 0.0
    %3548 = vmatprep.subr.mxu0 0.0
    %3549 = vmatpush1.msra.mxu0 0.0
    %3550 = vmatprep.subr.mxu0 0.0
    %3551 = vmatpush1.msra.mxu0 0.0
    %3552 = vmatprep.subr.mxu0 0.0
    %3553 = vmatpush1.msra.mxu0 0.0
    %3554 = vmatprep.subr.mxu0 0.0
    %3555 = vmatpush1.msra.mxu0 0.0
    %3556 = vmatprep.subr.mxu0 0.0
    %3557 = vmatpush1.msra.mxu0 0.0
    %3558 = vmatprep.subr.mxu0 0.0
    %3559 = vmatpush1.msra.mxu0 0.0
    %3560 = vmatprep.subr.mxu0 0.0
    %3561 = vmatpush1.msra.mxu0 0.0
    %3562 = vmatprep.subr.mxu0 0.0
    %3563 = vmatpush1.msra.mxu0 0.0
    %3564 = vmatprep.subr.mxu0 0.0
    %3565 = vmatpush1.msra.mxu0 0.0
    %3566 = vmatprep.subr.mxu0 0.0
    %3567 = vmatpush1.msra.mxu0 0.0
    %3568 = vmatprep.subr.mxu0 0.0
    %3569 = vmatpush1.msra.mxu0 0.0
    %3570 = vmatprep.subr.mxu0 0.0
    %3571 = vmatpush1.msra.mxu0 0.0
    %3572 = vmatprep.mubr.f32.mxu0 0.0
    %3573 = vmatmul.mubr.f32.gmra.mrb[0].mxu0 %v3506
    %v3574 = vpop.f32.mrb[0].mxu0
    %v3575 = vadd.f32 0.0, %v3574
    %v3576 = vpop.f32.mrb[0].mxu0
    %3577 = vdwg.mxu0
    %v3578 = vrot.slane %v3575, 7
    %3580 = vrot.lane.b32.xlu0 %v3575, 96
    %v3581 = vpop.permute.xlu0 %3580
    %v3583 = vadd.f32 %v3578, %v3581
    %3584 = vrot.lane.b32.xlu0 %v3575, 64
    %v3585 = vpop.permute.xlu0 %3584
    %v3587 = vrot.slane %v3585, 1
    %v3588 = vadd.f32 %v3583, %v3587
    %v3590 = vsel %vm130, %v3502, 0
    %3592 = vmatprep.subr.mxu0 0.0
    %3593 = vmatpush1.msra.mxu0 %v136
    %3594 = vmatprep.subr.mxu0 0.0
    %3595 = vmatpush1.msra.mxu0 0.0
    %3596 = vmatprep.subr.mxu0 0.0
    %3597 = vmatpush1.msra.mxu0 0.0
    %3598 = vmatprep.subr.mxu0 0.0
    %3599 = vmatpush1.msra.mxu0 0.0
    %3600 = vmatprep.subr.mxu0 0.0
    %3601 = vmatpush1.msra.mxu0 0.0
    %3602 = vmatprep.subr.mxu0 0.0
    %3603 = vmatpush1.msra.mxu0 0.0
    %3604 = vmatprep.subr.mxu0 0.0
    %3605 = vmatpush1.msra.mxu0 0.0
    %3606 = vmatprep.subr.mxu0 0.0
    %3607 = vmatpush1.msra.mxu0 0.0
    %3608 = vmatprep.subr.mxu0 0.0
    %3609 = vmatpush1.msra.mxu0 0.0
    %3610 = vmatprep.subr.mxu0 0.0
    %3611 = vmatpush1.msra.mxu0 0.0
    %3612 = vmatprep.subr.mxu0 0.0
    %3613 = vmatpush1.msra.mxu0 0.0
    %3614 = vmatprep.subr.mxu0 0.0
    %3615 = vmatpush1.msra.mxu0 0.0
    %3616 = vmatprep.subr.mxu0 0.0
    %3617 = vmatpush1.msra.mxu0 0.0
    %3618 = vmatprep.subr.mxu0 0.0
    %3619 = vmatpush1.msra.mxu0 0.0
    %3620 = vmatprep.subr.mxu0 0.0
    %3621 = vmatpush1.msra.mxu0 0.0
    %3622 = vmatprep.subr.mxu0 0.0
    %3623 = vmatpush1.msra.mxu0 0.0
    %3624 = vmatprep.subr.mxu0 0.0
    %3625 = vmatpush1.msra.mxu0 0.0
    %3626 = vmatprep.subr.mxu0 0.0
    %3627 = vmatpush1.msra.mxu0 0.0
    %3628 = vmatprep.subr.mxu0 0.0
    %3629 = vmatpush1.msra.mxu0 0.0
    %3630 = vmatprep.subr.mxu0 0.0
    %3631 = vmatpush1.msra.mxu0 0.0
    %3632 = vmatprep.subr.mxu0 0.0
    %3633 = vmatpush1.msra.mxu0 0.0
    %3634 = vmatprep.subr.mxu0 0.0
    %3635 = vmatpush1.msra.mxu0 0.0
    %3636 = vmatprep.subr.mxu0 0.0
    %3637 = vmatpush1.msra.mxu0 0.0
    %3638 = vmatprep.subr.mxu0 0.0
    %3639 = vmatpush1.msra.mxu0 0.0
    %3640 = vmatprep.subr.mxu0 0.0
    %3641 = vmatpush1.msra.mxu0 0.0
    %3642 = vmatprep.subr.mxu0 0.0
    %3643 = vmatpush1.msra.mxu0 0.0
    %3644 = vmatprep.subr.mxu0 0.0
    %3645 = vmatpush1.msra.mxu0 0.0
    %3646 = vmatprep.subr.mxu0 0.0
    %3647 = vmatpush1.msra.mxu0 0.0
    %3648 = vmatprep.subr.mxu0 0.0
    %3649 = vmatpush1.msra.mxu0 0.0
    %3650 = vmatprep.subr.mxu0 0.0
    %3651 = vmatpush1.msra.mxu0 0.0
    %3652 = vmatprep.subr.mxu0 0.0
    %3653 = vmatpush1.msra.mxu0 0.0
    %3654 = vmatprep.subr.mxu0 0.0
    %3655 = vmatpush1.msra.mxu0 0.0
    %3656 = vmatprep.mubr.f32.mxu0 0.0
    %3657 = vmatmul.mubr.f32.gmra.mrb[0].mxu0 %v3590
    %v3658 = vpop.f32.mrb[0].mxu0
    %v3659 = vadd.f32 0.0, %v3658
    %v3660 = vpop.f32.mrb[0].mxu0
    %3661 = vdwg.mxu0
    %v3662 = vadd.f32 %v3588, %v3659
    %v3663 = vadd.f32 %v3662, %v209
    %v3665 = vsel %vm40, %v3503, 0
    %3667 = vmatprep.subr.mxu0 0.0
    %3668 = vmatpush1.msra.mxu0 %v216
    %3669 = vmatprep.subr.mxu0 0.0
    %3670 = vmatpush1.msra.mxu0 0.0
    %3671 = vmatprep.subr.mxu0 0.0
    %3672 = vmatpush1.msra.mxu0 0.0
    %3673 = vmatprep.subr.mxu0 0.0
    %3674 = vmatpush1.msra.mxu0 0.0
    %3675 = vmatprep.subr.mxu0 0.0
    %3676 = vmatpush1.msra.mxu0 0.0
    %3677 = vmatprep.subr.mxu0 0.0
    %3678 = vmatpush1.msra.mxu0 0.0
    %3679 = vmatprep.subr.mxu0 0.0
    %3680 = vmatpush1.msra.mxu0 0.0
    %3681 = vmatprep.subr.mxu0 0.0
    %3682 = vmatpush1.msra.mxu0 0.0
    %3683 = vmatprep.subr.mxu0 0.0
    %3684 = vmatpush1.msra.mxu0 0.0
    %3685 = vmatprep.subr.mxu0 0.0
    %3686 = vmatpush1.msra.mxu0 0.0
    %3687 = vmatprep.subr.mxu0 0.0
    %3688 = vmatpush1.msra.mxu0 0.0
    %3689 = vmatprep.subr.mxu0 0.0
    %3690 = vmatpush1.msra.mxu0 0.0
    %3691 = vmatprep.subr.mxu0 0.0
    %3692 = vmatpush1.msra.mxu0 0.0
    %3693 = vmatprep.subr.mxu0 0.0
    %3694 = vmatpush1.msra.mxu0 0.0
    %3695 = vmatprep.subr.mxu0 0.0
    %3696 = vmatpush1.msra.mxu0 0.0
    %3697 = vmatprep.subr.mxu0 0.0
    %3698 = vmatpush1.msra.mxu0 0.0
    %3699 = vmatprep.subr.mxu0 0.0
    %3700 = vmatpush1.msra.mxu0 0.0
    %3701 = vmatprep.subr.mxu0 0.0
    %3702 = vmatpush1.msra.mxu0 0.0
    %3703 = vmatprep.subr.mxu0 0.0
    %3704 = vmatpush1.msra.mxu0 0.0
    %3705 = vmatprep.subr.mxu0 0.0
    %3706 = vmatpush1.msra.mxu0 0.0
    %3707 = vmatprep.subr.mxu0 0.0
    %3708 = vmatpush1.msra.mxu0 0.0
    %3709 = vmatprep.subr.mxu0 0.0
    %3710 = vmatpush1.msra.mxu0 0.0
    %3711 = vmatprep.subr.mxu0 0.0
    %3712 = vmatpush1.msra.mxu0 0.0
    %3713 = vmatprep.subr.mxu0 0.0
    %3714 = vmatpush1.msra.mxu0 0.0
    %3715 = vmatprep.subr.mxu0 0.0
    %3716 = vmatpush1.msra.mxu0 0.0
    %3717 = vmatprep.subr.mxu0 0.0
    %3718 = vmatpush1.msra.mxu0 0.0
    %3719 = vmatprep.subr.mxu0 0.0
    %3720 = vmatpush1.msra.mxu0 0.0
    %3721 = vmatprep.subr.mxu0 0.0
    %3722 = vmatpush1.msra.mxu0 0.0
    %3723 = vmatprep.subr.mxu0 0.0
    %3724 = vmatpush1.msra.mxu0 0.0
    %3725 = vmatprep.subr.mxu0 0.0
    %3726 = vmatpush1.msra.mxu0 0.0
    %3727 = vmatprep.subr.mxu0 0.0
    %3728 = vmatpush1.msra.mxu0 0.0
    %3729 = vmatprep.subr.mxu0 0.0
    %3730 = vmatpush1.msra.mxu0 0.0
    %3731 = vmatprep.mubr.f32.mxu0 0.0
    %3732 = vmatmul.mubr.f32.gmra.mrb[0].mxu0 %v3665
    %v3733 = vpop.f32.mrb[0].mxu0
    %v3734 = vadd.f32 0.0, %v3733
    %v3735 = vpop.f32.mrb[0].mxu0
    %3736 = vdwg.mxu0
    %v3737 = vrot.slane %v3734, 7
    %3739 = vrot.lane.b32.xlu0 %v3734, 96
    %v3740 = vpop.permute.xlu0 %3739
    %v3742 = vadd.f32 %v3737, %v3740
    %3743 = vrot.lane.b32.xlu0 %v3734, 64
    %v3744 = vpop.permute.xlu0 %3743
    %v3746 = vrot.slane %v3744, 1
    %v3747 = vadd.f32 %v3742, %v3746
    %v3749 = vsel %vm130, %v3504, 0
    %3751 = vmatprep.subr.mxu0 0.0
    %3752 = vmatpush1.msra.mxu0 %v304
    %3753 = vmatprep.subr.mxu0 0.0
    %3754 = vmatpush1.msra.mxu0 0.0
    %3755 = vmatprep.subr.mxu0 0.0
    %3756 = vmatpush1.msra.mxu0 0.0
    %3757 = vmatprep.subr.mxu0 0.0
    %3758 = vmatpush1.msra.mxu0 0.0
    %3759 = vmatprep.subr.mxu0 0.0
    %3760 = vmatpush1.msra.mxu0 0.0
    %3761 = vmatprep.subr.mxu0 0.0
    %3762 = vmatpush1.msra.mxu0 0.0
    %3763 = vmatprep.subr.mxu0 0.0
    %3764 = vmatpush1.msra.mxu0 0.0
    %3765 = vmatprep.subr.mxu0 0.0
    %3766 = vmatpush1.msra.mxu0 0.0
    %3767 = vmatprep.subr.mxu0 0.0
    %3768 = vmatpush1.msra.mxu0 0.0
    %3769 = vmatprep.subr.mxu0 0.0
    %3770 = vmatpush1.msra.mxu0 0.0
    %3771 = vmatprep.subr.mxu0 0.0
    %3772 = vmatpush1.msra.mxu0 0.0
    %3773 = vmatprep.subr.mxu0 0.0
    %3774 = vmatpush1.msra.mxu0 0.0
    %3775 = vmatprep.subr.mxu0 0.0
    %3776 = vmatpush1.msra.mxu0 0.0
    %3777 = vmatprep.subr.mxu0 0.0
    %3778 = vmatpush1.msra.mxu0 0.0
    %3779 = vmatprep.subr.mxu0 0.0
    %3780 = vmatpush1.msra.mxu0 0.0
    %3781 = vmatprep.subr.mxu0 0.0
    %3782 = vmatpush1.msra.mxu0 0.0
    %3783 = vmatprep.subr.mxu0 0.0
    %3784 = vmatpush1.msra.mxu0 0.0
    %3785 = vmatprep.subr.mxu0 0.0
    %3786 = vmatpush1.msra.mxu0 0.0
    %3787 = vmatprep.subr.mxu0 0.0
    %3788 = vmatpush1.msra.mxu0 0.0
    %3789 = vmatprep.subr.mxu0 0.0
    %3790 = vmatpush1.msra.mxu0 0.0
    %3791 = vmatprep.subr.mxu0 0.0
    %3792 = vmatpush1.msra.mxu0 0.0
    %3793 = vmatprep.subr.mxu0 0.0
    %3794 = vmatpush1.msra.mxu0 0.0
    %3795 = vmatprep.subr.mxu0 0.0
    %3796 = vmatpush1.msra.mxu0 0.0
    %3797 = vmatprep.subr.mxu0 0.0
    %3798 = vmatpush1.msra.mxu0 0.0
    %3799 = vmatprep.subr.mxu0 0.0
    %3800 = vmatpush1.msra.mxu0 0.0
    %3801 = vmatprep.subr.mxu0 0.0
    %3802 = vmatpush1.msra.mxu0 0.0
    %3803 = vmatprep.subr.mxu0 0.0
    %3804 = vmatpush1.msra.mxu0 0.0
    %3805 = vmatprep.subr.mxu0 0.0
    %3806 = vmatpush1.msra.mxu0 0.0
    %3807 = vmatprep.subr.mxu0 0.0
    %3808 = vmatpush1.msra.mxu0 0.0
    %3809 = vmatprep.subr.mxu0 0.0
    %3810 = vmatpush1.msra.mxu0 0.0
    %3811 = vmatprep.subr.mxu0 0.0
    %3812 = vmatpush1.msra.mxu0 0.0
    %3813 = vmatprep.subr.mxu0 0.0
    %3814 = vmatpush1.msra.mxu0 0.0
    %3815 = vmatprep.mubr.f32.mxu0 0.0
    %3816 = vmatmul.mubr.f32.gmra.mrb[0].mxu0 %v3749
    %v3817 = vpop.f32.mrb[0].mxu0
    %v3818 = vadd.f32 0.0, %v3817
    %v3819 = vpop.f32.mrb[0].mxu0
    %3820 = vdwg.mxu0
    %v3821 = vadd.f32 %v3747, %v3818
    %v3822 = vadd.f32 %v3821, %v377
    %v3824 = vsel %vm393, %v3663, 0
    %3826 = vmatprep.subr.mxu0 0.0
    %3827 = vmatpush1.msra.mxu0 %v379
    %3828 = vmatprep.subr.mxu0 0.0
    %3829 = vmatpush1.msra.mxu0 %v380
    %3830 = vmatprep.subr.mxu0 0.0
    %3831 = vmatpush1.msra.mxu0 %v381
    %3832 = vmatprep.subr.mxu0 0.0
    %3833 = vmatpush1.msra.mxu0 %v382
    %3834 = vmatprep.subr.mxu0 0.0
    %3835 = vmatpush1.msra.mxu0 0.0
    %3836 = vmatprep.subr.mxu0 0.0
    %3837 = vmatpush1.msra.mxu0 0.0
    %3838 = vmatprep.subr.mxu0 0.0
    %3839 = vmatpush1.msra.mxu0 0.0
    %3840 = vmatprep.subr.mxu0 0.0
    %3841 = vmatpush1.msra.mxu0 0.0
    %3842 = vmatprep.subr.mxu0 0.0
    %3843 = vmatpush1.msra.mxu0 0.0
    %3844 = vmatprep.subr.mxu0 0.0
    %3845 = vmatpush1.msra.mxu0 0.0
    %3846 = vmatprep.subr.mxu0 0.0
    %3847 = vmatpush1.msra.mxu0 0.0
    %3848 = vmatprep.subr.mxu0 0.0
    %3849 = vmatpush1.msra.mxu0 0.0
    %3850 = vmatprep.subr.mxu0 0.0
    %3851 = vmatpush1.msra.mxu0 0.0
    %3852 = vmatprep.subr.mxu0 0.0
    %3853 = vmatpush1.msra.mxu0 0.0
    %3854 = vmatprep.subr.mxu0 0.0
    %3855 = vmatpush1.msra.mxu0 0.0
    %3856 = vmatprep.subr.mxu0 0.0
    %3857 = vmatpush1.msra.mxu0 0.0
    %3858 = vmatprep.subr.mxu0 0.0
    %3859 = vmatpush1.msra.mxu0 0.0
    %3860 = vmatprep.subr.mxu0 0.0
    %3861 = vmatpush1.msra.mxu0 0.0
    %3862 = vmatprep.subr.mxu0 0.0
    %3863 = vmatpush1.msra.mxu0 0.0
    %3864 = vmatprep.subr.mxu0 0.0
    %3865 = vmatpush1.msra.mxu0 0.0
    %3866 = vmatprep.subr.mxu0 0.0
    %3867 = vmatpush1.msra.mxu0 0.0
    %3868 = vmatprep.subr.mxu0 0.0
    %3869 = vmatpush1.msra.mxu0 0.0
    %3870 = vmatprep.subr.mxu0 0.0
    %3871 = vmatpush1.msra.mxu0 0.0
    %3872 = vmatprep.subr.mxu0 0.0
    %3873 = vmatpush1.msra.mxu0 0.0
    %3874 = vmatprep.subr.mxu0 0.0
    %3875 = vmatpush1.msra.mxu0 0.0
    %3876 = vmatprep.subr.mxu0 0.0
    %3877 = vmatpush1.msra.mxu0 0.0
    %3878 = vmatprep.subr.mxu0 0.0
    %3879 = vmatpush1.msra.mxu0 0.0
    %3880 = vmatprep.subr.mxu0 0.0
    %3881 = vmatpush1.msra.mxu0 0.0
    %3882 = vmatprep.subr.mxu0 0.0
    %3883 = vmatpush1.msra.mxu0 0.0
    %3884 = vmatprep.subr.mxu0 0.0
    %3885 = vmatpush1.msra.mxu0 0.0
    %3886 = vmatprep.subr.mxu0 0.0
    %3887 = vmatpush1.msra.mxu0 0.0
    %3888 = vmatprep.subr.mxu0 0.0
    %3889 = vmatpush1.msra.mxu0 0.0
    %3890 = vmatprep.mubr.f32.mxu0 0.0
    %3891 = vmatmul.mubr.f32.gmra.mrb[0].mxu0 %v3824
    %v3892 = vpop.f32.mrb[0].mxu0
    %v3893 = vadd.f32 %v392, %v3892
    %v3894 = vpop.f32.mrb[0].mxu0
    %3895 = vdwg.mxu0
    %v3896 = vmul.f32 %v3893, %v531
    %v3897 = vmul.f32 %v3893, %v533
    %v3898 = vmul.f32 %v3893, %v535
    %v3899 = vmul.f32 %v3893, %v537
    %v3900 = vmul.f32 %v3893, %v547
    %v3901 = vmul.f32 %v3893, %v549
    %v3902 = vmul.f32 %v3893, %v551
    %v3903 = vmul.f32 %v3893, %v553
    %3908 = vrot.lane.b32.xlu0 %v3896, 96
    %v3909 = vpop.permute.xlu0 %3908
    %3910 = vrot.lane.b32.xlu0 %v3897, 96
    %v3911 = vpop.permute.xlu0 %3910
    %3912 = vrot.lane.b32.xlu0 %v3898, 96
    %v3913 = vpop.permute.xlu0 %3912
    %3914 = vrot.lane.b32.xlu0 %v3899, 96
    %v3915 = vpop.permute.xlu0 %3914
    %v3917 = vsel %vm393, %v3893, 0
    %v3919 = vsel %vm393, %v3909, 0
    %v3921 = vsel %vm393, %v3911, 0
    %v3923 = vsel %vm393, %v3913, 0
    %v3925 = vsel %vm393, %v3915, 0
    %3927 = vmatprep.subr.mxu0 0.0
    %3928 = vmatpush1.xpose.msra.mxu0 %v3919
    %3929 = vmatprep.subr.mxu0 0.0
    %3930 = vmatpush1.xpose.msra.mxu0 %v3921
    %3931 = vmatprep.subr.mxu0 0.0
    %3932 = vmatpush1.xpose.msra.mxu0 %v3923
    %3933 = vmatprep.subr.mxu0 0.0
    %3934 = vmatpush1.xpose.msra.mxu0 %v3925
    %3935 = vmatprep.subr.mxu0 0.0
    %3936 = vmatpush1.xpose.msra.mxu0 0.0
    %3937 = vmatprep.subr.mxu0 0.0
    %3938 = vmatpush1.xpose.msra.mxu0 0.0
    %3939 = vmatprep.subr.mxu0 0.0
    %3940 = vmatpush1.xpose.msra.mxu0 0.0
    %3941 = vmatprep.subr.mxu0 0.0
    %3942 = vmatpush1.xpose.msra.mxu0 0.0
    %3943 = vmatprep.subr.mxu0 0.0
    %3944 = vmatpush1.xpose.msra.mxu0 0.0
    %3945 = vmatprep.subr.mxu0 0.0
    %3946 = vmatpush1.xpose.msra.mxu0 0.0
    %3947 = vmatprep.subr.mxu0 0.0
    %3948 = vmatpush1.xpose.msra.mxu0 0.0
    %3949 = vmatprep.subr.mxu0 0.0
    %3950 = vmatpush1.xpose.msra.mxu0 0.0
    %3951 = vmatprep.subr.mxu0 0.0
    %3952 = vmatpush1.xpose.msra.mxu0 0.0
    %3953 = vmatprep.subr.mxu0 0.0
    %3954 = vmatpush1.xpose.msra.mxu0 0.0
    %3955 = vmatprep.subr.mxu0 0.0
    %3956 = vmatpush1.xpose.msra.mxu0 0.0
    %3957 = vmatprep.subr.mxu0 0.0
    %3958 = vmatpush1.xpose.msra.mxu0 0.0
    %3959 = vmatprep.subr.mxu0 0.0
    %3960 = vmatpush1.xpose.msra.mxu0 0.0
    %3961 = vmatprep.subr.mxu0 0.0
    %3962 = vmatpush1.xpose.msra.mxu0 0.0
    %3963 = vmatprep.subr.mxu0 0.0
    %3964 = vmatpush1.xpose.msra.mxu0 0.0
    %3965 = vmatprep.subr.mxu0 0.0
    %3966 = vmatpush1.xpose.msra.mxu0 0.0
    %3967 = vmatprep.subr.mxu0 0.0
    %3968 = vmatpush1.xpose.msra.mxu0 0.0
    %3969 = vmatprep.subr.mxu0 0.0
    %3970 = vmatpush1.xpose.msra.mxu0 0.0
    %3971 = vmatprep.subr.mxu0 0.0
    %3972 = vmatpush1.xpose.msra.mxu0 0.0
    %3973 = vmatprep.subr.mxu0 0.0
    %3974 = vmatpush1.xpose.msra.mxu0 0.0
    %3975 = vmatprep.subr.mxu0 0.0
    %3976 = vmatpush1.xpose.msra.mxu0 0.0
    %3977 = vmatprep.subr.mxu0 0.0
    %3978 = vmatpush1.xpose.msra.mxu0 0.0
    %3979 = vmatprep.subr.mxu0 0.0
    %3980 = vmatpush1.xpose.msra.mxu0 0.0
    %3981 = vmatprep.subr.mxu0 0.0
    %3982 = vmatpush1.xpose.msra.mxu0 0.0
    %3983 = vmatprep.subr.mxu0 0.0
    %3984 = vmatpush1.xpose.msra.mxu0 0.0
    %3985 = vmatprep.subr.mxu0 0.0
    %3986 = vmatpush1.xpose.msra.mxu0 0.0
    %3987 = vmatprep.subr.mxu0 0.0
    %3988 = vmatpush1.xpose.msra.mxu0 0.0
    %3989 = vmatprep.subr.mxu0 0.0
    %3990 = vmatpush1.xpose.msra.mxu0 0.0
    %3991 = vmatprep.mubr.f32.mxu0 0.0
    %3992 = vmatmul.mubr.f32.gmra.mrb[0].mxu0 %v3917
    %v3993 = vpop.f32.mrb[0].mxu0
    %v3994 = vadd.f32 0.0, %v3993
    %v3995 = vpop.f32.mrb[0].mxu0
    %3996 = vdwg.mxu0
    %v3997 = vmul.f32 %v3994, 0.35355338
    %v3998 = vsel %vm393, %v3997, -inf
    %3999 = vmax.xlane.f32.xlu0 %v3998
    %v4000 = vpop.xlane.xlu0 %3999
    %v4001 = vsub.f32 %v3997, %v4000
    %v4002 = vmul.f32 %v4001, 1.442695
    %v4003 = vpow.pop %v4002
    %v4005 = vsel %vm393, %v4003, 0
    %4007 = vmatprep.subr.mxu0 0.0
    %4008 = vmatpush1.msra.mxu0 %v522
    %4009 = vmatprep.subr.mxu0 0.0
    %4010 = vmatpush1.msra.mxu0 %v523
    %4011 = vmatprep.subr.mxu0 0.0
    %4012 = vmatpush1.msra.mxu0 %v524
    %4013 = vmatprep.subr.mxu0 0.0
    %4014 = vmatpush1.msra.mxu0 %v525
    %4015 = vmatprep.subr.mxu0 0.0
    %4016 = vmatpush1.msra.mxu0 0.0
    %4017 = vmatprep.subr.mxu0 0.0
    %4018 = vmatpush1.msra.mxu0 0.0
    %4019 = vmatprep.subr.mxu0 0.0
    %4020 = vmatpush1.msra.mxu0 0.0
    %4021 = vmatprep.subr.mxu0 0.0
    %4022 = vmatpush1.msra.mxu0 0.0
    %4023 = vmatprep.subr.mxu0 0.0
    %4024 = vmatpush1.msra.mxu0 0.0
    %4025 = vmatprep.subr.mxu0 0.0
    %4026 = vmatpush1.msra.mxu0 0.0
    %4027 = vmatprep.subr.mxu0 0.0
    %4028 = vmatpush1.msra.mxu0 0.0
    %4029 = vmatprep.subr.mxu0 0.0
    %4030 = vmatpush1.msra.mxu0 0.0
    %4031 = vmatprep.subr.mxu0 0.0
    %4032 = vmatpush1.msra.mxu0 0.0
    %4033 = vmatprep.subr.mxu0 0.0
    %4034 = vmatpush1.msra.mxu0 0.0
    %4035 = vmatprep.subr.mxu0 0.0
    %4036 = vmatpush1.msra.mxu0 0.0
    %4037 = vmatprep.subr.mxu0 0.0
    %4038 = vmatpush1.msra.mxu0 0.0
    %4039 = vmatprep.subr.mxu0 0.0
    %4040 = vmatpush1.msra.mxu0 0.0
    %4041 = vmatprep.subr.mxu0 0.0
    %4042 = vmatpush1.msra.mxu0 0.0
    %4043 = vmatprep.subr.mxu0 0.0
    %4044 = vmatpush1.msra.mxu0 0.0
    %4045 = vmatprep.subr.mxu0 0.0
    %4046 = vmatpush1.msra.mxu0 0.0
    %4047 = vmatprep.subr.mxu0 0.0
    %4048 = vmatpush1.msra.mxu0 0.0
    %4049 = vmatprep.subr.mxu0 0.0
    %4050 = vmatpush1.msra.mxu0 0.0
    %4051 = vmatprep.subr.mxu0 0.0
    %4052 = vmatpush1.msra.mxu0 0.0
    %4053 = vmatprep.subr.mxu0 0.0
    %4054 = vmatpush1.msra.mxu0 0.0
    %4055 = vmatprep.subr.mxu0 0.0
    %4056 = vmatpush1.msra.mxu0 0.0
    %4057 = vmatprep.subr.mxu0 0.0
    %4058 = vmatpush1.msra.mxu0 0.0
    %4059 = vmatprep.subr.mxu0 0.0
    %4060 = vmatpush1.msra.mxu0 0.0
    %4061 = vmatprep.subr.mxu0 0.0
    %4062 = vmatpush1.msra.mxu0 0.0
    %4063 = vmatprep.subr.mxu0 0.0
    %4064 = vmatpush1.msra.mxu0 0.0
    %4065 = vmatprep.subr.mxu0 0.0
    %4066 = vmatpush1.msra.mxu0 0.0
    %4067 = vmatprep.subr.mxu0 0.0
    %4068 = vmatpush1.msra.mxu0 0.0
    %4069 = vmatprep.subr.mxu0 0.0
    %4070 = vmatpush1.msra.mxu0 0.0
    %4071 = vmatprep.mubr.f32.mxu0 0.0
    %4072 = vmatmul.mubr.f32.gmra.mrb[0].mxu0 %v4005
    %v4073 = vpop.f32.mrb[0].mxu0
    %v4074 = vadd.f32 0.0, %v4073
    %v4075 = vpop.f32.mrb[0].mxu0
    %4076 = vdwg.mxu0
    %v4077 = vrcp.pop %v4074
    %v4078 = vmul.f32 %v4003, %v4077
    %4083 = vrot.lane.b32.xlu0 %v3900, 64
    %v4084 = vpop.permute.xlu0 %4083
    %4085 = vrot.lane.b32.xlu0 %v3901, 64
    %v4086 = vpop.permute.xlu0 %4085
    %4087 = vrot.lane.b32.xlu0 %v3902, 64
    %v4088 = vpop.permute.xlu0 %4087
    %4089 = vrot.lane.b32.xlu0 %v3903, 64
    %v4090 = vpop.permute.xlu0 %4089
    %v4096 = vsel %vm393, %v4078, 0
    %4098 = vmatprep.subr.mxu0 0.0
    %4099 = vmatpush1.msra.mxu0 %v4084
    %4100 = vmatprep.subr.mxu0 0.0
    %4101 = vmatpush1.msra.mxu0 %v4086
    %4102 = vmatprep.subr.mxu0 0.0
    %4103 = vmatpush1.msra.mxu0 %v4088
    %4104 = vmatprep.subr.mxu0 0.0
    %4105 = vmatpush1.msra.mxu0 %v4090
    %4106 = vmatprep.subr.mxu0 0.0
    %4107 = vmatpush1.msra.mxu0 0.0
    %4108 = vmatprep.subr.mxu0 0.0
    %4109 = vmatpush1.msra.mxu0 0.0
    %4110 = vmatprep.subr.mxu0 0.0
    %4111 = vmatpush1.msra.mxu0 0.0
    %4112 = vmatprep.subr.mxu0 0.0
    %4113 = vmatpush1.msra.mxu0 0.0
    %4114 = vmatprep.subr.mxu0 0.0
    %4115 = vmatpush1.msra.mxu0 0.0
    %4116 = vmatprep.subr.mxu0 0.0
    %4117 = vmatpush1.msra.mxu0 0.0
    %4118 = vmatprep.subr.mxu0 0.0
    %4119 = vmatpush1.msra.mxu0 0.0
    %4120 = vmatprep.subr.mxu0 0.0
    %4121 = vmatpush1.msra.mxu0 0.0
    %4122 = vmatprep.subr.mxu0 0.0
    %4123 = vmatpush1.msra.mxu0 0.0
    %4124 = vmatprep.subr.mxu0 0.0
    %4125 = vmatpush1.msra.mxu0 0.0
    %4126 = vmatprep.subr.mxu0 0.0
    %4127 = vmatpush1.msra.mxu0 0.0
    %4128 = vmatprep.subr.mxu0 0.0
    %4129 = vmatpush1.msra.mxu0 0.0
    %4130 = vmatprep.subr.mxu0 0.0
    %4131 = vmatpush1.msra.mxu0 0.0
    %4132 = vmatprep.subr.mxu0 0.0
    %4133 = vmatpush1.msra.mxu0 0.0
    %4134 = vmatprep.subr.mxu0 0.0
    %4135 = vmatpush1.msra.mxu0 0.0
    %4136 = vmatprep.subr.mxu0 0.0
    %4137 = vmatpush1.msra.mxu0 0.0
    %4138 = vmatprep.subr.mxu0 0.0
    %4139 = vmatpush1.msra.mxu0 0.0
    %4140 = vmatprep.subr.mxu0 0.0
    %4141 = vmatpush1.msra.mxu0 0.0
    %4142 = vmatprep.subr.mxu0 0.0
    %4143 = vmatpush1.msra.mxu0 0.0
    %4144 = vmatprep.subr.mxu0 0.0
    %4145 = vmatpush1.msra.mxu0 0.0
    %4146 = vmatprep.subr.mxu0 0.0
    %4147 = vmatpush1.msra.mxu0 0.0
    %4148 = vmatprep.subr.mxu0 0.0
    %4149 = vmatpush1.msra.mxu0 0.0
    %4150 = vmatprep.subr.mxu0 0.0
    %4151 = vmatpush1.msra.mxu0 0.0
    %4152 = vmatprep.subr.mxu0 0.0
    %4153 = vmatpush1.msra.mxu0 0.0
    %4154 = vmatprep.subr.mxu0 0.0
    %4155 = vmatpush1.msra.mxu0 0.0
    %4156 = vmatprep.subr.mxu0 0.0
    %4157 = vmatpush1.msra.mxu0 0.0
    %4158 = vmatprep.subr.mxu0 0.0
    %4159 = vmatpush1.msra.mxu0 0.0
    %4160 = vmatprep.subr.mxu0 0.0
    %4161 = vmatpush1.msra.mxu0 0.0
    %4162 = vmatprep.mubr.f32.mxu0 0.0
    %4163 = vmatmul.mubr.f32.gmra.mrb[0].mxu0 %v4096
    %v4164 = vpop.f32.mrb[0].mxu0
    %v4165 = vadd.f32 0.0, %v4164
    %v4166 = vpop.f32.mrb[0].mxu0
    %4167 = vdwg.mxu0
    %v4169 = vsel %vm393, %v4165, 0
    %4171 = vmatprep.subr.mxu0 0.0
    %4172 = vmatpush1.msra.mxu0 %v384
    %4173 = vmatprep.subr.mxu0 0.0
    %4174 = vmatpush1.msra.mxu0 %v385
    %4175 = vmatprep.subr.mxu0 0.0
    %4176 = vmatpush1.msra.mxu0 %v386
    %4177 = vmatprep.subr.mxu0 0.0
    %4178 = vmatpush1.msra.mxu0 %v387
    %4179 = vmatprep.subr.mxu0 0.0
    %4180 = vmatpush1.msra.mxu0 0.0
    %4181 = vmatprep.subr.mxu0 0.0
    %4182 = vmatpush1.msra.mxu0 0.0
    %4183 = vmatprep.subr.mxu0 0.0
    %4184 = vmatpush1.msra.mxu0 0.0
    %4185 = vmatprep.subr.mxu0 0.0
    %4186 = vmatpush1.msra.mxu0 0.0
    %4187 = vmatprep.subr.mxu0 0.0
    %4188 = vmatpush1.msra.mxu0 0.0
    %4189 = vmatprep.subr.mxu0 0.0
    %4190 = vmatpush1.msra.mxu0 0.0
    %4191 = vmatprep.subr.mxu0 0.0
    %4192 = vmatpush1.msra.mxu0 0.0
    %4193 = vmatprep.subr.mxu0 0.0
    %4194 = vmatpush1.msra.mxu0 0.0
    %4195 = vmatprep.subr.mxu0 0.0
    %4196 = vmatpush1.msra.mxu0 0.0
    %4197 = vmatprep.subr.mxu0 0.0
    %4198 = vmatpush1.msra.mxu0 0.0
    %4199 = vmatprep.subr.mxu0 0.0
    %4200 = vmatpush1.msra.mxu0 0.0
    %4201 = vmatprep.subr.mxu0 0.0
    %4202 = vmatpush1.msra.mxu0 0.0
    %4203 = vmatprep.subr.mxu0 0.0
    %4204 = vmatpush1.msra.mxu0 0.0
    %4205 = vmatprep.subr.mxu0 0.0
    %4206 = vmatpush1.msra.mxu0 0.0
    %4207 = vmatprep.subr.mxu0 0.0
    %4208 = vmatpush1.msra.mxu0 0.0
    %4209 = vmatprep.subr.mxu0 0.0
    %4210 = vmatpush1.msra.mxu0 0.0
    %4211 = vmatprep.subr.mxu0 0.0
    %4212 = vmatpush1.msra.mxu0 0.0
    %4213 = vmatprep.subr.mxu0 0.0
    %4214 = vmatpush1.msra.mxu0 0.0
    %4215 = vmatprep.subr.mxu0 0.0
    %4216 = vmatpush1.msra.mxu0 0.0
    %4217 = vmatprep.subr.mxu0 0.0
    %4218 = vmatpush1.msra.mxu0 0.0
    %4219 = vmatprep.subr.mxu0 0.0
    %4220 = vmatpush1.msra.mxu0 0.0
    %4221 = vmatprep.subr.mxu0 0.0
    %4222 = vmatpush1.msra.mxu0 0.0
    %4223 = vmatprep.subr.mxu0 0.0
    %4224 = vmatpush1.msra.mxu0 0.0
    %4225 = vmatprep.subr.mxu0 0.0
    %4226 = vmatpush1.msra.mxu0 0.0
    %4227 = vmatprep.subr.mxu0 0.0
    %4228 = vmatpush1.msra.mxu0 0.0
    %4229 = vmatprep.subr.mxu0 0.0
    %4230 = vmatpush1.msra.mxu0 0.0
    %4231 = vmatprep.subr.mxu0 0.0
    %4232 = vmatpush1.msra.mxu0 0.0
    %4233 = vmatprep.subr.mxu0 0.0
    %4234 = vmatpush1.msra.mxu0 0.0
    %4235 = vmatprep.mubr.f32.mxu0 0.0
    %4236 = vmatmul.mubr.f32.gmra.mrb[0].mxu0 %v4169
    %v4237 = vpop.f32.mrb[0].mxu0
    %v4238 = vadd.f32 %v829, %v4237
    %v4239 = vpop.f32.mrb[0].mxu0
    %4240 = vdwg.mxu0
    %v4241 = vadd.f32 %v3663, %v4238
    %v4242 = vsel %vm393, %v4241, 0.0
    %4243 = vadd.xlane.f32.xlu0 %v4242
    %v4244 = vpop.xlane.xlu0 %4243
    %v4245 = vmul.f32 %v4244, %v909
    %v4246 = vsub.f32 %v4241, %v4245
    %v4247 = vmul.f32 %v4246, %v4246
    %v4248 = vsel %vm393, %v4247, 0.0
    %4249 = vadd.xlane.f32.xlu0 %v4248
    %v4250 = vpop.xlane.xlu0 %4249
    %v4251 = vmul.f32 %v4250, %v909
    %v4252 = vadd.f32 %v4251, 1e-05
    %v4253 = vrsqrt.pop %v4252
    %v4254 = vmul.f32 %v4246, %v4253
    %v4255 = vmul.f32 %v4254, %v923
    %v4256 = vadd.f32 %v4255, %v928
    %v4258 = vsel %vm393, %v4256, 0
    %4260 = vmatprep.subr.mxu0 0.0
    %4261 = vmatpush1.msra.mxu0 %v930
    %4262 = vmatprep.subr.mxu0 0.0
    %4263 = vmatpush1.msra.mxu0 %v931
    %4264 = vmatprep.subr.mxu0 0.0
    %4265 = vmatpush1.msra.mxu0 %v932
    %4266 = vmatprep.subr.mxu0 0.0
    %4267 = vmatpush1.msra.mxu0 %v933
    %4268 = vmatprep.subr.mxu0 0.0
    %4269 = vmatpush1.msra.mxu0 0.0
    %4270 = vmatprep.subr.mxu0 0.0
    %4271 = vmatpush1.msra.mxu0 0.0
    %4272 = vmatprep.subr.mxu0 0.0
    %4273 = vmatpush1.msra.mxu0 0.0
    %4274 = vmatprep.subr.mxu0 0.0
    %4275 = vmatpush1.msra.mxu0 0.0
    %4276 = vmatprep.subr.mxu0 0.0
    %4277 = vmatpush1.msra.mxu0 0.0
    %4278 = vmatprep.subr.mxu0 0.0
    %4279 = vmatpush1.msra.mxu0 0.0
    %4280 = vmatprep.subr.mxu0 0.0
    %4281 = vmatpush1.msra.mxu0 0.0
    %4282 = vmatprep.subr.mxu0 0.0
    %4283 = vmatpush1.msra.mxu0 0.0
    %4284 = vmatprep.subr.mxu0 0.0
    %4285 = vmatpush1.msra.mxu0 0.0
    %4286 = vmatprep.subr.mxu0 0.0
    %4287 = vmatpush1.msra.mxu0 0.0
    %4288 = vmatprep.subr.mxu0 0.0
    %4289 = vmatpush1.msra.mxu0 0.0
    %4290 = vmatprep.subr.mxu0 0.0
    %4291 = vmatpush1.msra.mxu0 0.0
    %4292 = vmatprep.subr.mxu0 0.0
    %4293 = vmatpush1.msra.mxu0 0.0
    %4294 = vmatprep.subr.mxu0 0.0
    %4295 = vmatpush1.msra.mxu0 0.0
    %4296 = vmatprep.subr.mxu0 0.0
    %4297 = vmatpush1.msra.mxu0 0.0
    %4298 = vmatprep.subr.mxu0 0.0
    %4299 = vmatpush1.msra.mxu0 0.0
    %4300 = vmatprep.subr.mxu0 0.0
    %4301 = vmatpush1.msra.mxu0 0.0
    %4302 = vmatprep.subr.mxu0 0.0
    %4303 = vmatpush1.msra.mxu0 0.0
    %4304 = vmatprep.subr.mxu0 0.0
    %4305 = vmatpush1.msra.mxu0 0.0
    %4306 = vmatprep.subr.mxu0 0.0
    %4307 = vmatpush1.msra.mxu0 0.0
    %4308 = vmatprep.subr.mxu0 0.0
    %4309 = vmatpush1.msra.mxu0 0.0
    %4310 = vmatprep.subr.mxu0 0.0
    %4311 = vmatpush1.msra.mxu0 0.0
    %4312 = vmatprep.subr.mxu0 0.0
    %4313 = vmatpush1.msra.mxu0 0.0
    %4314 = vmatprep.subr.mxu0 0.0
    %4315 = vmatpush1.msra.mxu0 0.0
    %4316 = vmatprep.subr.mxu0 0.0
    %4317 = vmatpush1.msra.mxu0 0.0
    %4318 = vmatprep.subr.mxu0 0.0
    %4319 = vmatpush1.msra.mxu0 0.0
    %4320 = vmatprep.subr.mxu0 0.0
    %4321 = vmatpush1.msra.mxu0 0.0
    %4322 = vmatprep.subr.mxu0 0.0
    %4323 = vmatpush1.msra.mxu0 0.0
    %4324 = vmatprep.mubr.f32.mxu0 0.0
    %4325 = vmatmul.mubr.f32.gmra.mrb[0].mxu0 %v4258
    %v4326 = vpop.f32.mrb[0].mxu0
    %v4327 = vadd.f32 %v938, %v4326
    %v4328 = vpop.f32.mrb[0].mxu0
    %4329 = vdwg.mxu0
    %v4330 = vmax.f32 %v4327, 0.0
    %v4332 = vsel %vm1026, %v4330, 0
    %4334 = vmatprep.subr.mxu0 0.0
    %4335 = vmatpush1.msra.mxu0 %v1013
    %4336 = vmatprep.subr.mxu0 0.0
    %4337 = vmatpush1.msra.mxu0 %v1014
    %4338 = vmatprep.subr.mxu0 0.0
    %4339 = vmatpush1.msra.mxu0 %v1015
    %4340 = vmatprep.subr.mxu0 0.0
    %4341 = vmatpush1.msra.mxu0 %v1016
    %4342 = vmatprep.subr.mxu0 0.0
    %4343 = vmatpush1.msra.mxu0 %v1017
    %4344 = vmatprep.subr.mxu0 0.0
    %4345 = vmatpush1.msra.mxu0 %v1018
    %4346 = vmatprep.subr.mxu0 0.0
    %4347 = vmatpush1.msra.mxu0 %v1019
    %4348 = vmatprep.subr.mxu0 0.0
    %4349 = vmatpush1.msra.mxu0 %v1020
    %4350 = vmatprep.subr.mxu0 0.0
    %4351 = vmatpush1.msra.mxu0 0.0
    %4352 = vmatprep.subr.mxu0 0.0
    %4353 = vmatpush1.msra.mxu0 0.0
    %4354 = vmatprep.subr.mxu0 0.0
    %4355 = vmatpush1.msra.mxu0 0.0
    %4356 = vmatprep.subr.mxu0 0.0
    %4357 = vmatpush1.msra.mxu0 0.0
    %4358 = vmatprep.subr.mxu0 0.0
    %4359 = vmatpush1.msra.mxu0 0.0
    %4360 = vmatprep.subr.mxu0 0.0
    %4361 = vmatpush1.msra.mxu0 0.0
    %4362 = vmatprep.subr.mxu0 0.0
    %4363 = vmatpush1.msra.mxu0 0.0
    %4364 = vmatprep.subr.mxu0 0.0
    %4365 = vmatpush1.msra.mxu0 0.0
    %4366 = vmatprep.subr.mxu0 0.0
    %4367 = vmatpush1.msra.mxu0 0.0
    %4368 = vmatprep.subr.mxu0 0.0
    %4369 = vmatpush1.msra.mxu0 0.0
    %4370 = vmatprep.subr.mxu0 0.0
    %4371 = vmatpush1.msra.mxu0 0.0
    %4372 = vmatprep.subr.mxu0 0.0
    %4373 = vmatpush1.msra.mxu0 0.0
    %4374 = vmatprep.subr.mxu0 0.0
    %4375 = vmatpush1.msra.mxu0 0.0
    %4376 = vmatprep.subr.mxu0 0.0
    %4377 = vmatpush1.msra.mxu0 0.0
    %4378 = vmatprep.subr.mxu0 0.0
    %4379 = vmatpush1.msra.mxu0 0.0
    %4380 = vmatprep.subr.mxu0 0.0
    %4381 = vmatpush1.msra.mxu0 0.0
    %4382 = vmatprep.subr.mxu0 0.0
    %4383 = vmatpush1.msra.mxu0 0.0
    %4384 = vmatprep.subr.mxu0 0.0
    %4385 = vmatpush1.msra.mxu0 0.0
    %4386 = vmatprep.subr.mxu0 0.0
    %4387 = vmatpush1.msra.mxu0 0.0
    %4388 = vmatprep.subr.mxu0 0.0
    %4389 = vmatpush1.msra.mxu0 0.0
    %4390 = vmatprep.subr.mxu0 0.0
    %4391 = vmatpush1.msra.mxu0 0.0
    %4392 = vmatprep.subr.mxu0 0.0
    %4393 = vmatpush1.msra.mxu0 0.0
    %4394 = vmatprep.subr.mxu0 0.0
    %4395 = vmatpush1.msra.mxu0 0.0
    %4396 = vmatprep.subr.mxu0 0.0
    %4397 = vmatpush1.msra.mxu0 0.0
    %4398 = vmatprep.mubr.f32.mxu0 0.0
    %4399 = vmatmul.mubr.f32.gmra.mrb[0].mxu0 %v4332
    %v4400 = vpop.f32.mrb[0].mxu0
    %v4401 = vadd.f32 %v1025, %v4400
    %v4402 = vpop.f32.mrb[0].mxu0
    %4403 = vdwg.mxu0
    %v4404 = vadd.f32 %v4256, %v4401
    %v4405 = vsel %vm393, %v4404, 0.0
    %4406 = vadd.xlane.f32.xlu0 %v4405
    %v4407 = vpop.xlane.xlu0 %4406
    %v4408 = vmul.f32 %v4407, %v909
    %v4409 = vsub.f32 %v4404, %v4408
    %v4410 = vmul.f32 %v4409, %v4409
    %v4411 = vsel %vm393, %v4410, 0.0
    %4412 = vadd.xlane.f32.xlu0 %v4411
    %v4413 = vpop.xlane.xlu0 %4412
    %v4414 = vmul.f32 %v4413, %v909
    %v4415 = vadd.f32 %v4414, 1e-05
    %v4416 = vrsqrt.pop %v4415
    %v4417 = vmul.f32 %v4409, %v4416
    %v4418 = vmul.f32 %v4417, %v1119
    %v4419 = vadd.f32 %v4418, %v1124
    %v4421 = vsel %vm393, %v4419, 0
    %4423 = vmatprep.subr.mxu0 0.0
    %4424 = vmatpush1.msra.mxu0 %v1126
    %4425 = vmatprep.subr.mxu0 0.0
    %4426 = vmatpush1.msra.mxu0 %v1127
    %4427 = vmatprep.subr.mxu0 0.0
    %4428 = vmatpush1.msra.mxu0 %v1128
    %4429 = vmatprep.subr.mxu0 0.0
    %4430 = vmatpush1.msra.mxu0 %v1129
    %4431 = vmatprep.subr.mxu0 0.0
    %4432 = vmatpush1.msra.mxu0 0.0
    %4433 = vmatprep.subr.mxu0 0.0
    %4434 = vmatpush1.msra.mxu0 0.0
    %4435 = vmatprep.subr.mxu0 0.0
    %4436 = vmatpush1.msra.mxu0 0.0
    %4437 = vmatprep.subr.mxu0 0.0
    %4438 = vmatpush1.msra.mxu0 0.0
    %4439 = vmatprep.subr.mxu0 0.0
    %4440 = vmatpush1.msra.mxu0 0.0
    %4441 = vmatprep.subr.mxu0 0.0
    %4442 = vmatpush1.msra.mxu0 0.0
    %4443 = vmatprep.subr.mxu0 0.0
    %4444 = vmatpush1.msra.mxu0 0.0
    %4445 = vmatprep.subr.mxu0 0.0
    %4446 = vmatpush1.msra.mxu0 0.0
    %4447 = vmatprep.subr.mxu0 0.0
    %4448 = vmatpush1.msra.mxu0 0.0
    %4449 = vmatprep.subr.mxu0 0.0
    %4450 = vmatpush1.msra.mxu0 0.0
    %4451 = vmatprep.subr.mxu0 0.0
    %4452 = vmatpush1.msra.mxu0 0.0
    %4453 = vmatprep.subr.mxu0 0.0
    %4454 = vmatpush1.msra.mxu0 0.0
    %4455 = vmatprep.subr.mxu0 0.0
    %4456 = vmatpush1.msra.mxu0 0.0
    %4457 = vmatprep.subr.mxu0 0.0
    %4458 = vmatpush1.msra.mxu0 0.0
    %4459 = vmatprep.subr.mxu0 0.0
    %4460 = vmatpush1.msra.mxu0 0.0
    %4461 = vmatprep.subr.mxu0 0.0
    %4462 = vmatpush1.msra.mxu0 0.0
    %4463 = vmatprep.subr.mxu0 0.0
    %4464 = vmatpush1.msra.mxu0 0.0
    %4465 = vmatprep.subr.mxu0 0.0
    %4466 = vmatpush1.msra.mxu0 0.0
    %4467 = vmatprep.subr.mxu0 0.0
    %4468 = vmatpush1.msra.mxu0 0.0
    %4469 = vmatprep.subr.mxu0 0.0
    %4470 = vmatpush1.msra.mxu0 0.0
    %4471 = vmatprep.subr.mxu0 0.0
    %4472 = vmatpush1.msra.mxu0 0.0
    %4473 = vmatprep.subr.mxu0 0.0
    %4474 = vmatpush1.msra.mxu0 0.0
    %4475 = vmatprep.subr.mxu0 0.0
    %4476 = vmatpush1.msra.mxu0 0.0
    %4477 = vmatprep.subr.mxu0 0.0
    %4478 = vmatpush1.msra.mxu0 0.0
    %4479 = vmatprep.subr.mxu0 0.0
    %4480 = vmatpush1.msra.mxu0 0.0
    %4481 = vmatprep.subr.mxu0 0.0
    %4482 = vmatpush1.msra.mxu0 0.0
    %4483 = vmatprep.subr.mxu0 0.0
    %4484 = vmatpush1.msra.mxu0 0.0
    %4485 = vmatprep.subr.mxu0 0.0
    %4486 = vmatpush1.msra.mxu0 0.0
    %4487 = vmatprep.mubr.f32.mxu0 0.0
    %4488 = vmatmul.mubr.f32.gmra.mrb[0].mxu0 %v4421
    %v4489 = vpop.f32.mrb[0].mxu0
    %v4490 = vadd.f32 0.0, %v4489
    %v4491 = vpop.f32.mrb[0].mxu0
    %4492 = vdwg.mxu0
    %v4493 = vrot.slane %v4490, 7
    %4495 = vrot.lane.b32.xlu0 %v4490, 96
    %v4496 = vpop.permute.xlu0 %4495
    %v4498 = vadd.f32 %v4493, %v4496
    %4499 = vrot.lane.b32.xlu0 %v4490, 64
    %v4500 = vpop.permute.xlu0 %4499
    %v4502 = vrot.slane %v4500, 1
    %v4503 = vadd.f32 %v4498, %v4502
    %v4504 = vadd.f32 %v4503, %v1218
    %v4505 = vmul.f32 %v4504, %v1225
    %v4506 = vadd.f32 %v4505, %v1231
    %vm4507 = vcmp.gt.f32.partialorder %v4506, 0.0
    %v4508 = vmin.f32 %v4506, 0.0
    %v4509 = vmul.f32 %v4508, 1.442695
    %v4510 = vpow.pop %v4509
    %v4511 = vsub.f32 %v4510, 1.0
    %v4512 = vsel %vm4507, %v4506, %v4511
    %4513 = vmatprep.subr.mxu0 0.0
    %4514 = vmatpush1.msra.mxu0 %v4512
    %4515 = vmatprep.subr.mxu0 0.0
    %4516 = vmatpush1.msra.mxu0 0.0
    %4517 = vmatprep.subr.mxu0 0.0
    %4518 = vmatpush1.msra.mxu0 0.0
    %4519 = vmatprep.subr.mxu0 0.0
    %4520 = vmatpush1.msra.mxu0 0.0
    %4521 = vmatprep.subr.mxu0 0.0
    %4522 = vmatpush1.msra.mxu0 0.0
    %4523 = vmatprep.subr.mxu0 0.0
    %4524 = vmatpush1.msra.mxu0 0.0
    %4525 = vmatprep.subr.mxu0 0.0
    %4526 = vmatpush1.msra.mxu0 0.0
    %4527 = vmatprep.subr.mxu0 0.0
    %4528 = vmatpush1.msra.mxu0 0.0
    %4529 = vmatprep.subr.mxu0 0.0
    %4530 = vmatpush1.msra.mxu0 0.0
    %4531 = vmatprep.subr.mxu0 0.0
    %4532 = vmatpush1.msra.mxu0 0.0
    %4533 = vmatprep.subr.mxu0 0.0
    %4534 = vmatpush1.msra.mxu0 0.0
    %4535 = vmatprep.subr.mxu0 0.0
    %4536 = vmatpush1.msra.mxu0 0.0
    %4537 = vmatprep.subr.mxu0 0.0
    %4538 = vmatpush1.msra.mxu0 0.0
    %4539 = vmatprep.subr.mxu0 0.0
    %4540 = vmatpush1.msra.mxu0 0.0
    %4541 = vmatprep.subr.mxu0 0.0
    %4542 = vmatpush1.msra.mxu0 0.0
    %4543 = vmatprep.subr.mxu0 0.0
    %4544 = vmatpush1.msra.mxu0 0.0
    %4545 = vmatprep.subr.mxu0 0.0
    %4546 = vmatpush1.msra.mxu0 0.0
    %4547 = vmatprep.subr.mxu0 0.0
    %4548 = vmatpush1.msra.mxu0 0.0
    %4549 = vmatprep.subr.mxu0 0.0
    %4550 = vmatpush1.msra.mxu0 0.0
    %4551 = vmatprep.subr.mxu0 0.0
    %4552 = vmatpush1.msra.mxu0 0.0
    %4553 = vmatprep.subr.mxu0 0.0
    %4554 = vmatpush1.msra.mxu0 0.0
    %4555 = vmatprep.subr.mxu0 0.0
    %4556 = vmatpush1.msra.mxu0 0.0
    %4557 = vmatprep.subr.mxu0 0.0
    %4558 = vmatpush1.msra.mxu0 0.0
    %4559 = vmatprep.subr.mxu0 0.0
    %4560 = vmatpush1.msra.mxu0 0.0
    %4561 = vmatprep.subr.mxu0 0.0
    %4562 = vmatpush1.msra.mxu0 0.0
    %4563 = vmatprep.subr.mxu0 0.0
    %4564 = vmatpush1.msra.mxu0 0.0
    %4565 = vmatprep.subr.mxu0 0.0
    %4566 = vmatpush1.msra.mxu0 0.0
    %4567 = vmatprep.subr.mxu0 0.0
    %4568 = vmatpush1.msra.mxu0 0.0
    %4569 = vmatprep.subr.mxu0 0.0
    %4570 = vmatpush1.msra.mxu0 0.0
    %4571 = vmatprep.subr.mxu0 0.0
    %4572 = vmatpush1.msra.mxu0 0.0
    %4573 = vmatprep.subr.mxu0 0.0
    %4574 = vmatpush1.msra.mxu0 0.0
    %4575 = vmatprep.subr.mxu0 0.0
    %4576 = vmatpush1.msra.mxu0 0.0
    %4577 = vmatprep.mubr.f32.mxu0 0.0
    %4578 = vmatmul.mubr.f32.gmra.mrb[0].mxu0 %v1261
    %v4579 = vpop.f32.mrb[0].mxu0
    %v4580 = vadd.f32 0.0, %v4579
    %v4581 = vpop.f32.mrb[0].mxu0
    %4582 = vdwg.mxu0
    %4583 = vmatprep.subr.mxu0 0.0
    %4584 = vmatpush1.msra.mxu0 %v4512
    %4585 = vmatprep.subr.mxu0 0.0
    %4586 = vmatpush1.msra.mxu0 0.0
    %4587 = vmatprep.subr.mxu0 0.0
    %4588 = vmatpush1.msra.mxu0 0.0
    %4589 = vmatprep.subr.mxu0 0.0
    %4590 = vmatpush1.msra.mxu0 0.0
    %4591 = vmatprep.subr.mxu0 0.0
    %4592 = vmatpush1.msra.mxu0 0.0
    %4593 = vmatprep.subr.mxu0 0.0
    %4594 = vmatpush1.msra.mxu0 0.0
    %4595 = vmatprep.subr.mxu0 0.0
    %4596 = vmatpush1.msra.mxu0 0.0
    %4597 = vmatprep.subr.mxu0 0.0
    %4598 = vmatpush1.msra.mxu0 0.0
    %4599 = vmatprep.subr.mxu0 0.0
    %4600 = vmatpush1.msra.mxu0 0.0
    %4601 = vmatprep.subr.mxu0 0.0
    %4602 = vmatpush1.msra.mxu0 0.0
    %4603 = vmatprep.subr.mxu0 0.0
    %4604 = vmatpush1.msra.mxu0 0.0
    %4605 = vmatprep.subr.mxu0 0.0
    %4606 = vmatpush1.msra.mxu0 0.0
    %4607 = vmatprep.subr.mxu0 0.0
    %4608 = vmatpush1.msra.mxu0 0.0
    %4609 = vmatprep.subr.mxu0 0.0
    %4610 = vmatpush1.msra.mxu0 0.0
    %4611 = vmatprep.subr.mxu0 0.0
    %4612 = vmatpush1.msra.mxu0 0.0
    %4613 = vmatprep.subr.mxu0 0.0
    %4614 = vmatpush1.msra.mxu0 0.0
    %4615 = vmatprep.subr.mxu0 0.0
    %4616 = vmatpush1.msra.mxu0 0.0
    %4617 = vmatprep.subr.mxu0 0.0
    %4618 = vmatpush1.msra.mxu0 0.0
    %4619 = vmatprep.subr.mxu0 0.0
    %4620 = vmatpush1.msra.mxu0 0.0
    %4621 = vmatprep.subr.mxu0 0.0
    %4622 = vmatpush1.msra.mxu0 0.0
    %4623 = vmatprep.subr.mxu0 0.0
    %4624 = vmatpush1.msra.mxu0 0.0
    %4625 = vmatprep.subr.mxu0 0.0
    %4626 = vmatpush1.msra.mxu0 0.0
    %4627 = vmatprep.subr.mxu0 0.0
    %4628 = vmatpush1.msra.mxu0 0.0
    %4629 = vmatprep.subr.mxu0 0.0
    %4630 = vmatpush1.msra.mxu0 0.0
    %4631 = vmatprep.subr.mxu0 0.0
    %4632 = vmatpush1.msra.mxu0 0.0
    %4633 = vmatprep.subr.mxu0 0.0
    %4634 = vmatpush1.msra.mxu0 0.0
    %4635 = vmatprep.subr.mxu0 0.0
    %4636 = vmatpush1.msra.mxu0 0.0
    %4637 = vmatprep.subr.mxu0 0.0
    %4638 = vmatpush1.msra.mxu0 0.0
    %4639 = vmatprep.subr.mxu0 0.0
    %4640 = vmatpush1.msra.mxu0 0.0
    %4641 = vmatprep.subr.mxu0 0.0
    %4642 = vmatpush1.msra.mxu0 0.0
    %4643 = vmatprep.subr.mxu0 0.0
    %4644 = vmatpush1.msra.mxu0 0.0
    %4645 = vmatprep.subr.mxu0 0.0
    %4646 = vmatpush1.msra.mxu0 0.0
    %4647 = vmatprep.mubr.f32.mxu0 0.0
    %4648 = vmatmul.mubr.f32.gmra.mrb[0].mxu0 %v1334
    %v4649 = vpop.f32.mrb[0].mxu0
    %v4650 = vadd.f32 0.0, %v4649
    %v4651 = vpop.f32.mrb[0].mxu0
    %4652 = vdwg.mxu0
    %v4653 = vmax.f32 %v4580, %v4650
    %4654 = vmatprep.subr.mxu0 0.0
    %4655 = vmatpush1.msra.mxu0 %v4512
    %4656 = vmatprep.subr.mxu0 0.0
    %4657 = vmatpush1.msra.mxu0 0.0
    %4658 = vmatprep.subr.mxu0 0.0
    %4659 = vmatpush1.msra.mxu0 0.0
    %4660 = vmatprep.subr.mxu0 0.0
    %4661 = vmatpush1.msra.mxu0 0.0
    %4662 = vmatprep.subr.mxu0 0.0
    %4663 = vmatpush1.msra.mxu0 0.0
    %4664 = vmatprep.subr.mxu0 0.0
    %4665 = vmatpush1.msra.mxu0 0.0
    %4666 = vmatprep.subr.mxu0 0.0
    %4667 = vmatpush1.msra.mxu0 0.0
    %4668 = vmatprep.subr.mxu0 0.0
    %4669 = vmatpush1.msra.mxu0 0.0
    %4670 = vmatprep.subr.mxu0 0.0
    %4671 = vmatpush1.msra.mxu0 0.0
    %4672 = vmatprep.subr.mxu0 0.0
    %4673 = vmatpush1.msra.mxu0 0.0
    %4674 = vmatprep.subr.mxu0 0.0
    %4675 = vmatpush1.msra.mxu0 0.0
    %4676 = vmatprep.subr.mxu0 0.0
    %4677 = vmatpush1.msra.mxu0 0.0
    %4678 = vmatprep.subr.mxu0 0.0
    %4679 = vmatpush1.msra.mxu0 0.0
    %4680 = vmatprep.subr.mxu0 0.0
    %4681 = vmatpush1.msra.mxu0 0.0
    %4682 = vmatprep.subr.mxu0 0.0
    %4683 = vmatpush1.msra.mxu0 0.0
    %4684 = vmatprep.subr.mxu0 0.0
    %4685 = vmatpush1.msra.mxu0 0.0
    %4686 = vmatprep.subr.mxu0 0.0
    %4687 = vmatpush1.msra.mxu0 0.0
    %4688 = vmatprep.subr.mxu0 0.0
    %4689 = vmatpush1.msra.mxu0 0.0
    %4690 = vmatprep.subr.mxu0 0.0
    %4691 = vmatpush1.msra.mxu0 0.0
    %4692 = vmatprep.subr.mxu0 0.0
    %4693 = vmatpush1.msra.mxu0 0.0
    %4694 = vmatprep.subr.mxu0 0.0
    %4695 = vmatpush1.msra.mxu0 0.0
    %4696 = vmatprep.subr.mxu0 0.0
    %4697 = vmatpush1.msra.mxu0 0.0
    %4698 = vmatprep.subr.mxu0 0.0
    %4699 = vmatpush1.msra.mxu0 0.0
    %4700 = vmatprep.subr.mxu0 0.0
    %4701 = vmatpush1.msra.mxu0 0.0
    %4702 = vmatprep.subr.mxu0 0.0
    %4703 = vmatpush1.msra.mxu0 0.0
    %4704 = vmatprep.subr.mxu0 0.0
    %4705 = vmatpush1.msra.mxu0 0.0
    %4706 = vmatprep.subr.mxu0 0.0
    %4707 = vmatpush1.msra.mxu0 0.0
    %4708 = vmatprep.subr.mxu0 0.0
    %4709 = vmatpush1.msra.mxu0 0.0
    %4710 = vmatprep.subr.mxu0 0.0
    %4711 = vmatpush1.msra.mxu0 0.0
    %4712 = vmatprep.subr.mxu0 0.0
    %4713 = vmatpush1.msra.mxu0 0.0
    %4714 = vmatprep.subr.mxu0 0.0
    %4715 = vmatpush1.msra.mxu0 0.0
    %4716 = vmatprep.subr.mxu0 0.0
    %4717 = vmatpush1.msra.mxu0 0.0
    %4718 = vmatprep.mubr.f32.mxu0 0.0
    %4719 = vmatmul.mubr.f32.gmra.mrb[0].mxu0 %v1408
    %v4720 = vpop.f32.mrb[0].mxu0
    %v4721 = vadd.f32 0.0, %v4720
    %v4722 = vpop.f32.mrb[0].mxu0
    %4723 = vdwg.mxu0
    %v4724 = vmax.f32 %v4653, %v4721
    %v4726 = vsel %vm393, %v4724, 0
    %4728 = vmatprep.subr.mxu0 0.0
    %4729 = vmatpush1.msra.mxu0 %v1481
    %4730 = vmatprep.subr.mxu0 0.0
    %4731 = vmatpush1.msra.mxu0 %v1482
    %4732 = vmatprep.subr.mxu0 0.0
    %4733 = vmatpush1.msra.mxu0 %v1483
    %4734 = vmatprep.subr.mxu0 0.0
    %4735 = vmatpush1.msra.mxu0 %v1484
    %4736 = vmatprep.subr.mxu0 0.0
    %4737 = vmatpush1.msra.mxu0 0.0
    %4738 = vmatprep.subr.mxu0 0.0
    %4739 = vmatpush1.msra.mxu0 0.0
    %4740 = vmatprep.subr.mxu0 0.0
    %4741 = vmatpush1.msra.mxu0 0.0
    %4742 = vmatprep.subr.mxu0 0.0
    %4743 = vmatpush1.msra.mxu0 0.0
    %4744 = vmatprep.subr.mxu0 0.0
    %4745 = vmatpush1.msra.mxu0 0.0
    %4746 = vmatprep.subr.mxu0 0.0
    %4747 = vmatpush1.msra.mxu0 0.0
    %4748 = vmatprep.subr.mxu0 0.0
    %4749 = vmatpush1.msra.mxu0 0.0
    %4750 = vmatprep.subr.mxu0 0.0
    %4751 = vmatpush1.msra.mxu0 0.0
    %4752 = vmatprep.subr.mxu0 0.0
    %4753 = vmatpush1.msra.mxu0 0.0
    %4754 = vmatprep.subr.mxu0 0.0
    %4755 = vmatpush1.msra.mxu0 0.0
    %4756 = vmatprep.subr.mxu0 0.0
    %4757 = vmatpush1.msra.mxu0 0.0
    %4758 = vmatprep.subr.mxu0 0.0
    %4759 = vmatpush1.msra.mxu0 0.0
    %4760 = vmatprep.subr.mxu0 0.0
    %4761 = vmatpush1.msra.mxu0 0.0
    %4762 = vmatprep.subr.mxu0 0.0
    %4763 = vmatpush1.msra.mxu0 0.0
    %4764 = vmatprep.subr.mxu0 0.0
    %4765 = vmatpush1.msra.mxu0 0.0
    %4766 = vmatprep.subr.mxu0 0.0
    %4767 = vmatpush1.msra.mxu0 0.0
    %4768 = vmatprep.subr.mxu0 0.0
    %4769 = vmatpush1.msra.mxu0 0.0
    %4770 = vmatprep.subr.mxu0 0.0
    %4771 = vmatpush1.msra.mxu0 0.0
    %4772 = vmatprep.subr.mxu0 0.0
    %4773 = vmatpush1.msra.mxu0 0.0
    %4774 = vmatprep.subr.mxu0 0.0
    %4775 = vmatpush1.msra.mxu0 0.0
    %4776 = vmatprep.subr.mxu0 0.0
    %4777 = vmatpush1.msra.mxu0 0.0
    %4778 = vmatprep.subr.mxu0 0.0
    %4779 = vmatpush1.msra.mxu0 0.0
    %4780 = vmatprep.subr.mxu0 0.0
    %4781 = vmatpush1.msra.mxu0 0.0
    %4782 = vmatprep.subr.mxu0 0.0
    %4783 = vmatpush1.msra.mxu0 0.0
    %4784 = vmatprep.subr.mxu0 0.0
    %4785 = vmatpush1.msra.mxu0 0.0
    %4786 = vmatprep.subr.mxu0 0.0
    %4787 = vmatpush1.msra.mxu0 0.0
    %4788 = vmatprep.subr.mxu0 0.0
    %4789 = vmatpush1.msra.mxu0 0.0
    %4790 = vmatprep.subr.mxu0 0.0
    %4791 = vmatpush1.msra.mxu0 0.0
    %4792 = vmatprep.mubr.f32.mxu0 0.0
    %4793 = vmatmul.mubr.f32.gmra.mrb[0].mxu0 %v4726
    %v4794 = vpop.f32.mrb[0].mxu0
    %v4795 = vadd.f32 %v1494, %v4794
    %v4796 = vpop.f32.mrb[0].mxu0
    %4797 = vdwg.mxu0
    %v4799 = vrot.slane %v4795, 4
    %v4801 = vsel %vm134, %v4795, %v4799
    %v4802 = vmul.f32 %v4801, %v1593
    %v4803 = vmul.f32 %v4801, %v1595
    %v4804 = vmul.f32 %v4801, %v1601
    %v4805 = vmul.f32 %v4801, %v1603
    %4808 = vrot.lane.b32.xlu0 %v4802, 96
    %v4809 = vpop.permute.xlu0 %4808
    %4810 = vrot.lane.b32.xlu0 %v4803, 96
    %v4811 = vpop.permute.xlu0 %4810
    %v4812 = vsel %vm393, %v4795, 0
    %v4814 = vsel %vm393, %v4809, 0
    %v4816 = vsel %vm393, %v4811, 0
    %4818 = vmatprep.subr.mxu0 0.0
    %4819 = vmatpush1.xpose.msra.mxu0 %v4814
    %4820 = vmatprep.subr.mxu0 0.0
    %4821 = vmatpush1.xpose.msra.mxu0 %v4816
    %4822 = vmatprep.subr.mxu0 0.0
    %4823 = vmatpush1.xpose.msra.mxu0 0.0
    %4824 = vmatprep.subr.mxu0 0.0
    %4825 = vmatpush1.xpose.msra.mxu0 0.0
    %4826 = vmatprep.subr.mxu0 0.0
    %4827 = vmatpush1.xpose.msra.mxu0 0.0
    %4828 = vmatprep.subr.mxu0 0.0
    %4829 = vmatpush1.xpose.msra.mxu0 0.0
    %4830 = vmatprep.subr.mxu0 0.0
    %4831 = vmatpush1.xpose.msra.mxu0 0.0
    %4832 = vmatprep.subr.mxu0 0.0
    %4833 = vmatpush1.xpose.msra.mxu0 0.0
    %4834 = vmatprep.subr.mxu0 0.0
    %4835 = vmatpush1.xpose.msra.mxu0 0.0
    %4836 = vmatprep.subr.mxu0 0.0
    %4837 = vmatpush1.xpose.msra.mxu0 0.0
    %4838 = vmatprep.subr.mxu0 0.0
    %4839 = vmatpush1.xpose.msra.mxu0 0.0
    %4840 = vmatprep.subr.mxu0 0.0
    %4841 = vmatpush1.xpose.msra.mxu0 0.0
    %4842 = vmatprep.subr.mxu0 0.0
    %4843 = vmatpush1.xpose.msra.mxu0 0.0
    %4844 = vmatprep.subr.mxu0 0.0
    %4845 = vmatpush1.xpose.msra.mxu0 0.0
    %4846 = vmatprep.subr.mxu0 0.0
    %4847 = vmatpush1.xpose.msra.mxu0 0.0
    %4848 = vmatprep.subr.mxu0 0.0
    %4849 = vmatpush1.xpose.msra.mxu0 0.0
    %4850 = vmatprep.subr.mxu0 0.0
    %4851 = vmatpush1.xpose.msra.mxu0 0.0
    %4852 = vmatprep.subr.mxu0 0.0
    %4853 = vmatpush1.xpose.msra.mxu0 0.0
    %4854 = vmatprep.subr.mxu0 0.0
    %4855 = vmatpush1.xpose.msra.mxu0 0.0
    %4856 = vmatprep.subr.mxu0 0.0
    %4857 = vmatpush1.xpose.msra.mxu0 0.0
    %4858 = vmatprep.subr.mxu0 0.0
    %4859 = vmatpush1.xpose.msra.mxu0 0.0
    %4860 = vmatprep.subr.mxu0 0.0
    %4861 = vmatpush1.xpose.msra.mxu0 0.0
    %4862 = vmatprep.subr.mxu0 0.0
    %4863 = vmatpush1.xpose.msra.mxu0 0.0
    %4864 = vmatprep.subr.mxu0 0.0
    %4865 = vmatpush1.xpose.msra.mxu0 0.0
    %4866 = vmatprep.subr.mxu0 0.0
    %4867 = vmatpush1.xpose.msra.mxu0 0.0
    %4868 = vmatprep.subr.mxu0 0.0
    %4869 = vmatpush1.xpose.msra.mxu0 0.0
    %4870 = vmatprep.subr.mxu0 0.0
    %4871 = vmatpush1.xpose.msra.mxu0 0.0
    %4872 = vmatprep.subr.mxu0 0.0
    %4873 = vmatpush1.xpose.msra.mxu0 0.0
    %4874 = vmatprep.subr.mxu0 0.0
    %4875 = vmatpush1.xpose.msra.mxu0 0.0
    %4876 = vmatprep.subr.mxu0 0.0
    %4877 = vmatpush1.xpose.msra.mxu0 0.0
    %4878 = vmatprep.subr.mxu0 0.0
    %4879 = vmatpush1.xpose.msra.mxu0 0.0
    %4880 = vmatprep.subr.mxu0 0.0
    %4881 = vmatpush1.xpose.msra.mxu0 0.0
    %4882 = vmatprep.mubr.f32.mxu0 0.0
    %4883 = vmatmul.mubr.f32.gmra.mrb[0].mxu0 %v4812
    %v4884 = vpop.f32.mrb[0].mxu0
    %v4885 = vadd.f32 0.0, %v4884
    %v4886 = vpop.f32.mrb[0].mxu0
    %4887 = vdwg.mxu0
    %v4888 = vmul.f32 %v4885, 0.35355338
    %v4889 = vsel %vm1691, %v4888, -inf
    %4890 = vmax.xlane.f32.xlu0 %v4889
    %v4891 = vpop.xlane.xlu0 %4890
    %v4892 = vsub.f32 %v4888, %v4891
    %v4893 = vmul.f32 %v4892, 1.442695
    %v4894 = vpow.pop %v4893
    %v4896 = vsel %vm1710, %v4894, 0
    %4898 = vmatprep.subr.mxu0 0.0
    %4899 = vmatpush1.msra.mxu0 %v1708
    %4900 = vmatprep.subr.mxu0 0.0
    %4901 = vmatpush1.msra.mxu0 %v1709
    %4902 = vmatprep.subr.mxu0 0.0
    %4903 = vmatpush1.msra.mxu0 0.0
    %4904 = vmatprep.subr.mxu0 0.0
    %4905 = vmatpush1.msra.mxu0 0.0
    %4906 = vmatprep.subr.mxu0 0.0
    %4907 = vmatpush1.msra.mxu0 0.0
    %4908 = vmatprep.subr.mxu0 0.0
    %4909 = vmatpush1.msra.mxu0 0.0
    %4910 = vmatprep.subr.mxu0 0.0
    %4911 = vmatpush1.msra.mxu0 0.0
    %4912 = vmatprep.subr.mxu0 0.0
    %4913 = vmatpush1.msra.mxu0 0.0
    %4914 = vmatprep.subr.mxu0 0.0
    %4915 = vmatpush1.msra.mxu0 0.0
    %4916 = vmatprep.subr.mxu0 0.0
    %4917 = vmatpush1.msra.mxu0 0.0
    %4918 = vmatprep.subr.mxu0 0.0
    %4919 = vmatpush1.msra.mxu0 0.0
    %4920 = vmatprep.subr.mxu0 0.0
    %4921 = vmatpush1.msra.mxu0 0.0
    %4922 = vmatprep.subr.mxu0 0.0
    %4923 = vmatpush1.msra.mxu0 0.0
    %4924 = vmatprep.subr.mxu0 0.0
    %4925 = vmatpush1.msra.mxu0 0.0
    %4926 = vmatprep.subr.mxu0 0.0
    %4927 = vmatpush1.msra.mxu0 0.0
    %4928 = vmatprep.subr.mxu0 0.0
    %4929 = vmatpush1.msra.mxu0 0.0
    %4930 = vmatprep.subr.mxu0 0.0
    %4931 = vmatpush1.msra.mxu0 0.0
    %4932 = vmatprep.subr.mxu0 0.0
    %4933 = vmatpush1.msra.mxu0 0.0
    %4934 = vmatprep.subr.mxu0 0.0
    %4935 = vmatpush1.msra.mxu0 0.0
    %4936 = vmatprep.subr.mxu0 0.0
    %4937 = vmatpush1.msra.mxu0 0.0
    %4938 = vmatprep.subr.mxu0 0.0
    %4939 = vmatpush1.msra.mxu0 0.0
    %4940 = vmatprep.subr.mxu0 0.0
    %4941 = vmatpush1.msra.mxu0 0.0
    %4942 = vmatprep.subr.mxu0 0.0
    %4943 = vmatpush1.msra.mxu0 0.0
    %4944 = vmatprep.subr.mxu0 0.0
    %4945 = vmatpush1.msra.mxu0 0.0
    %4946 = vmatprep.subr.mxu0 0.0
    %4947 = vmatpush1.msra.mxu0 0.0
    %4948 = vmatprep.subr.mxu0 0.0
    %4949 = vmatpush1.msra.mxu0 0.0
    %4950 = vmatprep.subr.mxu0 0.0
    %4951 = vmatpush1.msra.mxu0 0.0
    %4952 = vmatprep.subr.mxu0 0.0
    %4953 = vmatpush1.msra.mxu0 0.0
    %4954 = vmatprep.subr.mxu0 0.0
    %4955 = vmatpush1.msra.mxu0 0.0
    %4956 = vmatprep.subr.mxu0 0.0
    %4957 = vmatpush1.msra.mxu0 0.0
    %4958 = vmatprep.subr.mxu0 0.0
    %4959 = vmatpush1.msra.mxu0 0.0
    %4960 = vmatprep.subr.mxu0 0.0
    %4961 = vmatpush1.msra.mxu0 0.0
    %4962 = vmatprep.mubr.f32.mxu0 0.0
    %4963 = vmatmul.mubr.f32.gmra.mrb[0].mxu0 %v4896
    %v4964 = vpop.f32.mrb[0].mxu0
    %v4965 = vadd.f32 0.0, %v4964
    %v4966 = vpop.f32.mrb[0].mxu0
    %4967 = vdwg.mxu0
    %v4968 = vrcp.pop %v4965
    %v4969 = vmul.f32 %v4894, %v4968
    %4972 = vrot.lane.b32.xlu0 %v4804, 64
    %v4973 = vpop.permute.xlu0 %4972
    %4974 = vrot.lane.b32.xlu0 %v4805, 64
    %v4975 = vpop.permute.xlu0 %4974
    %v4979 = vsel %vm1710, %v4969, 0
    %4981 = vmatprep.subr.mxu0 0.0
    %4982 = vmatpush1.msra.mxu0 %v4973
    %4983 = vmatprep.subr.mxu0 0.0
    %4984 = vmatpush1.msra.mxu0 %v4975
    %4985 = vmatprep.subr.mxu0 0.0
    %4986 = vmatpush1.msra.mxu0 0.0
    %4987 = vmatprep.subr.mxu0 0.0
    %4988 = vmatpush1.msra.mxu0 0.0
    %4989 = vmatprep.subr.mxu0 0.0
    %4990 = vmatpush1.msra.mxu0 0.0
    %4991 = vmatprep.subr.mxu0 0.0
    %4992 = vmatpush1.msra.mxu0 0.0
    %4993 = vmatprep.subr.mxu0 0.0
    %4994 = vmatpush1.msra.mxu0 0.0
    %4995 = vmatprep.subr.mxu0 0.0
    %4996 = vmatpush1.msra.mxu0 0.0
    %4997 = vmatprep.subr.mxu0 0.0
    %4998 = vmatpush1.msra.mxu0 0.0
    %4999 = vmatprep.subr.mxu0 0.0
    %5000 = vmatpush1.msra.mxu0 0.0
    %5001 = vmatprep.subr.mxu0 0.0
    %5002 = vmatpush1.msra.mxu0 0.0
    %5003 = vmatprep.subr.mxu0 0.0
    %5004 = vmatpush1.msra.mxu0 0.0
    %5005 = vmatprep.subr.mxu0 0.0
    %5006 = vmatpush1.msra.mxu0 0.0
    %5007 = vmatprep.subr.mxu0 0.0
    %5008 = vmatpush1.msra.mxu0 0.0
    %5009 = vmatprep.subr.mxu0 0.0
    %5010 = vmatpush1.msra.mxu0 0.0
    %5011 = vmatprep.subr.mxu0 0.0
    %5012 = vmatpush1.msra.mxu0 0.0
    %5013 = vmatprep.subr.mxu0 0.0
    %5014 = vmatpush1.msra.mxu0 0.0
    %5015 = vmatprep.subr.mxu0 0.0
    %5016 = vmatpush1.msra.mxu0 0.0
    %5017 = vmatprep.subr.mxu0 0.0
    %5018 = vmatpush1.msra.mxu0 0.0
    %5019 = vmatprep.subr.mxu0 0.0
    %5020 = vmatpush1.msra.mxu0 0.0
    %5021 = vmatprep.subr.mxu0 0.0
    %5022 = vmatpush1.msra.mxu0 0.0
    %5023 = vmatprep.subr.mxu0 0.0
    %5024 = vmatpush1.msra.mxu0 0.0
    %5025 = vmatprep.subr.mxu0 0.0
    %5026 = vmatpush1.msra.mxu0 0.0
    %5027 = vmatprep.subr.mxu0 0.0
    %5028 = vmatpush1.msra.mxu0 0.0
    %5029 = vmatprep.subr.mxu0 0.0
    %5030 = vmatpush1.msra.mxu0 0.0
    %5031 = vmatprep.subr.mxu0 0.0
    %5032 = vmatpush1.msra.mxu0 0.0
    %5033 = vmatprep.subr.mxu0 0.0
    %5034 = vmatpush1.msra.mxu0 0.0
    %5035 = vmatprep.subr.mxu0 0.0
    %5036 = vmatpush1.msra.mxu0 0.0
    %5037 = vmatprep.subr.mxu0 0.0
    %5038 = vmatpush1.msra.mxu0 0.0
    %5039 = vmatprep.subr.mxu0 0.0
    %5040 = vmatpush1.msra.mxu0 0.0
    %5041 = vmatprep.subr.mxu0 0.0
    %5042 = vmatpush1.msra.mxu0 0.0
    %5043 = vmatprep.subr.mxu0 0.0
    %5044 = vmatpush1.msra.mxu0 0.0
    %5045 = vmatprep.mubr.f32.mxu0 0.0
    %5046 = vmatmul.mubr.f32.gmra.mrb[0].mxu0 %v4979
    %v5047 = vpop.f32.mrb[0].mxu0
    %v5048 = vadd.f32 0.0, %v5047
    %v5049 = vpop.f32.mrb[0].mxu0
    %5050 = vdwg.mxu0
    %v5052 = vsel %vm393, %v5048, 0
    %5054 = vmatprep.subr.mxu0 0.0
    %5055 = vmatpush1.msra.mxu0 %v1486
    %5056 = vmatprep.subr.mxu0 0.0
    %5057 = vmatpush1.msra.mxu0 %v1487
    %5058 = vmatprep.subr.mxu0 0.0
    %5059 = vmatpush1.msra.mxu0 %v1488
    %5060 = vmatprep.subr.mxu0 0.0
    %5061 = vmatpush1.msra.mxu0 %v1489
    %5062 = vmatprep.subr.mxu0 0.0
    %5063 = vmatpush1.msra.mxu0 0.0
    %5064 = vmatprep.subr.mxu0 0.0
    %5065 = vmatpush1.msra.mxu0 0.0
    %5066 = vmatprep.subr.mxu0 0.0
    %5067 = vmatpush1.msra.mxu0 0.0
    %5068 = vmatprep.subr.mxu0 0.0
    %5069 = vmatpush1.msra.mxu0 0.0
    %5070 = vmatprep.subr.mxu0 0.0
    %5071 = vmatpush1.msra.mxu0 0.0
    %5072 = vmatprep.subr.mxu0 0.0
    %5073 = vmatpush1.msra.mxu0 0.0
    %5074 = vmatprep.subr.mxu0 0.0
    %5075 = vmatpush1.msra.mxu0 0.0
    %5076 = vmatprep.subr.mxu0 0.0
    %5077 = vmatpush1.msra.mxu0 0.0
    %5078 = vmatprep.subr.mxu0 0.0
    %5079 = vmatpush1.msra.mxu0 0.0
    %5080 = vmatprep.subr.mxu0 0.0
    %5081 = vmatpush1.msra.mxu0 0.0
    %5082 = vmatprep.subr.mxu0 0.0
    %5083 = vmatpush1.msra.mxu0 0.0
    %5084 = vmatprep.subr.mxu0 0.0
    %5085 = vmatpush1.msra.mxu0 0.0
    %5086 = vmatprep.subr.mxu0 0.0
    %5087 = vmatpush1.msra.mxu0 0.0
    %5088 = vmatprep.subr.mxu0 0.0
    %5089 = vmatpush1.msra.mxu0 0.0
    %5090 = vmatprep.subr.mxu0 0.0
    %5091 = vmatpush1.msra.mxu0 0.0
    %5092 = vmatprep.subr.mxu0 0.0
    %5093 = vmatpush1.msra.mxu0 0.0
    %5094 = vmatprep.subr.mxu0 0.0
    %5095 = vmatpush1.msra.mxu0 0.0
    %5096 = vmatprep.subr.mxu0 0.0
    %5097 = vmatpush1.msra.mxu0 0.0
    %5098 = vmatprep.subr.mxu0 0.0
    %5099 = vmatpush1.msra.mxu0 0.0
    %5100 = vmatprep.subr.mxu0 0.0
    %5101 = vmatpush1.msra.mxu0 0.0
    %5102 = vmatprep.subr.mxu0 0.0
    %5103 = vmatpush1.msra.mxu0 0.0
    %5104 = vmatprep.subr.mxu0 0.0
    %5105 = vmatpush1.msra.mxu0 0.0
    %5106 = vmatprep.subr.mxu0 0.0
    %5107 = vmatpush1.msra.mxu0 0.0
    %5108 = vmatprep.subr.mxu0 0.0
    %5109 = vmatpush1.msra.mxu0 0.0
    %5110 = vmatprep.subr.mxu0 0.0
    %5111 = vmatpush1.msra.mxu0 0.0
    %5112 = vmatprep.subr.mxu0 0.0
    %5113 = vmatpush1.msra.mxu0 0.0
    %5114 = vmatprep.subr.mxu0 0.0
    %5115 = vmatpush1.msra.mxu0 0.0
    %5116 = vmatprep.subr.mxu0 0.0
    %5117 = vmatpush1.msra.mxu0 0.0
    %5118 = vmatprep.mubr.f32.mxu0 0.0
    %5119 = vmatmul.mubr.f32.gmra.mrb[0].mxu0 %v5052
    %v5120 = vpop.f32.mrb[0].mxu0
    %v5121 = vadd.f32 %v1870, %v5120
    %v5122 = vpop.f32.mrb[0].mxu0
    %5123 = vdwg.mxu0
    %v5124 = vadd.f32 %v4724, %v5121
    %v5125 = vsel %vm1947, %v5124, 0.0
    %5126 = vadd.xlane.f32.xlu0 %v5125
    %v5127 = vpop.xlane.xlu0 %5126
    %v5128 = vmul.f32 %v5127, %v909
    %v5129 = vsub.f32 %v5124, %v5128
    %v5130 = vmul.f32 %v5129, %v5129
    %v5131 = vsel %vm1947, %v5130, 0.0
    %5132 = vadd.xlane.f32.xlu0 %v5131
    %v5133 = vpop.xlane.xlu0 %5132
    %v5134 = vmul.f32 %v5133, %v909
    %v5135 = vadd.f32 %v5134, 1e-05
    %v5136 = vrsqrt.pop %v5135
    %v5137 = vmul.f32 %v5129, %v5136
    %v5138 = vmul.f32 %v5137, %v1964
    %v5139 = vadd.f32 %v5138, %v1969
    %v5141 = vsel %vm393, %v5139, 0
    %5143 = vmatprep.subr.mxu0 0.0
    %5144 = vmatpush1.msra.mxu0 %v1971
    %5145 = vmatprep.subr.mxu0 0.0
    %5146 = vmatpush1.msra.mxu0 %v1972
    %5147 = vmatprep.subr.mxu0 0.0
    %5148 = vmatpush1.msra.mxu0 %v1973
    %5149 = vmatprep.subr.mxu0 0.0
    %5150 = vmatpush1.msra.mxu0 %v1974
    %5151 = vmatprep.subr.mxu0 0.0
    %5152 = vmatpush1.msra.mxu0 0.0
    %5153 = vmatprep.subr.mxu0 0.0
    %5154 = vmatpush1.msra.mxu0 0.0
    %5155 = vmatprep.subr.mxu0 0.0
    %5156 = vmatpush1.msra.mxu0 0.0
    %5157 = vmatprep.subr.mxu0 0.0
    %5158 = vmatpush1.msra.mxu0 0.0
    %5159 = vmatprep.subr.mxu0 0.0
    %5160 = vmatpush1.msra.mxu0 0.0
    %5161 = vmatprep.subr.mxu0 0.0
    %5162 = vmatpush1.msra.mxu0 0.0
    %5163 = vmatprep.subr.mxu0 0.0
    %5164 = vmatpush1.msra.mxu0 0.0
    %5165 = vmatprep.subr.mxu0 0.0
    %5166 = vmatpush1.msra.mxu0 0.0
    %5167 = vmatprep.subr.mxu0 0.0
    %5168 = vmatpush1.msra.mxu0 0.0
    %5169 = vmatprep.subr.mxu0 0.0
    %5170 = vmatpush1.msra.mxu0 0.0
    %5171 = vmatprep.subr.mxu0 0.0
    %5172 = vmatpush1.msra.mxu0 0.0
    %5173 = vmatprep.subr.mxu0 0.0
    %5174 = vmatpush1.msra.mxu0 0.0
    %5175 = vmatprep.subr.mxu0 0.0
    %5176 = vmatpush1.msra.mxu0 0.0
    %5177 = vmatprep.subr.mxu0 0.0
    %5178 = vmatpush1.msra.mxu0 0.0
    %5179 = vmatprep.subr.mxu0 0.0
    %5180 = vmatpush1.msra.mxu0 0.0
    %5181 = vmatprep.subr.mxu0 0.0
    %5182 = vmatpush1.msra.mxu0 0.0
    %5183 = vmatprep.subr.mxu0 0.0
    %5184 = vmatpush1.msra.mxu0 0.0
    %5185 = vmatprep.subr.mxu0 0.0
    %5186 = vmatpush1.msra.mxu0 0.0
    %5187 = vmatprep.subr.mxu0 0.0
    %5188 = vmatpush1.msra.mxu0 0.0
    %5189 = vmatprep.subr.mxu0 0.0
    %5190 = vmatpush1.msra.mxu0 0.0
    %5191 = vmatprep.subr.mxu0 0.0
    %5192 = vmatpush1.msra.mxu0 0.0
    %5193 = vmatprep.subr.mxu0 0.0
    %5194 = vmatpush1.msra.mxu0 0.0
    %5195 = vmatprep.subr.mxu0 0.0
    %5196 = vmatpush1.msra.mxu0 0.0
    %5197 = vmatprep.subr.mxu0 0.0
    %5198 = vmatpush1.msra.mxu0 0.0
    %5199 = vmatprep.subr.mxu0 0.0
    %5200 = vmatpush1.msra.mxu0 0.0
    %5201 = vmatprep.subr.mxu0 0.0
    %5202 = vmatpush1.msra.mxu0 0.0
    %5203 = vmatprep.subr.mxu0 0.0
    %5204 = vmatpush1.msra.mxu0 0.0
    %5205 = vmatprep.subr.mxu0 0.0
    %5206 = vmatpush1.msra.mxu0 0.0
    %5207 = vmatprep.mubr.f32.mxu0 0.0
    %5208 = vmatmul.mubr.f32.gmra.mrb[0].mxu0 %v5141
    %v5209 = vpop.f32.mrb[0].mxu0
    %v5210 = vadd.f32 %v1979, %v5209
    %v5211 = vpop.f32.mrb[0].mxu0
    %5212 = vdwg.mxu0
    %v5213 = vmax.f32 %v5210, 0.0
    %v5215 = vsel %vm1026, %v5213, 0
    %5217 = vmatprep.subr.mxu0 0.0
    %5218 = vmatpush1.msra.mxu0 %v2054
    %5219 = vmatprep.subr.mxu0 0.0
    %5220 = vmatpush1.msra.mxu0 %v2055
    %5221 = vmatprep.subr.mxu0 0.0
    %5222 = vmatpush1.msra.mxu0 %v2056
    %5223 = vmatprep.subr.mxu0 0.0
    %5224 = vmatpush1.msra.mxu0 %v2057
    %5225 = vmatprep.subr.mxu0 0.0
    %5226 = vmatpush1.msra.mxu0 %v2058
    %5227 = vmatprep.subr.mxu0 0.0
    %5228 = vmatpush1.msra.mxu0 %v2059
    %5229 = vmatprep.subr.mxu0 0.0
    %5230 = vmatpush1.msra.mxu0 %v2060
    %5231 = vmatprep.subr.mxu0 0.0
    %5232 = vmatpush1.msra.mxu0 %v2061
    %5233 = vmatprep.subr.mxu0 0.0
    %5234 = vmatpush1.msra.mxu0 0.0
    %5235 = vmatprep.subr.mxu0 0.0
    %5236 = vmatpush1.msra.mxu0 0.0
    %5237 = vmatprep.subr.mxu0 0.0
    %5238 = vmatpush1.msra.mxu0 0.0
    %5239 = vmatprep.subr.mxu0 0.0
    %5240 = vmatpush1.msra.mxu0 0.0
    %5241 = vmatprep.subr.mxu0 0.0
    %5242 = vmatpush1.msra.mxu0 0.0
    %5243 = vmatprep.subr.mxu0 0.0
    %5244 = vmatpush1.msra.mxu0 0.0
    %5245 = vmatprep.subr.mxu0 0.0
    %5246 = vmatpush1.msra.mxu0 0.0
    %5247 = vmatprep.subr.mxu0 0.0
    %5248 = vmatpush1.msra.mxu0 0.0
    %5249 = vmatprep.subr.mxu0 0.0
    %5250 = vmatpush1.msra.mxu0 0.0
    %5251 = vmatprep.subr.mxu0 0.0
    %5252 = vmatpush1.msra.mxu0 0.0
    %5253 = vmatprep.subr.mxu0 0.0
    %5254 = vmatpush1.msra.mxu0 0.0
    %5255 = vmatprep.subr.mxu0 0.0
    %5256 = vmatpush1.msra.mxu0 0.0
    %5257 = vmatprep.subr.mxu0 0.0
    %5258 = vmatpush1.msra.mxu0 0.0
    %5259 = vmatprep.subr.mxu0 0.0
    %5260 = vmatpush1.msra.mxu0 0.0
    %5261 = vmatprep.subr.mxu0 0.0
    %5262 = vmatpush1.msra.mxu0 0.0
    %5263 = vmatprep.subr.mxu0 0.0
    %5264 = vmatpush1.msra.mxu0 0.0
    %5265 = vmatprep.subr.mxu0 0.0
    %5266 = vmatpush1.msra.mxu0 0.0
    %5267 = vmatprep.subr.mxu0 0.0
    %5268 = vmatpush1.msra.mxu0 0.0
    %5269 = vmatprep.subr.mxu0 0.0
    %5270 = vmatpush1.msra.mxu0 0.0
    %5271 = vmatprep.subr.mxu0 0.0
    %5272 = vmatpush1.msra.mxu0 0.0
    %5273 = vmatprep.subr.mxu0 0.0
    %5274 = vmatpush1.msra.mxu0 0.0
    %5275 = vmatprep.subr.mxu0 0.0
    %5276 = vmatpush1.msra.mxu0 0.0
    %5277 = vmatprep.subr.mxu0 0.0
    %5278 = vmatpush1.msra.mxu0 0.0
    %5279 = vmatprep.subr.mxu0 0.0
    %5280 = vmatpush1.msra.mxu0 0.0
    %5281 = vmatprep.mubr.f32.mxu0 0.0
    %5282 = vmatmul.mubr.f32.gmra.mrb[0].mxu0 %v5215
    %v5283 = vpop.f32.mrb[0].mxu0
    %v5284 = vadd.f32 %v2066, %v5283
    %v5285 = vpop.f32.mrb[0].mxu0
    %5286 = vdwg.mxu0
    %v5287 = vadd.f32 %v5139, %v5284
    %v5288 = vsel %vm1947, %v5287, 0.0
    %5289 = vadd.xlane.f32.xlu0 %v5288
    %v5290 = vpop.xlane.xlu0 %5289
    %v5291 = vmul.f32 %v5290, %v909
    %v5292 = vsub.f32 %v5287, %v5291
    %v5293 = vmul.f32 %v5292, %v5292
    %v5294 = vsel %vm1947, %v5293, 0.0
    %5295 = vadd.xlane.f32.xlu0 %v5294
    %v5296 = vpop.xlane.xlu0 %5295
    %v5297 = vmul.f32 %v5296, %v909
    %v5298 = vadd.f32 %v5297, 1e-05
    %v5299 = vrsqrt.pop %v5298
    %v5300 = vmul.f32 %v5292, %v5299
    %v5301 = vmul.f32 %v5300, %v2159
    %v5302 = vadd.f32 %v5301, %v2164
    %v5303 = vsel %vm1947, %v5302, 0.0
    %5304 = vadd.xlane.f32.xlu0 %v5303
    %v5305 = vpop.xlane.xlu0 %5304
    %v5306 = vmul.f32 %v5305, %v909
    %v5307 = vsub.f32 %v5302, %v5306
    %v5308 = vmul.f32 %v5307, %v5307
    %v5309 = vsel %vm1947, %v5308, 0.0
    %5310 = vadd.xlane.f32.xlu0 %v5309
    %v5311 = vpop.xlane.xlu0 %5310
    %v5312 = vmul.f32 %v5311, %v909
    %v5313 = vadd.f32 %v5312, 1e-05
    %v5314 = vrsqrt.pop %v5313
    %v5315 = vmul.f32 %v5307, %v5314
    %v5316 = vmul.f32 %v5315, %v2184
    %v5317 = vadd.f32 %v5316, %v2189
    %v5319 = vsel %vm393, %v3822, 0
    %5321 = vmatprep.subr.mxu0 0.0
    %5322 = vmatpush1.msra.mxu0 %v2191
    %5323 = vmatprep.subr.mxu0 0.0
    %5324 = vmatpush1.msra.mxu0 %v2192
    %5325 = vmatprep.subr.mxu0 0.0
    %5326 = vmatpush1.msra.mxu0 %v2193
    %5327 = vmatprep.subr.mxu0 0.0
    %5328 = vmatpush1.msra.mxu0 %v2194
    %5329 = vmatprep.subr.mxu0 0.0
    %5330 = vmatpush1.msra.mxu0 0.0
    %5331 = vmatprep.subr.mxu0 0.0
    %5332 = vmatpush1.msra.mxu0 0.0
    %5333 = vmatprep.subr.mxu0 0.0
    %5334 = vmatpush1.msra.mxu0 0.0
    %5335 = vmatprep.subr.mxu0 0.0
    %5336 = vmatpush1.msra.mxu0 0.0
    %5337 = vmatprep.subr.mxu0 0.0
    %5338 = vmatpush1.msra.mxu0 0.0
    %5339 = vmatprep.subr.mxu0 0.0
    %5340 = vmatpush1.msra.mxu0 0.0
    %5341 = vmatprep.subr.mxu0 0.0
    %5342 = vmatpush1.msra.mxu0 0.0
    %5343 = vmatprep.subr.mxu0 0.0
    %5344 = vmatpush1.msra.mxu0 0.0
    %5345 = vmatprep.subr.mxu0 0.0
    %5346 = vmatpush1.msra.mxu0 0.0
    %5347 = vmatprep.subr.mxu0 0.0
    %5348 = vmatpush1.msra.mxu0 0.0
    %5349 = vmatprep.subr.mxu0 0.0
    %5350 = vmatpush1.msra.mxu0 0.0
    %5351 = vmatprep.subr.mxu0 0.0
    %5352 = vmatpush1.msra.mxu0 0.0
    %5353 = vmatprep.subr.mxu0 0.0
    %5354 = vmatpush1.msra.mxu0 0.0
    %5355 = vmatprep.subr.mxu0 0.0
    %5356 = vmatpush1.msra.mxu0 0.0
    %5357 = vmatprep.subr.mxu0 0.0
    %5358 = vmatpush1.msra.mxu0 0.0
    %5359 = vmatprep.subr.mxu0 0.0
    %5360 = vmatpush1.msra.mxu0 0.0
    %5361 = vmatprep.subr.mxu0 0.0
    %5362 = vmatpush1.msra.mxu0 0.0
    %5363 = vmatprep.subr.mxu0 0.0
    %5364 = vmatpush1.msra.mxu0 0.0
    %5365 = vmatprep.subr.mxu0 0.0
    %5366 = vmatpush1.msra.mxu0 0.0
    %5367 = vmatprep.subr.mxu0 0.0
    %5368 = vmatpush1.msra.mxu0 0.0
    %5369 = vmatprep.subr.mxu0 0.0
    %5370 = vmatpush1.msra.mxu0 0.0
    %5371 = vmatprep.subr.mxu0 0.0
    %5372 = vmatpush1.msra.mxu0 0.0
    %5373 = vmatprep.subr.mxu0 0.0
    %5374 = vmatpush1.msra.mxu0 0.0
    %5375 = vmatprep.subr.mxu0 0.0
    %5376 = vmatpush1.msra.mxu0 0.0
    %5377 = vmatprep.subr.mxu0 0.0
    %5378 = vmatpush1.msra.mxu0 0.0
    %5379 = vmatprep.subr.mxu0 0.0
    %5380 = vmatpush1.msra.mxu0 0.0
    %5381 = vmatprep.subr.mxu0 0.0
    %5382 = vmatpush1.msra.mxu0 0.0
    %5383 = vmatprep.subr.mxu0 0.0
    %5384 = vmatpush1.msra.mxu0 0.0
    %5385 = vmatprep.mubr.f32.mxu0 0.0
    %5386 = vmatmul.mubr.f32.gmra.mrb[0].mxu0 %v5319
    %v5387 = vpop.f32.mrb[0].mxu0
    %v5388 = vadd.f32 %v2204, %v5387
    %v5389 = vpop.f32.mrb[0].mxu0
    %5390 = vdwg.mxu0
    %v5391 = vmul.f32 %v5388, %v531
    %v5392 = vmul.f32 %v5388, %v533
    %v5393 = vmul.f32 %v5388, %v535
    %v5394 = vmul.f32 %v5388, %v537
    %v5395 = vmul.f32 %v5388, %v547
    %v5396 = vmul.f32 %v5388, %v549
    %v5397 = vmul.f32 %v5388, %v551
    %v5398 = vmul.f32 %v5388, %v553
    %5403 = vrot.lane.b32.xlu0 %v5391, 96
    %v5404 = vpop.permute.xlu0 %5403
    %5405 = vrot.lane.b32.xlu0 %v5392, 96
    %v5406 = vpop.permute.xlu0 %5405
    %5407 = vrot.lane.b32.xlu0 %v5393, 96
    %v5408 = vpop.permute.xlu0 %5407
    %5409 = vrot.lane.b32.xlu0 %v5394, 96
    %v5410 = vpop.permute.xlu0 %5409
    %v5412 = vsel %vm393, %v5388, 0
    %v5414 = vsel %vm393, %v5404, 0
    %v5416 = vsel %vm393, %v5406, 0
    %v5418 = vsel %vm393, %v5408, 0
    %v5420 = vsel %vm393, %v5410, 0
    %5422 = vmatprep.subr.mxu0 0.0
    %5423 = vmatpush1.xpose.msra.mxu0 %v5414
    %5424 = vmatprep.subr.mxu0 0.0
    %5425 = vmatpush1.xpose.msra.mxu0 %v5416
    %5426 = vmatprep.subr.mxu0 0.0
    %5427 = vmatpush1.xpose.msra.mxu0 %v5418
    %5428 = vmatprep.subr.mxu0 0.0
    %5429 = vmatpush1.xpose.msra.mxu0 %v5420
    %5430 = vmatprep.subr.mxu0 0.0
    %5431 = vmatpush1.xpose.msra.mxu0 0.0
    %5432 = vmatprep.subr.mxu0 0.0
    %5433 = vmatpush1.xpose.msra.mxu0 0.0
    %5434 = vmatprep.subr.mxu0 0.0
    %5435 = vmatpush1.xpose.msra.mxu0 0.0
    %5436 = vmatprep.subr.mxu0 0.0
    %5437 = vmatpush1.xpose.msra.mxu0 0.0
    %5438 = vmatprep.subr.mxu0 0.0
    %5439 = vmatpush1.xpose.msra.mxu0 0.0
    %5440 = vmatprep.subr.mxu0 0.0
    %5441 = vmatpush1.xpose.msra.mxu0 0.0
    %5442 = vmatprep.subr.mxu0 0.0
    %5443 = vmatpush1.xpose.msra.mxu0 0.0
    %5444 = vmatprep.subr.mxu0 0.0
    %5445 = vmatpush1.xpose.msra.mxu0 0.0
    %5446 = vmatprep.subr.mxu0 0.0
    %5447 = vmatpush1.xpose.msra.mxu0 0.0
    %5448 = vmatprep.subr.mxu0 0.0
    %5449 = vmatpush1.xpose.msra.mxu0 0.0
    %5450 = vmatprep.subr.mxu0 0.0
    %5451 = vmatpush1.xpose.msra.mxu0 0.0
    %5452 = vmatprep.subr.mxu0 0.0
    %5453 = vmatpush1.xpose.msra.mxu0 0.0
    %5454 = vmatprep.subr.mxu0 0.0
    %5455 = vmatpush1.xpose.msra.mxu0 0.0
    %5456 = vmatprep.subr.mxu0 0.0
    %5457 = vmatpush1.xpose.msra.mxu0 0.0
    %5458 = vmatprep.subr.mxu0 0.0
    %5459 = vmatpush1.xpose.msra.mxu0 0.0
    %5460 = vmatprep.subr.mxu0 0.0
    %5461 = vmatpush1.xpose.msra.mxu0 0.0
    %5462 = vmatprep.subr.mxu0 0.0
    %5463 = vmatpush1.xpose.msra.mxu0 0.0
    %5464 = vmatprep.subr.mxu0 0.0
    %5465 = vmatpush1.xpose.msra.mxu0 0.0
    %5466 = vmatprep.subr.mxu0 0.0
    %5467 = vmatpush1.xpose.msra.mxu0 0.0
    %5468 = vmatprep.subr.mxu0 0.0
    %5469 = vmatpush1.xpose.msra.mxu0 0.0
    %5470 = vmatprep.subr.mxu0 0.0
    %5471 = vmatpush1.xpose.msra.mxu0 0.0
    %5472 = vmatprep.subr.mxu0 0.0
    %5473 = vmatpush1.xpose.msra.mxu0 0.0
    %5474 = vmatprep.subr.mxu0 0.0
    %5475 = vmatpush1.xpose.msra.mxu0 0.0
    %5476 = vmatprep.subr.mxu0 0.0
    %5477 = vmatpush1.xpose.msra.mxu0 0.0
    %5478 = vmatprep.subr.mxu0 0.0
    %5479 = vmatpush1.xpose.msra.mxu0 0.0
    %5480 = vmatprep.subr.mxu0 0.0
    %5481 = vmatpush1.xpose.msra.mxu0 0.0
    %5482 = vmatprep.subr.mxu0 0.0
    %5483 = vmatpush1.xpose.msra.mxu0 0.0
    %5484 = vmatprep.subr.mxu0 0.0
    %5485 = vmatpush1.xpose.msra.mxu0 0.0
    %5486 = vmatprep.mubr.f32.mxu0 0.0
    %5487 = vmatmul.mubr.f32.gmra.mrb[0].mxu0 %v5412
    %v5488 = vpop.f32.mrb[0].mxu0
    %v5489 = vadd.f32 0.0, %v5488
    %v5490 = vpop.f32.mrb[0].mxu0
    %5491 = vdwg.mxu0
    %v5492 = vmul.f32 %v5489, 0.35355338
    %v5493 = vsel %vm2390, -1e+30, %v5492
    %v5494 = vsel %vm393, %v5493, -inf
    %5495 = vmax.xlane.f32.xlu0 %v5494
    %v5496 = vpop.xlane.xlu0 %5495
    %v5497 = vsub.f32 %v5493, %v5496
    %v5498 = vmul.f32 %v5497, 1.442695
    %v5499 = vpow.pop %v5498
    %v5501 = vsel %vm393, %v5499, 0
    %5503 = vmatprep.subr.mxu0 0.0
    %5504 = vmatpush1.msra.mxu0 %v522
    %5505 = vmatprep.subr.mxu0 0.0
    %5506 = vmatpush1.msra.mxu0 %v523
    %5507 = vmatprep.subr.mxu0 0.0
    %5508 = vmatpush1.msra.mxu0 %v524
    %5509 = vmatprep.subr.mxu0 0.0
    %5510 = vmatpush1.msra.mxu0 %v525
    %5511 = vmatprep.subr.mxu0 0.0
    %5512 = vmatpush1.msra.mxu0 0.0
    %5513 = vmatprep.subr.mxu0 0.0
    %5514 = vmatpush1.msra.mxu0 0.0
    %5515 = vmatprep.subr.mxu0 0.0
    %5516 = vmatpush1.msra.mxu0 0.0
    %5517 = vmatprep.subr.mxu0 0.0
    %5518 = vmatpush1.msra.mxu0 0.0
    %5519 = vmatprep.subr.mxu0 0.0
    %5520 = vmatpush1.msra.mxu0 0.0
    %5521 = vmatprep.subr.mxu0 0.0
    %5522 = vmatpush1.msra.mxu0 0.0
    %5523 = vmatprep.subr.mxu0 0.0
    %5524 = vmatpush1.msra.mxu0 0.0
    %5525 = vmatprep.subr.mxu0 0.0
    %5526 = vmatpush1.msra.mxu0 0.0
    %5527 = vmatprep.subr.mxu0 0.0
    %5528 = vmatpush1.msra.mxu0 0.0
    %5529 = vmatprep.subr.mxu0 0.0
    %5530 = vmatpush1.msra.mxu0 0.0
    %5531 = vmatprep.subr.mxu0 0.0
    %5532 = vmatpush1.msra.mxu0 0.0
    %5533 = vmatprep.subr.mxu0 0.0
    %5534 = vmatpush1.msra.mxu0 0.0
    %5535 = vmatprep.subr.mxu0 0.0
    %5536 = vmatpush1.msra.mxu0 0.0
    %5537 = vmatprep.subr.mxu0 0.0
    %5538 = vmatpush1.msra.mxu0 0.0
    %5539 = vmatprep.subr.mxu0 0.0
    %5540 = vmatpush1.msra.mxu0 0.0
    %5541 = vmatprep.subr.mxu0 0.0
    %5542 = vmatpush1.msra.mxu0 0.0
    %5543 = vmatprep.subr.mxu0 0.0
    %5544 = vmatpush1.msra.mxu0 0.0
    %5545 = vmatprep.subr.mxu0 0.0
    %5546 = vmatpush1.msra.mxu0 0.0
    %5547 = vmatprep.subr.mxu0 0.0
    %5548 = vmatpush1.msra.mxu0 0.0
    %5549 = vmatprep.subr.mxu0 0.0
    %5550 = vmatpush1.msra.mxu0 0.0
    %5551 = vmatprep.subr.mxu0 0.0
    %5552 = vmatpush1.msra.mxu0 0.0
    %5553 = vmatprep.subr.mxu0 0.0
    %5554 = vmatpush1.msra.mxu0 0.0
    %5555 = vmatprep.subr.mxu0 0.0
    %5556 = vmatpush1.msra.mxu0 0.0
    %5557 = vmatprep.subr.mxu0 0.0
    %5558 = vmatpush1.msra.mxu0 0.0
    %5559 = vmatprep.subr.mxu0 0.0
    %5560 = vmatpush1.msra.mxu0 0.0
    %5561 = vmatprep.subr.mxu0 0.0
    %5562 = vmatpush1.msra.mxu0 0.0
    %5563 = vmatprep.subr.mxu0 0.0
    %5564 = vmatpush1.msra.mxu0 0.0
    %5565 = vmatprep.subr.mxu0 0.0
    %5566 = vmatpush1.msra.mxu0 0.0
    %5567 = vmatprep.mubr.f32.mxu0 0.0
    %5568 = vmatmul.mubr.f32.gmra.mrb[0].mxu0 %v5501
    %v5569 = vpop.f32.mrb[0].mxu0
    %v5570 = vadd.f32 0.0, %v5569
    %v5571 = vpop.f32.mrb[0].mxu0
    %5572 = vdwg.mxu0
    %v5573 = vrcp.pop %v5570
    %v5574 = vmul.f32 %v5499, %v5573
    %5579 = vrot.lane.b32.xlu0 %v5395, 64
    %v5580 = vpop.permute.xlu0 %5579
    %5581 = vrot.lane.b32.xlu0 %v5396, 64
    %v5582 = vpop.permute.xlu0 %5581
    %5583 = vrot.lane.b32.xlu0 %v5397, 64
    %v5584 = vpop.permute.xlu0 %5583
    %5585 = vrot.lane.b32.xlu0 %v5398, 64
    %v5586 = vpop.permute.xlu0 %5585
    %v5592 = vsel %vm393, %v5574, 0
    %5594 = vmatprep.subr.mxu0 0.0
    %5595 = vmatpush1.msra.mxu0 %v5580
    %5596 = vmatprep.subr.mxu0 0.0
    %5597 = vmatpush1.msra.mxu0 %v5582
    %5598 = vmatprep.subr.mxu0 0.0
    %5599 = vmatpush1.msra.mxu0 %v5584
    %5600 = vmatprep.subr.mxu0 0.0
    %5601 = vmatpush1.msra.mxu0 %v5586
    %5602 = vmatprep.subr.mxu0 0.0
    %5603 = vmatpush1.msra.mxu0 0.0
    %5604 = vmatprep.subr.mxu0 0.0
    %5605 = vmatpush1.msra.mxu0 0.0
    %5606 = vmatprep.subr.mxu0 0.0
    %5607 = vmatpush1.msra.mxu0 0.0
    %5608 = vmatprep.subr.mxu0 0.0
    %5609 = vmatpush1.msra.mxu0 0.0
    %5610 = vmatprep.subr.mxu0 0.0
    %5611 = vmatpush1.msra.mxu0 0.0
    %5612 = vmatprep.subr.mxu0 0.0
    %5613 = vmatpush1.msra.mxu0 0.0
    %5614 = vmatprep.subr.mxu0 0.0
    %5615 = vmatpush1.msra.mxu0 0.0
    %5616 = vmatprep.subr.mxu0 0.0
    %5617 = vmatpush1.msra.mxu0 0.0
    %5618 = vmatprep.subr.mxu0 0.0
    %5619 = vmatpush1.msra.mxu0 0.0
    %5620 = vmatprep.subr.mxu0 0.0
    %5621 = vmatpush1.msra.mxu0 0.0
    %5622 = vmatprep.subr.mxu0 0.0
    %5623 = vmatpush1.msra.mxu0 0.0
    %5624 = vmatprep.subr.mxu0 0.0
    %5625 = vmatpush1.msra.mxu0 0.0
    %5626 = vmatprep.subr.mxu0 0.0
    %5627 = vmatpush1.msra.mxu0 0.0
    %5628 = vmatprep.subr.mxu0 0.0
    %5629 = vmatpush1.msra.mxu0 0.0
    %5630 = vmatprep.subr.mxu0 0.0
    %5631 = vmatpush1.msra.mxu0 0.0
    %5632 = vmatprep.subr.mxu0 0.0
    %5633 = vmatpush1.msra.mxu0 0.0
    %5634 = vmatprep.subr.mxu0 0.0
    %5635 = vmatpush1.msra.mxu0 0.0
    %5636 = vmatprep.subr.mxu0 0.0
    %5637 = vmatpush1.msra.mxu0 0.0
    %5638 = vmatprep.subr.mxu0 0.0
    %5639 = vmatpush1.msra.mxu0 0.0
    %5640 = vmatprep.subr.mxu0 0.0
    %5641 = vmatpush1.msra.mxu0 0.0
    %5642 = vmatprep.subr.mxu0 0.0
    %5643 = vmatpush1.msra.mxu0 0.0
    %5644 = vmatprep.subr.mxu0 0.0
    %5645 = vmatpush1.msra.mxu0 0.0
    %5646 = vmatprep.subr.mxu0 0.0
    %5647 = vmatpush1.msra.mxu0 0.0
    %5648 = vmatprep.subr.mxu0 0.0
    %5649 = vmatpush1.msra.mxu0 0.0
    %5650 = vmatprep.subr.mxu0 0.0
    %5651 = vmatpush1.msra.mxu0 0.0
    %5652 = vmatprep.subr.mxu0 0.0
    %5653 = vmatpush1.msra.mxu0 0.0
    %5654 = vmatprep.subr.mxu0 0.0
    %5655 = vmatpush1.msra.mxu0 0.0
    %5656 = vmatprep.subr.mxu0 0.0
    %5657 = vmatpush1.msra.mxu0 0.0
    %5658 = vmatprep.mubr.f32.mxu0 0.0
    %5659 = vmatmul.mubr.f32.gmra.mrb[0].mxu0 %v5592
    %v5660 = vpop.f32.mrb[0].mxu0
    %v5661 = vadd.f32 0.0, %v5660
    %v5662 = vpop.f32.mrb[0].mxu0
    %5663 = vdwg.mxu0
    %v5665 = vsel %vm393, %v5661, 0
    %5667 = vmatprep.subr.mxu0 0.0
    %5668 = vmatpush1.msra.mxu0 %v2196
    %5669 = vmatprep.subr.mxu0 0.0
    %5670 = vmatpush1.msra.mxu0 %v2197
    %5671 = vmatprep.subr.mxu0 0.0
    %5672 = vmatpush1.msra.mxu0 %v2198
    %5673 = vmatprep.subr.mxu0 0.0
    %5674 = vmatpush1.msra.mxu0 %v2199
    %5675 = vmatprep.subr.mxu0 0.0
    %5676 = vmatpush1.msra.mxu0 0.0
    %5677 = vmatprep.subr.mxu0 0.0
    %5678 = vmatpush1.msra.mxu0 0.0
    %5679 = vmatprep.subr.mxu0 0.0
    %5680 = vmatpush1.msra.mxu0 0.0
    %5681 = vmatprep.subr.mxu0 0.0
    %5682 = vmatpush1.msra.mxu0 0.0
    %5683 = vmatprep.subr.mxu0 0.0
    %5684 = vmatpush1.msra.mxu0 0.0
    %5685 = vmatprep.subr.mxu0 0.0
    %5686 = vmatpush1.msra.mxu0 0.0
    %5687 = vmatprep.subr.mxu0 0.0
    %5688 = vmatpush1.msra.mxu0 0.0
    %5689 = vmatprep.subr.mxu0 0.0
    %5690 = vmatpush1.msra.mxu0 0.0
    %5691 = vmatprep.subr.mxu0 0.0
    %5692 = vmatpush1.msra.mxu0 0.0
    %5693 = vmatprep.subr.mxu0 0.0
    %5694 = vmatpush1.msra.mxu0 0.0
    %5695 = vmatprep.subr.mxu0 0.0
    %5696 = vmatpush1.msra.mxu0 0.0
    %5697 = vmatprep.subr.mxu0 0.0
    %5698 = vmatpush1.msra.mxu0 0.0
    %5699 = vmatprep.subr.mxu0 0.0
    %5700 = vmatpush1.msra.mxu0 0.0
    %5701 = vmatprep.subr.mxu0 0.0
    %5702 = vmatpush1.msra.mxu0 0.0
    %5703 = vmatprep.subr.mxu0 0.0
    %5704 = vmatpush1.msra.mxu0 0.0
    %5705 = vmatprep.subr.mxu0 0.0
    %5706 = vmatpush1.msra.mxu0 0.0
    %5707 = vmatprep.subr.mxu0 0.0
    %5708 = vmatpush1.msra.mxu0 0.0
    %5709 = vmatprep.subr.mxu0 0.0
    %5710 = vmatpush1.msra.mxu0 0.0
    %5711 = vmatprep.subr.mxu0 0.0
    %5712 = vmatpush1.msra.mxu0 0.0
    %5713 = vmatprep.subr.mxu0 0.0
    %5714 = vmatpush1.msra.mxu0 0.0
    %5715 = vmatprep.subr.mxu0 0.0
    %5716 = vmatpush1.msra.mxu0 0.0
    %5717 = vmatprep.subr.mxu0 0.0
    %5718 = vmatpush1.msra.mxu0 0.0
    %5719 = vmatprep.subr.mxu0 0.0
    %5720 = vmatpush1.msra.mxu0 0.0
    %5721 = vmatprep.subr.mxu0 0.0
    %5722 = vmatpush1.msra.mxu0 0.0
    %5723 = vmatprep.subr.mxu0 0.0
    %5724 = vmatpush1.msra.mxu0 0.0
    %5725 = vmatprep.subr.mxu0 0.0
    %5726 = vmatpush1.msra.mxu0 0.0
    %5727 = vmatprep.subr.mxu0 0.0
    %5728 = vmatpush1.msra.mxu0 0.0
    %5729 = vmatprep.subr.mxu0 0.0
    %5730 = vmatpush1.msra.mxu0 0.0
    %5731 = vmatprep.mubr.f32.mxu0 0.0
    %5732 = vmatmul.mubr.f32.gmra.mrb[0].mxu0 %v5665
    %v5733 = vpop.f32.mrb[0].mxu0
    %v5734 = vadd.f32 %v2565, %v5733
    %v5735 = vpop.f32.mrb[0].mxu0
    %5736 = vdwg.mxu0
    %v5737 = vadd.f32 %v3822, %v5734
    %v5738 = vsel %vm393, %v5737, 0.0
    %5739 = vadd.xlane.f32.xlu0 %v5738
    %v5740 = vpop.xlane.xlu0 %5739
    %v5741 = vmul.f32 %v5740, %v909
    %v5742 = vsub.f32 %v5737, %v5741
    %v5743 = vmul.f32 %v5742, %v5742
    %v5744 = vsel %vm393, %v5743, 0.0
    %5745 = vadd.xlane.f32.xlu0 %v5744
    %v5746 = vpop.xlane.xlu0 %5745
    %v5747 = vmul.f32 %v5746, %v909
    %v5748 = vadd.f32 %v5747, 1e-05
    %v5749 = vrsqrt.pop %v5748
    %v5750 = vmul.f32 %v5742, %v5749
    %v5751 = vmul.f32 %v5750, %v2658
    %v5752 = vadd.f32 %v5751, %v2663
    %v5754 = vsel %vm393, %v5752, 0
    %5756 = vmatprep.subr.mxu0 0.0
    %5757 = vmatpush1.msra.mxu0 %v2665
    %5758 = vmatprep.subr.mxu0 0.0
    %5759 = vmatpush1.msra.mxu0 %v2666
    %5760 = vmatprep.subr.mxu0 0.0
    %5761 = vmatpush1.msra.mxu0 %v2667
    %5762 = vmatprep.subr.mxu0 0.0
    %5763 = vmatpush1.msra.mxu0 %v2668
    %5764 = vmatprep.subr.mxu0 0.0
    %5765 = vmatpush1.msra.mxu0 0.0
    %5766 = vmatprep.subr.mxu0 0.0
    %5767 = vmatpush1.msra.mxu0 0.0
    %5768 = vmatprep.subr.mxu0 0.0
    %5769 = vmatpush1.msra.mxu0 0.0
    %5770 = vmatprep.subr.mxu0 0.0
    %5771 = vmatpush1.msra.mxu0 0.0
    %5772 = vmatprep.subr.mxu0 0.0
    %5773 = vmatpush1.msra.mxu0 0.0
    %5774 = vmatprep.subr.mxu0 0.0
    %5775 = vmatpush1.msra.mxu0 0.0
    %5776 = vmatprep.subr.mxu0 0.0
    %5777 = vmatpush1.msra.mxu0 0.0
    %5778 = vmatprep.subr.mxu0 0.0
    %5779 = vmatpush1.msra.mxu0 0.0
    %5780 = vmatprep.subr.mxu0 0.0
    %5781 = vmatpush1.msra.mxu0 0.0
    %5782 = vmatprep.subr.mxu0 0.0
    %5783 = vmatpush1.msra.mxu0 0.0
    %5784 = vmatprep.subr.mxu0 0.0
    %5785 = vmatpush1.msra.mxu0 0.0
    %5786 = vmatprep.subr.mxu0 0.0
    %5787 = vmatpush1.msra.mxu0 0.0
    %5788 = vmatprep.subr.mxu0 0.0
    %5789 = vmatpush1.msra.mxu0 0.0
    %5790 = vmatprep.subr.mxu0 0.0
    %5791 = vmatpush1.msra.mxu0 0.0
    %5792 = vmatprep.subr.mxu0 0.0
    %5793 = vmatpush1.msra.mxu0 0.0
    %5794 = vmatprep.subr.mxu0 0.0
    %5795 = vmatpush1.msra.mxu0 0.0
    %5796 = vmatprep.subr.mxu0 0.0
    %5797 = vmatpush1.msra.mxu0 0.0
    %5798 = vmatprep.subr.mxu0 0.0
    %5799 = vmatpush1.msra.mxu0 0.0
    %5800 = vmatprep.subr.mxu0 0.0
    %5801 = vmatpush1.msra.mxu0 0.0
    %5802 = vmatprep.subr.mxu0 0.0
    %5803 = vmatpush1.msra.mxu0 0.0
    %5804 = vmatprep.subr.mxu0 0.0
    %5805 = vmatpush1.msra.mxu0 0.0
    %5806 = vmatprep.subr.mxu0 0.0
    %5807 = vmatpush1.msra.mxu0 0.0
    %5808 = vmatprep.subr.mxu0 0.0
    %5809 = vmatpush1.msra.mxu0 0.0
    %5810 = vmatprep.subr.mxu0 0.0
    %5811 = vmatpush1.msra.mxu0 0.0
    %5812 = vmatprep.subr.mxu0 0.0
    %5813 = vmatpush1.msra.mxu0 0.0
    %5814 = vmatprep.subr.mxu0 0.0
    %5815 = vmatpush1.msra.mxu0 0.0
    %5816 = vmatprep.subr.mxu0 0.0
    %5817 = vmatpush1.msra.mxu0 0.0
    %5818 = vmatprep.subr.mxu0 0.0
    %5819 = vmatpush1.msra.mxu0 0.0
    %5820 = vmatprep.mubr.f32.mxu0 0.0
    %5821 = vmatmul.mubr.f32.gmra.mrb[0].mxu0 %v5754
    %v5822 = vpop.f32.mrb[0].mxu0
    %v5823 = vadd.f32 %v2678, %v5822
    %v5824 = vpop.f32.mrb[0].mxu0
    %5825 = vdwg.mxu0
    %v5827 = vsel %vm393, %v5317, 0
    %5829 = vmatprep.subr.mxu0 0.0
    %5830 = vmatpush1.msra.mxu0 %v2757
    %5831 = vmatprep.subr.mxu0 0.0
    %5832 = vmatpush1.msra.mxu0 %v2759
    %5833 = vmatprep.subr.mxu0 0.0
    %5834 = vmatpush1.msra.mxu0 %v2761
    %5835 = vmatprep.subr.mxu0 0.0
    %5836 = vmatpush1.msra.mxu0 %v2763
    %5837 = vmatprep.subr.mxu0 0.0
    %5838 = vmatpush1.msra.mxu0 0.0
    %5839 = vmatprep.subr.mxu0 0.0
    %5840 = vmatpush1.msra.mxu0 0.0
    %5841 = vmatprep.subr.mxu0 0.0
    %5842 = vmatpush1.msra.mxu0 0.0
    %5843 = vmatprep.subr.mxu0 0.0
    %5844 = vmatpush1.msra.mxu0 0.0
    %5845 = vmatprep.subr.mxu0 0.0
    %5846 = vmatpush1.msra.mxu0 0.0
    %5847 = vmatprep.subr.mxu0 0.0
    %5848 = vmatpush1.msra.mxu0 0.0
    %5849 = vmatprep.subr.mxu0 0.0
    %5850 = vmatpush1.msra.mxu0 0.0
    %5851 = vmatprep.subr.mxu0 0.0
    %5852 = vmatpush1.msra.mxu0 0.0
    %5853 = vmatprep.subr.mxu0 0.0
    %5854 = vmatpush1.msra.mxu0 0.0
    %5855 = vmatprep.subr.mxu0 0.0
    %5856 = vmatpush1.msra.mxu0 0.0
    %5857 = vmatprep.subr.mxu0 0.0
    %5858 = vmatpush1.msra.mxu0 0.0
    %5859 = vmatprep.subr.mxu0 0.0
    %5860 = vmatpush1.msra.mxu0 0.0
    %5861 = vmatprep.subr.mxu0 0.0
    %5862 = vmatpush1.msra.mxu0 0.0
    %5863 = vmatprep.subr.mxu0 0.0
    %5864 = vmatpush1.msra.mxu0 0.0
    %5865 = vmatprep.subr.mxu0 0.0
    %5866 = vmatpush1.msra.mxu0 0.0
    %5867 = vmatprep.subr.mxu0 0.0
    %5868 = vmatpush1.msra.mxu0 0.0
    %5869 = vmatprep.subr.mxu0 0.0
    %5870 = vmatpush1.msra.mxu0 0.0
    %5871 = vmatprep.subr.mxu0 0.0
    %5872 = vmatpush1.msra.mxu0 0.0
    %5873 = vmatprep.subr.mxu0 0.0
    %5874 = vmatpush1.msra.mxu0 0.0
    %5875 = vmatprep.subr.mxu0 0.0
    %5876 = vmatpush1.msra.mxu0 0.0
    %5877 = vmatprep.subr.mxu0 0.0
    %5878 = vmatpush1.msra.mxu0 0.0
    %5879 = vmatprep.subr.mxu0 0.0
    %5880 = vmatpush1.msra.mxu0 0.0
    %5881 = vmatprep.subr.mxu0 0.0
    %5882 = vmatpush1.msra.mxu0 0.0
    %5883 = vmatprep.subr.mxu0 0.0
    %5884 = vmatpush1.msra.mxu0 0.0
    %5885 = vmatprep.subr.mxu0 0.0
    %5886 = vmatpush1.msra.mxu0 0.0
    %5887 = vmatprep.subr.mxu0 0.0
    %5888 = vmatpush1.msra.mxu0 0.0
    %5889 = vmatprep.subr.mxu0 0.0
    %5890 = vmatpush1.msra.mxu0 0.0
    %5891 = vmatprep.subr.mxu0 0.0
    %5892 = vmatpush1.msra.mxu0 0.0
    %5893 = vmatprep.mubr.f32.mxu0 0.0
    %5894 = vmatmul.mubr.f32.gmra.mrb[0].mxu0 %v5827
    %v5895 = vpop.f32.mrb[0].mxu0
    %v5896 = vadd.f32 %v2770, %v5895
    %v5897 = vpop.f32.mrb[0].mxu0
    %5898 = vdwg.mxu0
    %v5900 = vrot.slane %v5896, 4
    %v5902 = vsel %vm134, %v5896, %v5900
    %v5903 = vmul.f32 %v5902, %v1584
    %v5904 = vmul.f32 %v5902, %v1585
    %v5905 = vmul.f32 %v5902, %v1593
    %v5906 = vmul.f32 %v5902, %v1595
    %v5908 = vsel %vm393, %v5823, 0
    %v5911 = vsel %vm393, %v5903, 0
    %v5914 = vsel %vm393, %v5904, 0
    %5916 = vmatprep.subr.mxu0 0.0
    %5917 = vmatpush1.xpose.msra.mxu0 %v5911
    %5918 = vmatprep.subr.mxu0 0.0
    %5919 = vmatpush1.xpose.msra.mxu0 %v5914
    %5920 = vmatprep.subr.mxu0 0.0
    %5921 = vmatpush1.xpose.msra.mxu0 0.0
    %5922 = vmatprep.subr.mxu0 0.0
    %5923 = vmatpush1.xpose.msra.mxu0 0.0
    %5924 = vmatprep.subr.mxu0 0.0
    %5925 = vmatpush1.xpose.msra.mxu0 0.0
    %5926 = vmatprep.subr.mxu0 0.0
    %5927 = vmatpush1.xpose.msra.mxu0 0.0
    %5928 = vmatprep.subr.mxu0 0.0
    %5929 = vmatpush1.xpose.msra.mxu0 0.0
    %5930 = vmatprep.subr.mxu0 0.0
    %5931 = vmatpush1.xpose.msra.mxu0 0.0
    %5932 = vmatprep.subr.mxu0 0.0
    %5933 = vmatpush1.xpose.msra.mxu0 0.0
    %5934 = vmatprep.subr.mxu0 0.0
    %5935 = vmatpush1.xpose.msra.mxu0 0.0
    %5936 = vmatprep.subr.mxu0 0.0
    %5937 = vmatpush1.xpose.msra.mxu0 0.0
    %5938 = vmatprep.subr.mxu0 0.0
    %5939 = vmatpush1.xpose.msra.mxu0 0.0
    %5940 = vmatprep.subr.mxu0 0.0
    %5941 = vmatpush1.xpose.msra.mxu0 0.0
    %5942 = vmatprep.subr.mxu0 0.0
    %5943 = vmatpush1.xpose.msra.mxu0 0.0
    %5944 = vmatprep.subr.mxu0 0.0
    %5945 = vmatpush1.xpose.msra.mxu0 0.0
    %5946 = vmatprep.subr.mxu0 0.0
    %5947 = vmatpush1.xpose.msra.mxu0 0.0
    %5948 = vmatprep.subr.mxu0 0.0
    %5949 = vmatpush1.xpose.msra.mxu0 0.0
    %5950 = vmatprep.subr.mxu0 0.0
    %5951 = vmatpush1.xpose.msra.mxu0 0.0
    %5952 = vmatprep.subr.mxu0 0.0
    %5953 = vmatpush1.xpose.msra.mxu0 0.0
    %5954 = vmatprep.subr.mxu0 0.0
    %5955 = vmatpush1.xpose.msra.mxu0 0.0
    %5956 = vmatprep.subr.mxu0 0.0
    %5957 = vmatpush1.xpose.msra.mxu0 0.0
    %5958 = vmatprep.subr.mxu0 0.0
    %5959 = vmatpush1.xpose.msra.mxu0 0.0
    %5960 = vmatprep.subr.mxu0 0.0
    %5961 = vmatpush1.xpose.msra.mxu0 0.0
    %5962 = vmatprep.subr.mxu0 0.0
    %5963 = vmatpush1.xpose.msra.mxu0 0.0
    %5964 = vmatprep.subr.mxu0 0.0
    %5965 = vmatpush1.xpose.msra.mxu0 0.0
    %5966 = vmatprep.subr.mxu0 0.0
    %5967 = vmatpush1.xpose.msra.mxu0 0.0
    %5968 = vmatprep.subr.mxu0 0.0
    %5969 = vmatpush1.xpose.msra.mxu0 0.0
    %5970 = vmatprep.subr.mxu0 0.0
    %5971 = vmatpush1.xpose.msra.mxu0 0.0
    %5972 = vmatprep.subr.mxu0 0.0
    %5973 = vmatpush1.xpose.msra.mxu0 0.0
    %5974 = vmatprep.subr.mxu0 0.0
    %5975 = vmatpush1.xpose.msra.mxu0 0.0
    %5976 = vmatprep.subr.mxu0 0.0
    %5977 = vmatpush1.xpose.msra.mxu0 0.0
    %5978 = vmatprep.subr.mxu0 0.0
    %5979 = vmatpush1.xpose.msra.mxu0 0.0
    %5980 = vmatprep.mubr.f32.mxu0 0.0
    %5981 = vmatmul.mubr.f32.gmra.mrb[0].mxu0 %v5908
    %v5982 = vpop.f32.mrb[0].mxu0
    %v5983 = vadd.f32 0.0, %v5982
    %v5984 = vpop.f32.mrb[0].mxu0
    %5985 = vdwg.mxu0
    %v5986 = vmul.f32 %v5983, 0.35355338
    %v5987 = vsel %vm1710, %v5986, -inf
    %5988 = vmax.xlane.f32.xlu0 %v5987
    %v5989 = vpop.xlane.xlu0 %5988
    %v5990 = vsub.f32 %v5986, %v5989
    %v5991 = vmul.f32 %v5990, 1.442695
    %v5992 = vpow.pop %v5991
    %v5994 = vsel %vm1710, %v5992, 0
    %5996 = vmatprep.subr.mxu0 0.0
    %5997 = vmatpush1.msra.mxu0 %v1708
    %5998 = vmatprep.subr.mxu0 0.0
    %5999 = vmatpush1.msra.mxu0 %v1709
    %6000 = vmatprep.subr.mxu0 0.0
    %6001 = vmatpush1.msra.mxu0 0.0
    %6002 = vmatprep.subr.mxu0 0.0
    %6003 = vmatpush1.msra.mxu0 0.0
    %6004 = vmatprep.subr.mxu0 0.0
    %6005 = vmatpush1.msra.mxu0 0.0
    %6006 = vmatprep.subr.mxu0 0.0
    %6007 = vmatpush1.msra.mxu0 0.0
    %6008 = vmatprep.subr.mxu0 0.0
    %6009 = vmatpush1.msra.mxu0 0.0
    %6010 = vmatprep.subr.mxu0 0.0
    %6011 = vmatpush1.msra.mxu0 0.0
    %6012 = vmatprep.subr.mxu0 0.0
    %6013 = vmatpush1.msra.mxu0 0.0
    %6014 = vmatprep.subr.mxu0 0.0
    %6015 = vmatpush1.msra.mxu0 0.0
    %6016 = vmatprep.subr.mxu0 0.0
    %6017 = vmatpush1.msra.mxu0 0.0
    %6018 = vmatprep.subr.mxu0 0.0
    %6019 = vmatpush1.msra.mxu0 0.0
    %6020 = vmatprep.subr.mxu0 0.0
    %6021 = vmatpush1.msra.mxu0 0.0
    %6022 = vmatprep.subr.mxu0 0.0
    %6023 = vmatpush1.msra.mxu0 0.0
    %6024 = vmatprep.subr.mxu0 0.0
    %6025 = vmatpush1.msra.mxu0 0.0
    %6026 = vmatprep.subr.mxu0 0.0
    %6027 = vmatpush1.msra.mxu0 0.0
    %6028 = vmatprep.subr.mxu0 0.0
    %6029 = vmatpush1.msra.mxu0 0.0
    %6030 = vmatprep.subr.mxu0 0.0
    %6031 = vmatpush1.msra.mxu0 0.0
    %6032 = vmatprep.subr.mxu0 0.0
    %6033 = vmatpush1.msra.mxu0 0.0
    %6034 = vmatprep.subr.mxu0 0.0
    %6035 = vmatpush1.msra.mxu0 0.0
    %6036 = vmatprep.subr.mxu0 0.0
    %6037 = vmatpush1.msra.mxu0 0.0
    %6038 = vmatprep.subr.mxu0 0.0
    %6039 = vmatpush1.msra.mxu0 0.0
    %6040 = vmatprep.subr.mxu0 0.0
    %6041 = vmatpush1.msra.mxu0 0.0
    %6042 = vmatprep.subr.mxu0 0.0
    %6043 = vmatpush1.msra.mxu0 0.0
    %6044 = vmatprep.subr.mxu0 0.0
    %6045 = vmatpush1.msra.mxu0 0.0
    %6046 = vmatprep.subr.mxu0 0.0
    %6047 = vmatpush1.msra.mxu0 0.0
    %6048 = vmatprep.subr.mxu0 0.0
    %6049 = vmatpush1.msra.mxu0 0.0
    %6050 = vmatprep.subr.mxu0 0.0
    %6051 = vmatpush1.msra.mxu0 0.0
    %6052 = vmatprep.subr.mxu0 0.0
    %6053 = vmatpush1.msra.mxu0 0.0
    %6054 = vmatprep.subr.mxu0 0.0
    %6055 = vmatpush1.msra.mxu0 0.0
    %6056 = vmatprep.subr.mxu0 0.0
    %6057 = vmatpush1.msra.mxu0 0.0
    %6058 = vmatprep.subr.mxu0 0.0
    %6059 = vmatpush1.msra.mxu0 0.0
    %6060 = vmatprep.mubr.f32.mxu0 0.0
    %6061 = vmatmul.mubr.f32.gmra.mrb[0].mxu0 %v5994
    %v6062 = vpop.f32.mrb[0].mxu0
    %v6063 = vadd.f32 0.0, %v6062
    %v6064 = vpop.f32.mrb[0].mxu0
    %6065 = vdwg.mxu0
    %v6066 = vrcp.pop %v6063
    %v6067 = vmul.f32 %v5992, %v6066
    %6070 = vrot.lane.b32.xlu0 %v5905, 96
    %v6071 = vpop.permute.xlu0 %6070
    %6072 = vrot.lane.b32.xlu0 %v5906, 96
    %v6073 = vpop.permute.xlu0 %6072
    %v6077 = vsel %vm1710, %v6067, 0
    %6079 = vmatprep.subr.mxu0 0.0
    %6080 = vmatpush1.msra.mxu0 %v6071
    %6081 = vmatprep.subr.mxu0 0.0
    %6082 = vmatpush1.msra.mxu0 %v6073
    %6083 = vmatprep.subr.mxu0 0.0
    %6084 = vmatpush1.msra.mxu0 0.0
    %6085 = vmatprep.subr.mxu0 0.0
    %6086 = vmatpush1.msra.mxu0 0.0
    %6087 = vmatprep.subr.mxu0 0.0
    %6088 = vmatpush1.msra.mxu0 0.0
    %6089 = vmatprep.subr.mxu0 0.0
    %6090 = vmatpush1.msra.mxu0 0.0
    %6091 = vmatprep.subr.mxu0 0.0
    %6092 = vmatpush1.msra.mxu0 0.0
    %6093 = vmatprep.subr.mxu0 0.0
    %6094 = vmatpush1.msra.mxu0 0.0
    %6095 = vmatprep.subr.mxu0 0.0
    %6096 = vmatpush1.msra.mxu0 0.0
    %6097 = vmatprep.subr.mxu0 0.0
    %6098 = vmatpush1.msra.mxu0 0.0
    %6099 = vmatprep.subr.mxu0 0.0
    %6100 = vmatpush1.msra.mxu0 0.0
    %6101 = vmatprep.subr.mxu0 0.0
    %6102 = vmatpush1.msra.mxu0 0.0
    %6103 = vmatprep.subr.mxu0 0.0
    %6104 = vmatpush1.msra.mxu0 0.0
    %6105 = vmatprep.subr.mxu0 0.0
    %6106 = vmatpush1.msra.mxu0 0.0
    %6107 = vmatprep.subr.mxu0 0.0
    %6108 = vmatpush1.msra.mxu0 0.0
    %6109 = vmatprep.subr.mxu0 0.0
    %6110 = vmatpush1.msra.mxu0 0.0
    %6111 = vmatprep.subr.mxu0 0.0
    %6112 = vmatpush1.msra.mxu0 0.0
    %6113 = vmatprep.subr.mxu0 0.0
    %6114 = vmatpush1.msra.mxu0 0.0
    %6115 = vmatprep.subr.mxu0 0.0
    %6116 = vmatpush1.msra.mxu0 0.0
    %6117 = vmatprep.subr.mxu0 0.0
    %6118 = vmatpush1.msra.mxu0 0.0
    %6119 = vmatprep.subr.mxu0 0.0
    %6120 = vmatpush1.msra.mxu0 0.0
    %6121 = vmatprep.subr.mxu0 0.0
    %6122 = vmatpush1.msra.mxu0 0.0
    %6123 = vmatprep.subr.mxu0 0.0
    %6124 = vmatpush1.msra.mxu0 0.0
    %6125 = vmatprep.subr.mxu0 0.0
    %6126 = vmatpush1.msra.mxu0 0.0
    %6127 = vmatprep.subr.mxu0 0.0
    %6128 = vmatpush1.msra.mxu0 0.0
    %6129 = vmatprep.subr.mxu0 0.0
    %6130 = vmatpush1.msra.mxu0 0.0
    %6131 = vmatprep.subr.mxu0 0.0
    %6132 = vmatpush1.msra.mxu0 0.0
    %6133 = vmatprep.subr.mxu0 0.0
    %6134 = vmatpush1.msra.mxu0 0.0
    %6135 = vmatprep.subr.mxu0 0.0
    %6136 = vmatpush1.msra.mxu0 0.0
    %6137 = vmatprep.subr.mxu0 0.0
    %6138 = vmatpush1.msra.mxu0 0.0
    %6139 = vmatprep.subr.mxu0 0.0
    %6140 = vmatpush1.msra.mxu0 0.0
    %6141 = vmatprep.subr.mxu0 0.0
    %6142 = vmatpush1.msra.mxu0 0.0
    %6143 = vmatprep.mubr.f32.mxu0 0.0
    %6144 = vmatmul.mubr.f32.gmra.mrb[0].mxu0 %v6077
    %v6145 = vpop.f32.mrb[0].mxu0
    %v6146 = vadd.f32 0.0, %v6145
    %v6147 = vpop.f32.mrb[0].mxu0
    %6148 = vdwg.mxu0
    %v6150 = vsel %vm393, %v6146, 0
    %6152 = vmatprep.subr.mxu0 0.0
    %6153 = vmatpush1.msra.mxu0 %v2670
    %6154 = vmatprep.subr.mxu0 0.0
    %6155 = vmatpush1.msra.mxu0 %v2671
    %6156 = vmatprep.subr.mxu0 0.0
    %6157 = vmatpush1.msra.mxu0 %v2672
    %6158 = vmatprep.subr.mxu0 0.0
    %6159 = vmatpush1.msra.mxu0 %v2673
    %6160 = vmatprep.subr.mxu0 0.0
    %6161 = vmatpush1.msra.mxu0 0.0
    %6162 = vmatprep.subr.mxu0 0.0
    %6163 = vmatpush1.msra.mxu0 0.0
    %6164 = vmatprep.subr.mxu0 0.0
    %6165 = vmatpush1.msra.mxu0 0.0
    %6166 = vmatprep.subr.mxu0 0.0
    %6167 = vmatpush1.msra.mxu0 0.0
    %6168 = vmatprep.subr.mxu0 0.0
    %6169 = vmatpush1.msra.mxu0 0.0
    %6170 = vmatprep.subr.mxu0 0.0
    %6171 = vmatpush1.msra.mxu0 0.0
    %6172 = vmatprep.subr.mxu0 0.0
    %6173 = vmatpush1.msra.mxu0 0.0
    %6174 = vmatprep.subr.mxu0 0.0
    %6175 = vmatpush1.msra.mxu0 0.0
    %6176 = vmatprep.subr.mxu0 0.0
    %6177 = vmatpush1.msra.mxu0 0.0
    %6178 = vmatprep.subr.mxu0 0.0
    %6179 = vmatpush1.msra.mxu0 0.0
    %6180 = vmatprep.subr.mxu0 0.0
    %6181 = vmatpush1.msra.mxu0 0.0
    %6182 = vmatprep.subr.mxu0 0.0
    %6183 = vmatpush1.msra.mxu0 0.0
    %6184 = vmatprep.subr.mxu0 0.0
    %6185 = vmatpush1.msra.mxu0 0.0
    %6186 = vmatprep.subr.mxu0 0.0
    %6187 = vmatpush1.msra.mxu0 0.0
    %6188 = vmatprep.subr.mxu0 0.0
    %6189 = vmatpush1.msra.mxu0 0.0
    %6190 = vmatprep.subr.mxu0 0.0
    %6191 = vmatpush1.msra.mxu0 0.0
    %6192 = vmatprep.subr.mxu0 0.0
    %6193 = vmatpush1.msra.mxu0 0.0
    %6194 = vmatprep.subr.mxu0 0.0
    %6195 = vmatpush1.msra.mxu0 0.0
    %6196 = vmatprep.subr.mxu0 0.0
    %6197 = vmatpush1.msra.mxu0 0.0
    %6198 = vmatprep.subr.mxu0 0.0
    %6199 = vmatpush1.msra.mxu0 0.0
    %6200 = vmatprep.subr.mxu0 0.0
    %6201 = vmatpush1.msra.mxu0 0.0
    %6202 = vmatprep.subr.mxu0 0.0
    %6203 = vmatpush1.msra.mxu0 0.0
    %6204 = vmatprep.subr.mxu0 0.0
    %6205 = vmatpush1.msra.mxu0 0.0
    %6206 = vmatprep.subr.mxu0 0.0
    %6207 = vmatpush1.msra.mxu0 0.0
    %6208 = vmatprep.subr.mxu0 0.0
    %6209 = vmatpush1.msra.mxu0 0.0
    %6210 = vmatprep.subr.mxu0 0.0
    %6211 = vmatpush1.msra.mxu0 0.0
    %6212 = vmatprep.subr.mxu0 0.0
    %6213 = vmatpush1.msra.mxu0 0.0
    %6214 = vmatprep.subr.mxu0 0.0
    %6215 = vmatpush1.msra.mxu0 0.0
    %6216 = vmatprep.mubr.f32.mxu0 0.0
    %6217 = vmatmul.mubr.f32.gmra.mrb[0].mxu0 %v6150
    %v6218 = vpop.f32.mrb[0].mxu0
    %v6219 = vadd.f32 %v3098, %v6218
    %v6220 = vpop.f32.mrb[0].mxu0
    %6221 = vdwg.mxu0
    %v6222 = vadd.f32 %v5752, %v6219
    %v6223 = vsel %vm393, %v6222, 0.0
    %6224 = vadd.xlane.f32.xlu0 %v6223
    %v6225 = vpop.xlane.xlu0 %6224
    %v6226 = vmul.f32 %v6225, %v909
    %v6227 = vsub.f32 %v6222, %v6226
    %v6228 = vmul.f32 %v6227, %v6227
    %v6229 = vsel %vm393, %v6228, 0.0
    %6230 = vadd.xlane.f32.xlu0 %v6229
    %v6231 = vpop.xlane.xlu0 %6230
    %v6232 = vmul.f32 %v6231, %v909
    %v6233 = vadd.f32 %v6232, 1e-05
    %v6234 = vrsqrt.pop %v6233
    %v6235 = vmul.f32 %v6227, %v6234
    %v6236 = vmul.f32 %v6235, %v3191
    %v6237 = vadd.f32 %v6236, %v3196
    %v6239 = vsel %vm393, %v6237, 0
    %6241 = vmatprep.subr.mxu0 0.0
    %6242 = vmatpush1.msra.mxu0 %v3198
    %6243 = vmatprep.subr.mxu0 0.0
    %6244 = vmatpush1.msra.mxu0 %v3199
    %6245 = vmatprep.subr.mxu0 0.0
    %6246 = vmatpush1.msra.mxu0 %v3200
    %6247 = vmatprep.subr.mxu0 0.0
    %6248 = vmatpush1.msra.mxu0 %v3201
    %6249 = vmatprep.subr.mxu0 0.0
    %6250 = vmatpush1.msra.mxu0 0.0
    %6251 = vmatprep.subr.mxu0 0.0
    %6252 = vmatpush1.msra.mxu0 0.0
    %6253 = vmatprep.subr.mxu0 0.0
    %6254 = vmatpush1.msra.mxu0 0.0
    %6255 = vmatprep.subr.mxu0 0.0
    %6256 = vmatpush1.msra.mxu0 0.0
    %6257 = vmatprep.subr.mxu0 0.0
    %6258 = vmatpush1.msra.mxu0 0.0
    %6259 = vmatprep.subr.mxu0 0.0
    %6260 = vmatpush1.msra.mxu0 0.0
    %6261 = vmatprep.subr.mxu0 0.0
    %6262 = vmatpush1.msra.mxu0 0.0
    %6263 = vmatprep.subr.mxu0 0.0
    %6264 = vmatpush1.msra.mxu0 0.0
    %6265 = vmatprep.subr.mxu0 0.0
    %6266 = vmatpush1.msra.mxu0 0.0
    %6267 = vmatprep.subr.mxu0 0.0
    %6268 = vmatpush1.msra.mxu0 0.0
    %6269 = vmatprep.subr.mxu0 0.0
    %6270 = vmatpush1.msra.mxu0 0.0
    %6271 = vmatprep.subr.mxu0 0.0
    %6272 = vmatpush1.msra.mxu0 0.0
    %6273 = vmatprep.subr.mxu0 0.0
    %6274 = vmatpush1.msra.mxu0 0.0
    %6275 = vmatprep.subr.mxu0 0.0
    %6276 = vmatpush1.msra.mxu0 0.0
    %6277 = vmatprep.subr.mxu0 0.0
    %6278 = vmatpush1.msra.mxu0 0.0
    %6279 = vmatprep.subr.mxu0 0.0
    %6280 = vmatpush1.msra.mxu0 0.0
    %6281 = vmatprep.subr.mxu0 0.0
    %6282 = vmatpush1.msra.mxu0 0.0
    %6283 = vmatprep.subr.mxu0 0.0
    %6284 = vmatpush1.msra.mxu0 0.0
    %6285 = vmatprep.subr.mxu0 0.0
    %6286 = vmatpush1.msra.mxu0 0.0
    %6287 = vmatprep.subr.mxu0 0.0
    %6288 = vmatpush1.msra.mxu0 0.0
    %6289 = vmatprep.subr.mxu0 0.0
    %6290 = vmatpush1.msra.mxu0 0.0
    %6291 = vmatprep.subr.mxu0 0.0
    %6292 = vmatpush1.msra.mxu0 0.0
    %6293 = vmatprep.subr.mxu0 0.0
    %6294 = vmatpush1.msra.mxu0 0.0
    %6295 = vmatprep.subr.mxu0 0.0
    %6296 = vmatpush1.msra.mxu0 0.0
    %6297 = vmatprep.subr.mxu0 0.0
    %6298 = vmatpush1.msra.mxu0 0.0
    %6299 = vmatprep.subr.mxu0 0.0
    %6300 = vmatpush1.msra.mxu0 0.0
    %6301 = vmatprep.subr.mxu0 0.0
    %6302 = vmatpush1.msra.mxu0 0.0
    %6303 = vmatprep.subr.mxu0 0.0
    %6304 = vmatpush1.msra.mxu0 0.0
    %6305 = vmatprep.mubr.f32.mxu0 0.0
    %6306 = vmatmul.mubr.f32.gmra.mrb[0].mxu0 %v6239
    %v6307 = vpop.f32.mrb[0].mxu0
    %v6308 = vadd.f32 %v3206, %v6307
    %v6309 = vpop.f32.mrb[0].mxu0
    %6310 = vdwg.mxu0
    %v6311 = vmax.f32 %v6308, 0.0
    %v6313 = vsel %vm1026, %v6311, 0
    %6315 = vmatprep.subr.mxu0 0.0
    %6316 = vmatpush1.msra.mxu0 %v3281
    %6317 = vmatprep.subr.mxu0 0.0
    %6318 = vmatpush1.msra.mxu0 %v3282
    %6319 = vmatprep.subr.mxu0 0.0
    %6320 = vmatpush1.msra.mxu0 %v3283
    %6321 = vmatprep.subr.mxu0 0.0
    %6322 = vmatpush1.msra.mxu0 %v3284
    %6323 = vmatprep.subr.mxu0 0.0
    %6324 = vmatpush1.msra.mxu0 %v3285
    %6325 = vmatprep.subr.mxu0 0.0
    %6326 = vmatpush1.msra.mxu0 %v3286
    %6327 = vmatprep.subr.mxu0 0.0
    %6328 = vmatpush1.msra.mxu0 %v3287
    %6329 = vmatprep.subr.mxu0 0.0
    %6330 = vmatpush1.msra.mxu0 %v3288
    %6331 = vmatprep.subr.mxu0 0.0
    %6332 = vmatpush1.msra.mxu0 0.0
    %6333 = vmatprep.subr.mxu0 0.0
    %6334 = vmatpush1.msra.mxu0 0.0
    %6335 = vmatprep.subr.mxu0 0.0
    %6336 = vmatpush1.msra.mxu0 0.0
    %6337 = vmatprep.subr.mxu0 0.0
    %6338 = vmatpush1.msra.mxu0 0.0
    %6339 = vmatprep.subr.mxu0 0.0
    %6340 = vmatpush1.msra.mxu0 0.0
    %6341 = vmatprep.subr.mxu0 0.0
    %6342 = vmatpush1.msra.mxu0 0.0
    %6343 = vmatprep.subr.mxu0 0.0
    %6344 = vmatpush1.msra.mxu0 0.0
    %6345 = vmatprep.subr.mxu0 0.0
    %6346 = vmatpush1.msra.mxu0 0.0
    %6347 = vmatprep.subr.mxu0 0.0
    %6348 = vmatpush1.msra.mxu0 0.0
    %6349 = vmatprep.subr.mxu0 0.0
    %6350 = vmatpush1.msra.mxu0 0.0
    %6351 = vmatprep.subr.mxu0 0.0
    %6352 = vmatpush1.msra.mxu0 0.0
    %6353 = vmatprep.subr.mxu0 0.0
    %6354 = vmatpush1.msra.mxu0 0.0
    %6355 = vmatprep.subr.mxu0 0.0
    %6356 = vmatpush1.msra.mxu0 0.0
    %6357 = vmatprep.subr.mxu0 0.0
    %6358 = vmatpush1.msra.mxu0 0.0
    %6359 = vmatprep.subr.mxu0 0.0
    %6360 = vmatpush1.msra.mxu0 0.0
    %6361 = vmatprep.subr.mxu0 0.0
    %6362 = vmatpush1.msra.mxu0 0.0
    %6363 = vmatprep.subr.mxu0 0.0
    %6364 = vmatpush1.msra.mxu0 0.0
    %6365 = vmatprep.subr.mxu0 0.0
    %6366 = vmatpush1.msra.mxu0 0.0
    %6367 = vmatprep.subr.mxu0 0.0
    %6368 = vmatpush1.msra.mxu0 0.0
    %6369 = vmatprep.subr.mxu0 0.0
    %6370 = vmatpush1.msra.mxu0 0.0
    %6371 = vmatprep.subr.mxu0 0.0
    %6372 = vmatpush1.msra.mxu0 0.0
    %6373 = vmatprep.subr.mxu0 0.0
    %6374 = vmatpush1.msra.mxu0 0.0
    %6375 = vmatprep.subr.mxu0 0.0
    %6376 = vmatpush1.msra.mxu0 0.0
    %6377 = vmatprep.subr.mxu0 0.0
    %6378 = vmatpush1.msra.mxu0 0.0
    %6379 = vmatprep.mubr.f32.mxu0 0.0
    %6380 = vmatmul.mubr.f32.gmra.mrb[0].mxu0 %v6313
    %v6381 = vpop.f32.mrb[0].mxu0
    %v6382 = vadd.f32 %v3293, %v6381
    %v6383 = vpop.f32.mrb[0].mxu0
    %6384 = vdwg.mxu0
    %v6385 = vadd.f32 %v6237, %v6382
    %v6386 = vsel %vm393, %v6385, 0.0
    %6387 = vadd.xlane.f32.xlu0 %v6386
    %v6388 = vpop.xlane.xlu0 %6387
    %v6389 = vmul.f32 %v6388, %v909
    %v6390 = vsub.f32 %v6385, %v6389
    %v6391 = vmul.f32 %v6390, %v6390
    %v6392 = vsel %vm393, %v6391, 0.0
    %6393 = vadd.xlane.f32.xlu0 %v6392
    %v6394 = vpop.xlane.xlu0 %6393
    %v6395 = vmul.f32 %v6394, %v909
    %v6396 = vadd.f32 %v6395, 1e-05
    %v6397 = vrsqrt.pop %v6396
    %v6398 = vmul.f32 %v6390, %v6397
    %v6399 = vmul.f32 %v6398, %v3386
    %v6400 = vadd.f32 %v6399, %v3391
    %v6401 = vsel %vm393, %v6400, 0.0
    %6402 = vadd.xlane.f32.xlu0 %v6401
    %v6403 = vpop.xlane.xlu0 %6402
    %v6404 = vmul.f32 %v6403, %v909
    %v6405 = vsub.f32 %v6400, %v6404
    %v6406 = vmul.f32 %v6405, %v6405
    %v6407 = vsel %vm393, %v6406, 0.0
    %6408 = vadd.xlane.f32.xlu0 %v6407
    %v6409 = vpop.xlane.xlu0 %6408
    %v6410 = vmul.f32 %v6409, %v909
    %v6411 = vadd.f32 %v6410, 1e-05
    %v6412 = vrsqrt.pop %v6411
    %v6413 = vmul.f32 %v6405, %v6412
    %v6414 = vmul.f32 %v6413, %v3411
    %v6415 = vadd.f32 %v6414, %v3416
    %v6417 = vrot.slane %v6415, 4
    %v6418 = vsel %vm393, %v6417, 0
    %6420 = vmatprep.subr.mxu0 0.0
    %6421 = vmatpush1.msra.mxu0 %v3418
    %6422 = vmatprep.subr.mxu0 0.0
    %6423 = vmatpush1.msra.mxu0 %v3419
    %6424 = vmatprep.subr.mxu0 0.0
    %6425 = vmatpush1.msra.mxu0 %v3420
    %6426 = vmatprep.subr.mxu0 0.0
    %6427 = vmatpush1.msra.mxu0 %v3421
    %6428 = vmatprep.subr.mxu0 0.0
    %6429 = vmatpush1.msra.mxu0 0.0
    %6430 = vmatprep.subr.mxu0 0.0
    %6431 = vmatpush1.msra.mxu0 0.0
    %6432 = vmatprep.subr.mxu0 0.0
    %6433 = vmatpush1.msra.mxu0 0.0
    %6434 = vmatprep.subr.mxu0 0.0
    %6435 = vmatpush1.msra.mxu0 0.0
    %6436 = vmatprep.subr.mxu0 0.0
    %6437 = vmatpush1.msra.mxu0 0.0
    %6438 = vmatprep.subr.mxu0 0.0
    %6439 = vmatpush1.msra.mxu0 0.0
    %6440 = vmatprep.subr.mxu0 0.0
    %6441 = vmatpush1.msra.mxu0 0.0
    %6442 = vmatprep.subr.mxu0 0.0
    %6443 = vmatpush1.msra.mxu0 0.0
    %6444 = vmatprep.subr.mxu0 0.0
    %6445 = vmatpush1.msra.mxu0 0.0
    %6446 = vmatprep.subr.mxu0 0.0
    %6447 = vmatpush1.msra.mxu0 0.0
    %6448 = vmatprep.subr.mxu0 0.0
    %6449 = vmatpush1.msra.mxu0 0.0
    %6450 = vmatprep.subr.mxu0 0.0
    %6451 = vmatpush1.msra.mxu0 0.0
    %6452 = vmatprep.subr.mxu0 0.0
    %6453 = vmatpush1.msra.mxu0 0.0
    %6454 = vmatprep.subr.mxu0 0.0
    %6455 = vmatpush1.msra.mxu0 0.0
    %6456 = vmatprep.subr.mxu0 0.0
    %6457 = vmatpush1.msra.mxu0 0.0
    %6458 = vmatprep.subr.mxu0 0.0
    %6459 = vmatpush1.msra.mxu0 0.0
    %6460 = vmatprep.subr.mxu0 0.0
    %6461 = vmatpush1.msra.mxu0 0.0
    %6462 = vmatprep.subr.mxu0 0.0
    %6463 = vmatpush1.msra.mxu0 0.0
    %6464 = vmatprep.subr.mxu0 0.0
    %6465 = vmatpush1.msra.mxu0 0.0
    %6466 = vmatprep.subr.mxu0 0.0
    %6467 = vmatpush1.msra.mxu0 0.0
    %6468 = vmatprep.subr.mxu0 0.0
    %6469 = vmatpush1.msra.mxu0 0.0
    %6470 = vmatprep.subr.mxu0 0.0
    %6471 = vmatpush1.msra.mxu0 0.0
    %6472 = vmatprep.subr.mxu0 0.0
    %6473 = vmatpush1.msra.mxu0 0.0
    %6474 = vmatprep.subr.mxu0 0.0
    %6475 = vmatpush1.msra.mxu0 0.0
    %6476 = vmatprep.subr.mxu0 0.0
    %6477 = vmatpush1.msra.mxu0 0.0
    %6478 = vmatprep.subr.mxu0 0.0
    %6479 = vmatpush1.msra.mxu0 0.0
    %6480 = vmatprep.subr.mxu0 0.0
    %6481 = vmatpush1.msra.mxu0 0.0
    %6482 = vmatprep.subr.mxu0 0.0
    %6483 = vmatpush1.msra.mxu0 0.0
    %6484 = vmatprep.mubr.f32.mxu0 0.0
    %6485 = vmatmul.mubr.f32.gmra.mrb[0].mxu0 %v6418
    %v6486 = vpop.f32.mrb[0].mxu0
    %v6487 = vadd.f32 %v3426, %v6486
    %v6488 = vpop.f32.mrb[0].mxu0
    %6489 = vdwg.mxu0
    %v6491 = vrot.slane %v6487, 4
    %v6493 = vsel %vm134, %v3498, %v6491
    %6494 = vst [vmem:[#allocation5] sm:$0xff] %v6493
    // Predicated region
    $region26: #{run.1} parent=1 // pred_check
      _
    $region27: #{run.1} parent=1 // pred_check_branch
      %6496 = sbr.rel (0) target = $region29
    $region28: #{run.1} parent=1 // pred_region
      %s6498 = ssub.s32 128, 128
      %6499 = vsyncadd [#allocation4], %s6498
      %s6501 = sshll.u32 [#allocation5], 4
      %s6502 = int_to_ptr.vmem [resolvable:$true] %s6501
      %6504 = dma.vmem_to_hbm [thread:$0]  %s6502, 128, %s5, [#allocation4]
    $region29: #{run.1} parent=1 // pred_fallthru
      _
    // Predicated region
    $region30: #{run.1} parent=1 // pred_check
      _
    $region31: #{run.1} parent=1 // pred_check_branch
      %6506 = sbr.rel (0) target = $region33
    $region32: #{run.1} parent=1 // pred_region
      %6507 = dma.done [#allocation4], 128
    $region33: #{run.1} parent=1 // pred_fallthru
      _
    %6508 = vsyncpa [#allocation3], 1
    %6509 = vsyncpa [#allocation4], 1

</llo_original>
